<compile_context>
chip_gen: v7x
topology: tpu7x:2x2x1
jax: 0.10.0
libtpu: 0.0.40
codegen_flags: <defaults>
</compile_context>

<pallas_src>
import functools

import jax
import jax.numpy as jnp
from jax.experimental import pallas as pl
from jax.experimental.pallas import tpu as pltpu

N_EMBED = 32          # n_embed in the PyTorch module
BLOCK_SIZE = 8        # block_size (sequence length T)
N_HEAD = 4            # heads; head_size = n_embed // n_head = 8
LN_EPS = 1e-5         # torch.nn.LayerNorm default eps


# --------------------------------------------------------------------------
# Kernel
# --------------------------------------------------------------------------
def block_kernel(x_ref, w_ref, w2_ref, vec_ref, o_ref, *, seq_len, n_head):
    """One grid step: Bt sequences flattened to (M, C) = (Bt*T, C).

    w_ref  : (C, 8C) = [WQ' | WK' | WV' | WO | W1']   (f32 or bf16)
             where WQ' has the C**-0.5 scale and LN1 gamma folded in,
             WK'/WV' have LN1 gamma folded in, W1' has LN2 gamma folded in.
    w2_ref : (4C, C)
    vec_ref: (8, 4C) f32 rows = qkv_bias(3C) | bo(C) | b1'(4C) | b2(C) | pad
    """
    M, C = x_ref.shape
    Bt = M // seq_len
    hs = C // n_head
    cdt = w_ref.dtype                       # MXU operand dtype (f32 or bf16)

    x = x_ref[...].astype(jnp.float32)      # (M, C)

    b_qkv = vec_ref[0:1, :3 * C]            # (1, 3C)
    bo = vec_ref[1:2, :C]                   # (1, C)
    b1 = vec_ref[2:3, :]                    # (1, 4C)
    b2 = vec_ref[3:4, :C]                   # (1, C)

    # ----- LN1 (affine folded into weights): single-pass normalize -----
    mu = jnp.mean(x, axis=-1, keepdims=True)
    var = jnp.mean(x * x, axis=-1, keepdims=True) - mu * mu
    n1 = (x - mu) * jax.lax.rsqrt(var + LN_EPS)

    # Fused QKV projection (scale + LN1 affine pre-folded), f32 accumulation.
    qkv = jnp.dot(n1.astype(cdt), w_ref[:, :3 * C],
                  preferred_element_type=jnp.float32) + b_qkv   # (M, 3C)

    # Causal mask, shared by all heads.
    row = jax.lax.broadcasted_iota(jnp.int32, (seq_len, seq_len), 0)
    col = jax.lax.broadcasted_iota(jnp.int32, (seq_len, seq_len), 1)
    causal = (col <= row)[None]             # (1, T, T)

    # Stack heads along the leading batch dim -> single batched attention.
    qs, ks, vs = [], [], []
    for hd in range(n_head):
        qs.append(qkv[:, hd * hs:(hd + 1) * hs].reshape(Bt, seq_len, hs))
        ks.append(qkv[:, C + hd * hs:C + (hd + 1) * hs].reshape(Bt, seq_len, hs))
        vs.append(qkv[:, 2 * C + hd * hs:2 * C + (hd + 1) * hs]
                  .reshape(Bt, seq_len, hs))
    q = jnp.concatenate(qs, axis=0).astype(cdt)    # (H*Bt, T, hs)
    k = jnp.concatenate(ks, axis=0).astype(cdt)
    v = jnp.concatenate(vs, axis=0).astype(cdt)

    # One score einsum, one softmax, one p@v for all heads.
    s = jnp.einsum('bqd,bkd->bqk', q, k,
                   preferred_element_type=jnp.float32)          # (H*Bt, T, T)
    s = jnp.where(causal, s, -jnp.inf)
    s = s - jnp.max(s, axis=-1, keepdims=True)
    p = jnp.exp(s)                                              # f32 softmax
    p = p * pl.reciprocal(jnp.sum(p, axis=-1, keepdims=True), approx=True)

    o = jnp.einsum('bqk,bkd->bqd', p.astype(cdt), v,
                   preferred_element_type=jnp.float32)          # (H*Bt, T, hs)

    attn = jnp.concatenate(
        [o[hd * Bt:(hd + 1) * Bt].reshape(M, hs) for hd in range(n_head)],
        axis=-1)                                                # (M, C)

    # Output projection of the concatenated heads.
    sa = jnp.dot(attn.astype(cdt), w_ref[:, 3 * C:4 * C],
                 preferred_element_type=jnp.float32) + bo
    x1 = x + sa

    # ----- LN2 (affine folded into W1/b1) + MLP -----
    mu2 = jnp.mean(x1, axis=-1, keepdims=True)
    var2 = jnp.mean(x1 * x1, axis=-1, keepdims=True) - mu2 * mu2
    n2 = (x1 - mu2) * jax.lax.rsqrt(var2 + LN_EPS)

    ff = jnp.dot(n2.astype(cdt), w_ref[:, 4 * C:],
                 preferred_element_type=jnp.float32) + b1
    ff = jnp.maximum(ff, 0.0)
    ff = jnp.dot(ff.astype(cdt), w2_ref[...],
                 preferred_element_type=jnp.float32) + b2

    o_ref[...] = (x1 + ff).astype(o_ref.dtype)


# --------------------------------------------------------------------------
# Block-size planning (VMEM-budget + generation aware)
# --------------------------------------------------------------------------
def _vmem_bytes():
    try:
        info = pltpu.get_tpu_info()
        for attr in ("vmem_capacity_bytes", "vmem_bytes", "vmem_size_bytes"):
            v = getattr(info, attr, None)
            if v:
                return int(v)
    except Exception:
        pass
    return 128 << 20


def _multicore():
    """True on parts with >1 TensorCore per device (v4 megacore, v7x)."""
    try:
        d = jax.devices()[0]
        kind = str(getattr(d, "device_kind", "")).lower()
        if "v4" in kind or "v7" in kind:
            return True
        return int(getattr(d, "num_cores", 1)) > 1
    except Exception:
        return False


def _plan_blocks(B, T, C, H):
    """Return (Bt, padded_B): sequences per block and padded batch size."""
    # Live f32 intermediates per activation row (x, n1, qkv, q/k/v stacks,
    # scores, attn, x1, n2, 4C hidden, out) plus double-buffered I/O blocks,
    # with a 1.5x safety margin.
    per_row = 4 * (17 * C + 2 * H * T)
    per_row = per_row * 3 // 2 + 16 * C
    budget = min(_vmem_bytes() // 4, 24 << 20)
    rows_cap = max(T, min(budget // per_row, 8192))     # target ~2k-8k rows
    bt = max(1, min(B, rows_cap // T))
    if _multicore() and B >= 2:
        bt = min(bt, (B + 1) // 2)                      # keep >=2 grid blocks
    n_blocks = -(-B // bt)
    return bt, n_blocks * bt


# --------------------------------------------------------------------------
# pallas_call wrapper
# --------------------------------------------------------------------------
@functools.partial(jax.jit, static_argnames=("bt", "vmem_limit"))
def _run(x, w_cat, w2, vecs, *, bt, vmem_limit):
    B, T, C = x.shape
    M = bt * T
    H = N_HEAD
    hs = C // H

    x2 = x.reshape(B * T, C)        # lane-contiguous 2-D slab

    kernel = functools.partial(block_kernel, seq_len=T, n_head=H)

    grid_spec = pltpu.PrefetchScalarGridSpec(
        num_scalar_prefetch=0,
        grid=(B // bt,),
        in_specs=[
            pl.BlockSpec((M, C), lambda b: (b, 0)),              # x slab
            pl.BlockSpec(w_cat.shape, lambda b: (0, 0)),         # (C, 8C)
            pl.BlockSpec(w2.shape, lambda b: (0, 0)),            # (4C, C)
            pl.BlockSpec(vecs.shape, lambda b: (0, 0)),          # (8, 4C)
        ],
        out_specs=pl.BlockSpec((M, C), lambda b: (b, 0)),
    )

    rows = B * T
    wbytes = jnp.dtype(w_cat.dtype).itemsize
    cost = pl.CostEstimate(
        flops=int(2 * rows * C * C * 12          # qkv + wo + w1 + w2 projections
                  + 4 * rows * T * C),           # scores + p@v over all heads
        transcendentals=int(rows * H * T),       # softmax exp
        bytes_accessed=int(2 * rows * C * 4      # x in + out
                           + (8 * C * C + 4 * C * C) * wbytes
                           + 8 * 4 * C * 4),
    )

    out2 = pl.pallas_call(
        kernel,
        out_shape=jax.ShapeDtypeStruct((B * T, C), x.dtype),
        grid_spec=grid_spec,
        compiler_params=pltpu.CompilerParams(
            dimension_semantics=("parallel",),
            vmem_limit_bytes=int(vmem_limit)),
        cost_estimate=cost,
    )(x2, w_cat, w2, vecs)

    return out2.reshape(B, T, C)


def transformer_block(x, packed):
    B, T, C = x.shape
    bt, b_pad = _plan_blocks(B, T, C, N_HEAD)
    if b_pad != B:
        pad = jnp.zeros((b_pad - B, T, C), x.dtype)
        x_in = jnp.concatenate([x, pad], axis=0)
    else:
        x_in = x
    vmem_limit = min(_vmem_bytes() * 3 // 4, 96 << 20)
    out = _run(x_in, packed["w_cat"], packed["w2"], packed["vecs"],
               bt=bt, vmem_limit=vmem_limit)
    return out[:B]


# --------------------------------------------------------------------------
# Parameter packing (pack-time constant folding)
# --------------------------------------------------------------------------
def pack_params(p, weight_dtype=jnp.float32):
    """Fuse per-head weights, fold score scale + LN affines, gather biases."""
    H, C, hs = p["wq"].shape
    scale = C ** (-0.5)          # reference scales by full embed dim
    g1, be1 = p["g1"][0], p["be1"][0]
    g2, be2 = p["g2"][0], p["be2"][0]

    def cat_heads(w):            # (H, C, hs) -> (C, H*hs), head-major columns
        return jnp.transpose(w, (1, 0, 2)).reshape(C, H * hs)

    wq = cat_heads(p["wq"]) * scale          # fold score scale into Q
    wk = cat_heads(p["wk"])
    wv = cat_heads(p["wv"])

    # Fold LN1 affine: (n*g1 + be1) @ W = n @ (g1[:,None]*W) + be1 @ W
    bq, bk, bv = be1 @ wq, be1 @ wk, be1 @ wv
    wq = wq * g1[:, None]
    wk = wk * g1[:, None]
    wv = wv * g1[:, None]

    wo = p["wo"].reshape(H * hs, C)          # rows head-major

    # Fold LN2 affine into W1 / b1.
    w1 = p["w1"]
    b1 = p["b1"][0] + be2 @ w1
    w1 = w1 * g2[:, None]

    # [WQ' | WK' | WV' | WO | W1']  ->  (C, 8C)
    w_cat = jnp.concatenate([wq, wk, wv, wo, w1], axis=1)

    vecs = jnp.zeros((8, 4 * C), jnp.float32)
    vecs = vecs.at[0, :3 * C].set(jnp.concatenate([bq, bk, bv]))
    vecs = vecs.at[1, :C].set(p["bo"][0])
    vecs = vecs.at[2, :].set(b1)
    vecs = vecs.at[3, :C].set(p["b2"][0])

    return {
        "w_cat": w_cat.astype(weight_dtype),
        "w2": p["w2"].astype(weight_dtype),
        "vecs": vecs,                        # biases stay f32
    }


# --------------------------------------------------------------------------
# Pure-JAX reference (mirrors the PyTorch forward pass) + param init
# --------------------------------------------------------------------------
def reference_block(x, p):
    B, T, C = x.shape
    H = p["wq"].shape[0]

    def ln(v, g, b):
        mu = jnp.mean(v, axis=-1, keepdims=True)
        var = jnp.mean((v - mu) ** 2, axis=-1, keepdims=True)
        return (v - mu) / jnp.sqrt(var + LN_EPS) * g[0] + b[0]

    h = ln(x, p["g1"], p["be1"])
    tril = jnp.tril(jnp.ones((T, T), dtype=bool))
    outs = []
    for hd in range(H):
        q = h @ p["wq"][hd]
        k = h @ p["wk"][hd]
        v = h @ p["wv"][hd]
        wei = (q @ jnp.swapaxes(k, -2, -1)) * (C ** -0.5)
        wei = jnp.where(tril, wei, -jnp.inf)
        wei = jax.nn.softmax(wei, axis=-1)
        outs.append(wei @ v)
    sa = jnp.concatenate(outs, axis=-1)
    wo_full = jnp.concatenate([p["wo"][hd] for hd in range(H)], axis=0)
    sa = sa @ wo_full + p["bo"][0]
    x1 = x + sa
    h2 = ln(x1, p["g2"], p["be2"])
    ff = jnp.maximum(h2 @ p["w1"] + p["b1"][0], 0.0) @ p["w2"] + p["b2"][0]
    return x1 + ff


def make_params(key, n_embed=N_EMBED, n_head=N_HEAD):
    hs = n_embed // n_head
    ks = jax.random.split(key, 12)
    s = 0.02
    return {
        "wq": s * jax.random.normal(ks[0], (n_head, n_embed, hs), jnp.float32),
        "wk": s * jax.random.normal(ks[1], (n_head, n_embed, hs), jnp.float32),
        "wv": s * jax.random.normal(ks[2], (n_head, n_embed, hs), jnp.float32),
        "wo": s * jax.random.normal(ks[3], (n_head, hs, n_embed), jnp.float32),
        "bo": s * jax.random.normal(ks[4], (1, n_embed), jnp.float32),
        "w1": s * jax.random.normal(ks[5], (n_embed, 4 * n_embed), jnp.float32),
        "b1": s * jax.random.normal(ks[6], (1, 4 * n_embed), jnp.float32),
        "w2": s * jax.random.normal(ks[7], (4 * n_embed, n_embed), jnp.float32),
        "b2": s * jax.random.normal(ks[8], (1, n_embed), jnp.float32),
        "g1": 1.0 + s * jax.random.normal(ks[9], (1, n_embed), jnp.float32),
        "be1": s * jax.random.normal(ks[10], (1, n_embed), jnp.float32),
        "g2": 1.0 + s * jax.random.normal(ks[11], (1, n_embed), jnp.float32),
        "be2": jnp.zeros((1, n_embed), jnp.float32),
    }


if __name__ == "__main__":
    key = jax.random.PRNGKey(0)
    kx, kp = jax.random.split(key)

    B, T, C = 8, BLOCK_SIZE, N_EMBED
    x = jax.random.normal(kx, (B, T, C), jnp.float32)
    params = make_params(kp)
    ref = reference_block(x, params)

    # f32-stored weights: parity with the PyTorch module semantics.
    out_f32 = jax.block_until_ready(
        transformer_block(x, pack_params(params, jnp.float32)))
    assert out_f32.shape == (B, T, C)
    assert jnp.allclose(out_f32, ref, atol=5e-3, rtol=5e-3), \
        f"f32 max abs err {float(jnp.max(jnp.abs(out_f32 - ref)))}"

    # bf16-stored weights (halved weight DMA / MXU operand width), f32 accum.
    out_bf16 = jax.block_until_ready(
        transformer_block(x, pack_params(params, jnp.bfloat16)))
    assert jnp.allclose(out_bf16, ref, atol=5e-2, rtol=5e-2), \
        f"bf16 max abs err {float(jnp.max(jnp.abs(out_bf16 - ref)))}"

    # Awkward (non-divisible) batch exercises the padding path.
    x7 = x[:7]
    out7 = jax.block_until_ready(
        transformer_block(x7, pack_params(params, jnp.float32)))
    assert jnp.allclose(out7, ref[:7], atol=5e-3, rtol=5e-3), \
        f"padded-batch max abs err {float(jnp.max(jnp.abs(out7 - ref[:7])))}"

    print("KERNEL_OK")
</pallas_src>

<mosaic_0001>
module attributes {stable_mosaic.version = 11 : i64} {
  func.func @block_kernel(%arg0: i32, %arg1: memref<64x32xf32, #tpu.memory_space<vmem>>, %arg2: memref<32x256xf32, #tpu.memory_space<vmem>>, %arg3: memref<128x32xf32, #tpu.memory_space<vmem>>, %arg4: memref<8x128xf32, #tpu.memory_space<vmem>>, %arg5: memref<64x32xf32, #tpu.memory_space<vmem>>) attributes {dimension_semantics = [#tpu.dimension_semantics<parallel>], iteration_bounds = array<i64: 1>, scalar_prefetch = 0 : i64, scratch_operands = 0 : i64, tpu.core_type = #tpu.core_type<tc>, window_params = [{transform_indices = @transform_0, window_bounds = array<i64: 64, 32>}, {pipeline_mode = #tpu.pipeline_mode<synchronous>, transform_indices = @transform_1, window_bounds = array<i64: 32, 256>}, {pipeline_mode = #tpu.pipeline_mode<synchronous>, transform_indices = @transform_2, window_bounds = array<i64: 128, 32>}, {pipeline_mode = #tpu.pipeline_mode<synchronous>, transform_indices = @transform_3, window_bounds = array<i64: 8, 128>}, {transform_indices = @transform_4, window_bounds = array<i64: 64, 32>}]} {
    %c0 = arith.constant 0 : index
    %c0_0 = arith.constant 0 : index
    %0 = vector.load %arg1[%c0, %c0_0] : memref<64x32xf32, #tpu.memory_space<vmem>>, vector<64x32xf32>
    %c0_1 = arith.constant 0 : index
    %c0_2 = arith.constant 0 : index
    %1 = vector.load %arg4[%c0_1, %c0_2] : memref<8x128xf32, #tpu.memory_space<vmem>>, vector<1x96xf32>
    %c1 = arith.constant 1 : index
    %c0_3 = arith.constant 0 : index
    %2 = vector.load %arg4[%c1, %c0_3] : memref<8x128xf32, #tpu.memory_space<vmem>>, vector<1x32xf32>
    %c2 = arith.constant 2 : index
    %c0_4 = arith.constant 0 : index
    %3 = vector.load %arg4[%c2, %c0_4] : memref<8x128xf32, #tpu.memory_space<vmem>>, vector<1x128xf32>
    %c3 = arith.constant 3 : index
    %c0_5 = arith.constant 0 : index
    %4 = vector.load %arg4[%c3, %c0_5] : memref<8x128xf32, #tpu.memory_space<vmem>>, vector<1x32xf32>
    %cst = arith.constant dense<0.000000e+00> : vector<64xf32>
    %5 = vector.multi_reduction <add>, %0, %cst [1] : vector<64x32xf32> to vector<64xf32>
    %6 = vector.shape_cast %5 : vector<64xf32> to vector<64x1xf32>
    %cst_6 = arith.constant 3.200000e+01 : f32
    %7 = vector.broadcast %cst_6 : f32 to vector<64x1xf32>
    %8 = arith.divf %6, %7 : vector<64x1xf32>
    %9 = arith.mulf %0, %0 : vector<64x32xf32>
    %cst_7 = arith.constant dense<0.000000e+00> : vector<64xf32>
    %10 = vector.multi_reduction <add>, %9, %cst_7 [1] : vector<64x32xf32> to vector<64xf32>
    %11 = vector.shape_cast %10 : vector<64xf32> to vector<64x1xf32>
    %cst_8 = arith.constant 3.200000e+01 : f32
    %12 = vector.broadcast %cst_8 : f32 to vector<64x1xf32>
    %13 = arith.divf %11, %12 : vector<64x1xf32>
    %14 = arith.mulf %8, %8 : vector<64x1xf32>
    %15 = arith.subf %13, %14 : vector<64x1xf32>
    %16 = vector.broadcast %8 : vector<64x1xf32> to vector<64x32xf32>
    %17 = arith.subf %0, %16 : vector<64x32xf32>
    %cst_9 = arith.constant 9.99999974E-6 : f32
    %18 = vector.broadcast %cst_9 : f32 to vector<64x1xf32>
    %19 = arith.addf %15, %18 : vector<64x1xf32>
    %20 = math.rsqrt %19 : vector<64x1xf32>
    %21 = vector.broadcast %20 : vector<64x1xf32> to vector<64x32xf32>
    %22 = arith.mulf %17, %21 : vector<64x32xf32>
    %c0_10 = arith.constant 0 : index
    %c0_11 = arith.constant 0 : index
    %23 = vector.load %arg2[%c0_10, %c0_11] : memref<32x256xf32, #tpu.memory_space<vmem>>, vector<32x96xf32>
    %cst_12 = arith.constant dense<0.000000e+00> : vector<64x96xf32>
    %24 = tpu.matmul %22, %23, %cst_12 {dimension_numbers = #tpu.dot_dimension_numbers<[1], [0], [0], [1], [0, 0, 1, 1], [], []>} : vector<64x32xf32>, vector<32x96xf32>, vector<64x96xf32> -> vector<64x96xf32>
    %25 = vector.broadcast %1 : vector<1x96xf32> to vector<64x96xf32>
    %26 = arith.addf %24, %25 : vector<64x96xf32>
    %27 = tpu.iota {dimensions = array<i32: 0>} : vector<8x8xi32>
    %28 = tpu.iota {dimensions = array<i32: 1>} : vector<8x8xi32>
    %29 = arith.cmpi sle, %28, %27 : vector<8x8xi32>
    %30 = vector.shape_cast %29 : vector<8x8xi1> to vector<1x8x8xi1>
    %31 = vector.extract_strided_slice %26 {offsets = [0, 0], sizes = [64, 8], strides = [1, 1]} : vector<64x96xf32> to vector<64x8xf32>
    %32 = vector.shape_cast %31 : vector<64x8xf32> to vector<8x8x8xf32>
    %33 = vector.extract_strided_slice %26 {offsets = [0, 32], sizes = [64, 8], strides = [1, 1]} : vector<64x96xf32> to vector<64x8xf32>
    %34 = vector.shape_cast %33 : vector<64x8xf32> to vector<8x8x8xf32>
    %35 = vector.extract_strided_slice %26 {offsets = [0, 64], sizes = [64, 8], strides = [1, 1]} : vector<64x96xf32> to vector<64x8xf32>
    %36 = vector.shape_cast %35 : vector<64x8xf32> to vector<8x8x8xf32>
    %37 = vector.extract_strided_slice %26 {offsets = [0, 8], sizes = [64, 8], strides = [1, 1]} : vector<64x96xf32> to vector<64x8xf32>
    %38 = vector.shape_cast %37 : vector<64x8xf32> to vector<8x8x8xf32>
    %39 = vector.extract_strided_slice %26 {offsets = [0, 40], sizes = [64, 8], strides = [1, 1]} : vector<64x96xf32> to vector<64x8xf32>
    %40 = vector.shape_cast %39 : vector<64x8xf32> to vector<8x8x8xf32>
    %41 = vector.extract_strided_slice %26 {offsets = [0, 72], sizes = [64, 8], strides = [1, 1]} : vector<64x96xf32> to vector<64x8xf32>
    %42 = vector.shape_cast %41 : vector<64x8xf32> to vector<8x8x8xf32>
    %43 = vector.extract_strided_slice %26 {offsets = [0, 16], sizes = [64, 8], strides = [1, 1]} : vector<64x96xf32> to vector<64x8xf32>
    %44 = vector.shape_cast %43 : vector<64x8xf32> to vector<8x8x8xf32>
    %45 = vector.extract_strided_slice %26 {offsets = [0, 48], sizes = [64, 8], strides = [1, 1]} : vector<64x96xf32> to vector<64x8xf32>
    %46 = vector.shape_cast %45 : vector<64x8xf32> to vector<8x8x8xf32>
    %47 = vector.extract_strided_slice %26 {offsets = [0, 80], sizes = [64, 8], strides = [1, 1]} : vector<64x96xf32> to vector<64x8xf32>
    %48 = vector.shape_cast %47 : vector<64x8xf32> to vector<8x8x8xf32>
    %49 = vector.extract_strided_slice %26 {offsets = [0, 24], sizes = [64, 8], strides = [1, 1]} : vector<64x96xf32> to vector<64x8xf32>
    %50 = vector.shape_cast %49 : vector<64x8xf32> to vector<8x8x8xf32>
    %51 = vector.extract_strided_slice %26 {offsets = [0, 56], sizes = [64, 8], strides = [1, 1]} : vector<64x96xf32> to vector<64x8xf32>
    %52 = vector.shape_cast %51 : vector<64x8xf32> to vector<8x8x8xf32>
    %53 = vector.extract_strided_slice %26 {offsets = [0, 88], sizes = [64, 8], strides = [1, 1]} : vector<64x96xf32> to vector<64x8xf32>
    %54 = vector.shape_cast %53 : vector<64x8xf32> to vector<8x8x8xf32>
    %55 = tpu.concatenate %32, %38, %44, %50 in 0 : vector<8x8x8xf32>, vector<8x8x8xf32>, vector<8x8x8xf32>, vector<8x8x8xf32> -> vector<32x8x8xf32>
    %56 = tpu.concatenate %34, %40, %46, %52 in 0 : vector<8x8x8xf32>, vector<8x8x8xf32>, vector<8x8x8xf32>, vector<8x8x8xf32> -> vector<32x8x8xf32>
    %57 = tpu.concatenate %36, %42, %48, %54 in 0 : vector<8x8x8xf32>, vector<8x8x8xf32>, vector<8x8x8xf32>, vector<8x8x8xf32> -> vector<32x8x8xf32>
    "tpu.trace_start"() <{level = 10 : i32, message = "bqd,bkd->bqk"}> : () -> ()
    %cst_13 = arith.constant dense<0.000000e+00> : vector<32x8x8xf32>
    %58 = tpu.matmul %55, %56, %cst_13 {dimension_numbers = #tpu.dot_dimension_numbers<[2], [2], [1], [1], [0, 0, 0, 1, 1, 1], [0], [0]>} : vector<32x8x8xf32>, vector<32x8x8xf32>, vector<32x8x8xf32> -> vector<32x8x8xf32>
    %cst_14 = arith.constant 0xFF800000 : f32
    "tpu.trace_stop"() : () -> ()
    %59 = vector.shape_cast %30 : vector<1x8x8xi1> to vector<1x8x8xi1>
    %60 = vector.broadcast %59 : vector<1x8x8xi1> to vector<32x8x8xi1>
    %61 = vector.broadcast %cst_14 : f32 to vector<32x8x8xf32>
    %62 = arith.select %60, %58, %61 : vector<32x8x8xi1>, vector<32x8x8xf32>
    %cst_15 = arith.constant dense<0xFF800000> : vector<32x8xf32>
    %63 = vector.multi_reduction <maximumf>, %62, %cst_15 [2] : vector<32x8x8xf32> to vector<32x8xf32>
    %64 = vector.shape_cast %63 : vector<32x8xf32> to vector<32x8x1xf32>
    %65 = vector.broadcast %64 : vector<32x8x1xf32> to vector<32x8x8xf32>
    %66 = arith.subf %62, %65 : vector<32x8x8xf32>
    %67 = math.exp %66 : vector<32x8x8xf32>
    %cst_16 = arith.constant dense<0.000000e+00> : vector<32x8xf32>
    %68 = vector.multi_reduction <add>, %67, %cst_16 [2] : vector<32x8x8xf32> to vector<32x8xf32>
    %69 = vector.shape_cast %68 : vector<32x8xf32> to vector<32x8x1xf32>
    %70 = tpu.reciprocal %69 {approx = true} : vector<32x8x1xf32> -> vector<32x8x1xf32>
    %71 = vector.broadcast %70 : vector<32x8x1xf32> to vector<32x8x8xf32>
    %72 = arith.mulf %67, %71 : vector<32x8x8xf32>
    "tpu.trace_start"() <{level = 10 : i32, message = "bqk,bkd->bqd"}> : () -> ()
    %cst_17 = arith.constant dense<0.000000e+00> : vector<32x8x8xf32>
    %73 = tpu.matmul %72, %57, %cst_17 {dimension_numbers = #tpu.dot_dimension_numbers<[2], [1], [1], [2], [0, 0, 0, 1, 1, 2], [0], [0]>} : vector<32x8x8xf32>, vector<32x8x8xf32>, vector<32x8x8xf32> -> vector<32x8x8xf32>
    "tpu.trace_stop"() : () -> ()
    %74 = vector.extract_strided_slice %73 {offsets = [0, 0, 0], sizes = [8, 8, 8], strides = [1, 1, 1]} : vector<32x8x8xf32> to vector<8x8x8xf32>
    %75 = vector.shape_cast %74 : vector<8x8x8xf32> to vector<64x8xf32>
    %76 = vector.extract_strided_slice %73 {offsets = [8, 0, 0], sizes = [8, 8, 8], strides = [1, 1, 1]} : vector<32x8x8xf32> to vector<8x8x8xf32>
    %77 = vector.shape_cast %76 : vector<8x8x8xf32> to vector<64x8xf32>
    %78 = vector.extract_strided_slice %73 {offsets = [16, 0, 0], sizes = [8, 8, 8], strides = [1, 1, 1]} : vector<32x8x8xf32> to vector<8x8x8xf32>
    %79 = vector.shape_cast %78 : vector<8x8x8xf32> to vector<64x8xf32>
    %80 = vector.extract_strided_slice %73 {offsets = [24, 0, 0], sizes = [8, 8, 8], strides = [1, 1, 1]} : vector<32x8x8xf32> to vector<8x8x8xf32>
    %81 = vector.shape_cast %80 : vector<8x8x8xf32> to vector<64x8xf32>
    %82 = tpu.concatenate %75, %77, %79, %81 in 1 : vector<64x8xf32>, vector<64x8xf32>, vector<64x8xf32>, vector<64x8xf32> -> vector<64x32xf32>
    %c0_18 = arith.constant 0 : index
    %c96 = arith.constant 96 : index
    %83 = vector.load %arg2[%c0_18, %c96] : memref<32x256xf32, #tpu.memory_space<vmem>>, vector<32x32xf32>
    %cst_19 = arith.constant dense<0.000000e+00> : vector<64x32xf32>
    %84 = tpu.matmul %82, %83, %cst_19 {dimension_numbers = #tpu.dot_dimension_numbers<[1], [0], [0], [1], [0, 0, 1, 1], [], []>} : vector<64x32xf32>, vector<32x32xf32>, vector<64x32xf32> -> vector<64x32xf32>
    %85 = vector.broadcast %2 : vector<1x32xf32> to vector<64x32xf32>
    %86 = arith.addf %84, %85 : vector<64x32xf32>
    %87 = arith.addf %0, %86 : vector<64x32xf32>
    %cst_20 = arith.constant dense<0.000000e+00> : vector<64xf32>
    %88 = vector.multi_reduction <add>, %87, %cst_20 [1] : vector<64x32xf32> to vector<64xf32>
    %89 = vector.shape_cast %88 : vector<64xf32> to vector<64x1xf32>
    %cst_21 = arith.constant 3.200000e+01 : f32
    %90 = vector.broadcast %cst_21 : f32 to vector<64x1xf32>
    %91 = arith.divf %89, %90 : vector<64x1xf32>
    %92 = arith.mulf %87, %87 : vector<64x32xf32>
    %cst_22 = arith.constant dense<0.000000e+00> : vector<64xf32>
    %93 = vector.multi_reduction <add>, %92, %cst_22 [1] : vector<64x32xf32> to vector<64xf32>
    %94 = vector.shape_cast %93 : vector<64xf32> to vector<64x1xf32>
    %cst_23 = arith.constant 3.200000e+01 : f32
    %95 = vector.broadcast %cst_23 : f32 to vector<64x1xf32>
    %96 = arith.divf %94, %95 : vector<64x1xf32>
    %97 = arith.mulf %91, %91 : vector<64x1xf32>
    %98 = arith.subf %96, %97 : vector<64x1xf32>
    %99 = vector.broadcast %91 : vector<64x1xf32> to vector<64x32xf32>
    %100 = arith.subf %87, %99 : vector<64x32xf32>
    %cst_24 = arith.constant 9.99999974E-6 : f32
    %101 = vector.broadcast %cst_24 : f32 to vector<64x1xf32>
    %102 = arith.addf %98, %101 : vector<64x1xf32>
    %103 = math.rsqrt %102 : vector<64x1xf32>
    %104 = vector.broadcast %103 : vector<64x1xf32> to vector<64x32xf32>
    %105 = arith.mulf %100, %104 : vector<64x32xf32>
    %c0_25 = arith.constant 0 : index
    %c128 = arith.constant 128 : index
    %106 = vector.load %arg2[%c0_25, %c128] : memref<32x256xf32, #tpu.memory_space<vmem>>, vector<32x128xf32>
    %cst_26 = arith.constant dense<0.000000e+00> : vector<64x128xf32>
    %107 = tpu.matmul %105, %106, %cst_26 {dimension_numbers = #tpu.dot_dimension_numbers<[1], [0], [0], [1], [0, 0, 1, 1], [], []>} : vector<64x32xf32>, vector<32x128xf32>, vector<64x128xf32> -> vector<64x128xf32>
    %108 = vector.broadcast %3 : vector<1x128xf32> to vector<64x128xf32>
    %109 = arith.addf %107, %108 : vector<64x128xf32>
    %cst_27 = arith.constant 0.000000e+00 : f32
    %110 = vector.broadcast %cst_27 : f32 to vector<64x128xf32>
    %111 = arith.maximumf %109, %110 : vector<64x128xf32>
    %c0_28 = arith.constant 0 : index
    %c0_29 = arith.constant 0 : index
    %112 = vector.load %arg3[%c0_28, %c0_29] : memref<128x32xf32, #tpu.memory_space<vmem>>, vector<128x32xf32>
    %cst_30 = arith.constant dense<0.000000e+00> : vector<64x32xf32>
    %113 = tpu.matmul %111, %112, %cst_30 {dimension_numbers = #tpu.dot_dimension_numbers<[1], [0], [0], [1], [0, 0, 1, 1], [], []>} : vector<64x128xf32>, vector<128x32xf32>, vector<64x32xf32> -> vector<64x32xf32>
    %114 = vector.broadcast %4 : vector<1x32xf32> to vector<64x32xf32>
    %115 = arith.addf %113, %114 : vector<64x32xf32>
    %116 = arith.addf %87, %115 : vector<64x32xf32>
    %c0_31 = arith.constant 0 : index
    %c0_32 = arith.constant 0 : index
    %117 = vector.load %arg5[%c0_31, %c0_32] : memref<64x32xf32, #tpu.memory_space<vmem>>, vector<64x32xf32>
    tpu.vector_store %arg5[%c0_31, %c0_32], %116 {strides = array<i32>} : memref<64x32xf32, #tpu.memory_space<vmem>>, vector<64x32xf32>,
    return
  }
  func.func @transform_0(%arg0: i32) -> (i32, i32) {
    %c0_i32 = arith.constant 0 : i32
    %c0_i32_0 = arith.constant 0 : i32
    return %arg0, %c0_i32 : i32, i32
  }
  func.func @transform_1(%arg0: i32) -> (i32, i32) {
    %c0_i32 = arith.constant 0 : i32
    %c0_i32_0 = arith.constant 0 : i32
    %c0_i32_1 = arith.constant 0 : i32
    return %c0_i32, %c0_i32_0 : i32, i32
  }
  func.func @transform_2(%arg0: i32) -> (i32, i32) {
    %c0_i32 = arith.constant 0 : i32
    %c0_i32_0 = arith.constant 0 : i32
    %c0_i32_1 = arith.constant 0 : i32
    return %c0_i32, %c0_i32_0 : i32, i32
  }
  func.func @transform_3(%arg0: i32) -> (i32, i32) {
    %c0_i32 = arith.constant 0 : i32
    %c0_i32_0 = arith.constant 0 : i32
    %c0_i32_1 = arith.constant 0 : i32
    return %c0_i32, %c0_i32_0 : i32, i32
  }
  func.func @transform_4(%arg0: i32) -> (i32, i32) {
    %c0_i32 = arith.constant 0 : i32
    %c0_i32_0 = arith.constant 0 : i32
    return %arg0, %c0_i32 : i32, i32
  }
}

</mosaic_0001>

<llo_original>
// kernel: _run.1
$region0: #{_run.1}
  #allocation0 [shape = 'u32[]', space=smem, size = 0x4, offset = 0x4, fixed_abs, tag = 'smem constant byte address 0x4 - core index']
  #allocation1 [shape = 'u32[144,128]{1,0:T(1,128)}', space=vmem, size = 0x12000, scoped, tag = 'internal scratch']
  %s0 = inlined_call_operand.hbm [shape: f32[64,32], index: 0, kind: input, shape index: {}]
  %s1 = inlined_call_operand.hbm [shape: f32[32,256], index: 1, kind: input, shape index: {}]
  %s2 = inlined_call_operand.hbm [shape: f32[128,32], index: 2, kind: input, shape index: {}]
  %s3 = inlined_call_operand.hbm [shape: f32[8,128], index: 3, kind: input, shape index: {}]
  %s4 = inlined_call_operand.hbm [shape: f32[64,32], index: 4, kind: output, shape index: {}]
  %s5 = sld [smem:[#allocation0]]
  $region42: #{_run.1} parent=0
    _
  %s7 = ssub.s32 1, %s5
  %s8 = scalar_select 0, %s7, %s5
  $region1: #{_run.1} parent=0
    #allocation2 [shape = 'u8[32768]{0}', space=vmem, size = 0x8000, scoped, tag = 'input window, operand 0, single buffered']
    #allocation3 [shape = 's32[1]{0}', space=sflag, size = 0x4, scoped, tag = 'scoped memory for _run.1']
    #allocation4 [shape = 's32[1]{0}', space=sflag, size = 0x4, scoped, tag = 'scoped memory for _run.1']
    #allocation5 [shape = 'u8[32768]{0}', space=vmem, size = 0x8000, scoped, tag = 'input window, operand 1, single buffered']
    #allocation6 [shape = 's32[1]{0}', space=sflag, size = 0x4, scoped, tag = 'scoped memory for _run.1']
    #allocation7 [shape = 'u8[65536]{0}', space=vmem, size = 0x10000, scoped, tag = 'input window, operand 2, single buffered']
    #allocation8 [shape = 'u8[4096]{0}', space=vmem, size = 0x1000, scoped, tag = 'input window, operand 3, single buffered']
    #allocation9 [shape = 's32[1]{0}', space=sflag, size = 0x4, scoped, tag = 'scoped memory for _run.1']
    #allocation10 [shape = 'u8[32768]{0}', space=vmem, size = 0x8000, scoped, tag = 'output window, operand 0, single buffered']
    %9 = vsyncpa [#allocation3], 0
    %10 = vsyncpa [#allocation6], 0
    %11 = vsyncpa [#allocation9], 0
    %12 = vsyncpa [#allocation4], 0
    // Predicated region
    $region2: #{_run.1} parent=1 // pred_check
      _
    $region3: #{_run.1} parent=1 // pred_check_branch
      %14 = sbr.rel (0) target = $region5
    $region4: #{_run.1} parent=1 // pred_region
      %s16 = ssub.s32 1024, 1024
      %17 = vsyncadd [#allocation3], %s16
      %s18 = sshll.u32 [#allocation2], 4
      %s19 = int_to_ptr.vmem [resolvable:$true] %s18
      %24 = dma.hbm_to_vmem [thread:$0]  %s0, 1024, %s19, [#allocation3], 128, 128, 8
    $region5: #{_run.1} parent=1 // pred_fallthru
      _
    // Predicated region
    $region6: #{_run.1} parent=1 // pred_check
      _
    $region7: #{_run.1} parent=1 // pred_check_branch
      %26 = sbr.rel (0) target = $region9
    $region8: #{_run.1} parent=1 // pred_region
      %s28 = ssub.s32 1024, 1024
      %29 = vsyncadd [#allocation6], %s28
      %s30 = sshll.u32 [#allocation5], 4
      %s31 = int_to_ptr.vmem [resolvable:$true] %s30
      %36 = dma.hbm_to_vmem [thread:$0]  %s1, 1024, %s31, [#allocation6], 256, 256, 16
    $region9: #{_run.1} parent=1 // pred_fallthru
      _
    // Predicated region
    $region10: #{_run.1} parent=1 // pred_check
      _
    $region11: #{_run.1} parent=1 // pred_check_branch
      %38 = sbr.rel (0) target = $region13
    $region12: #{_run.1} parent=1 // pred_region
      %s40 = ssub.s32 2048, 2048
      %41 = vsyncadd [#allocation6], %s40
      %s42 = sshll.u32 [#allocation7], 4
      %s43 = int_to_ptr.vmem [resolvable:$true] %s42
      %48 = dma.hbm_to_vmem [thread:$0]  %s2, 2048, %s43, [#allocation6], 128, 128, 8
    $region13: #{_run.1} parent=1 // pred_fallthru
      _
    // Predicated region
    $region14: #{_run.1} parent=1 // pred_check
      _
    $region15: #{_run.1} parent=1 // pred_check_branch
      %50 = sbr.rel (0) target = $region17
    $region16: #{_run.1} parent=1 // pred_region
      %s52 = ssub.s32 128, 128
      %53 = vsyncadd [#allocation9], %s52
      %s55 = sshll.u32 [#allocation8], 4
      %s56 = int_to_ptr.vmem [resolvable:$true] %s55
      %58 = dma.hbm_to_vmem [thread:$0]  %s3, 128, %s56, [#allocation9]
    $region17: #{_run.1} parent=1 // pred_fallthru
      _
    // Predicated region
    $region18: #{_run.1} parent=1 // pred_check
      _
    $region19: #{_run.1} parent=1 // pred_check_branch
      %60 = sbr.rel (0) target = $region21
    $region20: #{_run.1} parent=1 // pred_region
      %61 = dma.done [#allocation3], 1024
    $region21: #{_run.1} parent=1 // pred_fallthru
      _
    // Predicated region
    $region22: #{_run.1} parent=1 // pred_check
      _
    $region23: #{_run.1} parent=1 // pred_check_branch
      %63 = sbr.rel (0) target = $region25
    $region24: #{_run.1} parent=1 // pred_region
      %64 = dma.done [#allocation6], 1024
    $region25: #{_run.1} parent=1 // pred_fallthru
      _
    // Predicated region
    $region26: #{_run.1} parent=1 // pred_check
      _
    $region27: #{_run.1} parent=1 // pred_check_branch
      %66 = sbr.rel (0) target = $region29
    $region28: #{_run.1} parent=1 // pred_region
      %67 = dma.done [#allocation6], 2048
    $region29: #{_run.1} parent=1 // pred_fallthru
      _
    // Predicated region
    $region30: #{_run.1} parent=1 // pred_check
      _
    $region31: #{_run.1} parent=1 // pred_check_branch
      %69 = sbr.rel (0) target = $region33
    $region32: #{_run.1} parent=1 // pred_region
      %70 = dma.done [#allocation9], 128
    $region33: #{_run.1} parent=1 // pred_fallthru
      _
    %v71 = vld [vmem:[#allocation2] sm:$0xff]
    %v72 = vld [vmem:[#allocation2 + $0x8] sm:$0xff]
    %v73 = vld [vmem:[#allocation2 + $0x10] sm:$0xff]
    %v74 = vld [vmem:[#allocation2 + $0x18] sm:$0xff]
    %v75 = vld [vmem:[#allocation2 + $0x20] sm:$0xff]
    %v76 = vld [vmem:[#allocation2 + $0x28] sm:$0xff]
    %v77 = vld [vmem:[#allocation2 + $0x30] sm:$0xff]
    %v78 = vld [vmem:[#allocation2 + $0x38] sm:$0xff]
    %v79 = vld [vmem:[#allocation8] sm:$0x1]
    %v80 = vld [vmem:[#allocation8 + $0x1] sm:$0x1]
    %v81 = vld [vmem:[#allocation8 + $0x2] sm:$0x1]
    %v82 = vld [vmem:[#allocation8 + $0x3] sm:$0x1]
    %vm83 = vcmask 261120
    %v84 = vsel %vm83, %v71, 0.0
    %85 = vadd.xlane.f32.xlu0 %v84
    %v86 = vpop.xlane.xlu0 %85
    %v87 = vsel %vm83, %v72, 0.0
    %88 = vadd.xlane.f32.xlu0 %v87
    %v89 = vpop.xlane.xlu0 %88
    %v90 = vsel %vm83, %v73, 0.0
    %91 = vadd.xlane.f32.xlu0 %v90
    %v92 = vpop.xlane.xlu0 %91
    %v93 = vsel %vm83, %v74, 0.0
    %94 = vadd.xlane.f32.xlu0 %v93
    %v95 = vpop.xlane.xlu0 %94
    %v96 = vsel %vm83, %v75, 0.0
    %97 = vadd.xlane.f32.xlu0 %v96
    %v98 = vpop.xlane.xlu0 %97
    %v99 = vsel %vm83, %v76, 0.0
    %100 = vadd.xlane.f32.xlu0 %v99
    %v101 = vpop.xlane.xlu0 %100
    %v102 = vsel %vm83, %v77, 0.0
    %103 = vadd.xlane.f32.xlu0 %v102
    %v104 = vpop.xlane.xlu0 %103
    %v105 = vsel %vm83, %v78, 0.0
    %106 = vadd.xlane.f32.xlu0 %v105
    %v107 = vpop.xlane.xlu0 %106
    %v108 = vrcp.pop 32.0
    %v109 = vmul.f32 %v86, %v108
    %v110 = vmul.f32 %v89, %v108
    %v111 = vmul.f32 %v92, %v108
    %v112 = vmul.f32 %v95, %v108
    %v113 = vmul.f32 %v98, %v108
    %v114 = vmul.f32 %v101, %v108
    %v115 = vmul.f32 %v104, %v108
    %v116 = vmul.f32 %v107, %v108
    %v117 = vmul.f32 %v71, %v71
    %v118 = vmul.f32 %v72, %v72
    %v119 = vmul.f32 %v73, %v73
    %v120 = vmul.f32 %v74, %v74
    %v121 = vmul.f32 %v75, %v75
    %v122 = vmul.f32 %v76, %v76
    %v123 = vmul.f32 %v77, %v77
    %v124 = vmul.f32 %v78, %v78
    %v125 = vsel %vm83, %v117, 0.0
    %126 = vadd.xlane.f32.xlu0 %v125
    %v127 = vpop.xlane.xlu0 %126
    %v128 = vsel %vm83, %v118, 0.0
    %129 = vadd.xlane.f32.xlu0 %v128
    %v130 = vpop.xlane.xlu0 %129
    %v131 = vsel %vm83, %v119, 0.0
    %132 = vadd.xlane.f32.xlu0 %v131
    %v133 = vpop.xlane.xlu0 %132
    %v134 = vsel %vm83, %v120, 0.0
    %135 = vadd.xlane.f32.xlu0 %v134
    %v136 = vpop.xlane.xlu0 %135
    %v137 = vsel %vm83, %v121, 0.0
    %138 = vadd.xlane.f32.xlu0 %v137
    %v139 = vpop.xlane.xlu0 %138
    %v140 = vsel %vm83, %v122, 0.0
    %141 = vadd.xlane.f32.xlu0 %v140
    %v142 = vpop.xlane.xlu0 %141
    %v143 = vsel %vm83, %v123, 0.0
    %144 = vadd.xlane.f32.xlu0 %v143
    %v145 = vpop.xlane.xlu0 %144
    %v146 = vsel %vm83, %v124, 0.0
    %147 = vadd.xlane.f32.xlu0 %v146
    %v148 = vpop.xlane.xlu0 %147
    %v149 = vmul.f32 %v127, %v108
    %v150 = vmul.f32 %v130, %v108
    %v151 = vmul.f32 %v133, %v108
    %v152 = vmul.f32 %v136, %v108
    %v153 = vmul.f32 %v139, %v108
    %v154 = vmul.f32 %v142, %v108
    %v155 = vmul.f32 %v145, %v108
    %v156 = vmul.f32 %v148, %v108
    %v157 = vmul.f32 %v109, %v109
    %v158 = vmul.f32 %v110, %v110
    %v159 = vmul.f32 %v111, %v111
    %v160 = vmul.f32 %v112, %v112
    %v161 = vmul.f32 %v113, %v113
    %v162 = vmul.f32 %v114, %v114
    %v163 = vmul.f32 %v115, %v115
    %v164 = vmul.f32 %v116, %v116
    %v165 = vsub.f32 %v149, %v157
    %v166 = vsub.f32 %v150, %v158
    %v167 = vsub.f32 %v151, %v159
    %v168 = vsub.f32 %v152, %v160
    %v169 = vsub.f32 %v153, %v161
    %v170 = vsub.f32 %v154, %v162
    %v171 = vsub.f32 %v155, %v163
    %v172 = vsub.f32 %v156, %v164
    %v173 = vsub.f32 %v71, %v109
    %v174 = vsub.f32 %v72, %v110
    %v175 = vsub.f32 %v73, %v111
    %v176 = vsub.f32 %v74, %v112
    %v177 = vsub.f32 %v75, %v113
    %v178 = vsub.f32 %v76, %v114
    %v179 = vsub.f32 %v77, %v115
    %v180 = vsub.f32 %v78, %v116
    %v181 = vadd.f32 %v165, 1e-05
    %v182 = vadd.f32 %v166, 1e-05
    %v183 = vadd.f32 %v167, 1e-05
    %v184 = vadd.f32 %v168, 1e-05
    %v185 = vadd.f32 %v169, 1e-05
    %v186 = vadd.f32 %v170, 1e-05
    %v187 = vadd.f32 %v171, 1e-05
    %v188 = vadd.f32 %v172, 1e-05
    %v189 = vrsqrt.pop %v181
    %v190 = vrsqrt.pop %v182
    %v191 = vrsqrt.pop %v183
    %v192 = vrsqrt.pop %v184
    %v193 = vrsqrt.pop %v185
    %v194 = vrsqrt.pop %v186
    %v195 = vrsqrt.pop %v187
    %v196 = vrsqrt.pop %v188
    %v197 = vmul.f32 %v173, %v189
    %v198 = vmul.f32 %v174, %v190
    %v199 = vmul.f32 %v175, %v191
    %v200 = vmul.f32 %v176, %v192
    %v201 = vmul.f32 %v177, %v193
    %v202 = vmul.f32 %v178, %v194
    %v203 = vmul.f32 %v179, %v195
    %v204 = vmul.f32 %v180, %v196
    %v205 = vld [vmem:[#allocation5] sm:$0xff]
    %v206 = vld [vmem:[#allocation5 + $0x10] sm:$0xff]
    %v207 = vld [vmem:[#allocation5 + $0x20] sm:$0xff]
    %v208 = vld [vmem:[#allocation5 + $0x30] sm:$0xff]
    %v209 = vlaneseq
    %v210 = vshrl.u32 %v209, 7
    %v211 = vsub.s32 0, %v210
    %v212 = vrot.slane %v79, %v211
    %v214 = vsel %vm83, %v197, 0
    %v217 = vsel %vm83, %v198, 0
    %v220 = vsel %vm83, %v199, 0
    %v223 = vsel %vm83, %v200, 0
    %v226 = vsel %vm83, %v201, 0
    %v229 = vsel %vm83, %v202, 0
    %v232 = vsel %vm83, %v203, 0
    %v235 = vsel %vm83, %v204, 0
    %237 = vmatprep.subr.mxu0 0.0
    %238 = vmatpush1.msra.mxu0 %v205
    %239 = vmatprep.subr.mxu0 0.0
    %240 = vmatpush1.msra.mxu0 %v206
    %241 = vmatprep.subr.mxu0 0.0
    %242 = vmatpush1.msra.mxu0 %v207
    %243 = vmatprep.subr.mxu0 0.0
    %244 = vmatpush1.msra.mxu0 %v208
    %245 = vmatprep.subr.mxu0 0.0
    %246 = vmatpush1.msra.mxu0 0.0
    %247 = vmatprep.subr.mxu0 0.0
    %248 = vmatpush1.msra.mxu0 0.0
    %249 = vmatprep.subr.mxu0 0.0
    %250 = vmatpush1.msra.mxu0 0.0
    %251 = vmatprep.subr.mxu0 0.0
    %252 = vmatpush1.msra.mxu0 0.0
    %253 = vmatprep.subr.mxu0 0.0
    %254 = vmatpush1.msra.mxu0 0.0
    %255 = vmatprep.subr.mxu0 0.0
    %256 = vmatpush1.msra.mxu0 0.0
    %257 = vmatprep.subr.mxu0 0.0
    %258 = vmatpush1.msra.mxu0 0.0
    %259 = vmatprep.subr.mxu0 0.0
    %260 = vmatpush1.msra.mxu0 0.0
    %261 = vmatprep.subr.mxu0 0.0
    %262 = vmatpush1.msra.mxu0 0.0
    %263 = vmatprep.subr.mxu0 0.0
    %264 = vmatpush1.msra.mxu0 0.0
    %265 = vmatprep.subr.mxu0 0.0
    %266 = vmatpush1.msra.mxu0 0.0
    %267 = vmatprep.subr.mxu0 0.0
    %268 = vmatpush1.msra.mxu0 0.0
    %269 = vmatprep.subr.mxu0 0.0
    %270 = vmatpush1.msra.mxu0 0.0
    %271 = vmatprep.subr.mxu0 0.0
    %272 = vmatpush1.msra.mxu0 0.0
    %273 = vmatprep.subr.mxu0 0.0
    %274 = vmatpush1.msra.mxu0 0.0
    %275 = vmatprep.subr.mxu0 0.0
    %276 = vmatpush1.msra.mxu0 0.0
    %277 = vmatprep.subr.mxu0 0.0
    %278 = vmatpush1.msra.mxu0 0.0
    %279 = vmatprep.subr.mxu0 0.0
    %280 = vmatpush1.msra.mxu0 0.0
    %281 = vmatprep.subr.mxu0 0.0
    %282 = vmatpush1.msra.mxu0 0.0
    %283 = vmatprep.subr.mxu0 0.0
    %284 = vmatpush1.msra.mxu0 0.0
    %285 = vmatprep.subr.mxu0 0.0
    %286 = vmatpush1.msra.mxu0 0.0
    %287 = vmatprep.subr.mxu0 0.0
    %288 = vmatpush1.msra.mxu0 0.0
    %289 = vmatprep.subr.mxu0 0.0
    %290 = vmatpush1.msra.mxu0 0.0
    %291 = vmatprep.subr.mxu0 0.0
    %292 = vmatpush1.msra.mxu0 0.0
    %293 = vmatprep.subr.mxu0 0.0
    %294 = vmatpush1.msra.mxu0 0.0
    %295 = vmatprep.subr.mxu0 0.0
    %296 = vmatpush1.msra.mxu0 0.0
    %297 = vmatprep.subr.mxu0 0.0
    %298 = vmatpush1.msra.mxu0 0.0
    %299 = vmatprep.subr.mxu0 0.0
    %300 = vmatpush1.msra.mxu0 0.0
    %301 = vmatprep.mubr.f32.mxu0 0.0
    %302 = vmatmul.mubr.f32.gmra.mrb[0].mxu0 %v214
    %v303 = vpop.f32.mrb[0].mxu0
    %v304 = vadd.f32 %v212, %v303
    %v305 = vpop.f32.mrb[0].mxu0
    %306 = vmatprep.mubr.f32.mxu0 0.0
    %307 = vmatmul.mubr.f32.gmra.mrb[0].mxu0 %v217
    %v308 = vpop.f32.mrb[0].mxu0
    %v309 = vadd.f32 %v212, %v308
    %v310 = vpop.f32.mrb[0].mxu0
    %311 = vmatprep.mubr.f32.mxu0 0.0
    %312 = vmatmul.mubr.f32.gmra.mrb[0].mxu0 %v220
    %v313 = vpop.f32.mrb[0].mxu0
    %v314 = vadd.f32 %v212, %v313
    %v315 = vpop.f32.mrb[0].mxu0
    %316 = vmatprep.mubr.f32.mxu0 0.0
    %317 = vmatmul.mubr.f32.gmra.mrb[0].mxu0 %v223
    %v318 = vpop.f32.mrb[0].mxu0
    %v319 = vadd.f32 %v212, %v318
    %v320 = vpop.f32.mrb[0].mxu0
    %321 = vmatprep.mubr.f32.mxu0 0.0
    %322 = vmatmul.mubr.f32.gmra.mrb[0].mxu0 %v226
    %v323 = vpop.f32.mrb[0].mxu0
    %v324 = vadd.f32 %v212, %v323
    %v325 = vpop.f32.mrb[0].mxu0
    %326 = vmatprep.mubr.f32.mxu0 0.0
    %327 = vmatmul.mubr.f32.gmra.mrb[0].mxu0 %v229
    %v328 = vpop.f32.mrb[0].mxu0
    %v329 = vadd.f32 %v212, %v328
    %v330 = vpop.f32.mrb[0].mxu0
    %331 = vmatprep.mubr.f32.mxu0 0.0
    %332 = vmatmul.mubr.f32.gmra.mrb[0].mxu0 %v232
    %v333 = vpop.f32.mrb[0].mxu0
    %v334 = vadd.f32 %v212, %v333
    %v335 = vpop.f32.mrb[0].mxu0
    %336 = vmatprep.mubr.f32.mxu0 0.0
    %337 = vmatmul.mubr.f32.gmra.mrb[0].mxu0 %v235
    %v338 = vpop.f32.mrb[0].mxu0
    %v339 = vadd.f32 %v212, %v338
    %v340 = vpop.f32.mrb[0].mxu0
    %341 = vdwg.mxu0
    %v342 = vlaneseq
    %v343 = vshrl.u32 %v342, 7
    %v344 = vlaneseq
    %v345 = vand.u32 %v344, 127
    %vm346 = vcmp.le.s32.totalorder %v345, %v343
    %355 = vrot.lane.b32.xlu0 %v304, 120
    %v356 = vpop.permute.xlu0 %355
    %357 = vrot.lane.b32.xlu0 %v309, 120
    %v358 = vpop.permute.xlu0 %357
    %359 = vrot.lane.b32.xlu0 %v314, 120
    %v360 = vpop.permute.xlu0 %359
    %361 = vrot.lane.b32.xlu0 %v319, 120
    %v362 = vpop.permute.xlu0 %361
    %363 = vrot.lane.b32.xlu0 %v324, 120
    %v364 = vpop.permute.xlu0 %363
    %365 = vrot.lane.b32.xlu0 %v329, 120
    %v366 = vpop.permute.xlu0 %365
    %367 = vrot.lane.b32.xlu0 %v334, 120
    %v368 = vpop.permute.xlu0 %367
    %369 = vrot.lane.b32.xlu0 %v339, 120
    %v370 = vpop.permute.xlu0 %369
    %371 = vrot.lane.b32.xlu0 %v304, 112
    %v372 = vpop.permute.xlu0 %371
    %373 = vrot.lane.b32.xlu0 %v309, 112
    %v374 = vpop.permute.xlu0 %373
    %375 = vrot.lane.b32.xlu0 %v314, 112
    %v376 = vpop.permute.xlu0 %375
    %377 = vrot.lane.b32.xlu0 %v319, 112
    %v378 = vpop.permute.xlu0 %377
    %379 = vrot.lane.b32.xlu0 %v324, 112
    %v380 = vpop.permute.xlu0 %379
    %381 = vrot.lane.b32.xlu0 %v329, 112
    %v382 = vpop.permute.xlu0 %381
    %383 = vrot.lane.b32.xlu0 %v334, 112
    %v384 = vpop.permute.xlu0 %383
    %385 = vrot.lane.b32.xlu0 %v339, 112
    %v386 = vpop.permute.xlu0 %385
    %387 = vrot.lane.b32.xlu0 %v304, 104
    %v388 = vpop.permute.xlu0 %387
    %389 = vrot.lane.b32.xlu0 %v309, 104
    %v390 = vpop.permute.xlu0 %389
    %391 = vrot.lane.b32.xlu0 %v314, 104
    %v392 = vpop.permute.xlu0 %391
    %393 = vrot.lane.b32.xlu0 %v319, 104
    %v394 = vpop.permute.xlu0 %393
    %395 = vrot.lane.b32.xlu0 %v324, 104
    %v396 = vpop.permute.xlu0 %395
    %397 = vrot.lane.b32.xlu0 %v329, 104
    %v398 = vpop.permute.xlu0 %397
    %399 = vrot.lane.b32.xlu0 %v334, 104
    %v400 = vpop.permute.xlu0 %399
    %401 = vrot.lane.b32.xlu0 %v339, 104
    %v402 = vpop.permute.xlu0 %401
    %403 = vrot.lane.b32.xlu0 %v304, 96
    %v404 = vpop.permute.xlu0 %403
    %vm405 = vcmask 64512
    %v406 = vsel %vm405, %v304, 0
    %v408 = vsel %vm405, %v404, 0
    %410 = vmatprep.subr.mxu0 0.0
    %411 = vmatpush1.xpose.msra.mxu0 %v408
    %412 = vmatprep.subr.mxu0 0.0
    %413 = vmatpush1.xpose.msra.mxu0 0.0
    %414 = vmatprep.subr.mxu0 0.0
    %415 = vmatpush1.xpose.msra.mxu0 0.0
    %416 = vmatprep.subr.mxu0 0.0
    %417 = vmatpush1.xpose.msra.mxu0 0.0
    %418 = vmatprep.subr.mxu0 0.0
    %419 = vmatpush1.xpose.msra.mxu0 0.0
    %420 = vmatprep.subr.mxu0 0.0
    %421 = vmatpush1.xpose.msra.mxu0 0.0
    %422 = vmatprep.subr.mxu0 0.0
    %423 = vmatpush1.xpose.msra.mxu0 0.0
    %424 = vmatprep.subr.mxu0 0.0
    %425 = vmatpush1.xpose.msra.mxu0 0.0
    %426 = vmatprep.subr.mxu0 0.0
    %427 = vmatpush1.xpose.msra.mxu0 0.0
    %428 = vmatprep.subr.mxu0 0.0
    %429 = vmatpush1.xpose.msra.mxu0 0.0
    %430 = vmatprep.subr.mxu0 0.0
    %431 = vmatpush1.xpose.msra.mxu0 0.0
    %432 = vmatprep.subr.mxu0 0.0
    %433 = vmatpush1.xpose.msra.mxu0 0.0
    %434 = vmatprep.subr.mxu0 0.0
    %435 = vmatpush1.xpose.msra.mxu0 0.0
    %436 = vmatprep.subr.mxu0 0.0
    %437 = vmatpush1.xpose.msra.mxu0 0.0
    %438 = vmatprep.subr.mxu0 0.0
    %439 = vmatpush1.xpose.msra.mxu0 0.0
    %440 = vmatprep.subr.mxu0 0.0
    %441 = vmatpush1.xpose.msra.mxu0 0.0
    %442 = vmatprep.subr.mxu0 0.0
    %443 = vmatpush1.xpose.msra.mxu0 0.0
    %444 = vmatprep.subr.mxu0 0.0
    %445 = vmatpush1.xpose.msra.mxu0 0.0
    %446 = vmatprep.subr.mxu0 0.0
    %447 = vmatpush1.xpose.msra.mxu0 0.0
    %448 = vmatprep.subr.mxu0 0.0
    %449 = vmatpush1.xpose.msra.mxu0 0.0
    %450 = vmatprep.subr.mxu0 0.0
    %451 = vmatpush1.xpose.msra.mxu0 0.0
    %452 = vmatprep.subr.mxu0 0.0
    %453 = vmatpush1.xpose.msra.mxu0 0.0
    %454 = vmatprep.subr.mxu0 0.0
    %455 = vmatpush1.xpose.msra.mxu0 0.0
    %456 = vmatprep.subr.mxu0 0.0
    %457 = vmatpush1.xpose.msra.mxu0 0.0
    %458 = vmatprep.subr.mxu0 0.0
    %459 = vmatpush1.xpose.msra.mxu0 0.0
    %460 = vmatprep.subr.mxu0 0.0
    %461 = vmatpush1.xpose.msra.mxu0 0.0
    %462 = vmatprep.subr.mxu0 0.0
    %463 = vmatpush1.xpose.msra.mxu0 0.0
    %464 = vmatprep.subr.mxu0 0.0
    %465 = vmatpush1.xpose.msra.mxu0 0.0
    %466 = vmatprep.subr.mxu0 0.0
    %467 = vmatpush1.xpose.msra.mxu0 0.0
    %468 = vmatprep.subr.mxu0 0.0
    %469 = vmatpush1.xpose.msra.mxu0 0.0
    %470 = vmatprep.subr.mxu0 0.0
    %471 = vmatpush1.xpose.msra.mxu0 0.0
    %472 = vmatprep.subr.mxu0 0.0
    %473 = vmatpush1.xpose.msra.mxu0 0.0
    %474 = vmatprep.mubr.f32.mxu0 0.0
    %475 = vmatmul.mubr.f32.gmra.mrb[0].mxu0 %v406
    %v476 = vpop.f32.mrb[0].mxu0
    %v477 = vadd.f32 0.0, %v476
    %v478 = vpop.f32.mrb[0].mxu0
    %479 = vdwg.mxu0
    %480 = vrot.lane.b32.xlu0 %v309, 96
    %v481 = vpop.permute.xlu0 %480
    %v482 = vsel %vm405, %v309, 0
    %v484 = vsel %vm405, %v481, 0
    %486 = vmatprep.subr.mxu0 0.0
    %487 = vmatpush1.xpose.msra.mxu0 %v484
    %488 = vmatprep.subr.mxu0 0.0
    %489 = vmatpush1.xpose.msra.mxu0 0.0
    %490 = vmatprep.subr.mxu0 0.0
    %491 = vmatpush1.xpose.msra.mxu0 0.0
    %492 = vmatprep.subr.mxu0 0.0
    %493 = vmatpush1.xpose.msra.mxu0 0.0
    %494 = vmatprep.subr.mxu0 0.0
    %495 = vmatpush1.xpose.msra.mxu0 0.0
    %496 = vmatprep.subr.mxu0 0.0
    %497 = vmatpush1.xpose.msra.mxu0 0.0
    %498 = vmatprep.subr.mxu0 0.0
    %499 = vmatpush1.xpose.msra.mxu0 0.0
    %500 = vmatprep.subr.mxu0 0.0
    %501 = vmatpush1.xpose.msra.mxu0 0.0
    %502 = vmatprep.subr.mxu0 0.0
    %503 = vmatpush1.xpose.msra.mxu0 0.0
    %504 = vmatprep.subr.mxu0 0.0
    %505 = vmatpush1.xpose.msra.mxu0 0.0
    %506 = vmatprep.subr.mxu0 0.0
    %507 = vmatpush1.xpose.msra.mxu0 0.0
    %508 = vmatprep.subr.mxu0 0.0
    %509 = vmatpush1.xpose.msra.mxu0 0.0
    %510 = vmatprep.subr.mxu0 0.0
    %511 = vmatpush1.xpose.msra.mxu0 0.0
    %512 = vmatprep.subr.mxu0 0.0
    %513 = vmatpush1.xpose.msra.mxu0 0.0
    %514 = vmatprep.subr.mxu0 0.0
    %515 = vmatpush1.xpose.msra.mxu0 0.0
    %516 = vmatprep.subr.mxu0 0.0
    %517 = vmatpush1.xpose.msra.mxu0 0.0
    %518 = vmatprep.subr.mxu0 0.0
    %519 = vmatpush1.xpose.msra.mxu0 0.0
    %520 = vmatprep.subr.mxu0 0.0
    %521 = vmatpush1.xpose.msra.mxu0 0.0
    %522 = vmatprep.subr.mxu0 0.0
    %523 = vmatpush1.xpose.msra.mxu0 0.0
    %524 = vmatprep.subr.mxu0 0.0
    %525 = vmatpush1.xpose.msra.mxu0 0.0
    %526 = vmatprep.subr.mxu0 0.0
    %527 = vmatpush1.xpose.msra.mxu0 0.0
    %528 = vmatprep.subr.mxu0 0.0
    %529 = vmatpush1.xpose.msra.mxu0 0.0
    %530 = vmatprep.subr.mxu0 0.0
    %531 = vmatpush1.xpose.msra.mxu0 0.0
    %532 = vmatprep.subr.mxu0 0.0
    %533 = vmatpush1.xpose.msra.mxu0 0.0
    %534 = vmatprep.subr.mxu0 0.0
    %535 = vmatpush1.xpose.msra.mxu0 0.0
    %536 = vmatprep.subr.mxu0 0.0
    %537 = vmatpush1.xpose.msra.mxu0 0.0
    %538 = vmatprep.subr.mxu0 0.0
    %539 = vmatpush1.xpose.msra.mxu0 0.0
    %540 = vmatprep.subr.mxu0 0.0
    %541 = vmatpush1.xpose.msra.mxu0 0.0
    %542 = vmatprep.subr.mxu0 0.0
    %543 = vmatpush1.xpose.msra.mxu0 0.0
    %544 = vmatprep.subr.mxu0 0.0
    %545 = vmatpush1.xpose.msra.mxu0 0.0
    %546 = vmatprep.subr.mxu0 0.0
    %547 = vmatpush1.xpose.msra.mxu0 0.0
    %548 = vmatprep.subr.mxu0 0.0
    %549 = vmatpush1.xpose.msra.mxu0 0.0
    %550 = vmatprep.mubr.f32.mxu0 0.0
    %551 = vmatmul.mubr.f32.gmra.mrb[0].mxu0 %v482
    %v552 = vpop.f32.mrb[0].mxu0
    %v553 = vadd.f32 0.0, %v552
    %v554 = vpop.f32.mrb[0].mxu0
    %555 = vdwg.mxu0
    %556 = vrot.lane.b32.xlu0 %v314, 96
    %v557 = vpop.permute.xlu0 %556
    %v558 = vsel %vm405, %v314, 0
    %v560 = vsel %vm405, %v557, 0
    %562 = vmatprep.subr.mxu0 0.0
    %563 = vmatpush1.xpose.msra.mxu0 %v560
    %564 = vmatprep.subr.mxu0 0.0
    %565 = vmatpush1.xpose.msra.mxu0 0.0
    %566 = vmatprep.subr.mxu0 0.0
    %567 = vmatpush1.xpose.msra.mxu0 0.0
    %568 = vmatprep.subr.mxu0 0.0
    %569 = vmatpush1.xpose.msra.mxu0 0.0
    %570 = vmatprep.subr.mxu0 0.0
    %571 = vmatpush1.xpose.msra.mxu0 0.0
    %572 = vmatprep.subr.mxu0 0.0
    %573 = vmatpush1.xpose.msra.mxu0 0.0
    %574 = vmatprep.subr.mxu0 0.0
    %575 = vmatpush1.xpose.msra.mxu0 0.0
    %576 = vmatprep.subr.mxu0 0.0
    %577 = vmatpush1.xpose.msra.mxu0 0.0
    %578 = vmatprep.subr.mxu0 0.0
    %579 = vmatpush1.xpose.msra.mxu0 0.0
    %580 = vmatprep.subr.mxu0 0.0
    %581 = vmatpush1.xpose.msra.mxu0 0.0
    %582 = vmatprep.subr.mxu0 0.0
    %583 = vmatpush1.xpose.msra.mxu0 0.0
    %584 = vmatprep.subr.mxu0 0.0
    %585 = vmatpush1.xpose.msra.mxu0 0.0
    %586 = vmatprep.subr.mxu0 0.0
    %587 = vmatpush1.xpose.msra.mxu0 0.0
    %588 = vmatprep.subr.mxu0 0.0
    %589 = vmatpush1.xpose.msra.mxu0 0.0
    %590 = vmatprep.subr.mxu0 0.0
    %591 = vmatpush1.xpose.msra.mxu0 0.0
    %592 = vmatprep.subr.mxu0 0.0
    %593 = vmatpush1.xpose.msra.mxu0 0.0
    %594 = vmatprep.subr.mxu0 0.0
    %595 = vmatpush1.xpose.msra.mxu0 0.0
    %596 = vmatprep.subr.mxu0 0.0
    %597 = vmatpush1.xpose.msra.mxu0 0.0
    %598 = vmatprep.subr.mxu0 0.0
    %599 = vmatpush1.xpose.msra.mxu0 0.0
    %600 = vmatprep.subr.mxu0 0.0
    %601 = vmatpush1.xpose.msra.mxu0 0.0
    %602 = vmatprep.subr.mxu0 0.0
    %603 = vmatpush1.xpose.msra.mxu0 0.0
    %604 = vmatprep.subr.mxu0 0.0
    %605 = vmatpush1.xpose.msra.mxu0 0.0
    %606 = vmatprep.subr.mxu0 0.0
    %607 = vmatpush1.xpose.msra.mxu0 0.0
    %608 = vmatprep.subr.mxu0 0.0
    %609 = vmatpush1.xpose.msra.mxu0 0.0
    %610 = vmatprep.subr.mxu0 0.0
    %611 = vmatpush1.xpose.msra.mxu0 0.0
    %612 = vmatprep.subr.mxu0 0.0
    %613 = vmatpush1.xpose.msra.mxu0 0.0
    %614 = vmatprep.subr.mxu0 0.0
    %615 = vmatpush1.xpose.msra.mxu0 0.0
    %616 = vmatprep.subr.mxu0 0.0
    %617 = vmatpush1.xpose.msra.mxu0 0.0
    %618 = vmatprep.subr.mxu0 0.0
    %619 = vmatpush1.xpose.msra.mxu0 0.0
    %620 = vmatprep.subr.mxu0 0.0
    %621 = vmatpush1.xpose.msra.mxu0 0.0
    %622 = vmatprep.subr.mxu0 0.0
    %623 = vmatpush1.xpose.msra.mxu0 0.0
    %624 = vmatprep.subr.mxu0 0.0
    %625 = vmatpush1.xpose.msra.mxu0 0.0
    %626 = vmatprep.mubr.f32.mxu0 0.0
    %627 = vmatmul.mubr.f32.gmra.mrb[0].mxu0 %v558
    %v628 = vpop.f32.mrb[0].mxu0
    %v629 = vadd.f32 0.0, %v628
    %v630 = vpop.f32.mrb[0].mxu0
    %631 = vdwg.mxu0
    %632 = vrot.lane.b32.xlu0 %v319, 96
    %v633 = vpop.permute.xlu0 %632
    %v634 = vsel %vm405, %v319, 0
    %v636 = vsel %vm405, %v633, 0
    %638 = vmatprep.subr.mxu0 0.0
    %639 = vmatpush1.xpose.msra.mxu0 %v636
    %640 = vmatprep.subr.mxu0 0.0
    %641 = vmatpush1.xpose.msra.mxu0 0.0
    %642 = vmatprep.subr.mxu0 0.0
    %643 = vmatpush1.xpose.msra.mxu0 0.0
    %644 = vmatprep.subr.mxu0 0.0
    %645 = vmatpush1.xpose.msra.mxu0 0.0
    %646 = vmatprep.subr.mxu0 0.0
    %647 = vmatpush1.xpose.msra.mxu0 0.0
    %648 = vmatprep.subr.mxu0 0.0
    %649 = vmatpush1.xpose.msra.mxu0 0.0
    %650 = vmatprep.subr.mxu0 0.0
    %651 = vmatpush1.xpose.msra.mxu0 0.0
    %652 = vmatprep.subr.mxu0 0.0
    %653 = vmatpush1.xpose.msra.mxu0 0.0
    %654 = vmatprep.subr.mxu0 0.0
    %655 = vmatpush1.xpose.msra.mxu0 0.0
    %656 = vmatprep.subr.mxu0 0.0
    %657 = vmatpush1.xpose.msra.mxu0 0.0
    %658 = vmatprep.subr.mxu0 0.0
    %659 = vmatpush1.xpose.msra.mxu0 0.0
    %660 = vmatprep.subr.mxu0 0.0
    %661 = vmatpush1.xpose.msra.mxu0 0.0
    %662 = vmatprep.subr.mxu0 0.0
    %663 = vmatpush1.xpose.msra.mxu0 0.0
    %664 = vmatprep.subr.mxu0 0.0
    %665 = vmatpush1.xpose.msra.mxu0 0.0
    %666 = vmatprep.subr.mxu0 0.0
    %667 = vmatpush1.xpose.msra.mxu0 0.0
    %668 = vmatprep.subr.mxu0 0.0
    %669 = vmatpush1.xpose.msra.mxu0 0.0
    %670 = vmatprep.subr.mxu0 0.0
    %671 = vmatpush1.xpose.msra.mxu0 0.0
    %672 = vmatprep.subr.mxu0 0.0
    %673 = vmatpush1.xpose.msra.mxu0 0.0
    %674 = vmatprep.subr.mxu0 0.0
    %675 = vmatpush1.xpose.msra.mxu0 0.0
    %676 = vmatprep.subr.mxu0 0.0
    %677 = vmatpush1.xpose.msra.mxu0 0.0
    %678 = vmatprep.subr.mxu0 0.0
    %679 = vmatpush1.xpose.msra.mxu0 0.0
    %680 = vmatprep.subr.mxu0 0.0
    %681 = vmatpush1.xpose.msra.mxu0 0.0
    %682 = vmatprep.subr.mxu0 0.0
    %683 = vmatpush1.xpose.msra.mxu0 0.0
    %684 = vmatprep.subr.mxu0 0.0
    %685 = vmatpush1.xpose.msra.mxu0 0.0
    %686 = vmatprep.subr.mxu0 0.0
    %687 = vmatpush1.xpose.msra.mxu0 0.0
    %688 = vmatprep.subr.mxu0 0.0
    %689 = vmatpush1.xpose.msra.mxu0 0.0
    %690 = vmatprep.subr.mxu0 0.0
    %691 = vmatpush1.xpose.msra.mxu0 0.0
    %692 = vmatprep.subr.mxu0 0.0
    %693 = vmatpush1.xpose.msra.mxu0 0.0
    %694 = vmatprep.subr.mxu0 0.0
    %695 = vmatpush1.xpose.msra.mxu0 0.0
    %696 = vmatprep.subr.mxu0 0.0
    %697 = vmatpush1.xpose.msra.mxu0 0.0
    %698 = vmatprep.subr.mxu0 0.0
    %699 = vmatpush1.xpose.msra.mxu0 0.0
    %700 = vmatprep.subr.mxu0 0.0
    %701 = vmatpush1.xpose.msra.mxu0 0.0
    %702 = vmatprep.mubr.f32.mxu0 0.0
    %703 = vmatmul.mubr.f32.gmra.mrb[0].mxu0 %v634
    %v704 = vpop.f32.mrb[0].mxu0
    %v705 = vadd.f32 0.0, %v704
    %v706 = vpop.f32.mrb[0].mxu0
    %707 = vdwg.mxu0
    %708 = vrot.lane.b32.xlu0 %v324, 96
    %v709 = vpop.permute.xlu0 %708
    %v710 = vsel %vm405, %v324, 0
    %v712 = vsel %vm405, %v709, 0
    %714 = vmatprep.subr.mxu0 0.0
    %715 = vmatpush1.xpose.msra.mxu0 %v712
    %716 = vmatprep.subr.mxu0 0.0
    %717 = vmatpush1.xpose.msra.mxu0 0.0
    %718 = vmatprep.subr.mxu0 0.0
    %719 = vmatpush1.xpose.msra.mxu0 0.0
    %720 = vmatprep.subr.mxu0 0.0
    %721 = vmatpush1.xpose.msra.mxu0 0.0
    %722 = vmatprep.subr.mxu0 0.0
    %723 = vmatpush1.xpose.msra.mxu0 0.0
    %724 = vmatprep.subr.mxu0 0.0
    %725 = vmatpush1.xpose.msra.mxu0 0.0
    %726 = vmatprep.subr.mxu0 0.0
    %727 = vmatpush1.xpose.msra.mxu0 0.0
    %728 = vmatprep.subr.mxu0 0.0
    %729 = vmatpush1.xpose.msra.mxu0 0.0
    %730 = vmatprep.subr.mxu0 0.0
    %731 = vmatpush1.xpose.msra.mxu0 0.0
    %732 = vmatprep.subr.mxu0 0.0
    %733 = vmatpush1.xpose.msra.mxu0 0.0
    %734 = vmatprep.subr.mxu0 0.0
    %735 = vmatpush1.xpose.msra.mxu0 0.0
    %736 = vmatprep.subr.mxu0 0.0
    %737 = vmatpush1.xpose.msra.mxu0 0.0
    %738 = vmatprep.subr.mxu0 0.0
    %739 = vmatpush1.xpose.msra.mxu0 0.0
    %740 = vmatprep.subr.mxu0 0.0
    %741 = vmatpush1.xpose.msra.mxu0 0.0
    %742 = vmatprep.subr.mxu0 0.0
    %743 = vmatpush1.xpose.msra.mxu0 0.0
    %744 = vmatprep.subr.mxu0 0.0
    %745 = vmatpush1.xpose.msra.mxu0 0.0
    %746 = vmatprep.subr.mxu0 0.0
    %747 = vmatpush1.xpose.msra.mxu0 0.0
    %748 = vmatprep.subr.mxu0 0.0
    %749 = vmatpush1.xpose.msra.mxu0 0.0
    %750 = vmatprep.subr.mxu0 0.0
    %751 = vmatpush1.xpose.msra.mxu0 0.0
    %752 = vmatprep.subr.mxu0 0.0
    %753 = vmatpush1.xpose.msra.mxu0 0.0
    %754 = vmatprep.subr.mxu0 0.0
    %755 = vmatpush1.xpose.msra.mxu0 0.0
    %756 = vmatprep.subr.mxu0 0.0
    %757 = vmatpush1.xpose.msra.mxu0 0.0
    %758 = vmatprep.subr.mxu0 0.0
    %759 = vmatpush1.xpose.msra.mxu0 0.0
    %760 = vmatprep.subr.mxu0 0.0
    %761 = vmatpush1.xpose.msra.mxu0 0.0
    %762 = vmatprep.subr.mxu0 0.0
    %763 = vmatpush1.xpose.msra.mxu0 0.0
    %764 = vmatprep.subr.mxu0 0.0
    %765 = vmatpush1.xpose.msra.mxu0 0.0
    %766 = vmatprep.subr.mxu0 0.0
    %767 = vmatpush1.xpose.msra.mxu0 0.0
    %768 = vmatprep.subr.mxu0 0.0
    %769 = vmatpush1.xpose.msra.mxu0 0.0
    %770 = vmatprep.subr.mxu0 0.0
    %771 = vmatpush1.xpose.msra.mxu0 0.0
    %772 = vmatprep.subr.mxu0 0.0
    %773 = vmatpush1.xpose.msra.mxu0 0.0
    %774 = vmatprep.subr.mxu0 0.0
    %775 = vmatpush1.xpose.msra.mxu0 0.0
    %776 = vmatprep.subr.mxu0 0.0
    %777 = vmatpush1.xpose.msra.mxu0 0.0
    %778 = vmatprep.mubr.f32.mxu0 0.0
    %779 = vmatmul.mubr.f32.gmra.mrb[0].mxu0 %v710
    %v780 = vpop.f32.mrb[0].mxu0
    %v781 = vadd.f32 0.0, %v780
    %v782 = vpop.f32.mrb[0].mxu0
    %783 = vdwg.mxu0
    %784 = vrot.lane.b32.xlu0 %v329, 96
    %v785 = vpop.permute.xlu0 %784
    %v786 = vsel %vm405, %v329, 0
    %v788 = vsel %vm405, %v785, 0
    %790 = vmatprep.subr.mxu0 0.0
    %791 = vmatpush1.xpose.msra.mxu0 %v788
    %792 = vmatprep.subr.mxu0 0.0
    %793 = vmatpush1.xpose.msra.mxu0 0.0
    %794 = vmatprep.subr.mxu0 0.0
    %795 = vmatpush1.xpose.msra.mxu0 0.0
    %796 = vmatprep.subr.mxu0 0.0
    %797 = vmatpush1.xpose.msra.mxu0 0.0
    %798 = vmatprep.subr.mxu0 0.0
    %799 = vmatpush1.xpose.msra.mxu0 0.0
    %800 = vmatprep.subr.mxu0 0.0
    %801 = vmatpush1.xpose.msra.mxu0 0.0
    %802 = vmatprep.subr.mxu0 0.0
    %803 = vmatpush1.xpose.msra.mxu0 0.0
    %804 = vmatprep.subr.mxu0 0.0
    %805 = vmatpush1.xpose.msra.mxu0 0.0
    %806 = vmatprep.subr.mxu0 0.0
    %807 = vmatpush1.xpose.msra.mxu0 0.0
    %808 = vmatprep.subr.mxu0 0.0
    %809 = vmatpush1.xpose.msra.mxu0 0.0
    %810 = vmatprep.subr.mxu0 0.0
    %811 = vmatpush1.xpose.msra.mxu0 0.0
    %812 = vmatprep.subr.mxu0 0.0
    %813 = vmatpush1.xpose.msra.mxu0 0.0
    %814 = vmatprep.subr.mxu0 0.0
    %815 = vmatpush1.xpose.msra.mxu0 0.0
    %816 = vmatprep.subr.mxu0 0.0
    %817 = vmatpush1.xpose.msra.mxu0 0.0
    %818 = vmatprep.subr.mxu0 0.0
    %819 = vmatpush1.xpose.msra.mxu0 0.0
    %820 = vmatprep.subr.mxu0 0.0
    %821 = vmatpush1.xpose.msra.mxu0 0.0
    %822 = vmatprep.subr.mxu0 0.0
    %823 = vmatpush1.xpose.msra.mxu0 0.0
    %824 = vmatprep.subr.mxu0 0.0
    %825 = vmatpush1.xpose.msra.mxu0 0.0
    %826 = vmatprep.subr.mxu0 0.0
    %827 = vmatpush1.xpose.msra.mxu0 0.0
    %828 = vmatprep.subr.mxu0 0.0
    %829 = vmatpush1.xpose.msra.mxu0 0.0
    %830 = vmatprep.subr.mxu0 0.0
    %831 = vmatpush1.xpose.msra.mxu0 0.0
    %832 = vmatprep.subr.mxu0 0.0
    %833 = vmatpush1.xpose.msra.mxu0 0.0
    %834 = vmatprep.subr.mxu0 0.0
    %835 = vmatpush1.xpose.msra.mxu0 0.0
    %836 = vmatprep.subr.mxu0 0.0
    %837 = vmatpush1.xpose.msra.mxu0 0.0
    %838 = vmatprep.subr.mxu0 0.0
    %839 = vmatpush1.xpose.msra.mxu0 0.0
    %840 = vmatprep.subr.mxu0 0.0
    %841 = vmatpush1.xpose.msra.mxu0 0.0
    %842 = vmatprep.subr.mxu0 0.0
    %843 = vmatpush1.xpose.msra.mxu0 0.0
    %844 = vmatprep.subr.mxu0 0.0
    %845 = vmatpush1.xpose.msra.mxu0 0.0
    %846 = vmatprep.subr.mxu0 0.0
    %847 = vmatpush1.xpose.msra.mxu0 0.0
    %848 = vmatprep.subr.mxu0 0.0
    %849 = vmatpush1.xpose.msra.mxu0 0.0
    %850 = vmatprep.subr.mxu0 0.0
    %851 = vmatpush1.xpose.msra.mxu0 0.0
    %852 = vmatprep.subr.mxu0 0.0
    %853 = vmatpush1.xpose.msra.mxu0 0.0
    %854 = vmatprep.mubr.f32.mxu0 0.0
    %855 = vmatmul.mubr.f32.gmra.mrb[0].mxu0 %v786
    %v856 = vpop.f32.mrb[0].mxu0
    %v857 = vadd.f32 0.0, %v856
    %v858 = vpop.f32.mrb[0].mxu0
    %859 = vdwg.mxu0
    %860 = vrot.lane.b32.xlu0 %v334, 96
    %v861 = vpop.permute.xlu0 %860
    %v862 = vsel %vm405, %v334, 0
    %v864 = vsel %vm405, %v861, 0
    %866 = vmatprep.subr.mxu0 0.0
    %867 = vmatpush1.xpose.msra.mxu0 %v864
    %868 = vmatprep.subr.mxu0 0.0
    %869 = vmatpush1.xpose.msra.mxu0 0.0
    %870 = vmatprep.subr.mxu0 0.0
    %871 = vmatpush1.xpose.msra.mxu0 0.0
    %872 = vmatprep.subr.mxu0 0.0
    %873 = vmatpush1.xpose.msra.mxu0 0.0
    %874 = vmatprep.subr.mxu0 0.0
    %875 = vmatpush1.xpose.msra.mxu0 0.0
    %876 = vmatprep.subr.mxu0 0.0
    %877 = vmatpush1.xpose.msra.mxu0 0.0
    %878 = vmatprep.subr.mxu0 0.0
    %879 = vmatpush1.xpose.msra.mxu0 0.0
    %880 = vmatprep.subr.mxu0 0.0
    %881 = vmatpush1.xpose.msra.mxu0 0.0
    %882 = vmatprep.subr.mxu0 0.0
    %883 = vmatpush1.xpose.msra.mxu0 0.0
    %884 = vmatprep.subr.mxu0 0.0
    %885 = vmatpush1.xpose.msra.mxu0 0.0
    %886 = vmatprep.subr.mxu0 0.0
    %887 = vmatpush1.xpose.msra.mxu0 0.0
    %888 = vmatprep.subr.mxu0 0.0
    %889 = vmatpush1.xpose.msra.mxu0 0.0
    %890 = vmatprep.subr.mxu0 0.0
    %891 = vmatpush1.xpose.msra.mxu0 0.0
    %892 = vmatprep.subr.mxu0 0.0
    %893 = vmatpush1.xpose.msra.mxu0 0.0
    %894 = vmatprep.subr.mxu0 0.0
    %895 = vmatpush1.xpose.msra.mxu0 0.0
    %896 = vmatprep.subr.mxu0 0.0
    %897 = vmatpush1.xpose.msra.mxu0 0.0
    %898 = vmatprep.subr.mxu0 0.0
    %899 = vmatpush1.xpose.msra.mxu0 0.0
    %900 = vmatprep.subr.mxu0 0.0
    %901 = vmatpush1.xpose.msra.mxu0 0.0
    %902 = vmatprep.subr.mxu0 0.0
    %903 = vmatpush1.xpose.msra.mxu0 0.0
    %904 = vmatprep.subr.mxu0 0.0
    %905 = vmatpush1.xpose.msra.mxu0 0.0
    %906 = vmatprep.subr.mxu0 0.0
    %907 = vmatpush1.xpose.msra.mxu0 0.0
    %908 = vmatprep.subr.mxu0 0.0
    %909 = vmatpush1.xpose.msra.mxu0 0.0
    %910 = vmatprep.subr.mxu0 0.0
    %911 = vmatpush1.xpose.msra.mxu0 0.0
    %912 = vmatprep.subr.mxu0 0.0
    %913 = vmatpush1.xpose.msra.mxu0 0.0
    %914 = vmatprep.subr.mxu0 0.0
    %915 = vmatpush1.xpose.msra.mxu0 0.0
    %916 = vmatprep.subr.mxu0 0.0
    %917 = vmatpush1.xpose.msra.mxu0 0.0
    %918 = vmatprep.subr.mxu0 0.0
    %919 = vmatpush1.xpose.msra.mxu0 0.0
    %920 = vmatprep.subr.mxu0 0.0
    %921 = vmatpush1.xpose.msra.mxu0 0.0
    %922 = vmatprep.subr.mxu0 0.0
    %923 = vmatpush1.xpose.msra.mxu0 0.0
    %924 = vmatprep.subr.mxu0 0.0
    %925 = vmatpush1.xpose.msra.mxu0 0.0
    %926 = vmatprep.subr.mxu0 0.0
    %927 = vmatpush1.xpose.msra.mxu0 0.0
    %928 = vmatprep.subr.mxu0 0.0
    %929 = vmatpush1.xpose.msra.mxu0 0.0
    %930 = vmatprep.mubr.f32.mxu0 0.0
    %931 = vmatmul.mubr.f32.gmra.mrb[0].mxu0 %v862
    %v932 = vpop.f32.mrb[0].mxu0
    %v933 = vadd.f32 0.0, %v932
    %v934 = vpop.f32.mrb[0].mxu0
    %935 = vdwg.mxu0
    %936 = vrot.lane.b32.xlu0 %v339, 96
    %v937 = vpop.permute.xlu0 %936
    %v938 = vsel %vm405, %v339, 0
    %v940 = vsel %vm405, %v937, 0
    %942 = vmatprep.subr.mxu0 0.0
    %943 = vmatpush1.xpose.msra.mxu0 %v940
    %944 = vmatprep.subr.mxu0 0.0
    %945 = vmatpush1.xpose.msra.mxu0 0.0
    %946 = vmatprep.subr.mxu0 0.0
    %947 = vmatpush1.xpose.msra.mxu0 0.0
    %948 = vmatprep.subr.mxu0 0.0
    %949 = vmatpush1.xpose.msra.mxu0 0.0
    %950 = vmatprep.subr.mxu0 0.0
    %951 = vmatpush1.xpose.msra.mxu0 0.0
    %952 = vmatprep.subr.mxu0 0.0
    %953 = vmatpush1.xpose.msra.mxu0 0.0
    %954 = vmatprep.subr.mxu0 0.0
    %955 = vmatpush1.xpose.msra.mxu0 0.0
    %956 = vmatprep.subr.mxu0 0.0
    %957 = vmatpush1.xpose.msra.mxu0 0.0
    %958 = vmatprep.subr.mxu0 0.0
    %959 = vmatpush1.xpose.msra.mxu0 0.0
    %960 = vmatprep.subr.mxu0 0.0
    %961 = vmatpush1.xpose.msra.mxu0 0.0
    %962 = vmatprep.subr.mxu0 0.0
    %963 = vmatpush1.xpose.msra.mxu0 0.0
    %964 = vmatprep.subr.mxu0 0.0
    %965 = vmatpush1.xpose.msra.mxu0 0.0
    %966 = vmatprep.subr.mxu0 0.0
    %967 = vmatpush1.xpose.msra.mxu0 0.0
    %968 = vmatprep.subr.mxu0 0.0
    %969 = vmatpush1.xpose.msra.mxu0 0.0
    %970 = vmatprep.subr.mxu0 0.0
    %971 = vmatpush1.xpose.msra.mxu0 0.0
    %972 = vmatprep.subr.mxu0 0.0
    %973 = vmatpush1.xpose.msra.mxu0 0.0
    %974 = vmatprep.subr.mxu0 0.0
    %975 = vmatpush1.xpose.msra.mxu0 0.0
    %976 = vmatprep.subr.mxu0 0.0
    %977 = vmatpush1.xpose.msra.mxu0 0.0
    %978 = vmatprep.subr.mxu0 0.0
    %979 = vmatpush1.xpose.msra.mxu0 0.0
    %980 = vmatprep.subr.mxu0 0.0
    %981 = vmatpush1.xpose.msra.mxu0 0.0
    %982 = vmatprep.subr.mxu0 0.0
    %983 = vmatpush1.xpose.msra.mxu0 0.0
    %984 = vmatprep.subr.mxu0 0.0
    %985 = vmatpush1.xpose.msra.mxu0 0.0
    %986 = vmatprep.subr.mxu0 0.0
    %987 = vmatpush1.xpose.msra.mxu0 0.0
    %988 = vmatprep.subr.mxu0 0.0
    %989 = vmatpush1.xpose.msra.mxu0 0.0
    %990 = vmatprep.subr.mxu0 0.0
    %991 = vmatpush1.xpose.msra.mxu0 0.0
    %992 = vmatprep.subr.mxu0 0.0
    %993 = vmatpush1.xpose.msra.mxu0 0.0
    %994 = vmatprep.subr.mxu0 0.0
    %995 = vmatpush1.xpose.msra.mxu0 0.0
    %996 = vmatprep.subr.mxu0 0.0
    %997 = vmatpush1.xpose.msra.mxu0 0.0
    %998 = vmatprep.subr.mxu0 0.0
    %999 = vmatpush1.xpose.msra.mxu0 0.0
    %1000 = vmatprep.subr.mxu0 0.0
    %1001 = vmatpush1.xpose.msra.mxu0 0.0
    %1002 = vmatprep.subr.mxu0 0.0
    %1003 = vmatpush1.xpose.msra.mxu0 0.0
    %1004 = vmatprep.subr.mxu0 0.0
    %1005 = vmatpush1.xpose.msra.mxu0 0.0
    %1006 = vmatprep.mubr.f32.mxu0 0.0
    %1007 = vmatmul.mubr.f32.gmra.mrb[0].mxu0 %v938
    %v1008 = vpop.f32.mrb[0].mxu0
    %v1009 = vadd.f32 0.0, %v1008
    %v1010 = vpop.f32.mrb[0].mxu0
    %1011 = vdwg.mxu0
    %1012 = vrot.lane.b32.xlu0 %v356, 96
    %v1013 = vpop.permute.xlu0 %1012
    %v1014 = vsel %vm405, %v356, 0
    %v1016 = vsel %vm405, %v1013, 0
    %1018 = vmatprep.subr.mxu0 0.0
    %1019 = vmatpush1.xpose.msra.mxu0 %v1016
    %1020 = vmatprep.subr.mxu0 0.0
    %1021 = vmatpush1.xpose.msra.mxu0 0.0
    %1022 = vmatprep.subr.mxu0 0.0
    %1023 = vmatpush1.xpose.msra.mxu0 0.0
    %1024 = vmatprep.subr.mxu0 0.0
    %1025 = vmatpush1.xpose.msra.mxu0 0.0
    %1026 = vmatprep.subr.mxu0 0.0
    %1027 = vmatpush1.xpose.msra.mxu0 0.0
    %1028 = vmatprep.subr.mxu0 0.0
    %1029 = vmatpush1.xpose.msra.mxu0 0.0
    %1030 = vmatprep.subr.mxu0 0.0
    %1031 = vmatpush1.xpose.msra.mxu0 0.0
    %1032 = vmatprep.subr.mxu0 0.0
    %1033 = vmatpush1.xpose.msra.mxu0 0.0
    %1034 = vmatprep.subr.mxu0 0.0
    %1035 = vmatpush1.xpose.msra.mxu0 0.0
    %1036 = vmatprep.subr.mxu0 0.0
    %1037 = vmatpush1.xpose.msra.mxu0 0.0
    %1038 = vmatprep.subr.mxu0 0.0
    %1039 = vmatpush1.xpose.msra.mxu0 0.0
    %1040 = vmatprep.subr.mxu0 0.0
    %1041 = vmatpush1.xpose.msra.mxu0 0.0
    %1042 = vmatprep.subr.mxu0 0.0
    %1043 = vmatpush1.xpose.msra.mxu0 0.0
    %1044 = vmatprep.subr.mxu0 0.0
    %1045 = vmatpush1.xpose.msra.mxu0 0.0
    %1046 = vmatprep.subr.mxu0 0.0
    %1047 = vmatpush1.xpose.msra.mxu0 0.0
    %1048 = vmatprep.subr.mxu0 0.0
    %1049 = vmatpush1.xpose.msra.mxu0 0.0
    %1050 = vmatprep.subr.mxu0 0.0
    %1051 = vmatpush1.xpose.msra.mxu0 0.0
    %1052 = vmatprep.subr.mxu0 0.0
    %1053 = vmatpush1.xpose.msra.mxu0 0.0
    %1054 = vmatprep.subr.mxu0 0.0
    %1055 = vmatpush1.xpose.msra.mxu0 0.0
    %1056 = vmatprep.subr.mxu0 0.0
    %1057 = vmatpush1.xpose.msra.mxu0 0.0
    %1058 = vmatprep.subr.mxu0 0.0
    %1059 = vmatpush1.xpose.msra.mxu0 0.0
    %1060 = vmatprep.subr.mxu0 0.0
    %1061 = vmatpush1.xpose.msra.mxu0 0.0
    %1062 = vmatprep.subr.mxu0 0.0
    %1063 = vmatpush1.xpose.msra.mxu0 0.0
    %1064 = vmatprep.subr.mxu0 0.0
    %1065 = vmatpush1.xpose.msra.mxu0 0.0
    %1066 = vmatprep.subr.mxu0 0.0
    %1067 = vmatpush1.xpose.msra.mxu0 0.0
    %1068 = vmatprep.subr.mxu0 0.0
    %1069 = vmatpush1.xpose.msra.mxu0 0.0
    %1070 = vmatprep.subr.mxu0 0.0
    %1071 = vmatpush1.xpose.msra.mxu0 0.0
    %1072 = vmatprep.subr.mxu0 0.0
    %1073 = vmatpush1.xpose.msra.mxu0 0.0
    %1074 = vmatprep.subr.mxu0 0.0
    %1075 = vmatpush1.xpose.msra.mxu0 0.0
    %1076 = vmatprep.subr.mxu0 0.0
    %1077 = vmatpush1.xpose.msra.mxu0 0.0
    %1078 = vmatprep.subr.mxu0 0.0
    %1079 = vmatpush1.xpose.msra.mxu0 0.0
    %1080 = vmatprep.subr.mxu0 0.0
    %1081 = vmatpush1.xpose.msra.mxu0 0.0
    %1082 = vmatprep.mubr.f32.mxu0 0.0
    %1083 = vmatmul.mubr.f32.gmra.mrb[0].mxu0 %v1014
    %v1084 = vpop.f32.mrb[0].mxu0
    %v1085 = vadd.f32 0.0, %v1084
    %v1086 = vpop.f32.mrb[0].mxu0
    %1087 = vdwg.mxu0
    %1088 = vrot.lane.b32.xlu0 %v358, 96
    %v1089 = vpop.permute.xlu0 %1088
    %v1090 = vsel %vm405, %v358, 0
    %v1092 = vsel %vm405, %v1089, 0
    %1094 = vmatprep.subr.mxu0 0.0
    %1095 = vmatpush1.xpose.msra.mxu0 %v1092
    %1096 = vmatprep.subr.mxu0 0.0
    %1097 = vmatpush1.xpose.msra.mxu0 0.0
    %1098 = vmatprep.subr.mxu0 0.0
    %1099 = vmatpush1.xpose.msra.mxu0 0.0
    %1100 = vmatprep.subr.mxu0 0.0
    %1101 = vmatpush1.xpose.msra.mxu0 0.0
    %1102 = vmatprep.subr.mxu0 0.0
    %1103 = vmatpush1.xpose.msra.mxu0 0.0
    %1104 = vmatprep.subr.mxu0 0.0
    %1105 = vmatpush1.xpose.msra.mxu0 0.0
    %1106 = vmatprep.subr.mxu0 0.0
    %1107 = vmatpush1.xpose.msra.mxu0 0.0
    %1108 = vmatprep.subr.mxu0 0.0
    %1109 = vmatpush1.xpose.msra.mxu0 0.0
    %1110 = vmatprep.subr.mxu0 0.0
    %1111 = vmatpush1.xpose.msra.mxu0 0.0
    %1112 = vmatprep.subr.mxu0 0.0
    %1113 = vmatpush1.xpose.msra.mxu0 0.0
    %1114 = vmatprep.subr.mxu0 0.0
    %1115 = vmatpush1.xpose.msra.mxu0 0.0
    %1116 = vmatprep.subr.mxu0 0.0
    %1117 = vmatpush1.xpose.msra.mxu0 0.0
    %1118 = vmatprep.subr.mxu0 0.0
    %1119 = vmatpush1.xpose.msra.mxu0 0.0
    %1120 = vmatprep.subr.mxu0 0.0
    %1121 = vmatpush1.xpose.msra.mxu0 0.0
    %1122 = vmatprep.subr.mxu0 0.0
    %1123 = vmatpush1.xpose.msra.mxu0 0.0
    %1124 = vmatprep.subr.mxu0 0.0
    %1125 = vmatpush1.xpose.msra.mxu0 0.0
    %1126 = vmatprep.subr.mxu0 0.0
    %1127 = vmatpush1.xpose.msra.mxu0 0.0
    %1128 = vmatprep.subr.mxu0 0.0
    %1129 = vmatpush1.xpose.msra.mxu0 0.0
    %1130 = vmatprep.subr.mxu0 0.0
    %1131 = vmatpush1.xpose.msra.mxu0 0.0
    %1132 = vmatprep.subr.mxu0 0.0
    %1133 = vmatpush1.xpose.msra.mxu0 0.0
    %1134 = vmatprep.subr.mxu0 0.0
    %1135 = vmatpush1.xpose.msra.mxu0 0.0
    %1136 = vmatprep.subr.mxu0 0.0
    %1137 = vmatpush1.xpose.msra.mxu0 0.0
    %1138 = vmatprep.subr.mxu0 0.0
    %1139 = vmatpush1.xpose.msra.mxu0 0.0
    %1140 = vmatprep.subr.mxu0 0.0
    %1141 = vmatpush1.xpose.msra.mxu0 0.0
    %1142 = vmatprep.subr.mxu0 0.0
    %1143 = vmatpush1.xpose.msra.mxu0 0.0
    %1144 = vmatprep.subr.mxu0 0.0
    %1145 = vmatpush1.xpose.msra.mxu0 0.0
    %1146 = vmatprep.subr.mxu0 0.0
    %1147 = vmatpush1.xpose.msra.mxu0 0.0
    %1148 = vmatprep.subr.mxu0 0.0
    %1149 = vmatpush1.xpose.msra.mxu0 0.0
    %1150 = vmatprep.subr.mxu0 0.0
    %1151 = vmatpush1.xpose.msra.mxu0 0.0
    %1152 = vmatprep.subr.mxu0 0.0
    %1153 = vmatpush1.xpose.msra.mxu0 0.0
    %1154 = vmatprep.subr.mxu0 0.0
    %1155 = vmatpush1.xpose.msra.mxu0 0.0
    %1156 = vmatprep.subr.mxu0 0.0
    %1157 = vmatpush1.xpose.msra.mxu0 0.0
    %1158 = vmatprep.mubr.f32.mxu0 0.0
    %1159 = vmatmul.mubr.f32.gmra.mrb[0].mxu0 %v1090
    %v1160 = vpop.f32.mrb[0].mxu0
    %v1161 = vadd.f32 0.0, %v1160
    %v1162 = vpop.f32.mrb[0].mxu0
    %1163 = vdwg.mxu0
    %1164 = vrot.lane.b32.xlu0 %v360, 96
    %v1165 = vpop.permute.xlu0 %1164
    %v1166 = vsel %vm405, %v360, 0
    %v1168 = vsel %vm405, %v1165, 0
    %1170 = vmatprep.subr.mxu0 0.0
    %1171 = vmatpush1.xpose.msra.mxu0 %v1168
    %1172 = vmatprep.subr.mxu0 0.0
    %1173 = vmatpush1.xpose.msra.mxu0 0.0
    %1174 = vmatprep.subr.mxu0 0.0
    %1175 = vmatpush1.xpose.msra.mxu0 0.0
    %1176 = vmatprep.subr.mxu0 0.0
    %1177 = vmatpush1.xpose.msra.mxu0 0.0
    %1178 = vmatprep.subr.mxu0 0.0
    %1179 = vmatpush1.xpose.msra.mxu0 0.0
    %1180 = vmatprep.subr.mxu0 0.0
    %1181 = vmatpush1.xpose.msra.mxu0 0.0
    %1182 = vmatprep.subr.mxu0 0.0
    %1183 = vmatpush1.xpose.msra.mxu0 0.0
    %1184 = vmatprep.subr.mxu0 0.0
    %1185 = vmatpush1.xpose.msra.mxu0 0.0
    %1186 = vmatprep.subr.mxu0 0.0
    %1187 = vmatpush1.xpose.msra.mxu0 0.0
    %1188 = vmatprep.subr.mxu0 0.0
    %1189 = vmatpush1.xpose.msra.mxu0 0.0
    %1190 = vmatprep.subr.mxu0 0.0
    %1191 = vmatpush1.xpose.msra.mxu0 0.0
    %1192 = vmatprep.subr.mxu0 0.0
    %1193 = vmatpush1.xpose.msra.mxu0 0.0
    %1194 = vmatprep.subr.mxu0 0.0
    %1195 = vmatpush1.xpose.msra.mxu0 0.0
    %1196 = vmatprep.subr.mxu0 0.0
    %1197 = vmatpush1.xpose.msra.mxu0 0.0
    %1198 = vmatprep.subr.mxu0 0.0
    %1199 = vmatpush1.xpose.msra.mxu0 0.0
    %1200 = vmatprep.subr.mxu0 0.0
    %1201 = vmatpush1.xpose.msra.mxu0 0.0
    %1202 = vmatprep.subr.mxu0 0.0
    %1203 = vmatpush1.xpose.msra.mxu0 0.0
    %1204 = vmatprep.subr.mxu0 0.0
    %1205 = vmatpush1.xpose.msra.mxu0 0.0
    %1206 = vmatprep.subr.mxu0 0.0
    %1207 = vmatpush1.xpose.msra.mxu0 0.0
    %1208 = vmatprep.subr.mxu0 0.0
    %1209 = vmatpush1.xpose.msra.mxu0 0.0
    %1210 = vmatprep.subr.mxu0 0.0
    %1211 = vmatpush1.xpose.msra.mxu0 0.0
    %1212 = vmatprep.subr.mxu0 0.0
    %1213 = vmatpush1.xpose.msra.mxu0 0.0
    %1214 = vmatprep.subr.mxu0 0.0
    %1215 = vmatpush1.xpose.msra.mxu0 0.0
    %1216 = vmatprep.subr.mxu0 0.0
    %1217 = vmatpush1.xpose.msra.mxu0 0.0
    %1218 = vmatprep.subr.mxu0 0.0
    %1219 = vmatpush1.xpose.msra.mxu0 0.0
    %1220 = vmatprep.subr.mxu0 0.0
    %1221 = vmatpush1.xpose.msra.mxu0 0.0
    %1222 = vmatprep.subr.mxu0 0.0
    %1223 = vmatpush1.xpose.msra.mxu0 0.0
    %1224 = vmatprep.subr.mxu0 0.0
    %1225 = vmatpush1.xpose.msra.mxu0 0.0
    %1226 = vmatprep.subr.mxu0 0.0
    %1227 = vmatpush1.xpose.msra.mxu0 0.0
    %1228 = vmatprep.subr.mxu0 0.0
    %1229 = vmatpush1.xpose.msra.mxu0 0.0
    %1230 = vmatprep.subr.mxu0 0.0
    %1231 = vmatpush1.xpose.msra.mxu0 0.0
    %1232 = vmatprep.subr.mxu0 0.0
    %1233 = vmatpush1.xpose.msra.mxu0 0.0
    %1234 = vmatprep.mubr.f32.mxu0 0.0
    %1235 = vmatmul.mubr.f32.gmra.mrb[0].mxu0 %v1166
    %v1236 = vpop.f32.mrb[0].mxu0
    %v1237 = vadd.f32 0.0, %v1236
    %v1238 = vpop.f32.mrb[0].mxu0
    %1239 = vdwg.mxu0
    %1240 = vrot.lane.b32.xlu0 %v362, 96
    %v1241 = vpop.permute.xlu0 %1240
    %v1242 = vsel %vm405, %v362, 0
    %v1244 = vsel %vm405, %v1241, 0
    %1246 = vmatprep.subr.mxu0 0.0
    %1247 = vmatpush1.xpose.msra.mxu0 %v1244
    %1248 = vmatprep.subr.mxu0 0.0
    %1249 = vmatpush1.xpose.msra.mxu0 0.0
    %1250 = vmatprep.subr.mxu0 0.0
    %1251 = vmatpush1.xpose.msra.mxu0 0.0
    %1252 = vmatprep.subr.mxu0 0.0
    %1253 = vmatpush1.xpose.msra.mxu0 0.0
    %1254 = vmatprep.subr.mxu0 0.0
    %1255 = vmatpush1.xpose.msra.mxu0 0.0
    %1256 = vmatprep.subr.mxu0 0.0
    %1257 = vmatpush1.xpose.msra.mxu0 0.0
    %1258 = vmatprep.subr.mxu0 0.0
    %1259 = vmatpush1.xpose.msra.mxu0 0.0
    %1260 = vmatprep.subr.mxu0 0.0
    %1261 = vmatpush1.xpose.msra.mxu0 0.0
    %1262 = vmatprep.subr.mxu0 0.0
    %1263 = vmatpush1.xpose.msra.mxu0 0.0
    %1264 = vmatprep.subr.mxu0 0.0
    %1265 = vmatpush1.xpose.msra.mxu0 0.0
    %1266 = vmatprep.subr.mxu0 0.0
    %1267 = vmatpush1.xpose.msra.mxu0 0.0
    %1268 = vmatprep.subr.mxu0 0.0
    %1269 = vmatpush1.xpose.msra.mxu0 0.0
    %1270 = vmatprep.subr.mxu0 0.0
    %1271 = vmatpush1.xpose.msra.mxu0 0.0
    %1272 = vmatprep.subr.mxu0 0.0
    %1273 = vmatpush1.xpose.msra.mxu0 0.0
    %1274 = vmatprep.subr.mxu0 0.0
    %1275 = vmatpush1.xpose.msra.mxu0 0.0
    %1276 = vmatprep.subr.mxu0 0.0
    %1277 = vmatpush1.xpose.msra.mxu0 0.0
    %1278 = vmatprep.subr.mxu0 0.0
    %1279 = vmatpush1.xpose.msra.mxu0 0.0
    %1280 = vmatprep.subr.mxu0 0.0
    %1281 = vmatpush1.xpose.msra.mxu0 0.0
    %1282 = vmatprep.subr.mxu0 0.0
    %1283 = vmatpush1.xpose.msra.mxu0 0.0
    %1284 = vmatprep.subr.mxu0 0.0
    %1285 = vmatpush1.xpose.msra.mxu0 0.0
    %1286 = vmatprep.subr.mxu0 0.0
    %1287 = vmatpush1.xpose.msra.mxu0 0.0
    %1288 = vmatprep.subr.mxu0 0.0
    %1289 = vmatpush1.xpose.msra.mxu0 0.0
    %1290 = vmatprep.subr.mxu0 0.0
    %1291 = vmatpush1.xpose.msra.mxu0 0.0
    %1292 = vmatprep.subr.mxu0 0.0
    %1293 = vmatpush1.xpose.msra.mxu0 0.0
    %1294 = vmatprep.subr.mxu0 0.0
    %1295 = vmatpush1.xpose.msra.mxu0 0.0
    %1296 = vmatprep.subr.mxu0 0.0
    %1297 = vmatpush1.xpose.msra.mxu0 0.0
    %1298 = vmatprep.subr.mxu0 0.0
    %1299 = vmatpush1.xpose.msra.mxu0 0.0
    %1300 = vmatprep.subr.mxu0 0.0
    %1301 = vmatpush1.xpose.msra.mxu0 0.0
    %1302 = vmatprep.subr.mxu0 0.0
    %1303 = vmatpush1.xpose.msra.mxu0 0.0
    %1304 = vmatprep.subr.mxu0 0.0
    %1305 = vmatpush1.xpose.msra.mxu0 0.0
    %1306 = vmatprep.subr.mxu0 0.0
    %1307 = vmatpush1.xpose.msra.mxu0 0.0
    %1308 = vmatprep.subr.mxu0 0.0
    %1309 = vmatpush1.xpose.msra.mxu0 0.0
    %1310 = vmatprep.mubr.f32.mxu0 0.0
    %1311 = vmatmul.mubr.f32.gmra.mrb[0].mxu0 %v1242
    %v1312 = vpop.f32.mrb[0].mxu0
    %v1313 = vadd.f32 0.0, %v1312
    %v1314 = vpop.f32.mrb[0].mxu0
    %1315 = vdwg.mxu0
    %1316 = vrot.lane.b32.xlu0 %v364, 96
    %v1317 = vpop.permute.xlu0 %1316
    %v1318 = vsel %vm405, %v364, 0
    %v1320 = vsel %vm405, %v1317, 0
    %1322 = vmatprep.subr.mxu0 0.0
    %1323 = vmatpush1.xpose.msra.mxu0 %v1320
    %1324 = vmatprep.subr.mxu0 0.0
    %1325 = vmatpush1.xpose.msra.mxu0 0.0
    %1326 = vmatprep.subr.mxu0 0.0
    %1327 = vmatpush1.xpose.msra.mxu0 0.0
    %1328 = vmatprep.subr.mxu0 0.0
    %1329 = vmatpush1.xpose.msra.mxu0 0.0
    %1330 = vmatprep.subr.mxu0 0.0
    %1331 = vmatpush1.xpose.msra.mxu0 0.0
    %1332 = vmatprep.subr.mxu0 0.0
    %1333 = vmatpush1.xpose.msra.mxu0 0.0
    %1334 = vmatprep.subr.mxu0 0.0
    %1335 = vmatpush1.xpose.msra.mxu0 0.0
    %1336 = vmatprep.subr.mxu0 0.0
    %1337 = vmatpush1.xpose.msra.mxu0 0.0
    %1338 = vmatprep.subr.mxu0 0.0
    %1339 = vmatpush1.xpose.msra.mxu0 0.0
    %1340 = vmatprep.subr.mxu0 0.0
    %1341 = vmatpush1.xpose.msra.mxu0 0.0
    %1342 = vmatprep.subr.mxu0 0.0
    %1343 = vmatpush1.xpose.msra.mxu0 0.0
    %1344 = vmatprep.subr.mxu0 0.0
    %1345 = vmatpush1.xpose.msra.mxu0 0.0
    %1346 = vmatprep.subr.mxu0 0.0
    %1347 = vmatpush1.xpose.msra.mxu0 0.0
    %1348 = vmatprep.subr.mxu0 0.0
    %1349 = vmatpush1.xpose.msra.mxu0 0.0
    %1350 = vmatprep.subr.mxu0 0.0
    %1351 = vmatpush1.xpose.msra.mxu0 0.0
    %1352 = vmatprep.subr.mxu0 0.0
    %1353 = vmatpush1.xpose.msra.mxu0 0.0
    %1354 = vmatprep.subr.mxu0 0.0
    %1355 = vmatpush1.xpose.msra.mxu0 0.0
    %1356 = vmatprep.subr.mxu0 0.0
    %1357 = vmatpush1.xpose.msra.mxu0 0.0
    %1358 = vmatprep.subr.mxu0 0.0
    %1359 = vmatpush1.xpose.msra.mxu0 0.0
    %1360 = vmatprep.subr.mxu0 0.0
    %1361 = vmatpush1.xpose.msra.mxu0 0.0
    %1362 = vmatprep.subr.mxu0 0.0
    %1363 = vmatpush1.xpose.msra.mxu0 0.0
    %1364 = vmatprep.subr.mxu0 0.0
    %1365 = vmatpush1.xpose.msra.mxu0 0.0
    %1366 = vmatprep.subr.mxu0 0.0
    %1367 = vmatpush1.xpose.msra.mxu0 0.0
    %1368 = vmatprep.subr.mxu0 0.0
    %1369 = vmatpush1.xpose.msra.mxu0 0.0
    %1370 = vmatprep.subr.mxu0 0.0
    %1371 = vmatpush1.xpose.msra.mxu0 0.0
    %1372 = vmatprep.subr.mxu0 0.0
    %1373 = vmatpush1.xpose.msra.mxu0 0.0
    %1374 = vmatprep.subr.mxu0 0.0
    %1375 = vmatpush1.xpose.msra.mxu0 0.0
    %1376 = vmatprep.subr.mxu0 0.0
    %1377 = vmatpush1.xpose.msra.mxu0 0.0
    %1378 = vmatprep.subr.mxu0 0.0
    %1379 = vmatpush1.xpose.msra.mxu0 0.0
    %1380 = vmatprep.subr.mxu0 0.0
    %1381 = vmatpush1.xpose.msra.mxu0 0.0
    %1382 = vmatprep.subr.mxu0 0.0
    %1383 = vmatpush1.xpose.msra.mxu0 0.0
    %1384 = vmatprep.subr.mxu0 0.0
    %1385 = vmatpush1.xpose.msra.mxu0 0.0
    %1386 = vmatprep.mubr.f32.mxu0 0.0
    %1387 = vmatmul.mubr.f32.gmra.mrb[0].mxu0 %v1318
    %v1388 = vpop.f32.mrb[0].mxu0
    %v1389 = vadd.f32 0.0, %v1388
    %v1390 = vpop.f32.mrb[0].mxu0
    %1391 = vdwg.mxu0
    %1392 = vrot.lane.b32.xlu0 %v366, 96
    %v1393 = vpop.permute.xlu0 %1392
    %v1394 = vsel %vm405, %v366, 0
    %v1396 = vsel %vm405, %v1393, 0
    %1398 = vmatprep.subr.mxu0 0.0
    %1399 = vmatpush1.xpose.msra.mxu0 %v1396
    %1400 = vmatprep.subr.mxu0 0.0
    %1401 = vmatpush1.xpose.msra.mxu0 0.0
    %1402 = vmatprep.subr.mxu0 0.0
    %1403 = vmatpush1.xpose.msra.mxu0 0.0
    %1404 = vmatprep.subr.mxu0 0.0
    %1405 = vmatpush1.xpose.msra.mxu0 0.0
    %1406 = vmatprep.subr.mxu0 0.0
    %1407 = vmatpush1.xpose.msra.mxu0 0.0
    %1408 = vmatprep.subr.mxu0 0.0
    %1409 = vmatpush1.xpose.msra.mxu0 0.0
    %1410 = vmatprep.subr.mxu0 0.0
    %1411 = vmatpush1.xpose.msra.mxu0 0.0
    %1412 = vmatprep.subr.mxu0 0.0
    %1413 = vmatpush1.xpose.msra.mxu0 0.0
    %1414 = vmatprep.subr.mxu0 0.0
    %1415 = vmatpush1.xpose.msra.mxu0 0.0
    %1416 = vmatprep.subr.mxu0 0.0
    %1417 = vmatpush1.xpose.msra.mxu0 0.0
    %1418 = vmatprep.subr.mxu0 0.0
    %1419 = vmatpush1.xpose.msra.mxu0 0.0
    %1420 = vmatprep.subr.mxu0 0.0
    %1421 = vmatpush1.xpose.msra.mxu0 0.0
    %1422 = vmatprep.subr.mxu0 0.0
    %1423 = vmatpush1.xpose.msra.mxu0 0.0
    %1424 = vmatprep.subr.mxu0 0.0
    %1425 = vmatpush1.xpose.msra.mxu0 0.0
    %1426 = vmatprep.subr.mxu0 0.0
    %1427 = vmatpush1.xpose.msra.mxu0 0.0
    %1428 = vmatprep.subr.mxu0 0.0
    %1429 = vmatpush1.xpose.msra.mxu0 0.0
    %1430 = vmatprep.subr.mxu0 0.0
    %1431 = vmatpush1.xpose.msra.mxu0 0.0
    %1432 = vmatprep.subr.mxu0 0.0
    %1433 = vmatpush1.xpose.msra.mxu0 0.0
    %1434 = vmatprep.subr.mxu0 0.0
    %1435 = vmatpush1.xpose.msra.mxu0 0.0
    %1436 = vmatprep.subr.mxu0 0.0
    %1437 = vmatpush1.xpose.msra.mxu0 0.0
    %1438 = vmatprep.subr.mxu0 0.0
    %1439 = vmatpush1.xpose.msra.mxu0 0.0
    %1440 = vmatprep.subr.mxu0 0.0
    %1441 = vmatpush1.xpose.msra.mxu0 0.0
    %1442 = vmatprep.subr.mxu0 0.0
    %1443 = vmatpush1.xpose.msra.mxu0 0.0
    %1444 = vmatprep.subr.mxu0 0.0
    %1445 = vmatpush1.xpose.msra.mxu0 0.0
    %1446 = vmatprep.subr.mxu0 0.0
    %1447 = vmatpush1.xpose.msra.mxu0 0.0
    %1448 = vmatprep.subr.mxu0 0.0
    %1449 = vmatpush1.xpose.msra.mxu0 0.0
    %1450 = vmatprep.subr.mxu0 0.0
    %1451 = vmatpush1.xpose.msra.mxu0 0.0
    %1452 = vmatprep.subr.mxu0 0.0
    %1453 = vmatpush1.xpose.msra.mxu0 0.0
    %1454 = vmatprep.subr.mxu0 0.0
    %1455 = vmatpush1.xpose.msra.mxu0 0.0
    %1456 = vmatprep.subr.mxu0 0.0
    %1457 = vmatpush1.xpose.msra.mxu0 0.0
    %1458 = vmatprep.subr.mxu0 0.0
    %1459 = vmatpush1.xpose.msra.mxu0 0.0
    %1460 = vmatprep.subr.mxu0 0.0
    %1461 = vmatpush1.xpose.msra.mxu0 0.0
    %1462 = vmatprep.mubr.f32.mxu0 0.0
    %1463 = vmatmul.mubr.f32.gmra.mrb[0].mxu0 %v1394
    %v1464 = vpop.f32.mrb[0].mxu0
    %v1465 = vadd.f32 0.0, %v1464
    %v1466 = vpop.f32.mrb[0].mxu0
    %1467 = vdwg.mxu0
    %1468 = vrot.lane.b32.xlu0 %v368, 96
    %v1469 = vpop.permute.xlu0 %1468
    %v1470 = vsel %vm405, %v368, 0
    %v1472 = vsel %vm405, %v1469, 0
    %1474 = vmatprep.subr.mxu0 0.0
    %1475 = vmatpush1.xpose.msra.mxu0 %v1472
    %1476 = vmatprep.subr.mxu0 0.0
    %1477 = vmatpush1.xpose.msra.mxu0 0.0
    %1478 = vmatprep.subr.mxu0 0.0
    %1479 = vmatpush1.xpose.msra.mxu0 0.0
    %1480 = vmatprep.subr.mxu0 0.0
    %1481 = vmatpush1.xpose.msra.mxu0 0.0
    %1482 = vmatprep.subr.mxu0 0.0
    %1483 = vmatpush1.xpose.msra.mxu0 0.0
    %1484 = vmatprep.subr.mxu0 0.0
    %1485 = vmatpush1.xpose.msra.mxu0 0.0
    %1486 = vmatprep.subr.mxu0 0.0
    %1487 = vmatpush1.xpose.msra.mxu0 0.0
    %1488 = vmatprep.subr.mxu0 0.0
    %1489 = vmatpush1.xpose.msra.mxu0 0.0
    %1490 = vmatprep.subr.mxu0 0.0
    %1491 = vmatpush1.xpose.msra.mxu0 0.0
    %1492 = vmatprep.subr.mxu0 0.0
    %1493 = vmatpush1.xpose.msra.mxu0 0.0
    %1494 = vmatprep.subr.mxu0 0.0
    %1495 = vmatpush1.xpose.msra.mxu0 0.0
    %1496 = vmatprep.subr.mxu0 0.0
    %1497 = vmatpush1.xpose.msra.mxu0 0.0
    %1498 = vmatprep.subr.mxu0 0.0
    %1499 = vmatpush1.xpose.msra.mxu0 0.0
    %1500 = vmatprep.subr.mxu0 0.0
    %1501 = vmatpush1.xpose.msra.mxu0 0.0
    %1502 = vmatprep.subr.mxu0 0.0
    %1503 = vmatpush1.xpose.msra.mxu0 0.0
    %1504 = vmatprep.subr.mxu0 0.0
    %1505 = vmatpush1.xpose.msra.mxu0 0.0
    %1506 = vmatprep.subr.mxu0 0.0
    %1507 = vmatpush1.xpose.msra.mxu0 0.0
    %1508 = vmatprep.subr.mxu0 0.0
    %1509 = vmatpush1.xpose.msra.mxu0 0.0
    %1510 = vmatprep.subr.mxu0 0.0
    %1511 = vmatpush1.xpose.msra.mxu0 0.0
    %1512 = vmatprep.subr.mxu0 0.0
    %1513 = vmatpush1.xpose.msra.mxu0 0.0
    %1514 = vmatprep.subr.mxu0 0.0
    %1515 = vmatpush1.xpose.msra.mxu0 0.0
    %1516 = vmatprep.subr.mxu0 0.0
    %1517 = vmatpush1.xpose.msra.mxu0 0.0
    %1518 = vmatprep.subr.mxu0 0.0
    %1519 = vmatpush1.xpose.msra.mxu0 0.0
    %1520 = vmatprep.subr.mxu0 0.0
    %1521 = vmatpush1.xpose.msra.mxu0 0.0
    %1522 = vmatprep.subr.mxu0 0.0
    %1523 = vmatpush1.xpose.msra.mxu0 0.0
    %1524 = vmatprep.subr.mxu0 0.0
    %1525 = vmatpush1.xpose.msra.mxu0 0.0
    %1526 = vmatprep.subr.mxu0 0.0
    %1527 = vmatpush1.xpose.msra.mxu0 0.0
    %1528 = vmatprep.subr.mxu0 0.0
    %1529 = vmatpush1.xpose.msra.mxu0 0.0
    %1530 = vmatprep.subr.mxu0 0.0
    %1531 = vmatpush1.xpose.msra.mxu0 0.0
    %1532 = vmatprep.subr.mxu0 0.0
    %1533 = vmatpush1.xpose.msra.mxu0 0.0
    %1534 = vmatprep.subr.mxu0 0.0
    %1535 = vmatpush1.xpose.msra.mxu0 0.0
    %1536 = vmatprep.subr.mxu0 0.0
    %1537 = vmatpush1.xpose.msra.mxu0 0.0
    %1538 = vmatprep.mubr.f32.mxu0 0.0
    %1539 = vmatmul.mubr.f32.gmra.mrb[0].mxu0 %v1470
    %v1540 = vpop.f32.mrb[0].mxu0
    %v1541 = vadd.f32 0.0, %v1540
    %v1542 = vpop.f32.mrb[0].mxu0
    %1543 = vdwg.mxu0
    %1544 = vrot.lane.b32.xlu0 %v370, 96
    %v1545 = vpop.permute.xlu0 %1544
    %v1546 = vsel %vm405, %v370, 0
    %v1548 = vsel %vm405, %v1545, 0
    %1550 = vmatprep.subr.mxu0 0.0
    %1551 = vmatpush1.xpose.msra.mxu0 %v1548
    %1552 = vmatprep.subr.mxu0 0.0
    %1553 = vmatpush1.xpose.msra.mxu0 0.0
    %1554 = vmatprep.subr.mxu0 0.0
    %1555 = vmatpush1.xpose.msra.mxu0 0.0
    %1556 = vmatprep.subr.mxu0 0.0
    %1557 = vmatpush1.xpose.msra.mxu0 0.0
    %1558 = vmatprep.subr.mxu0 0.0
    %1559 = vmatpush1.xpose.msra.mxu0 0.0
    %1560 = vmatprep.subr.mxu0 0.0
    %1561 = vmatpush1.xpose.msra.mxu0 0.0
    %1562 = vmatprep.subr.mxu0 0.0
    %1563 = vmatpush1.xpose.msra.mxu0 0.0
    %1564 = vmatprep.subr.mxu0 0.0
    %1565 = vmatpush1.xpose.msra.mxu0 0.0
    %1566 = vmatprep.subr.mxu0 0.0
    %1567 = vmatpush1.xpose.msra.mxu0 0.0
    %1568 = vmatprep.subr.mxu0 0.0
    %1569 = vmatpush1.xpose.msra.mxu0 0.0
    %1570 = vmatprep.subr.mxu0 0.0
    %1571 = vmatpush1.xpose.msra.mxu0 0.0
    %1572 = vmatprep.subr.mxu0 0.0
    %1573 = vmatpush1.xpose.msra.mxu0 0.0
    %1574 = vmatprep.subr.mxu0 0.0
    %1575 = vmatpush1.xpose.msra.mxu0 0.0
    %1576 = vmatprep.subr.mxu0 0.0
    %1577 = vmatpush1.xpose.msra.mxu0 0.0
    %1578 = vmatprep.subr.mxu0 0.0
    %1579 = vmatpush1.xpose.msra.mxu0 0.0
    %1580 = vmatprep.subr.mxu0 0.0
    %1581 = vmatpush1.xpose.msra.mxu0 0.0
    %1582 = vmatprep.subr.mxu0 0.0
    %1583 = vmatpush1.xpose.msra.mxu0 0.0
    %1584 = vmatprep.subr.mxu0 0.0
    %1585 = vmatpush1.xpose.msra.mxu0 0.0
    %1586 = vmatprep.subr.mxu0 0.0
    %1587 = vmatpush1.xpose.msra.mxu0 0.0
    %1588 = vmatprep.subr.mxu0 0.0
    %1589 = vmatpush1.xpose.msra.mxu0 0.0
    %1590 = vmatprep.subr.mxu0 0.0
    %1591 = vmatpush1.xpose.msra.mxu0 0.0
    %1592 = vmatprep.subr.mxu0 0.0
    %1593 = vmatpush1.xpose.msra.mxu0 0.0
    %1594 = vmatprep.subr.mxu0 0.0
    %1595 = vmatpush1.xpose.msra.mxu0 0.0
    %1596 = vmatprep.subr.mxu0 0.0
    %1597 = vmatpush1.xpose.msra.mxu0 0.0
    %1598 = vmatprep.subr.mxu0 0.0
    %1599 = vmatpush1.xpose.msra.mxu0 0.0
    %1600 = vmatprep.subr.mxu0 0.0
    %1601 = vmatpush1.xpose.msra.mxu0 0.0
    %1602 = vmatprep.subr.mxu0 0.0
    %1603 = vmatpush1.xpose.msra.mxu0 0.0
    %1604 = vmatprep.subr.mxu0 0.0
    %1605 = vmatpush1.xpose.msra.mxu0 0.0
    %1606 = vmatprep.subr.mxu0 0.0
    %1607 = vmatpush1.xpose.msra.mxu0 0.0
    %1608 = vmatprep.subr.mxu0 0.0
    %1609 = vmatpush1.xpose.msra.mxu0 0.0
    %1610 = vmatprep.subr.mxu0 0.0
    %1611 = vmatpush1.xpose.msra.mxu0 0.0
    %1612 = vmatprep.subr.mxu0 0.0
    %1613 = vmatpush1.xpose.msra.mxu0 0.0
    %1614 = vmatprep.mubr.f32.mxu0 0.0
    %1615 = vmatmul.mubr.f32.gmra.mrb[0].mxu0 %v1546
    %v1616 = vpop.f32.mrb[0].mxu0
    %v1617 = vadd.f32 0.0, %v1616
    %v1618 = vpop.f32.mrb[0].mxu0
    %1619 = vdwg.mxu0
    %1620 = vrot.lane.b32.xlu0 %v372, 96
    %v1621 = vpop.permute.xlu0 %1620
    %v1622 = vsel %vm405, %v372, 0
    %v1624 = vsel %vm405, %v1621, 0
    %1626 = vmatprep.subr.mxu0 0.0
    %1627 = vmatpush1.xpose.msra.mxu0 %v1624
    %1628 = vmatprep.subr.mxu0 0.0
    %1629 = vmatpush1.xpose.msra.mxu0 0.0
    %1630 = vmatprep.subr.mxu0 0.0
    %1631 = vmatpush1.xpose.msra.mxu0 0.0
    %1632 = vmatprep.subr.mxu0 0.0
    %1633 = vmatpush1.xpose.msra.mxu0 0.0
    %1634 = vmatprep.subr.mxu0 0.0
    %1635 = vmatpush1.xpose.msra.mxu0 0.0
    %1636 = vmatprep.subr.mxu0 0.0
    %1637 = vmatpush1.xpose.msra.mxu0 0.0
    %1638 = vmatprep.subr.mxu0 0.0
    %1639 = vmatpush1.xpose.msra.mxu0 0.0
    %1640 = vmatprep.subr.mxu0 0.0
    %1641 = vmatpush1.xpose.msra.mxu0 0.0
    %1642 = vmatprep.subr.mxu0 0.0
    %1643 = vmatpush1.xpose.msra.mxu0 0.0
    %1644 = vmatprep.subr.mxu0 0.0
    %1645 = vmatpush1.xpose.msra.mxu0 0.0
    %1646 = vmatprep.subr.mxu0 0.0
    %1647 = vmatpush1.xpose.msra.mxu0 0.0
    %1648 = vmatprep.subr.mxu0 0.0
    %1649 = vmatpush1.xpose.msra.mxu0 0.0
    %1650 = vmatprep.subr.mxu0 0.0
    %1651 = vmatpush1.xpose.msra.mxu0 0.0
    %1652 = vmatprep.subr.mxu0 0.0
    %1653 = vmatpush1.xpose.msra.mxu0 0.0
    %1654 = vmatprep.subr.mxu0 0.0
    %1655 = vmatpush1.xpose.msra.mxu0 0.0
    %1656 = vmatprep.subr.mxu0 0.0
    %1657 = vmatpush1.xpose.msra.mxu0 0.0
    %1658 = vmatprep.subr.mxu0 0.0
    %1659 = vmatpush1.xpose.msra.mxu0 0.0
    %1660 = vmatprep.subr.mxu0 0.0
    %1661 = vmatpush1.xpose.msra.mxu0 0.0
    %1662 = vmatprep.subr.mxu0 0.0
    %1663 = vmatpush1.xpose.msra.mxu0 0.0
    %1664 = vmatprep.subr.mxu0 0.0
    %1665 = vmatpush1.xpose.msra.mxu0 0.0
    %1666 = vmatprep.subr.mxu0 0.0
    %1667 = vmatpush1.xpose.msra.mxu0 0.0
    %1668 = vmatprep.subr.mxu0 0.0
    %1669 = vmatpush1.xpose.msra.mxu0 0.0
    %1670 = vmatprep.subr.mxu0 0.0
    %1671 = vmatpush1.xpose.msra.mxu0 0.0
    %1672 = vmatprep.subr.mxu0 0.0
    %1673 = vmatpush1.xpose.msra.mxu0 0.0
    %1674 = vmatprep.subr.mxu0 0.0
    %1675 = vmatpush1.xpose.msra.mxu0 0.0
    %1676 = vmatprep.subr.mxu0 0.0
    %1677 = vmatpush1.xpose.msra.mxu0 0.0
    %1678 = vmatprep.subr.mxu0 0.0
    %1679 = vmatpush1.xpose.msra.mxu0 0.0
    %1680 = vmatprep.subr.mxu0 0.0
    %1681 = vmatpush1.xpose.msra.mxu0 0.0
    %1682 = vmatprep.subr.mxu0 0.0
    %1683 = vmatpush1.xpose.msra.mxu0 0.0
    %1684 = vmatprep.subr.mxu0 0.0
    %1685 = vmatpush1.xpose.msra.mxu0 0.0
    %1686 = vmatprep.subr.mxu0 0.0
    %1687 = vmatpush1.xpose.msra.mxu0 0.0
    %1688 = vmatprep.subr.mxu0 0.0
    %1689 = vmatpush1.xpose.msra.mxu0 0.0
    %1690 = vmatprep.mubr.f32.mxu0 0.0
    %1691 = vmatmul.mubr.f32.gmra.mrb[0].mxu0 %v1622
    %v1692 = vpop.f32.mrb[0].mxu0
    %v1693 = vadd.f32 0.0, %v1692
    %v1694 = vpop.f32.mrb[0].mxu0
    %1695 = vdwg.mxu0
    %1696 = vrot.lane.b32.xlu0 %v374, 96
    %v1697 = vpop.permute.xlu0 %1696
    %v1698 = vsel %vm405, %v374, 0
    %v1700 = vsel %vm405, %v1697, 0
    %1702 = vmatprep.subr.mxu0 0.0
    %1703 = vmatpush1.xpose.msra.mxu0 %v1700
    %1704 = vmatprep.subr.mxu0 0.0
    %1705 = vmatpush1.xpose.msra.mxu0 0.0
    %1706 = vmatprep.subr.mxu0 0.0
    %1707 = vmatpush1.xpose.msra.mxu0 0.0
    %1708 = vmatprep.subr.mxu0 0.0
    %1709 = vmatpush1.xpose.msra.mxu0 0.0
    %1710 = vmatprep.subr.mxu0 0.0
    %1711 = vmatpush1.xpose.msra.mxu0 0.0
    %1712 = vmatprep.subr.mxu0 0.0
    %1713 = vmatpush1.xpose.msra.mxu0 0.0
    %1714 = vmatprep.subr.mxu0 0.0
    %1715 = vmatpush1.xpose.msra.mxu0 0.0
    %1716 = vmatprep.subr.mxu0 0.0
    %1717 = vmatpush1.xpose.msra.mxu0 0.0
    %1718 = vmatprep.subr.mxu0 0.0
    %1719 = vmatpush1.xpose.msra.mxu0 0.0
    %1720 = vmatprep.subr.mxu0 0.0
    %1721 = vmatpush1.xpose.msra.mxu0 0.0
    %1722 = vmatprep.subr.mxu0 0.0
    %1723 = vmatpush1.xpose.msra.mxu0 0.0
    %1724 = vmatprep.subr.mxu0 0.0
    %1725 = vmatpush1.xpose.msra.mxu0 0.0
    %1726 = vmatprep.subr.mxu0 0.0
    %1727 = vmatpush1.xpose.msra.mxu0 0.0
    %1728 = vmatprep.subr.mxu0 0.0
    %1729 = vmatpush1.xpose.msra.mxu0 0.0
    %1730 = vmatprep.subr.mxu0 0.0
    %1731 = vmatpush1.xpose.msra.mxu0 0.0
    %1732 = vmatprep.subr.mxu0 0.0
    %1733 = vmatpush1.xpose.msra.mxu0 0.0
    %1734 = vmatprep.subr.mxu0 0.0
    %1735 = vmatpush1.xpose.msra.mxu0 0.0
    %1736 = vmatprep.subr.mxu0 0.0
    %1737 = vmatpush1.xpose.msra.mxu0 0.0
    %1738 = vmatprep.subr.mxu0 0.0
    %1739 = vmatpush1.xpose.msra.mxu0 0.0
    %1740 = vmatprep.subr.mxu0 0.0
    %1741 = vmatpush1.xpose.msra.mxu0 0.0
    %1742 = vmatprep.subr.mxu0 0.0
    %1743 = vmatpush1.xpose.msra.mxu0 0.0
    %1744 = vmatprep.subr.mxu0 0.0
    %1745 = vmatpush1.xpose.msra.mxu0 0.0
    %1746 = vmatprep.subr.mxu0 0.0
    %1747 = vmatpush1.xpose.msra.mxu0 0.0
    %1748 = vmatprep.subr.mxu0 0.0
    %1749 = vmatpush1.xpose.msra.mxu0 0.0
    %1750 = vmatprep.subr.mxu0 0.0
    %1751 = vmatpush1.xpose.msra.mxu0 0.0
    %1752 = vmatprep.subr.mxu0 0.0
    %1753 = vmatpush1.xpose.msra.mxu0 0.0
    %1754 = vmatprep.subr.mxu0 0.0
    %1755 = vmatpush1.xpose.msra.mxu0 0.0
    %1756 = vmatprep.subr.mxu0 0.0
    %1757 = vmatpush1.xpose.msra.mxu0 0.0
    %1758 = vmatprep.subr.mxu0 0.0
    %1759 = vmatpush1.xpose.msra.mxu0 0.0
    %1760 = vmatprep.subr.mxu0 0.0
    %1761 = vmatpush1.xpose.msra.mxu0 0.0
    %1762 = vmatprep.subr.mxu0 0.0
    %1763 = vmatpush1.xpose.msra.mxu0 0.0
    %1764 = vmatprep.subr.mxu0 0.0
    %1765 = vmatpush1.xpose.msra.mxu0 0.0
    %1766 = vmatprep.mubr.f32.mxu0 0.0
    %1767 = vmatmul.mubr.f32.gmra.mrb[0].mxu0 %v1698
    %v1768 = vpop.f32.mrb[0].mxu0
    %v1769 = vadd.f32 0.0, %v1768
    %v1770 = vpop.f32.mrb[0].mxu0
    %1771 = vdwg.mxu0
    %1772 = vrot.lane.b32.xlu0 %v376, 96
    %v1773 = vpop.permute.xlu0 %1772
    %v1774 = vsel %vm405, %v376, 0
    %v1776 = vsel %vm405, %v1773, 0
    %1778 = vmatprep.subr.mxu0 0.0
    %1779 = vmatpush1.xpose.msra.mxu0 %v1776
    %1780 = vmatprep.subr.mxu0 0.0
    %1781 = vmatpush1.xpose.msra.mxu0 0.0
    %1782 = vmatprep.subr.mxu0 0.0
    %1783 = vmatpush1.xpose.msra.mxu0 0.0
    %1784 = vmatprep.subr.mxu0 0.0
    %1785 = vmatpush1.xpose.msra.mxu0 0.0
    %1786 = vmatprep.subr.mxu0 0.0
    %1787 = vmatpush1.xpose.msra.mxu0 0.0
    %1788 = vmatprep.subr.mxu0 0.0
    %1789 = vmatpush1.xpose.msra.mxu0 0.0
    %1790 = vmatprep.subr.mxu0 0.0
    %1791 = vmatpush1.xpose.msra.mxu0 0.0
    %1792 = vmatprep.subr.mxu0 0.0
    %1793 = vmatpush1.xpose.msra.mxu0 0.0
    %1794 = vmatprep.subr.mxu0 0.0
    %1795 = vmatpush1.xpose.msra.mxu0 0.0
    %1796 = vmatprep.subr.mxu0 0.0
    %1797 = vmatpush1.xpose.msra.mxu0 0.0
    %1798 = vmatprep.subr.mxu0 0.0
    %1799 = vmatpush1.xpose.msra.mxu0 0.0
    %1800 = vmatprep.subr.mxu0 0.0
    %1801 = vmatpush1.xpose.msra.mxu0 0.0
    %1802 = vmatprep.subr.mxu0 0.0
    %1803 = vmatpush1.xpose.msra.mxu0 0.0
    %1804 = vmatprep.subr.mxu0 0.0
    %1805 = vmatpush1.xpose.msra.mxu0 0.0
    %1806 = vmatprep.subr.mxu0 0.0
    %1807 = vmatpush1.xpose.msra.mxu0 0.0
    %1808 = vmatprep.subr.mxu0 0.0
    %1809 = vmatpush1.xpose.msra.mxu0 0.0
    %1810 = vmatprep.subr.mxu0 0.0
    %1811 = vmatpush1.xpose.msra.mxu0 0.0
    %1812 = vmatprep.subr.mxu0 0.0
    %1813 = vmatpush1.xpose.msra.mxu0 0.0
    %1814 = vmatprep.subr.mxu0 0.0
    %1815 = vmatpush1.xpose.msra.mxu0 0.0
    %1816 = vmatprep.subr.mxu0 0.0
    %1817 = vmatpush1.xpose.msra.mxu0 0.0
    %1818 = vmatprep.subr.mxu0 0.0
    %1819 = vmatpush1.xpose.msra.mxu0 0.0
    %1820 = vmatprep.subr.mxu0 0.0
    %1821 = vmatpush1.xpose.msra.mxu0 0.0
    %1822 = vmatprep.subr.mxu0 0.0
    %1823 = vmatpush1.xpose.msra.mxu0 0.0
    %1824 = vmatprep.subr.mxu0 0.0
    %1825 = vmatpush1.xpose.msra.mxu0 0.0
    %1826 = vmatprep.subr.mxu0 0.0
    %1827 = vmatpush1.xpose.msra.mxu0 0.0
    %1828 = vmatprep.subr.mxu0 0.0
    %1829 = vmatpush1.xpose.msra.mxu0 0.0
    %1830 = vmatprep.subr.mxu0 0.0
    %1831 = vmatpush1.xpose.msra.mxu0 0.0
    %1832 = vmatprep.subr.mxu0 0.0
    %1833 = vmatpush1.xpose.msra.mxu0 0.0
    %1834 = vmatprep.subr.mxu0 0.0
    %1835 = vmatpush1.xpose.msra.mxu0 0.0
    %1836 = vmatprep.subr.mxu0 0.0
    %1837 = vmatpush1.xpose.msra.mxu0 0.0
    %1838 = vmatprep.subr.mxu0 0.0
    %1839 = vmatpush1.xpose.msra.mxu0 0.0
    %1840 = vmatprep.subr.mxu0 0.0
    %1841 = vmatpush1.xpose.msra.mxu0 0.0
    %1842 = vmatprep.mubr.f32.mxu0 0.0
    %1843 = vmatmul.mubr.f32.gmra.mrb[0].mxu0 %v1774
    %v1844 = vpop.f32.mrb[0].mxu0
    %v1845 = vadd.f32 0.0, %v1844
    %v1846 = vpop.f32.mrb[0].mxu0
    %1847 = vdwg.mxu0
    %1848 = vrot.lane.b32.xlu0 %v378, 96
    %v1849 = vpop.permute.xlu0 %1848
    %v1850 = vsel %vm405, %v378, 0
    %v1852 = vsel %vm405, %v1849, 0
    %1854 = vmatprep.subr.mxu0 0.0
    %1855 = vmatpush1.xpose.msra.mxu0 %v1852
    %1856 = vmatprep.subr.mxu0 0.0
    %1857 = vmatpush1.xpose.msra.mxu0 0.0
    %1858 = vmatprep.subr.mxu0 0.0
    %1859 = vmatpush1.xpose.msra.mxu0 0.0
    %1860 = vmatprep.subr.mxu0 0.0
    %1861 = vmatpush1.xpose.msra.mxu0 0.0
    %1862 = vmatprep.subr.mxu0 0.0
    %1863 = vmatpush1.xpose.msra.mxu0 0.0
    %1864 = vmatprep.subr.mxu0 0.0
    %1865 = vmatpush1.xpose.msra.mxu0 0.0
    %1866 = vmatprep.subr.mxu0 0.0
    %1867 = vmatpush1.xpose.msra.mxu0 0.0
    %1868 = vmatprep.subr.mxu0 0.0
    %1869 = vmatpush1.xpose.msra.mxu0 0.0
    %1870 = vmatprep.subr.mxu0 0.0
    %1871 = vmatpush1.xpose.msra.mxu0 0.0
    %1872 = vmatprep.subr.mxu0 0.0
    %1873 = vmatpush1.xpose.msra.mxu0 0.0
    %1874 = vmatprep.subr.mxu0 0.0
    %1875 = vmatpush1.xpose.msra.mxu0 0.0
    %1876 = vmatprep.subr.mxu0 0.0
    %1877 = vmatpush1.xpose.msra.mxu0 0.0
    %1878 = vmatprep.subr.mxu0 0.0
    %1879 = vmatpush1.xpose.msra.mxu0 0.0
    %1880 = vmatprep.subr.mxu0 0.0
    %1881 = vmatpush1.xpose.msra.mxu0 0.0
    %1882 = vmatprep.subr.mxu0 0.0
    %1883 = vmatpush1.xpose.msra.mxu0 0.0
    %1884 = vmatprep.subr.mxu0 0.0
    %1885 = vmatpush1.xpose.msra.mxu0 0.0
    %1886 = vmatprep.subr.mxu0 0.0
    %1887 = vmatpush1.xpose.msra.mxu0 0.0
    %1888 = vmatprep.subr.mxu0 0.0
    %1889 = vmatpush1.xpose.msra.mxu0 0.0
    %1890 = vmatprep.subr.mxu0 0.0
    %1891 = vmatpush1.xpose.msra.mxu0 0.0
    %1892 = vmatprep.subr.mxu0 0.0
    %1893 = vmatpush1.xpose.msra.mxu0 0.0
    %1894 = vmatprep.subr.mxu0 0.0
    %1895 = vmatpush1.xpose.msra.mxu0 0.0
    %1896 = vmatprep.subr.mxu0 0.0
    %1897 = vmatpush1.xpose.msra.mxu0 0.0
    %1898 = vmatprep.subr.mxu0 0.0
    %1899 = vmatpush1.xpose.msra.mxu0 0.0
    %1900 = vmatprep.subr.mxu0 0.0
    %1901 = vmatpush1.xpose.msra.mxu0 0.0
    %1902 = vmatprep.subr.mxu0 0.0
    %1903 = vmatpush1.xpose.msra.mxu0 0.0
    %1904 = vmatprep.subr.mxu0 0.0
    %1905 = vmatpush1.xpose.msra.mxu0 0.0
    %1906 = vmatprep.subr.mxu0 0.0
    %1907 = vmatpush1.xpose.msra.mxu0 0.0
    %1908 = vmatprep.subr.mxu0 0.0
    %1909 = vmatpush1.xpose.msra.mxu0 0.0
    %1910 = vmatprep.subr.mxu0 0.0
    %1911 = vmatpush1.xpose.msra.mxu0 0.0
    %1912 = vmatprep.subr.mxu0 0.0
    %1913 = vmatpush1.xpose.msra.mxu0 0.0
    %1914 = vmatprep.subr.mxu0 0.0
    %1915 = vmatpush1.xpose.msra.mxu0 0.0
    %1916 = vmatprep.subr.mxu0 0.0
    %1917 = vmatpush1.xpose.msra.mxu0 0.0
    %1918 = vmatprep.mubr.f32.mxu0 0.0
    %1919 = vmatmul.mubr.f32.gmra.mrb[0].mxu0 %v1850
    %v1920 = vpop.f32.mrb[0].mxu0
    %v1921 = vadd.f32 0.0, %v1920
    %v1922 = vpop.f32.mrb[0].mxu0
    %1923 = vdwg.mxu0
    %1924 = vrot.lane.b32.xlu0 %v380, 96
    %v1925 = vpop.permute.xlu0 %1924
    %v1926 = vsel %vm405, %v380, 0
    %v1928 = vsel %vm405, %v1925, 0
    %1930 = vmatprep.subr.mxu0 0.0
    %1931 = vmatpush1.xpose.msra.mxu0 %v1928
    %1932 = vmatprep.subr.mxu0 0.0
    %1933 = vmatpush1.xpose.msra.mxu0 0.0
    %1934 = vmatprep.subr.mxu0 0.0
    %1935 = vmatpush1.xpose.msra.mxu0 0.0
    %1936 = vmatprep.subr.mxu0 0.0
    %1937 = vmatpush1.xpose.msra.mxu0 0.0
    %1938 = vmatprep.subr.mxu0 0.0
    %1939 = vmatpush1.xpose.msra.mxu0 0.0
    %1940 = vmatprep.subr.mxu0 0.0
    %1941 = vmatpush1.xpose.msra.mxu0 0.0
    %1942 = vmatprep.subr.mxu0 0.0
    %1943 = vmatpush1.xpose.msra.mxu0 0.0
    %1944 = vmatprep.subr.mxu0 0.0
    %1945 = vmatpush1.xpose.msra.mxu0 0.0
    %1946 = vmatprep.subr.mxu0 0.0
    %1947 = vmatpush1.xpose.msra.mxu0 0.0
    %1948 = vmatprep.subr.mxu0 0.0
    %1949 = vmatpush1.xpose.msra.mxu0 0.0
    %1950 = vmatprep.subr.mxu0 0.0
    %1951 = vmatpush1.xpose.msra.mxu0 0.0
    %1952 = vmatprep.subr.mxu0 0.0
    %1953 = vmatpush1.xpose.msra.mxu0 0.0
    %1954 = vmatprep.subr.mxu0 0.0
    %1955 = vmatpush1.xpose.msra.mxu0 0.0
    %1956 = vmatprep.subr.mxu0 0.0
    %1957 = vmatpush1.xpose.msra.mxu0 0.0
    %1958 = vmatprep.subr.mxu0 0.0
    %1959 = vmatpush1.xpose.msra.mxu0 0.0
    %1960 = vmatprep.subr.mxu0 0.0
    %1961 = vmatpush1.xpose.msra.mxu0 0.0
    %1962 = vmatprep.subr.mxu0 0.0
    %1963 = vmatpush1.xpose.msra.mxu0 0.0
    %1964 = vmatprep.subr.mxu0 0.0
    %1965 = vmatpush1.xpose.msra.mxu0 0.0
    %1966 = vmatprep.subr.mxu0 0.0
    %1967 = vmatpush1.xpose.msra.mxu0 0.0
    %1968 = vmatprep.subr.mxu0 0.0
    %1969 = vmatpush1.xpose.msra.mxu0 0.0
    %1970 = vmatprep.subr.mxu0 0.0
    %1971 = vmatpush1.xpose.msra.mxu0 0.0
    %1972 = vmatprep.subr.mxu0 0.0
    %1973 = vmatpush1.xpose.msra.mxu0 0.0
    %1974 = vmatprep.subr.mxu0 0.0
    %1975 = vmatpush1.xpose.msra.mxu0 0.0
    %1976 = vmatprep.subr.mxu0 0.0
    %1977 = vmatpush1.xpose.msra.mxu0 0.0
    %1978 = vmatprep.subr.mxu0 0.0
    %1979 = vmatpush1.xpose.msra.mxu0 0.0
    %1980 = vmatprep.subr.mxu0 0.0
    %1981 = vmatpush1.xpose.msra.mxu0 0.0
    %1982 = vmatprep.subr.mxu0 0.0
    %1983 = vmatpush1.xpose.msra.mxu0 0.0
    %1984 = vmatprep.subr.mxu0 0.0
    %1985 = vmatpush1.xpose.msra.mxu0 0.0
    %1986 = vmatprep.subr.mxu0 0.0
    %1987 = vmatpush1.xpose.msra.mxu0 0.0
    %1988 = vmatprep.subr.mxu0 0.0
    %1989 = vmatpush1.xpose.msra.mxu0 0.0
    %1990 = vmatprep.subr.mxu0 0.0
    %1991 = vmatpush1.xpose.msra.mxu0 0.0
    %1992 = vmatprep.subr.mxu0 0.0
    %1993 = vmatpush1.xpose.msra.mxu0 0.0
    %1994 = vmatprep.mubr.f32.mxu0 0.0
    %1995 = vmatmul.mubr.f32.gmra.mrb[0].mxu0 %v1926
    %v1996 = vpop.f32.mrb[0].mxu0
    %v1997 = vadd.f32 0.0, %v1996
    %v1998 = vpop.f32.mrb[0].mxu0
    %1999 = vdwg.mxu0
    %2000 = vrot.lane.b32.xlu0 %v382, 96
    %v2001 = vpop.permute.xlu0 %2000
    %v2002 = vsel %vm405, %v382, 0
    %v2004 = vsel %vm405, %v2001, 0
    %2006 = vmatprep.subr.mxu0 0.0
    %2007 = vmatpush1.xpose.msra.mxu0 %v2004
    %2008 = vmatprep.subr.mxu0 0.0
    %2009 = vmatpush1.xpose.msra.mxu0 0.0
    %2010 = vmatprep.subr.mxu0 0.0
    %2011 = vmatpush1.xpose.msra.mxu0 0.0
    %2012 = vmatprep.subr.mxu0 0.0
    %2013 = vmatpush1.xpose.msra.mxu0 0.0
    %2014 = vmatprep.subr.mxu0 0.0
    %2015 = vmatpush1.xpose.msra.mxu0 0.0
    %2016 = vmatprep.subr.mxu0 0.0
    %2017 = vmatpush1.xpose.msra.mxu0 0.0
    %2018 = vmatprep.subr.mxu0 0.0
    %2019 = vmatpush1.xpose.msra.mxu0 0.0
    %2020 = vmatprep.subr.mxu0 0.0
    %2021 = vmatpush1.xpose.msra.mxu0 0.0
    %2022 = vmatprep.subr.mxu0 0.0
    %2023 = vmatpush1.xpose.msra.mxu0 0.0
    %2024 = vmatprep.subr.mxu0 0.0
    %2025 = vmatpush1.xpose.msra.mxu0 0.0
    %2026 = vmatprep.subr.mxu0 0.0
    %2027 = vmatpush1.xpose.msra.mxu0 0.0
    %2028 = vmatprep.subr.mxu0 0.0
    %2029 = vmatpush1.xpose.msra.mxu0 0.0
    %2030 = vmatprep.subr.mxu0 0.0
    %2031 = vmatpush1.xpose.msra.mxu0 0.0
    %2032 = vmatprep.subr.mxu0 0.0
    %2033 = vmatpush1.xpose.msra.mxu0 0.0
    %2034 = vmatprep.subr.mxu0 0.0
    %2035 = vmatpush1.xpose.msra.mxu0 0.0
    %2036 = vmatprep.subr.mxu0 0.0
    %2037 = vmatpush1.xpose.msra.mxu0 0.0
    %2038 = vmatprep.subr.mxu0 0.0
    %2039 = vmatpush1.xpose.msra.mxu0 0.0
    %2040 = vmatprep.subr.mxu0 0.0
    %2041 = vmatpush1.xpose.msra.mxu0 0.0
    %2042 = vmatprep.subr.mxu0 0.0
    %2043 = vmatpush1.xpose.msra.mxu0 0.0
    %2044 = vmatprep.subr.mxu0 0.0
    %2045 = vmatpush1.xpose.msra.mxu0 0.0
    %2046 = vmatprep.subr.mxu0 0.0
    %2047 = vmatpush1.xpose.msra.mxu0 0.0
    %2048 = vmatprep.subr.mxu0 0.0
    %2049 = vmatpush1.xpose.msra.mxu0 0.0
    %2050 = vmatprep.subr.mxu0 0.0
    %2051 = vmatpush1.xpose.msra.mxu0 0.0
    %2052 = vmatprep.subr.mxu0 0.0
    %2053 = vmatpush1.xpose.msra.mxu0 0.0
    %2054 = vmatprep.subr.mxu0 0.0
    %2055 = vmatpush1.xpose.msra.mxu0 0.0
    %2056 = vmatprep.subr.mxu0 0.0
    %2057 = vmatpush1.xpose.msra.mxu0 0.0
    %2058 = vmatprep.subr.mxu0 0.0
    %2059 = vmatpush1.xpose.msra.mxu0 0.0
    %2060 = vmatprep.subr.mxu0 0.0
    %2061 = vmatpush1.xpose.msra.mxu0 0.0
    %2062 = vmatprep.subr.mxu0 0.0
    %2063 = vmatpush1.xpose.msra.mxu0 0.0
    %2064 = vmatprep.subr.mxu0 0.0
    %2065 = vmatpush1.xpose.msra.mxu0 0.0
    %2066 = vmatprep.subr.mxu0 0.0
    %2067 = vmatpush1.xpose.msra.mxu0 0.0
    %2068 = vmatprep.subr.mxu0 0.0
    %2069 = vmatpush1.xpose.msra.mxu0 0.0
    %2070 = vmatprep.mubr.f32.mxu0 0.0
    %2071 = vmatmul.mubr.f32.gmra.mrb[0].mxu0 %v2002
    %v2072 = vpop.f32.mrb[0].mxu0
    %v2073 = vadd.f32 0.0, %v2072
    %v2074 = vpop.f32.mrb[0].mxu0
    %2075 = vdwg.mxu0
    %2076 = vrot.lane.b32.xlu0 %v384, 96
    %v2077 = vpop.permute.xlu0 %2076
    %v2078 = vsel %vm405, %v384, 0
    %v2080 = vsel %vm405, %v2077, 0
    %2082 = vmatprep.subr.mxu0 0.0
    %2083 = vmatpush1.xpose.msra.mxu0 %v2080
    %2084 = vmatprep.subr.mxu0 0.0
    %2085 = vmatpush1.xpose.msra.mxu0 0.0
    %2086 = vmatprep.subr.mxu0 0.0
    %2087 = vmatpush1.xpose.msra.mxu0 0.0
    %2088 = vmatprep.subr.mxu0 0.0
    %2089 = vmatpush1.xpose.msra.mxu0 0.0
    %2090 = vmatprep.subr.mxu0 0.0
    %2091 = vmatpush1.xpose.msra.mxu0 0.0
    %2092 = vmatprep.subr.mxu0 0.0
    %2093 = vmatpush1.xpose.msra.mxu0 0.0
    %2094 = vmatprep.subr.mxu0 0.0
    %2095 = vmatpush1.xpose.msra.mxu0 0.0
    %2096 = vmatprep.subr.mxu0 0.0
    %2097 = vmatpush1.xpose.msra.mxu0 0.0
    %2098 = vmatprep.subr.mxu0 0.0
    %2099 = vmatpush1.xpose.msra.mxu0 0.0
    %2100 = vmatprep.subr.mxu0 0.0
    %2101 = vmatpush1.xpose.msra.mxu0 0.0
    %2102 = vmatprep.subr.mxu0 0.0
    %2103 = vmatpush1.xpose.msra.mxu0 0.0
    %2104 = vmatprep.subr.mxu0 0.0
    %2105 = vmatpush1.xpose.msra.mxu0 0.0
    %2106 = vmatprep.subr.mxu0 0.0
    %2107 = vmatpush1.xpose.msra.mxu0 0.0
    %2108 = vmatprep.subr.mxu0 0.0
    %2109 = vmatpush1.xpose.msra.mxu0 0.0
    %2110 = vmatprep.subr.mxu0 0.0
    %2111 = vmatpush1.xpose.msra.mxu0 0.0
    %2112 = vmatprep.subr.mxu0 0.0
    %2113 = vmatpush1.xpose.msra.mxu0 0.0
    %2114 = vmatprep.subr.mxu0 0.0
    %2115 = vmatpush1.xpose.msra.mxu0 0.0
    %2116 = vmatprep.subr.mxu0 0.0
    %2117 = vmatpush1.xpose.msra.mxu0 0.0
    %2118 = vmatprep.subr.mxu0 0.0
    %2119 = vmatpush1.xpose.msra.mxu0 0.0
    %2120 = vmatprep.subr.mxu0 0.0
    %2121 = vmatpush1.xpose.msra.mxu0 0.0
    %2122 = vmatprep.subr.mxu0 0.0
    %2123 = vmatpush1.xpose.msra.mxu0 0.0
    %2124 = vmatprep.subr.mxu0 0.0
    %2125 = vmatpush1.xpose.msra.mxu0 0.0
    %2126 = vmatprep.subr.mxu0 0.0
    %2127 = vmatpush1.xpose.msra.mxu0 0.0
    %2128 = vmatprep.subr.mxu0 0.0
    %2129 = vmatpush1.xpose.msra.mxu0 0.0
    %2130 = vmatprep.subr.mxu0 0.0
    %2131 = vmatpush1.xpose.msra.mxu0 0.0
    %2132 = vmatprep.subr.mxu0 0.0
    %2133 = vmatpush1.xpose.msra.mxu0 0.0
    %2134 = vmatprep.subr.mxu0 0.0
    %2135 = vmatpush1.xpose.msra.mxu0 0.0
    %2136 = vmatprep.subr.mxu0 0.0
    %2137 = vmatpush1.xpose.msra.mxu0 0.0
    %2138 = vmatprep.subr.mxu0 0.0
    %2139 = vmatpush1.xpose.msra.mxu0 0.0
    %2140 = vmatprep.subr.mxu0 0.0
    %2141 = vmatpush1.xpose.msra.mxu0 0.0
    %2142 = vmatprep.subr.mxu0 0.0
    %2143 = vmatpush1.xpose.msra.mxu0 0.0
    %2144 = vmatprep.subr.mxu0 0.0
    %2145 = vmatpush1.xpose.msra.mxu0 0.0
    %2146 = vmatprep.mubr.f32.mxu0 0.0
    %2147 = vmatmul.mubr.f32.gmra.mrb[0].mxu0 %v2078
    %v2148 = vpop.f32.mrb[0].mxu0
    %v2149 = vadd.f32 0.0, %v2148
    %v2150 = vpop.f32.mrb[0].mxu0
    %2151 = vdwg.mxu0
    %2152 = vrot.lane.b32.xlu0 %v386, 96
    %v2153 = vpop.permute.xlu0 %2152
    %v2154 = vsel %vm405, %v386, 0
    %v2156 = vsel %vm405, %v2153, 0
    %2158 = vmatprep.subr.mxu0 0.0
    %2159 = vmatpush1.xpose.msra.mxu0 %v2156
    %2160 = vmatprep.subr.mxu0 0.0
    %2161 = vmatpush1.xpose.msra.mxu0 0.0
    %2162 = vmatprep.subr.mxu0 0.0
    %2163 = vmatpush1.xpose.msra.mxu0 0.0
    %2164 = vmatprep.subr.mxu0 0.0
    %2165 = vmatpush1.xpose.msra.mxu0 0.0
    %2166 = vmatprep.subr.mxu0 0.0
    %2167 = vmatpush1.xpose.msra.mxu0 0.0
    %2168 = vmatprep.subr.mxu0 0.0
    %2169 = vmatpush1.xpose.msra.mxu0 0.0
    %2170 = vmatprep.subr.mxu0 0.0
    %2171 = vmatpush1.xpose.msra.mxu0 0.0
    %2172 = vmatprep.subr.mxu0 0.0
    %2173 = vmatpush1.xpose.msra.mxu0 0.0
    %2174 = vmatprep.subr.mxu0 0.0
    %2175 = vmatpush1.xpose.msra.mxu0 0.0
    %2176 = vmatprep.subr.mxu0 0.0
    %2177 = vmatpush1.xpose.msra.mxu0 0.0
    %2178 = vmatprep.subr.mxu0 0.0
    %2179 = vmatpush1.xpose.msra.mxu0 0.0
    %2180 = vmatprep.subr.mxu0 0.0
    %2181 = vmatpush1.xpose.msra.mxu0 0.0
    %2182 = vmatprep.subr.mxu0 0.0
    %2183 = vmatpush1.xpose.msra.mxu0 0.0
    %2184 = vmatprep.subr.mxu0 0.0
    %2185 = vmatpush1.xpose.msra.mxu0 0.0
    %2186 = vmatprep.subr.mxu0 0.0
    %2187 = vmatpush1.xpose.msra.mxu0 0.0
    %2188 = vmatprep.subr.mxu0 0.0
    %2189 = vmatpush1.xpose.msra.mxu0 0.0
    %2190 = vmatprep.subr.mxu0 0.0
    %2191 = vmatpush1.xpose.msra.mxu0 0.0
    %2192 = vmatprep.subr.mxu0 0.0
    %2193 = vmatpush1.xpose.msra.mxu0 0.0
    %2194 = vmatprep.subr.mxu0 0.0
    %2195 = vmatpush1.xpose.msra.mxu0 0.0
    %2196 = vmatprep.subr.mxu0 0.0
    %2197 = vmatpush1.xpose.msra.mxu0 0.0
    %2198 = vmatprep.subr.mxu0 0.0
    %2199 = vmatpush1.xpose.msra.mxu0 0.0
    %2200 = vmatprep.subr.mxu0 0.0
    %2201 = vmatpush1.xpose.msra.mxu0 0.0
    %2202 = vmatprep.subr.mxu0 0.0
    %2203 = vmatpush1.xpose.msra.mxu0 0.0
    %2204 = vmatprep.subr.mxu0 0.0
    %2205 = vmatpush1.xpose.msra.mxu0 0.0
    %2206 = vmatprep.subr.mxu0 0.0
    %2207 = vmatpush1.xpose.msra.mxu0 0.0
    %2208 = vmatprep.subr.mxu0 0.0
    %2209 = vmatpush1.xpose.msra.mxu0 0.0
    %2210 = vmatprep.subr.mxu0 0.0
    %2211 = vmatpush1.xpose.msra.mxu0 0.0
    %2212 = vmatprep.subr.mxu0 0.0
    %2213 = vmatpush1.xpose.msra.mxu0 0.0
    %2214 = vmatprep.subr.mxu0 0.0
    %2215 = vmatpush1.xpose.msra.mxu0 0.0
    %2216 = vmatprep.subr.mxu0 0.0
    %2217 = vmatpush1.xpose.msra.mxu0 0.0
    %2218 = vmatprep.subr.mxu0 0.0
    %2219 = vmatpush1.xpose.msra.mxu0 0.0
    %2220 = vmatprep.subr.mxu0 0.0
    %2221 = vmatpush1.xpose.msra.mxu0 0.0
    %2222 = vmatprep.mubr.f32.mxu0 0.0
    %2223 = vmatmul.mubr.f32.gmra.mrb[0].mxu0 %v2154
    %v2224 = vpop.f32.mrb[0].mxu0
    %v2225 = vadd.f32 0.0, %v2224
    %v2226 = vpop.f32.mrb[0].mxu0
    %2227 = vdwg.mxu0
    %2228 = vrot.lane.b32.xlu0 %v388, 96
    %v2229 = vpop.permute.xlu0 %2228
    %v2230 = vsel %vm405, %v388, 0
    %v2232 = vsel %vm405, %v2229, 0
    %2234 = vmatprep.subr.mxu0 0.0
    %2235 = vmatpush1.xpose.msra.mxu0 %v2232
    %2236 = vmatprep.subr.mxu0 0.0
    %2237 = vmatpush1.xpose.msra.mxu0 0.0
    %2238 = vmatprep.subr.mxu0 0.0
    %2239 = vmatpush1.xpose.msra.mxu0 0.0
    %2240 = vmatprep.subr.mxu0 0.0
    %2241 = vmatpush1.xpose.msra.mxu0 0.0
    %2242 = vmatprep.subr.mxu0 0.0
    %2243 = vmatpush1.xpose.msra.mxu0 0.0
    %2244 = vmatprep.subr.mxu0 0.0
    %2245 = vmatpush1.xpose.msra.mxu0 0.0
    %2246 = vmatprep.subr.mxu0 0.0
    %2247 = vmatpush1.xpose.msra.mxu0 0.0
    %2248 = vmatprep.subr.mxu0 0.0
    %2249 = vmatpush1.xpose.msra.mxu0 0.0
    %2250 = vmatprep.subr.mxu0 0.0
    %2251 = vmatpush1.xpose.msra.mxu0 0.0
    %2252 = vmatprep.subr.mxu0 0.0
    %2253 = vmatpush1.xpose.msra.mxu0 0.0
    %2254 = vmatprep.subr.mxu0 0.0
    %2255 = vmatpush1.xpose.msra.mxu0 0.0
    %2256 = vmatprep.subr.mxu0 0.0
    %2257 = vmatpush1.xpose.msra.mxu0 0.0
    %2258 = vmatprep.subr.mxu0 0.0
    %2259 = vmatpush1.xpose.msra.mxu0 0.0
    %2260 = vmatprep.subr.mxu0 0.0
    %2261 = vmatpush1.xpose.msra.mxu0 0.0
    %2262 = vmatprep.subr.mxu0 0.0
    %2263 = vmatpush1.xpose.msra.mxu0 0.0
    %2264 = vmatprep.subr.mxu0 0.0
    %2265 = vmatpush1.xpose.msra.mxu0 0.0
    %2266 = vmatprep.subr.mxu0 0.0
    %2267 = vmatpush1.xpose.msra.mxu0 0.0
    %2268 = vmatprep.subr.mxu0 0.0
    %2269 = vmatpush1.xpose.msra.mxu0 0.0
    %2270 = vmatprep.subr.mxu0 0.0
    %2271 = vmatpush1.xpose.msra.mxu0 0.0
    %2272 = vmatprep.subr.mxu0 0.0
    %2273 = vmatpush1.xpose.msra.mxu0 0.0
    %2274 = vmatprep.subr.mxu0 0.0
    %2275 = vmatpush1.xpose.msra.mxu0 0.0
    %2276 = vmatprep.subr.mxu0 0.0
    %2277 = vmatpush1.xpose.msra.mxu0 0.0
    %2278 = vmatprep.subr.mxu0 0.0
    %2279 = vmatpush1.xpose.msra.mxu0 0.0
    %2280 = vmatprep.subr.mxu0 0.0
    %2281 = vmatpush1.xpose.msra.mxu0 0.0
    %2282 = vmatprep.subr.mxu0 0.0
    %2283 = vmatpush1.xpose.msra.mxu0 0.0
    %2284 = vmatprep.subr.mxu0 0.0
    %2285 = vmatpush1.xpose.msra.mxu0 0.0
    %2286 = vmatprep.subr.mxu0 0.0
    %2287 = vmatpush1.xpose.msra.mxu0 0.0
    %2288 = vmatprep.subr.mxu0 0.0
    %2289 = vmatpush1.xpose.msra.mxu0 0.0
    %2290 = vmatprep.subr.mxu0 0.0
    %2291 = vmatpush1.xpose.msra.mxu0 0.0
    %2292 = vmatprep.subr.mxu0 0.0
    %2293 = vmatpush1.xpose.msra.mxu0 0.0
    %2294 = vmatprep.subr.mxu0 0.0
    %2295 = vmatpush1.xpose.msra.mxu0 0.0
    %2296 = vmatprep.subr.mxu0 0.0
    %2297 = vmatpush1.xpose.msra.mxu0 0.0
    %2298 = vmatprep.mubr.f32.mxu0 0.0
    %2299 = vmatmul.mubr.f32.gmra.mrb[0].mxu0 %v2230
    %v2300 = vpop.f32.mrb[0].mxu0
    %v2301 = vadd.f32 0.0, %v2300
    %v2302 = vpop.f32.mrb[0].mxu0
    %2303 = vdwg.mxu0
    %2304 = vrot.lane.b32.xlu0 %v390, 96
    %v2305 = vpop.permute.xlu0 %2304
    %v2306 = vsel %vm405, %v390, 0
    %v2308 = vsel %vm405, %v2305, 0
    %2310 = vmatprep.subr.mxu0 0.0
    %2311 = vmatpush1.xpose.msra.mxu0 %v2308
    %2312 = vmatprep.subr.mxu0 0.0
    %2313 = vmatpush1.xpose.msra.mxu0 0.0
    %2314 = vmatprep.subr.mxu0 0.0
    %2315 = vmatpush1.xpose.msra.mxu0 0.0
    %2316 = vmatprep.subr.mxu0 0.0
    %2317 = vmatpush1.xpose.msra.mxu0 0.0
    %2318 = vmatprep.subr.mxu0 0.0
    %2319 = vmatpush1.xpose.msra.mxu0 0.0
    %2320 = vmatprep.subr.mxu0 0.0
    %2321 = vmatpush1.xpose.msra.mxu0 0.0
    %2322 = vmatprep.subr.mxu0 0.0
    %2323 = vmatpush1.xpose.msra.mxu0 0.0
    %2324 = vmatprep.subr.mxu0 0.0
    %2325 = vmatpush1.xpose.msra.mxu0 0.0
    %2326 = vmatprep.subr.mxu0 0.0
    %2327 = vmatpush1.xpose.msra.mxu0 0.0
    %2328 = vmatprep.subr.mxu0 0.0
    %2329 = vmatpush1.xpose.msra.mxu0 0.0
    %2330 = vmatprep.subr.mxu0 0.0
    %2331 = vmatpush1.xpose.msra.mxu0 0.0
    %2332 = vmatprep.subr.mxu0 0.0
    %2333 = vmatpush1.xpose.msra.mxu0 0.0
    %2334 = vmatprep.subr.mxu0 0.0
    %2335 = vmatpush1.xpose.msra.mxu0 0.0
    %2336 = vmatprep.subr.mxu0 0.0
    %2337 = vmatpush1.xpose.msra.mxu0 0.0
    %2338 = vmatprep.subr.mxu0 0.0
    %2339 = vmatpush1.xpose.msra.mxu0 0.0
    %2340 = vmatprep.subr.mxu0 0.0
    %2341 = vmatpush1.xpose.msra.mxu0 0.0
    %2342 = vmatprep.subr.mxu0 0.0
    %2343 = vmatpush1.xpose.msra.mxu0 0.0
    %2344 = vmatprep.subr.mxu0 0.0
    %2345 = vmatpush1.xpose.msra.mxu0 0.0
    %2346 = vmatprep.subr.mxu0 0.0
    %2347 = vmatpush1.xpose.msra.mxu0 0.0
    %2348 = vmatprep.subr.mxu0 0.0
    %2349 = vmatpush1.xpose.msra.mxu0 0.0
    %2350 = vmatprep.subr.mxu0 0.0
    %2351 = vmatpush1.xpose.msra.mxu0 0.0
    %2352 = vmatprep.subr.mxu0 0.0
    %2353 = vmatpush1.xpose.msra.mxu0 0.0
    %2354 = vmatprep.subr.mxu0 0.0
    %2355 = vmatpush1.xpose.msra.mxu0 0.0
    %2356 = vmatprep.subr.mxu0 0.0
    %2357 = vmatpush1.xpose.msra.mxu0 0.0
    %2358 = vmatprep.subr.mxu0 0.0
    %2359 = vmatpush1.xpose.msra.mxu0 0.0
    %2360 = vmatprep.subr.mxu0 0.0
    %2361 = vmatpush1.xpose.msra.mxu0 0.0
    %2362 = vmatprep.subr.mxu0 0.0
    %2363 = vmatpush1.xpose.msra.mxu0 0.0
    %2364 = vmatprep.subr.mxu0 0.0
    %2365 = vmatpush1.xpose.msra.mxu0 0.0
    %2366 = vmatprep.subr.mxu0 0.0
    %2367 = vmatpush1.xpose.msra.mxu0 0.0
    %2368 = vmatprep.subr.mxu0 0.0
    %2369 = vmatpush1.xpose.msra.mxu0 0.0
    %2370 = vmatprep.subr.mxu0 0.0
    %2371 = vmatpush1.xpose.msra.mxu0 0.0
    %2372 = vmatprep.subr.mxu0 0.0
    %2373 = vmatpush1.xpose.msra.mxu0 0.0
    %2374 = vmatprep.mubr.f32.mxu0 0.0
    %2375 = vmatmul.mubr.f32.gmra.mrb[0].mxu0 %v2306
    %v2376 = vpop.f32.mrb[0].mxu0
    %v2377 = vadd.f32 0.0, %v2376
    %v2378 = vpop.f32.mrb[0].mxu0
    %2379 = vdwg.mxu0
    %2380 = vrot.lane.b32.xlu0 %v392, 96
    %v2381 = vpop.permute.xlu0 %2380
    %v2382 = vsel %vm405, %v392, 0
    %v2384 = vsel %vm405, %v2381, 0
    %2386 = vmatprep.subr.mxu0 0.0
    %2387 = vmatpush1.xpose.msra.mxu0 %v2384
    %2388 = vmatprep.subr.mxu0 0.0
    %2389 = vmatpush1.xpose.msra.mxu0 0.0
    %2390 = vmatprep.subr.mxu0 0.0
    %2391 = vmatpush1.xpose.msra.mxu0 0.0
    %2392 = vmatprep.subr.mxu0 0.0
    %2393 = vmatpush1.xpose.msra.mxu0 0.0
    %2394 = vmatprep.subr.mxu0 0.0
    %2395 = vmatpush1.xpose.msra.mxu0 0.0
    %2396 = vmatprep.subr.mxu0 0.0
    %2397 = vmatpush1.xpose.msra.mxu0 0.0
    %2398 = vmatprep.subr.mxu0 0.0
    %2399 = vmatpush1.xpose.msra.mxu0 0.0
    %2400 = vmatprep.subr.mxu0 0.0
    %2401 = vmatpush1.xpose.msra.mxu0 0.0
    %2402 = vmatprep.subr.mxu0 0.0
    %2403 = vmatpush1.xpose.msra.mxu0 0.0
    %2404 = vmatprep.subr.mxu0 0.0
    %2405 = vmatpush1.xpose.msra.mxu0 0.0
    %2406 = vmatprep.subr.mxu0 0.0
    %2407 = vmatpush1.xpose.msra.mxu0 0.0
    %2408 = vmatprep.subr.mxu0 0.0
    %2409 = vmatpush1.xpose.msra.mxu0 0.0
    %2410 = vmatprep.subr.mxu0 0.0
    %2411 = vmatpush1.xpose.msra.mxu0 0.0
    %2412 = vmatprep.subr.mxu0 0.0
    %2413 = vmatpush1.xpose.msra.mxu0 0.0
    %2414 = vmatprep.subr.mxu0 0.0
    %2415 = vmatpush1.xpose.msra.mxu0 0.0
    %2416 = vmatprep.subr.mxu0 0.0
    %2417 = vmatpush1.xpose.msra.mxu0 0.0
    %2418 = vmatprep.subr.mxu0 0.0
    %2419 = vmatpush1.xpose.msra.mxu0 0.0
    %2420 = vmatprep.subr.mxu0 0.0
    %2421 = vmatpush1.xpose.msra.mxu0 0.0
    %2422 = vmatprep.subr.mxu0 0.0
    %2423 = vmatpush1.xpose.msra.mxu0 0.0
    %2424 = vmatprep.subr.mxu0 0.0
    %2425 = vmatpush1.xpose.msra.mxu0 0.0
    %2426 = vmatprep.subr.mxu0 0.0
    %2427 = vmatpush1.xpose.msra.mxu0 0.0
    %2428 = vmatprep.subr.mxu0 0.0
    %2429 = vmatpush1.xpose.msra.mxu0 0.0
    %2430 = vmatprep.subr.mxu0 0.0
    %2431 = vmatpush1.xpose.msra.mxu0 0.0
    %2432 = vmatprep.subr.mxu0 0.0
    %2433 = vmatpush1.xpose.msra.mxu0 0.0
    %2434 = vmatprep.subr.mxu0 0.0
    %2435 = vmatpush1.xpose.msra.mxu0 0.0
    %2436 = vmatprep.subr.mxu0 0.0
    %2437 = vmatpush1.xpose.msra.mxu0 0.0
    %2438 = vmatprep.subr.mxu0 0.0
    %2439 = vmatpush1.xpose.msra.mxu0 0.0
    %2440 = vmatprep.subr.mxu0 0.0
    %2441 = vmatpush1.xpose.msra.mxu0 0.0
    %2442 = vmatprep.subr.mxu0 0.0
    %2443 = vmatpush1.xpose.msra.mxu0 0.0
    %2444 = vmatprep.subr.mxu0 0.0
    %2445 = vmatpush1.xpose.msra.mxu0 0.0
    %2446 = vmatprep.subr.mxu0 0.0
    %2447 = vmatpush1.xpose.msra.mxu0 0.0
    %2448 = vmatprep.subr.mxu0 0.0
    %2449 = vmatpush1.xpose.msra.mxu0 0.0
    %2450 = vmatprep.mubr.f32.mxu0 0.0
    %2451 = vmatmul.mubr.f32.gmra.mrb[0].mxu0 %v2382
    %v2452 = vpop.f32.mrb[0].mxu0
    %v2453 = vadd.f32 0.0, %v2452
    %v2454 = vpop.f32.mrb[0].mxu0
    %2455 = vdwg.mxu0
    %2456 = vrot.lane.b32.xlu0 %v394, 96
    %v2457 = vpop.permute.xlu0 %2456
    %v2458 = vsel %vm405, %v394, 0
    %v2460 = vsel %vm405, %v2457, 0
    %2462 = vmatprep.subr.mxu0 0.0
    %2463 = vmatpush1.xpose.msra.mxu0 %v2460
    %2464 = vmatprep.subr.mxu0 0.0
    %2465 = vmatpush1.xpose.msra.mxu0 0.0
    %2466 = vmatprep.subr.mxu0 0.0
    %2467 = vmatpush1.xpose.msra.mxu0 0.0
    %2468 = vmatprep.subr.mxu0 0.0
    %2469 = vmatpush1.xpose.msra.mxu0 0.0
    %2470 = vmatprep.subr.mxu0 0.0
    %2471 = vmatpush1.xpose.msra.mxu0 0.0
    %2472 = vmatprep.subr.mxu0 0.0
    %2473 = vmatpush1.xpose.msra.mxu0 0.0
    %2474 = vmatprep.subr.mxu0 0.0
    %2475 = vmatpush1.xpose.msra.mxu0 0.0
    %2476 = vmatprep.subr.mxu0 0.0
    %2477 = vmatpush1.xpose.msra.mxu0 0.0
    %2478 = vmatprep.subr.mxu0 0.0
    %2479 = vmatpush1.xpose.msra.mxu0 0.0
    %2480 = vmatprep.subr.mxu0 0.0
    %2481 = vmatpush1.xpose.msra.mxu0 0.0
    %2482 = vmatprep.subr.mxu0 0.0
    %2483 = vmatpush1.xpose.msra.mxu0 0.0
    %2484 = vmatprep.subr.mxu0 0.0
    %2485 = vmatpush1.xpose.msra.mxu0 0.0
    %2486 = vmatprep.subr.mxu0 0.0
    %2487 = vmatpush1.xpose.msra.mxu0 0.0
    %2488 = vmatprep.subr.mxu0 0.0
    %2489 = vmatpush1.xpose.msra.mxu0 0.0
    %2490 = vmatprep.subr.mxu0 0.0
    %2491 = vmatpush1.xpose.msra.mxu0 0.0
    %2492 = vmatprep.subr.mxu0 0.0
    %2493 = vmatpush1.xpose.msra.mxu0 0.0
    %2494 = vmatprep.subr.mxu0 0.0
    %2495 = vmatpush1.xpose.msra.mxu0 0.0
    %2496 = vmatprep.subr.mxu0 0.0
    %2497 = vmatpush1.xpose.msra.mxu0 0.0
    %2498 = vmatprep.subr.mxu0 0.0
    %2499 = vmatpush1.xpose.msra.mxu0 0.0
    %2500 = vmatprep.subr.mxu0 0.0
    %2501 = vmatpush1.xpose.msra.mxu0 0.0
    %2502 = vmatprep.subr.mxu0 0.0
    %2503 = vmatpush1.xpose.msra.mxu0 0.0
    %2504 = vmatprep.subr.mxu0 0.0
    %2505 = vmatpush1.xpose.msra.mxu0 0.0
    %2506 = vmatprep.subr.mxu0 0.0
    %2507 = vmatpush1.xpose.msra.mxu0 0.0
    %2508 = vmatprep.subr.mxu0 0.0
    %2509 = vmatpush1.xpose.msra.mxu0 0.0
    %2510 = vmatprep.subr.mxu0 0.0
    %2511 = vmatpush1.xpose.msra.mxu0 0.0
    %2512 = vmatprep.subr.mxu0 0.0
    %2513 = vmatpush1.xpose.msra.mxu0 0.0
    %2514 = vmatprep.subr.mxu0 0.0
    %2515 = vmatpush1.xpose.msra.mxu0 0.0
    %2516 = vmatprep.subr.mxu0 0.0
    %2517 = vmatpush1.xpose.msra.mxu0 0.0
    %2518 = vmatprep.subr.mxu0 0.0
    %2519 = vmatpush1.xpose.msra.mxu0 0.0
    %2520 = vmatprep.subr.mxu0 0.0
    %2521 = vmatpush1.xpose.msra.mxu0 0.0
    %2522 = vmatprep.subr.mxu0 0.0
    %2523 = vmatpush1.xpose.msra.mxu0 0.0
    %2524 = vmatprep.subr.mxu0 0.0
    %2525 = vmatpush1.xpose.msra.mxu0 0.0
    %2526 = vmatprep.mubr.f32.mxu0 0.0
    %2527 = vmatmul.mubr.f32.gmra.mrb[0].mxu0 %v2458
    %v2528 = vpop.f32.mrb[0].mxu0
    %v2529 = vadd.f32 0.0, %v2528
    %v2530 = vpop.f32.mrb[0].mxu0
    %2531 = vdwg.mxu0
    %2532 = vrot.lane.b32.xlu0 %v396, 96
    %v2533 = vpop.permute.xlu0 %2532
    %v2534 = vsel %vm405, %v396, 0
    %v2536 = vsel %vm405, %v2533, 0
    %2538 = vmatprep.subr.mxu0 0.0
    %2539 = vmatpush1.xpose.msra.mxu0 %v2536
    %2540 = vmatprep.subr.mxu0 0.0
    %2541 = vmatpush1.xpose.msra.mxu0 0.0
    %2542 = vmatprep.subr.mxu0 0.0
    %2543 = vmatpush1.xpose.msra.mxu0 0.0
    %2544 = vmatprep.subr.mxu0 0.0
    %2545 = vmatpush1.xpose.msra.mxu0 0.0
    %2546 = vmatprep.subr.mxu0 0.0
    %2547 = vmatpush1.xpose.msra.mxu0 0.0
    %2548 = vmatprep.subr.mxu0 0.0
    %2549 = vmatpush1.xpose.msra.mxu0 0.0
    %2550 = vmatprep.subr.mxu0 0.0
    %2551 = vmatpush1.xpose.msra.mxu0 0.0
    %2552 = vmatprep.subr.mxu0 0.0
    %2553 = vmatpush1.xpose.msra.mxu0 0.0
    %2554 = vmatprep.subr.mxu0 0.0
    %2555 = vmatpush1.xpose.msra.mxu0 0.0
    %2556 = vmatprep.subr.mxu0 0.0
    %2557 = vmatpush1.xpose.msra.mxu0 0.0
    %2558 = vmatprep.subr.mxu0 0.0
    %2559 = vmatpush1.xpose.msra.mxu0 0.0
    %2560 = vmatprep.subr.mxu0 0.0
    %2561 = vmatpush1.xpose.msra.mxu0 0.0
    %2562 = vmatprep.subr.mxu0 0.0
    %2563 = vmatpush1.xpose.msra.mxu0 0.0
    %2564 = vmatprep.subr.mxu0 0.0
    %2565 = vmatpush1.xpose.msra.mxu0 0.0
    %2566 = vmatprep.subr.mxu0 0.0
    %2567 = vmatpush1.xpose.msra.mxu0 0.0
    %2568 = vmatprep.subr.mxu0 0.0
    %2569 = vmatpush1.xpose.msra.mxu0 0.0
    %2570 = vmatprep.subr.mxu0 0.0
    %2571 = vmatpush1.xpose.msra.mxu0 0.0
    %2572 = vmatprep.subr.mxu0 0.0
    %2573 = vmatpush1.xpose.msra.mxu0 0.0
    %2574 = vmatprep.subr.mxu0 0.0
    %2575 = vmatpush1.xpose.msra.mxu0 0.0
    %2576 = vmatprep.subr.mxu0 0.0
    %2577 = vmatpush1.xpose.msra.mxu0 0.0
    %2578 = vmatprep.subr.mxu0 0.0
    %2579 = vmatpush1.xpose.msra.mxu0 0.0
    %2580 = vmatprep.subr.mxu0 0.0
    %2581 = vmatpush1.xpose.msra.mxu0 0.0
    %2582 = vmatprep.subr.mxu0 0.0
    %2583 = vmatpush1.xpose.msra.mxu0 0.0
    %2584 = vmatprep.subr.mxu0 0.0
    %2585 = vmatpush1.xpose.msra.mxu0 0.0
    %2586 = vmatprep.subr.mxu0 0.0
    %2587 = vmatpush1.xpose.msra.mxu0 0.0
    %2588 = vmatprep.subr.mxu0 0.0
    %2589 = vmatpush1.xpose.msra.mxu0 0.0
    %2590 = vmatprep.subr.mxu0 0.0
    %2591 = vmatpush1.xpose.msra.mxu0 0.0
    %2592 = vmatprep.subr.mxu0 0.0
    %2593 = vmatpush1.xpose.msra.mxu0 0.0
    %2594 = vmatprep.subr.mxu0 0.0
    %2595 = vmatpush1.xpose.msra.mxu0 0.0
    %2596 = vmatprep.subr.mxu0 0.0
    %2597 = vmatpush1.xpose.msra.mxu0 0.0
    %2598 = vmatprep.subr.mxu0 0.0
    %2599 = vmatpush1.xpose.msra.mxu0 0.0
    %2600 = vmatprep.subr.mxu0 0.0
    %2601 = vmatpush1.xpose.msra.mxu0 0.0
    %2602 = vmatprep.mubr.f32.mxu0 0.0
    %2603 = vmatmul.mubr.f32.gmra.mrb[0].mxu0 %v2534
    %v2604 = vpop.f32.mrb[0].mxu0
    %v2605 = vadd.f32 0.0, %v2604
    %v2606 = vpop.f32.mrb[0].mxu0
    %2607 = vdwg.mxu0
    %2608 = vrot.lane.b32.xlu0 %v398, 96
    %v2609 = vpop.permute.xlu0 %2608
    %v2610 = vsel %vm405, %v398, 0
    %v2612 = vsel %vm405, %v2609, 0
    %2614 = vmatprep.subr.mxu0 0.0
    %2615 = vmatpush1.xpose.msra.mxu0 %v2612
    %2616 = vmatprep.subr.mxu0 0.0
    %2617 = vmatpush1.xpose.msra.mxu0 0.0
    %2618 = vmatprep.subr.mxu0 0.0
    %2619 = vmatpush1.xpose.msra.mxu0 0.0
    %2620 = vmatprep.subr.mxu0 0.0
    %2621 = vmatpush1.xpose.msra.mxu0 0.0
    %2622 = vmatprep.subr.mxu0 0.0
    %2623 = vmatpush1.xpose.msra.mxu0 0.0
    %2624 = vmatprep.subr.mxu0 0.0
    %2625 = vmatpush1.xpose.msra.mxu0 0.0
    %2626 = vmatprep.subr.mxu0 0.0
    %2627 = vmatpush1.xpose.msra.mxu0 0.0
    %2628 = vmatprep.subr.mxu0 0.0
    %2629 = vmatpush1.xpose.msra.mxu0 0.0
    %2630 = vmatprep.subr.mxu0 0.0
    %2631 = vmatpush1.xpose.msra.mxu0 0.0
    %2632 = vmatprep.subr.mxu0 0.0
    %2633 = vmatpush1.xpose.msra.mxu0 0.0
    %2634 = vmatprep.subr.mxu0 0.0
    %2635 = vmatpush1.xpose.msra.mxu0 0.0
    %2636 = vmatprep.subr.mxu0 0.0
    %2637 = vmatpush1.xpose.msra.mxu0 0.0
    %2638 = vmatprep.subr.mxu0 0.0
    %2639 = vmatpush1.xpose.msra.mxu0 0.0
    %2640 = vmatprep.subr.mxu0 0.0
    %2641 = vmatpush1.xpose.msra.mxu0 0.0
    %2642 = vmatprep.subr.mxu0 0.0
    %2643 = vmatpush1.xpose.msra.mxu0 0.0
    %2644 = vmatprep.subr.mxu0 0.0
    %2645 = vmatpush1.xpose.msra.mxu0 0.0
    %2646 = vmatprep.subr.mxu0 0.0
    %2647 = vmatpush1.xpose.msra.mxu0 0.0
    %2648 = vmatprep.subr.mxu0 0.0
    %2649 = vmatpush1.xpose.msra.mxu0 0.0
    %2650 = vmatprep.subr.mxu0 0.0
    %2651 = vmatpush1.xpose.msra.mxu0 0.0
    %2652 = vmatprep.subr.mxu0 0.0
    %2653 = vmatpush1.xpose.msra.mxu0 0.0
    %2654 = vmatprep.subr.mxu0 0.0
    %2655 = vmatpush1.xpose.msra.mxu0 0.0
    %2656 = vmatprep.subr.mxu0 0.0
    %2657 = vmatpush1.xpose.msra.mxu0 0.0
    %2658 = vmatprep.subr.mxu0 0.0
    %2659 = vmatpush1.xpose.msra.mxu0 0.0
    %2660 = vmatprep.subr.mxu0 0.0
    %2661 = vmatpush1.xpose.msra.mxu0 0.0
    %2662 = vmatprep.subr.mxu0 0.0
    %2663 = vmatpush1.xpose.msra.mxu0 0.0
    %2664 = vmatprep.subr.mxu0 0.0
    %2665 = vmatpush1.xpose.msra.mxu0 0.0
    %2666 = vmatprep.subr.mxu0 0.0
    %2667 = vmatpush1.xpose.msra.mxu0 0.0
    %2668 = vmatprep.subr.mxu0 0.0
    %2669 = vmatpush1.xpose.msra.mxu0 0.0
    %2670 = vmatprep.subr.mxu0 0.0
    %2671 = vmatpush1.xpose.msra.mxu0 0.0
    %2672 = vmatprep.subr.mxu0 0.0
    %2673 = vmatpush1.xpose.msra.mxu0 0.0
    %2674 = vmatprep.subr.mxu0 0.0
    %2675 = vmatpush1.xpose.msra.mxu0 0.0
    %2676 = vmatprep.subr.mxu0 0.0
    %2677 = vmatpush1.xpose.msra.mxu0 0.0
    %2678 = vmatprep.mubr.f32.mxu0 0.0
    %2679 = vmatmul.mubr.f32.gmra.mrb[0].mxu0 %v2610
    %v2680 = vpop.f32.mrb[0].mxu0
    %v2681 = vadd.f32 0.0, %v2680
    %v2682 = vpop.f32.mrb[0].mxu0
    %2683 = vdwg.mxu0
    %2684 = vrot.lane.b32.xlu0 %v400, 96
    %v2685 = vpop.permute.xlu0 %2684
    %v2686 = vsel %vm405, %v400, 0
    %v2688 = vsel %vm405, %v2685, 0
    %2690 = vmatprep.subr.mxu0 0.0
    %2691 = vmatpush1.xpose.msra.mxu0 %v2688
    %2692 = vmatprep.subr.mxu0 0.0
    %2693 = vmatpush1.xpose.msra.mxu0 0.0
    %2694 = vmatprep.subr.mxu0 0.0
    %2695 = vmatpush1.xpose.msra.mxu0 0.0
    %2696 = vmatprep.subr.mxu0 0.0
    %2697 = vmatpush1.xpose.msra.mxu0 0.0
    %2698 = vmatprep.subr.mxu0 0.0
    %2699 = vmatpush1.xpose.msra.mxu0 0.0
    %2700 = vmatprep.subr.mxu0 0.0
    %2701 = vmatpush1.xpose.msra.mxu0 0.0
    %2702 = vmatprep.subr.mxu0 0.0
    %2703 = vmatpush1.xpose.msra.mxu0 0.0
    %2704 = vmatprep.subr.mxu0 0.0
    %2705 = vmatpush1.xpose.msra.mxu0 0.0
    %2706 = vmatprep.subr.mxu0 0.0
    %2707 = vmatpush1.xpose.msra.mxu0 0.0
    %2708 = vmatprep.subr.mxu0 0.0
    %2709 = vmatpush1.xpose.msra.mxu0 0.0
    %2710 = vmatprep.subr.mxu0 0.0
    %2711 = vmatpush1.xpose.msra.mxu0 0.0
    %2712 = vmatprep.subr.mxu0 0.0
    %2713 = vmatpush1.xpose.msra.mxu0 0.0
    %2714 = vmatprep.subr.mxu0 0.0
    %2715 = vmatpush1.xpose.msra.mxu0 0.0
    %2716 = vmatprep.subr.mxu0 0.0
    %2717 = vmatpush1.xpose.msra.mxu0 0.0
    %2718 = vmatprep.subr.mxu0 0.0
    %2719 = vmatpush1.xpose.msra.mxu0 0.0
    %2720 = vmatprep.subr.mxu0 0.0
    %2721 = vmatpush1.xpose.msra.mxu0 0.0
    %2722 = vmatprep.subr.mxu0 0.0
    %2723 = vmatpush1.xpose.msra.mxu0 0.0
    %2724 = vmatprep.subr.mxu0 0.0
    %2725 = vmatpush1.xpose.msra.mxu0 0.0
    %2726 = vmatprep.subr.mxu0 0.0
    %2727 = vmatpush1.xpose.msra.mxu0 0.0
    %2728 = vmatprep.subr.mxu0 0.0
    %2729 = vmatpush1.xpose.msra.mxu0 0.0
    %2730 = vmatprep.subr.mxu0 0.0
    %2731 = vmatpush1.xpose.msra.mxu0 0.0
    %2732 = vmatprep.subr.mxu0 0.0
    %2733 = vmatpush1.xpose.msra.mxu0 0.0
    %2734 = vmatprep.subr.mxu0 0.0
    %2735 = vmatpush1.xpose.msra.mxu0 0.0
    %2736 = vmatprep.subr.mxu0 0.0
    %2737 = vmatpush1.xpose.msra.mxu0 0.0
    %2738 = vmatprep.subr.mxu0 0.0
    %2739 = vmatpush1.xpose.msra.mxu0 0.0
    %2740 = vmatprep.subr.mxu0 0.0
    %2741 = vmatpush1.xpose.msra.mxu0 0.0
    %2742 = vmatprep.subr.mxu0 0.0
    %2743 = vmatpush1.xpose.msra.mxu0 0.0
    %2744 = vmatprep.subr.mxu0 0.0
    %2745 = vmatpush1.xpose.msra.mxu0 0.0
    %2746 = vmatprep.subr.mxu0 0.0
    %2747 = vmatpush1.xpose.msra.mxu0 0.0
    %2748 = vmatprep.subr.mxu0 0.0
    %2749 = vmatpush1.xpose.msra.mxu0 0.0
    %2750 = vmatprep.subr.mxu0 0.0
    %2751 = vmatpush1.xpose.msra.mxu0 0.0
    %2752 = vmatprep.subr.mxu0 0.0
    %2753 = vmatpush1.xpose.msra.mxu0 0.0
    %2754 = vmatprep.mubr.f32.mxu0 0.0
    %2755 = vmatmul.mubr.f32.gmra.mrb[0].mxu0 %v2686
    %v2756 = vpop.f32.mrb[0].mxu0
    %v2757 = vadd.f32 0.0, %v2756
    %v2758 = vpop.f32.mrb[0].mxu0
    %2759 = vdwg.mxu0
    %2760 = vrot.lane.b32.xlu0 %v402, 96
    %v2761 = vpop.permute.xlu0 %2760
    %v2762 = vsel %vm405, %v402, 0
    %v2764 = vsel %vm405, %v2761, 0
    %2766 = vmatprep.subr.mxu0 0.0
    %2767 = vmatpush1.xpose.msra.mxu0 %v2764
    %2768 = vmatprep.subr.mxu0 0.0
    %2769 = vmatpush1.xpose.msra.mxu0 0.0
    %2770 = vmatprep.subr.mxu0 0.0
    %2771 = vmatpush1.xpose.msra.mxu0 0.0
    %2772 = vmatprep.subr.mxu0 0.0
    %2773 = vmatpush1.xpose.msra.mxu0 0.0
    %2774 = vmatprep.subr.mxu0 0.0
    %2775 = vmatpush1.xpose.msra.mxu0 0.0
    %2776 = vmatprep.subr.mxu0 0.0
    %2777 = vmatpush1.xpose.msra.mxu0 0.0
    %2778 = vmatprep.subr.mxu0 0.0
    %2779 = vmatpush1.xpose.msra.mxu0 0.0
    %2780 = vmatprep.subr.mxu0 0.0
    %2781 = vmatpush1.xpose.msra.mxu0 0.0
    %2782 = vmatprep.subr.mxu0 0.0
    %2783 = vmatpush1.xpose.msra.mxu0 0.0
    %2784 = vmatprep.subr.mxu0 0.0
    %2785 = vmatpush1.xpose.msra.mxu0 0.0
    %2786 = vmatprep.subr.mxu0 0.0
    %2787 = vmatpush1.xpose.msra.mxu0 0.0
    %2788 = vmatprep.subr.mxu0 0.0
    %2789 = vmatpush1.xpose.msra.mxu0 0.0
    %2790 = vmatprep.subr.mxu0 0.0
    %2791 = vmatpush1.xpose.msra.mxu0 0.0
    %2792 = vmatprep.subr.mxu0 0.0
    %2793 = vmatpush1.xpose.msra.mxu0 0.0
    %2794 = vmatprep.subr.mxu0 0.0
    %2795 = vmatpush1.xpose.msra.mxu0 0.0
    %2796 = vmatprep.subr.mxu0 0.0
    %2797 = vmatpush1.xpose.msra.mxu0 0.0
    %2798 = vmatprep.subr.mxu0 0.0
    %2799 = vmatpush1.xpose.msra.mxu0 0.0
    %2800 = vmatprep.subr.mxu0 0.0
    %2801 = vmatpush1.xpose.msra.mxu0 0.0
    %2802 = vmatprep.subr.mxu0 0.0
    %2803 = vmatpush1.xpose.msra.mxu0 0.0
    %2804 = vmatprep.subr.mxu0 0.0
    %2805 = vmatpush1.xpose.msra.mxu0 0.0
    %2806 = vmatprep.subr.mxu0 0.0
    %2807 = vmatpush1.xpose.msra.mxu0 0.0
    %2808 = vmatprep.subr.mxu0 0.0
    %2809 = vmatpush1.xpose.msra.mxu0 0.0
    %2810 = vmatprep.subr.mxu0 0.0
    %2811 = vmatpush1.xpose.msra.mxu0 0.0
    %2812 = vmatprep.subr.mxu0 0.0
    %2813 = vmatpush1.xpose.msra.mxu0 0.0
    %2814 = vmatprep.subr.mxu0 0.0
    %2815 = vmatpush1.xpose.msra.mxu0 0.0
    %2816 = vmatprep.subr.mxu0 0.0
    %2817 = vmatpush1.xpose.msra.mxu0 0.0
    %2818 = vmatprep.subr.mxu0 0.0
    %2819 = vmatpush1.xpose.msra.mxu0 0.0
    %2820 = vmatprep.subr.mxu0 0.0
    %2821 = vmatpush1.xpose.msra.mxu0 0.0
    %2822 = vmatprep.subr.mxu0 0.0
    %2823 = vmatpush1.xpose.msra.mxu0 0.0
    %2824 = vmatprep.subr.mxu0 0.0
    %2825 = vmatpush1.xpose.msra.mxu0 0.0
    %2826 = vmatprep.subr.mxu0 0.0
    %2827 = vmatpush1.xpose.msra.mxu0 0.0
    %2828 = vmatprep.subr.mxu0 0.0
    %2829 = vmatpush1.xpose.msra.mxu0 0.0
    %2830 = vmatprep.mubr.f32.mxu0 0.0
    %2831 = vmatmul.mubr.f32.gmra.mrb[0].mxu0 %v2762
    %v2832 = vpop.f32.mrb[0].mxu0
    %v2833 = vadd.f32 0.0, %v2832
    %v2834 = vpop.f32.mrb[0].mxu0
    %2835 = vdwg.mxu0
    %v2836 = vsel %vm346, 1, 0
    %vm2837 = vcmp.eq.s32.totalorder %v2836, 1
    %v2838 = vsel %vm2837, %v477, -inf
    %v2839 = vsel %vm2837, %v553, -inf
    %v2840 = vsel %vm2837, %v629, -inf
    %v2841 = vsel %vm2837, %v705, -inf
    %v2842 = vsel %vm2837, %v781, -inf
    %v2843 = vsel %vm2837, %v857, -inf
    %v2844 = vsel %vm2837, %v933, -inf
    %v2845 = vsel %vm2837, %v1009, -inf
    %v2846 = vsel %vm2837, %v1085, -inf
    %v2847 = vsel %vm2837, %v1161, -inf
    %v2848 = vsel %vm2837, %v1237, -inf
    %v2849 = vsel %vm2837, %v1313, -inf
    %v2850 = vsel %vm2837, %v1389, -inf
    %v2851 = vsel %vm2837, %v1465, -inf
    %v2852 = vsel %vm2837, %v1541, -inf
    %v2853 = vsel %vm2837, %v1617, -inf
    %v2854 = vsel %vm2837, %v1693, -inf
    %v2855 = vsel %vm2837, %v1769, -inf
    %v2856 = vsel %vm2837, %v1845, -inf
    %v2857 = vsel %vm2837, %v1921, -inf
    %v2858 = vsel %vm2837, %v1997, -inf
    %v2859 = vsel %vm2837, %v2073, -inf
    %v2860 = vsel %vm2837, %v2149, -inf
    %v2861 = vsel %vm2837, %v2225, -inf
    %v2862 = vsel %vm2837, %v2301, -inf
    %v2863 = vsel %vm2837, %v2377, -inf
    %v2864 = vsel %vm2837, %v2453, -inf
    %v2865 = vsel %vm2837, %v2529, -inf
    %v2866 = vsel %vm2837, %v2605, -inf
    %v2867 = vsel %vm2837, %v2681, -inf
    %v2868 = vsel %vm2837, %v2757, -inf
    %v2869 = vsel %vm2837, %v2833, -inf
    %v2870 = vsel %vm405, %v2838, -inf
    %2871 = vmax.xlane.f32.xlu0 %v2870
    %v2872 = vpop.xlane.xlu0 %2871
    %v2873 = vsel %vm405, %v2839, -inf
    %2874 = vmax.xlane.f32.xlu0 %v2873
    %v2875 = vpop.xlane.xlu0 %2874
    %v2876 = vsel %vm405, %v2840, -inf
    %2877 = vmax.xlane.f32.xlu0 %v2876
    %v2878 = vpop.xlane.xlu0 %2877
    %v2879 = vsel %vm405, %v2841, -inf
    %2880 = vmax.xlane.f32.xlu0 %v2879
    %v2881 = vpop.xlane.xlu0 %2880
    %v2882 = vsel %vm405, %v2842, -inf
    %2883 = vmax.xlane.f32.xlu0 %v2882
    %v2884 = vpop.xlane.xlu0 %2883
    %v2885 = vsel %vm405, %v2843, -inf
    %2886 = vmax.xlane.f32.xlu0 %v2885
    %v2887 = vpop.xlane.xlu0 %2886
    %v2888 = vsel %vm405, %v2844, -inf
    %2889 = vmax.xlane.f32.xlu0 %v2888
    %v2890 = vpop.xlane.xlu0 %2889
    %v2891 = vsel %vm405, %v2845, -inf
    %2892 = vmax.xlane.f32.xlu0 %v2891
    %v2893 = vpop.xlane.xlu0 %2892
    %v2894 = vsel %vm405, %v2846, -inf
    %2895 = vmax.xlane.f32.xlu0 %v2894
    %v2896 = vpop.xlane.xlu0 %2895
    %v2897 = vsel %vm405, %v2847, -inf
    %2898 = vmax.xlane.f32.xlu0 %v2897
    %v2899 = vpop.xlane.xlu0 %2898
    %v2900 = vsel %vm405, %v2848, -inf
    %2901 = vmax.xlane.f32.xlu0 %v2900
    %v2902 = vpop.xlane.xlu0 %2901
    %v2903 = vsel %vm405, %v2849, -inf
    %2904 = vmax.xlane.f32.xlu0 %v2903
    %v2905 = vpop.xlane.xlu0 %2904
    %v2906 = vsel %vm405, %v2850, -inf
    %2907 = vmax.xlane.f32.xlu0 %v2906
    %v2908 = vpop.xlane.xlu0 %2907
    %v2909 = vsel %vm405, %v2851, -inf
    %2910 = vmax.xlane.f32.xlu0 %v2909
    %v2911 = vpop.xlane.xlu0 %2910
    %v2912 = vsel %vm405, %v2852, -inf
    %2913 = vmax.xlane.f32.xlu0 %v2912
    %v2914 = vpop.xlane.xlu0 %2913
    %v2915 = vsel %vm405, %v2853, -inf
    %2916 = vmax.xlane.f32.xlu0 %v2915
    %v2917 = vpop.xlane.xlu0 %2916
    %v2918 = vsel %vm405, %v2854, -inf
    %2919 = vmax.xlane.f32.xlu0 %v2918
    %v2920 = vpop.xlane.xlu0 %2919
    %v2921 = vsel %vm405, %v2855, -inf
    %2922 = vmax.xlane.f32.xlu0 %v2921
    %v2923 = vpop.xlane.xlu0 %2922
    %v2924 = vsel %vm405, %v2856, -inf
    %2925 = vmax.xlane.f32.xlu0 %v2924
    %v2926 = vpop.xlane.xlu0 %2925
    %v2927 = vsel %vm405, %v2857, -inf
    %2928 = vmax.xlane.f32.xlu0 %v2927
    %v2929 = vpop.xlane.xlu0 %2928
    %v2930 = vsel %vm405, %v2858, -inf
    %2931 = vmax.xlane.f32.xlu0 %v2930
    %v2932 = vpop.xlane.xlu0 %2931
    %v2933 = vsel %vm405, %v2859, -inf
    %2934 = vmax.xlane.f32.xlu0 %v2933
    %v2935 = vpop.xlane.xlu0 %2934
    %v2936 = vsel %vm405, %v2860, -inf
    %2937 = vmax.xlane.f32.xlu0 %v2936
    %v2938 = vpop.xlane.xlu0 %2937
    %v2939 = vsel %vm405, %v2861, -inf
    %2940 = vmax.xlane.f32.xlu0 %v2939
    %v2941 = vpop.xlane.xlu0 %2940
    %v2942 = vsel %vm405, %v2862, -inf
    %2943 = vmax.xlane.f32.xlu0 %v2942
    %v2944 = vpop.xlane.xlu0 %2943
    %v2945 = vsel %vm405, %v2863, -inf
    %2946 = vmax.xlane.f32.xlu0 %v2945
    %v2947 = vpop.xlane.xlu0 %2946
    %v2948 = vsel %vm405, %v2864, -inf
    %2949 = vmax.xlane.f32.xlu0 %v2948
    %v2950 = vpop.xlane.xlu0 %2949
    %v2951 = vsel %vm405, %v2865, -inf
    %2952 = vmax.xlane.f32.xlu0 %v2951
    %v2953 = vpop.xlane.xlu0 %2952
    %v2954 = vsel %vm405, %v2866, -inf
    %2955 = vmax.xlane.f32.xlu0 %v2954
    %v2956 = vpop.xlane.xlu0 %2955
    %v2957 = vsel %vm405, %v2867, -inf
    %2958 = vmax.xlane.f32.xlu0 %v2957
    %v2959 = vpop.xlane.xlu0 %2958
    %v2960 = vsel %vm405, %v2868, -inf
    %2961 = vmax.xlane.f32.xlu0 %v2960
    %v2962 = vpop.xlane.xlu0 %2961
    %v2963 = vsel %vm405, %v2869, -inf
    %2964 = vmax.xlane.f32.xlu0 %v2963
    %v2965 = vpop.xlane.xlu0 %2964
    %v2966 = vsub.f32 %v2838, %v2872
    %v2967 = vsub.f32 %v2839, %v2875
    %v2968 = vsub.f32 %v2840, %v2878
    %v2969 = vsub.f32 %v2841, %v2881
    %v2970 = vsub.f32 %v2842, %v2884
    %v2971 = vsub.f32 %v2843, %v2887
    %v2972 = vsub.f32 %v2844, %v2890
    %v2973 = vsub.f32 %v2845, %v2893
    %v2974 = vsub.f32 %v2846, %v2896
    %v2975 = vsub.f32 %v2847, %v2899
    %v2976 = vsub.f32 %v2848, %v2902
    %v2977 = vsub.f32 %v2849, %v2905
    %v2978 = vsub.f32 %v2850, %v2908
    %v2979 = vsub.f32 %v2851, %v2911
    %v2980 = vsub.f32 %v2852, %v2914
    %v2981 = vsub.f32 %v2853, %v2917
    %v2982 = vsub.f32 %v2854, %v2920
    %v2983 = vsub.f32 %v2855, %v2923
    %v2984 = vsub.f32 %v2856, %v2926
    %v2985 = vsub.f32 %v2857, %v2929
    %v2986 = vsub.f32 %v2858, %v2932
    %v2987 = vsub.f32 %v2859, %v2935
    %v2988 = vsub.f32 %v2860, %v2938
    %v2989 = vsub.f32 %v2861, %v2941
    %v2990 = vsub.f32 %v2862, %v2944
    %v2991 = vsub.f32 %v2863, %v2947
    %v2992 = vsub.f32 %v2864, %v2950
    %v2993 = vsub.f32 %v2865, %v2953
    %v2994 = vsub.f32 %v2866, %v2956
    %v2995 = vsub.f32 %v2867, %v2959
    %v2996 = vsub.f32 %v2868, %v2962
    %v2997 = vsub.f32 %v2869, %v2965
    %v2998 = vmul.f32 %v2966, 1.442695
    %v2999 = vpow.pop %v2998
    %v3000 = vmul.f32 %v2967, 1.442695
    %v3001 = vpow.pop %v3000
    %v3002 = vmul.f32 %v2968, 1.442695
    %v3003 = vpow.pop %v3002
    %v3004 = vmul.f32 %v2969, 1.442695
    %v3005 = vpow.pop %v3004
    %v3006 = vmul.f32 %v2970, 1.442695
    %v3007 = vpow.pop %v3006
    %v3008 = vmul.f32 %v2971, 1.442695
    %v3009 = vpow.pop %v3008
    %v3010 = vmul.f32 %v2972, 1.442695
    %v3011 = vpow.pop %v3010
    %v3012 = vmul.f32 %v2973, 1.442695
    %v3013 = vpow.pop %v3012
    %v3014 = vmul.f32 %v2974, 1.442695
    %v3015 = vpow.pop %v3014
    %v3016 = vmul.f32 %v2975, 1.442695
    %v3017 = vpow.pop %v3016
    %v3018 = vmul.f32 %v2976, 1.442695
    %v3019 = vpow.pop %v3018
    %v3020 = vmul.f32 %v2977, 1.442695
    %v3021 = vpow.pop %v3020
    %v3022 = vmul.f32 %v2978, 1.442695
    %v3023 = vpow.pop %v3022
    %v3024 = vmul.f32 %v2979, 1.442695
    %v3025 = vpow.pop %v3024
    %v3026 = vmul.f32 %v2980, 1.442695
    %v3027 = vpow.pop %v3026
    %v3028 = vmul.f32 %v2981, 1.442695
    %v3029 = vpow.pop %v3028
    %v3030 = vmul.f32 %v2982, 1.442695
    %v3031 = vpow.pop %v3030
    %v3032 = vmul.f32 %v2983, 1.442695
    %v3033 = vpow.pop %v3032
    %v3034 = vmul.f32 %v2984, 1.442695
    %v3035 = vpow.pop %v3034
    %v3036 = vmul.f32 %v2985, 1.442695
    %v3037 = vpow.pop %v3036
    %v3038 = vmul.f32 %v2986, 1.442695
    %v3039 = vpow.pop %v3038
    %v3040 = vmul.f32 %v2987, 1.442695
    %v3041 = vpow.pop %v3040
    %v3042 = vmul.f32 %v2988, 1.442695
    %v3043 = vpow.pop %v3042
    %v3044 = vmul.f32 %v2989, 1.442695
    %v3045 = vpow.pop %v3044
    %v3046 = vmul.f32 %v2990, 1.442695
    %v3047 = vpow.pop %v3046
    %v3048 = vmul.f32 %v2991, 1.442695
    %v3049 = vpow.pop %v3048
    %v3050 = vmul.f32 %v2992, 1.442695
    %v3051 = vpow.pop %v3050
    %v3052 = vmul.f32 %v2993, 1.442695
    %v3053 = vpow.pop %v3052
    %v3054 = vmul.f32 %v2994, 1.442695
    %v3055 = vpow.pop %v3054
    %v3056 = vmul.f32 %v2995, 1.442695
    %v3057 = vpow.pop %v3056
    %v3058 = vmul.f32 %v2996, 1.442695
    %v3059 = vpow.pop %v3058
    %v3060 = vmul.f32 %v2997, 1.442695
    %v3061 = vpow.pop %v3060
    %v3062 = vsel %vm405, %v2999, 0.0
    %3063 = vadd.xlane.f32.xlu0 %v3062
    %v3064 = vpop.xlane.xlu0 %3063
    %v3065 = vsel %vm405, %v3001, 0.0
    %3066 = vadd.xlane.f32.xlu0 %v3065
    %v3067 = vpop.xlane.xlu0 %3066
    %v3068 = vsel %vm405, %v3003, 0.0
    %3069 = vadd.xlane.f32.xlu0 %v3068
    %v3070 = vpop.xlane.xlu0 %3069
    %v3071 = vsel %vm405, %v3005, 0.0
    %3072 = vadd.xlane.f32.xlu0 %v3071
    %v3073 = vpop.xlane.xlu0 %3072
    %v3074 = vsel %vm405, %v3007, 0.0
    %3075 = vadd.xlane.f32.xlu0 %v3074
    %v3076 = vpop.xlane.xlu0 %3075
    %v3077 = vsel %vm405, %v3009, 0.0
    %3078 = vadd.xlane.f32.xlu0 %v3077
    %v3079 = vpop.xlane.xlu0 %3078
    %v3080 = vsel %vm405, %v3011, 0.0
    %3081 = vadd.xlane.f32.xlu0 %v3080
    %v3082 = vpop.xlane.xlu0 %3081
    %v3083 = vsel %vm405, %v3013, 0.0
    %3084 = vadd.xlane.f32.xlu0 %v3083
    %v3085 = vpop.xlane.xlu0 %3084
    %v3086 = vsel %vm405, %v3015, 0.0
    %3087 = vadd.xlane.f32.xlu0 %v3086
    %v3088 = vpop.xlane.xlu0 %3087
    %v3089 = vsel %vm405, %v3017, 0.0
    %3090 = vadd.xlane.f32.xlu0 %v3089
    %v3091 = vpop.xlane.xlu0 %3090
    %v3092 = vsel %vm405, %v3019, 0.0
    %3093 = vadd.xlane.f32.xlu0 %v3092
    %v3094 = vpop.xlane.xlu0 %3093
    %v3095 = vsel %vm405, %v3021, 0.0
    %3096 = vadd.xlane.f32.xlu0 %v3095
    %v3097 = vpop.xlane.xlu0 %3096
    %v3098 = vsel %vm405, %v3023, 0.0
    %3099 = vadd.xlane.f32.xlu0 %v3098
    %v3100 = vpop.xlane.xlu0 %3099
    %v3101 = vsel %vm405, %v3025, 0.0
    %3102 = vadd.xlane.f32.xlu0 %v3101
    %v3103 = vpop.xlane.xlu0 %3102
    %v3104 = vsel %vm405, %v3027, 0.0
    %3105 = vadd.xlane.f32.xlu0 %v3104
    %v3106 = vpop.xlane.xlu0 %3105
    %v3107 = vsel %vm405, %v3029, 0.0
    %3108 = vadd.xlane.f32.xlu0 %v3107
    %v3109 = vpop.xlane.xlu0 %3108
    %v3110 = vsel %vm405, %v3031, 0.0
    %3111 = vadd.xlane.f32.xlu0 %v3110
    %v3112 = vpop.xlane.xlu0 %3111
    %v3113 = vsel %vm405, %v3033, 0.0
    %3114 = vadd.xlane.f32.xlu0 %v3113
    %v3115 = vpop.xlane.xlu0 %3114
    %v3116 = vsel %vm405, %v3035, 0.0
    %3117 = vadd.xlane.f32.xlu0 %v3116
    %v3118 = vpop.xlane.xlu0 %3117
    %v3119 = vsel %vm405, %v3037, 0.0
    %3120 = vadd.xlane.f32.xlu0 %v3119
    %v3121 = vpop.xlane.xlu0 %3120
    %v3122 = vsel %vm405, %v3039, 0.0
    %3123 = vadd.xlane.f32.xlu0 %v3122
    %v3124 = vpop.xlane.xlu0 %3123
    %v3125 = vsel %vm405, %v3041, 0.0
    %3126 = vadd.xlane.f32.xlu0 %v3125
    %v3127 = vpop.xlane.xlu0 %3126
    %v3128 = vsel %vm405, %v3043, 0.0
    %3129 = vadd.xlane.f32.xlu0 %v3128
    %v3130 = vpop.xlane.xlu0 %3129
    %v3131 = vsel %vm405, %v3045, 0.0
    %3132 = vadd.xlane.f32.xlu0 %v3131
    %v3133 = vpop.xlane.xlu0 %3132
    %v3134 = vsel %vm405, %v3047, 0.0
    %3135 = vadd.xlane.f32.xlu0 %v3134
    %v3136 = vpop.xlane.xlu0 %3135
    %v3137 = vsel %vm405, %v3049, 0.0
    %3138 = vadd.xlane.f32.xlu0 %v3137
    %v3139 = vpop.xlane.xlu0 %3138
    %v3140 = vsel %vm405, %v3051, 0.0
    %3141 = vadd.xlane.f32.xlu0 %v3140
    %v3142 = vpop.xlane.xlu0 %3141
    %v3143 = vsel %vm405, %v3053, 0.0
    %3144 = vadd.xlane.f32.xlu0 %v3143
    %v3145 = vpop.xlane.xlu0 %3144
    %v3146 = vsel %vm405, %v3055, 0.0
    %3147 = vadd.xlane.f32.xlu0 %v3146
    %v3148 = vpop.xlane.xlu0 %3147
    %v3149 = vsel %vm405, %v3057, 0.0
    %3150 = vadd.xlane.f32.xlu0 %v3149
    %v3151 = vpop.xlane.xlu0 %3150
    %v3152 = vsel %vm405, %v3059, 0.0
    %3153 = vadd.xlane.f32.xlu0 %v3152
    %v3154 = vpop.xlane.xlu0 %3153
    %v3155 = vsel %vm405, %v3061, 0.0
    %3156 = vadd.xlane.f32.xlu0 %v3155
    %v3157 = vpop.xlane.xlu0 %3156
    %v3158 = vrcp.pop %v3064
    %v3159 = vrcp.pop %v3067
    %v3160 = vrcp.pop %v3070
    %v3161 = vrcp.pop %v3073
    %v3162 = vrcp.pop %v3076
    %v3163 = vrcp.pop %v3079
    %v3164 = vrcp.pop %v3082
    %v3165 = vrcp.pop %v3085
    %v3166 = vrcp.pop %v3088
    %v3167 = vrcp.pop %v3091
    %v3168 = vrcp.pop %v3094
    %v3169 = vrcp.pop %v3097
    %v3170 = vrcp.pop %v3100
    %v3171 = vrcp.pop %v3103
    %v3172 = vrcp.pop %v3106
    %v3173 = vrcp.pop %v3109
    %v3174 = vrcp.pop %v3112
    %v3175 = vrcp.pop %v3115
    %v3176 = vrcp.pop %v3118
    %v3177 = vrcp.pop %v3121
    %v3178 = vrcp.pop %v3124
    %v3179 = vrcp.pop %v3127
    %v3180 = vrcp.pop %v3130
    %v3181 = vrcp.pop %v3133
    %v3182 = vrcp.pop %v3136
    %v3183 = vrcp.pop %v3139
    %v3184 = vrcp.pop %v3142
    %v3185 = vrcp.pop %v3145
    %v3186 = vrcp.pop %v3148
    %v3187 = vrcp.pop %v3151
    %v3188 = vrcp.pop %v3154
    %v3189 = vrcp.pop %v3157
    %v3190 = vmul.f32 %v2999, %v3158
    %v3191 = vmul.f32 %v3001, %v3159
    %v3192 = vmul.f32 %v3003, %v3160
    %v3193 = vmul.f32 %v3005, %v3161
    %v3194 = vmul.f32 %v3007, %v3162
    %v3195 = vmul.f32 %v3009, %v3163
    %v3196 = vmul.f32 %v3011, %v3164
    %v3197 = vmul.f32 %v3013, %v3165
    %v3198 = vmul.f32 %v3015, %v3166
    %v3199 = vmul.f32 %v3017, %v3167
    %v3200 = vmul.f32 %v3019, %v3168
    %v3201 = vmul.f32 %v3021, %v3169
    %v3202 = vmul.f32 %v3023, %v3170
    %v3203 = vmul.f32 %v3025, %v3171
    %v3204 = vmul.f32 %v3027, %v3172
    %v3205 = vmul.f32 %v3029, %v3173
    %v3206 = vmul.f32 %v3031, %v3174
    %v3207 = vmul.f32 %v3033, %v3175
    %v3208 = vmul.f32 %v3035, %v3176
    %v3209 = vmul.f32 %v3037, %v3177
    %v3210 = vmul.f32 %v3039, %v3178
    %v3211 = vmul.f32 %v3041, %v3179
    %v3212 = vmul.f32 %v3043, %v3180
    %v3213 = vmul.f32 %v3045, %v3181
    %v3214 = vmul.f32 %v3047, %v3182
    %v3215 = vmul.f32 %v3049, %v3183
    %v3216 = vmul.f32 %v3051, %v3184
    %v3217 = vmul.f32 %v3053, %v3185
    %v3218 = vmul.f32 %v3055, %v3186
    %v3219 = vmul.f32 %v3057, %v3187
    %v3220 = vmul.f32 %v3059, %v3188
    %v3221 = vmul.f32 %v3061, %v3189
    %3222 = vrot.lane.b32.xlu0 %v304, 64
    %v3223 = vpop.permute.xlu0 %3222
    %v3226 = vsel %vm405, %v3190, 0
    %3228 = vmatprep.subr.mxu0 0.0
    %3229 = vmatpush1.msra.mxu0 %v3223
    %3230 = vmatprep.subr.mxu0 0.0
    %3231 = vmatpush1.msra.mxu0 0.0
    %3232 = vmatprep.subr.mxu0 0.0
    %3233 = vmatpush1.msra.mxu0 0.0
    %3234 = vmatprep.subr.mxu0 0.0
    %3235 = vmatpush1.msra.mxu0 0.0
    %3236 = vmatprep.subr.mxu0 0.0
    %3237 = vmatpush1.msra.mxu0 0.0
    %3238 = vmatprep.subr.mxu0 0.0
    %3239 = vmatpush1.msra.mxu0 0.0
    %3240 = vmatprep.subr.mxu0 0.0
    %3241 = vmatpush1.msra.mxu0 0.0
    %3242 = vmatprep.subr.mxu0 0.0
    %3243 = vmatpush1.msra.mxu0 0.0
    %3244 = vmatprep.subr.mxu0 0.0
    %3245 = vmatpush1.msra.mxu0 0.0
    %3246 = vmatprep.subr.mxu0 0.0
    %3247 = vmatpush1.msra.mxu0 0.0
    %3248 = vmatprep.subr.mxu0 0.0
    %3249 = vmatpush1.msra.mxu0 0.0
    %3250 = vmatprep.subr.mxu0 0.0
    %3251 = vmatpush1.msra.mxu0 0.0
    %3252 = vmatprep.subr.mxu0 0.0
    %3253 = vmatpush1.msra.mxu0 0.0
    %3254 = vmatprep.subr.mxu0 0.0
    %3255 = vmatpush1.msra.mxu0 0.0
    %3256 = vmatprep.subr.mxu0 0.0
    %3257 = vmatpush1.msra.mxu0 0.0
    %3258 = vmatprep.subr.mxu0 0.0
    %3259 = vmatpush1.msra.mxu0 0.0
    %3260 = vmatprep.subr.mxu0 0.0
    %3261 = vmatpush1.msra.mxu0 0.0
    %3262 = vmatprep.subr.mxu0 0.0
    %3263 = vmatpush1.msra.mxu0 0.0
    %3264 = vmatprep.subr.mxu0 0.0
    %3265 = vmatpush1.msra.mxu0 0.0
    %3266 = vmatprep.subr.mxu0 0.0
    %3267 = vmatpush1.msra.mxu0 0.0
    %3268 = vmatprep.subr.mxu0 0.0
    %3269 = vmatpush1.msra.mxu0 0.0
    %3270 = vmatprep.subr.mxu0 0.0
    %3271 = vmatpush1.msra.mxu0 0.0
    %3272 = vmatprep.subr.mxu0 0.0
    %3273 = vmatpush1.msra.mxu0 0.0
    %3274 = vmatprep.subr.mxu0 0.0
    %3275 = vmatpush1.msra.mxu0 0.0
    %3276 = vmatprep.subr.mxu0 0.0
    %3277 = vmatpush1.msra.mxu0 0.0
    %3278 = vmatprep.subr.mxu0 0.0
    %3279 = vmatpush1.msra.mxu0 0.0
    %3280 = vmatprep.subr.mxu0 0.0
    %3281 = vmatpush1.msra.mxu0 0.0
    %3282 = vmatprep.subr.mxu0 0.0
    %3283 = vmatpush1.msra.mxu0 0.0
    %3284 = vmatprep.subr.mxu0 0.0
    %3285 = vmatpush1.msra.mxu0 0.0
    %3286 = vmatprep.subr.mxu0 0.0
    %3287 = vmatpush1.msra.mxu0 0.0
    %3288 = vmatprep.subr.mxu0 0.0
    %3289 = vmatpush1.msra.mxu0 0.0
    %3290 = vmatprep.subr.mxu0 0.0
    %3291 = vmatpush1.msra.mxu0 0.0
    %3292 = vmatprep.mubr.f32.mxu0 0.0
    %3293 = vmatmul.mubr.f32.gmra.mrb[0].mxu0 %v3226
    %v3294 = vpop.f32.mrb[0].mxu0
    %v3295 = vadd.f32 0.0, %v3294
    %v3296 = vpop.f32.mrb[0].mxu0
    %3297 = vdwg.mxu0
    %3298 = vrot.lane.b32.xlu0 %v309, 64
    %v3299 = vpop.permute.xlu0 %3298
    %v3302 = vsel %vm405, %v3191, 0
    %3304 = vmatprep.subr.mxu0 0.0
    %3305 = vmatpush1.msra.mxu0 %v3299
    %3306 = vmatprep.subr.mxu0 0.0
    %3307 = vmatpush1.msra.mxu0 0.0
    %3308 = vmatprep.subr.mxu0 0.0
    %3309 = vmatpush1.msra.mxu0 0.0
    %3310 = vmatprep.subr.mxu0 0.0
    %3311 = vmatpush1.msra.mxu0 0.0
    %3312 = vmatprep.subr.mxu0 0.0
    %3313 = vmatpush1.msra.mxu0 0.0
    %3314 = vmatprep.subr.mxu0 0.0
    %3315 = vmatpush1.msra.mxu0 0.0
    %3316 = vmatprep.subr.mxu0 0.0
    %3317 = vmatpush1.msra.mxu0 0.0
    %3318 = vmatprep.subr.mxu0 0.0
    %3319 = vmatpush1.msra.mxu0 0.0
    %3320 = vmatprep.subr.mxu0 0.0
    %3321 = vmatpush1.msra.mxu0 0.0
    %3322 = vmatprep.subr.mxu0 0.0
    %3323 = vmatpush1.msra.mxu0 0.0
    %3324 = vmatprep.subr.mxu0 0.0
    %3325 = vmatpush1.msra.mxu0 0.0
    %3326 = vmatprep.subr.mxu0 0.0
    %3327 = vmatpush1.msra.mxu0 0.0
    %3328 = vmatprep.subr.mxu0 0.0
    %3329 = vmatpush1.msra.mxu0 0.0
    %3330 = vmatprep.subr.mxu0 0.0
    %3331 = vmatpush1.msra.mxu0 0.0
    %3332 = vmatprep.subr.mxu0 0.0
    %3333 = vmatpush1.msra.mxu0 0.0
    %3334 = vmatprep.subr.mxu0 0.0
    %3335 = vmatpush1.msra.mxu0 0.0
    %3336 = vmatprep.subr.mxu0 0.0
    %3337 = vmatpush1.msra.mxu0 0.0
    %3338 = vmatprep.subr.mxu0 0.0
    %3339 = vmatpush1.msra.mxu0 0.0
    %3340 = vmatprep.subr.mxu0 0.0
    %3341 = vmatpush1.msra.mxu0 0.0
    %3342 = vmatprep.subr.mxu0 0.0
    %3343 = vmatpush1.msra.mxu0 0.0
    %3344 = vmatprep.subr.mxu0 0.0
    %3345 = vmatpush1.msra.mxu0 0.0
    %3346 = vmatprep.subr.mxu0 0.0
    %3347 = vmatpush1.msra.mxu0 0.0
    %3348 = vmatprep.subr.mxu0 0.0
    %3349 = vmatpush1.msra.mxu0 0.0
    %3350 = vmatprep.subr.mxu0 0.0
    %3351 = vmatpush1.msra.mxu0 0.0
    %3352 = vmatprep.subr.mxu0 0.0
    %3353 = vmatpush1.msra.mxu0 0.0
    %3354 = vmatprep.subr.mxu0 0.0
    %3355 = vmatpush1.msra.mxu0 0.0
    %3356 = vmatprep.subr.mxu0 0.0
    %3357 = vmatpush1.msra.mxu0 0.0
    %3358 = vmatprep.subr.mxu0 0.0
    %3359 = vmatpush1.msra.mxu0 0.0
    %3360 = vmatprep.subr.mxu0 0.0
    %3361 = vmatpush1.msra.mxu0 0.0
    %3362 = vmatprep.subr.mxu0 0.0
    %3363 = vmatpush1.msra.mxu0 0.0
    %3364 = vmatprep.subr.mxu0 0.0
    %3365 = vmatpush1.msra.mxu0 0.0
    %3366 = vmatprep.subr.mxu0 0.0
    %3367 = vmatpush1.msra.mxu0 0.0
    %3368 = vmatprep.mubr.f32.mxu0 0.0
    %3369 = vmatmul.mubr.f32.gmra.mrb[0].mxu0 %v3302
    %v3370 = vpop.f32.mrb[0].mxu0
    %v3371 = vadd.f32 0.0, %v3370
    %v3372 = vpop.f32.mrb[0].mxu0
    %3373 = vdwg.mxu0
    %3374 = vrot.lane.b32.xlu0 %v314, 64
    %v3375 = vpop.permute.xlu0 %3374
    %v3378 = vsel %vm405, %v3192, 0
    %3380 = vmatprep.subr.mxu0 0.0
    %3381 = vmatpush1.msra.mxu0 %v3375
    %3382 = vmatprep.subr.mxu0 0.0
    %3383 = vmatpush1.msra.mxu0 0.0
    %3384 = vmatprep.subr.mxu0 0.0
    %3385 = vmatpush1.msra.mxu0 0.0
    %3386 = vmatprep.subr.mxu0 0.0
    %3387 = vmatpush1.msra.mxu0 0.0
    %3388 = vmatprep.subr.mxu0 0.0
    %3389 = vmatpush1.msra.mxu0 0.0
    %3390 = vmatprep.subr.mxu0 0.0
    %3391 = vmatpush1.msra.mxu0 0.0
    %3392 = vmatprep.subr.mxu0 0.0
    %3393 = vmatpush1.msra.mxu0 0.0
    %3394 = vmatprep.subr.mxu0 0.0
    %3395 = vmatpush1.msra.mxu0 0.0
    %3396 = vmatprep.subr.mxu0 0.0
    %3397 = vmatpush1.msra.mxu0 0.0
    %3398 = vmatprep.subr.mxu0 0.0
    %3399 = vmatpush1.msra.mxu0 0.0
    %3400 = vmatprep.subr.mxu0 0.0
    %3401 = vmatpush1.msra.mxu0 0.0
    %3402 = vmatprep.subr.mxu0 0.0
    %3403 = vmatpush1.msra.mxu0 0.0
    %3404 = vmatprep.subr.mxu0 0.0
    %3405 = vmatpush1.msra.mxu0 0.0
    %3406 = vmatprep.subr.mxu0 0.0
    %3407 = vmatpush1.msra.mxu0 0.0
    %3408 = vmatprep.subr.mxu0 0.0
    %3409 = vmatpush1.msra.mxu0 0.0
    %3410 = vmatprep.subr.mxu0 0.0
    %3411 = vmatpush1.msra.mxu0 0.0
    %3412 = vmatprep.subr.mxu0 0.0
    %3413 = vmatpush1.msra.mxu0 0.0
    %3414 = vmatprep.subr.mxu0 0.0
    %3415 = vmatpush1.msra.mxu0 0.0
    %3416 = vmatprep.subr.mxu0 0.0
    %3417 = vmatpush1.msra.mxu0 0.0
    %3418 = vmatprep.subr.mxu0 0.0
    %3419 = vmatpush1.msra.mxu0 0.0
    %3420 = vmatprep.subr.mxu0 0.0
    %3421 = vmatpush1.msra.mxu0 0.0
    %3422 = vmatprep.subr.mxu0 0.0
    %3423 = vmatpush1.msra.mxu0 0.0
    %3424 = vmatprep.subr.mxu0 0.0
    %3425 = vmatpush1.msra.mxu0 0.0
    %3426 = vmatprep.subr.mxu0 0.0
    %3427 = vmatpush1.msra.mxu0 0.0
    %3428 = vmatprep.subr.mxu0 0.0
    %3429 = vmatpush1.msra.mxu0 0.0
    %3430 = vmatprep.subr.mxu0 0.0
    %3431 = vmatpush1.msra.mxu0 0.0
    %3432 = vmatprep.subr.mxu0 0.0
    %3433 = vmatpush1.msra.mxu0 0.0
    %3434 = vmatprep.subr.mxu0 0.0
    %3435 = vmatpush1.msra.mxu0 0.0
    %3436 = vmatprep.subr.mxu0 0.0
    %3437 = vmatpush1.msra.mxu0 0.0
    %3438 = vmatprep.subr.mxu0 0.0
    %3439 = vmatpush1.msra.mxu0 0.0
    %3440 = vmatprep.subr.mxu0 0.0
    %3441 = vmatpush1.msra.mxu0 0.0
    %3442 = vmatprep.subr.mxu0 0.0
    %3443 = vmatpush1.msra.mxu0 0.0
    %3444 = vmatprep.mubr.f32.mxu0 0.0
    %3445 = vmatmul.mubr.f32.gmra.mrb[0].mxu0 %v3378
    %v3446 = vpop.f32.mrb[0].mxu0
    %v3447 = vadd.f32 0.0, %v3446
    %v3448 = vpop.f32.mrb[0].mxu0
    %3449 = vdwg.mxu0
    %3450 = vrot.lane.b32.xlu0 %v319, 64
    %v3451 = vpop.permute.xlu0 %3450
    %v3454 = vsel %vm405, %v3193, 0
    %3456 = vmatprep.subr.mxu0 0.0
    %3457 = vmatpush1.msra.mxu0 %v3451
    %3458 = vmatprep.subr.mxu0 0.0
    %3459 = vmatpush1.msra.mxu0 0.0
    %3460 = vmatprep.subr.mxu0 0.0
    %3461 = vmatpush1.msra.mxu0 0.0
    %3462 = vmatprep.subr.mxu0 0.0
    %3463 = vmatpush1.msra.mxu0 0.0
    %3464 = vmatprep.subr.mxu0 0.0
    %3465 = vmatpush1.msra.mxu0 0.0
    %3466 = vmatprep.subr.mxu0 0.0
    %3467 = vmatpush1.msra.mxu0 0.0
    %3468 = vmatprep.subr.mxu0 0.0
    %3469 = vmatpush1.msra.mxu0 0.0
    %3470 = vmatprep.subr.mxu0 0.0
    %3471 = vmatpush1.msra.mxu0 0.0
    %3472 = vmatprep.subr.mxu0 0.0
    %3473 = vmatpush1.msra.mxu0 0.0
    %3474 = vmatprep.subr.mxu0 0.0
    %3475 = vmatpush1.msra.mxu0 0.0
    %3476 = vmatprep.subr.mxu0 0.0
    %3477 = vmatpush1.msra.mxu0 0.0
    %3478 = vmatprep.subr.mxu0 0.0
    %3479 = vmatpush1.msra.mxu0 0.0
    %3480 = vmatprep.subr.mxu0 0.0
    %3481 = vmatpush1.msra.mxu0 0.0
    %3482 = vmatprep.subr.mxu0 0.0
    %3483 = vmatpush1.msra.mxu0 0.0
    %3484 = vmatprep.subr.mxu0 0.0
    %3485 = vmatpush1.msra.mxu0 0.0
    %3486 = vmatprep.subr.mxu0 0.0
    %3487 = vmatpush1.msra.mxu0 0.0
    %3488 = vmatprep.subr.mxu0 0.0
    %3489 = vmatpush1.msra.mxu0 0.0
    %3490 = vmatprep.subr.mxu0 0.0
    %3491 = vmatpush1.msra.mxu0 0.0
    %3492 = vmatprep.subr.mxu0 0.0
    %3493 = vmatpush1.msra.mxu0 0.0
    %3494 = vmatprep.subr.mxu0 0.0
    %3495 = vmatpush1.msra.mxu0 0.0
    %3496 = vmatprep.subr.mxu0 0.0
    %3497 = vmatpush1.msra.mxu0 0.0
    %3498 = vmatprep.subr.mxu0 0.0
    %3499 = vmatpush1.msra.mxu0 0.0
    %3500 = vmatprep.subr.mxu0 0.0
    %3501 = vmatpush1.msra.mxu0 0.0
    %3502 = vmatprep.subr.mxu0 0.0
    %3503 = vmatpush1.msra.mxu0 0.0
    %3504 = vmatprep.subr.mxu0 0.0
    %3505 = vmatpush1.msra.mxu0 0.0
    %3506 = vmatprep.subr.mxu0 0.0
    %3507 = vmatpush1.msra.mxu0 0.0
    %3508 = vmatprep.subr.mxu0 0.0
    %3509 = vmatpush1.msra.mxu0 0.0
    %3510 = vmatprep.subr.mxu0 0.0
    %3511 = vmatpush1.msra.mxu0 0.0
    %3512 = vmatprep.subr.mxu0 0.0
    %3513 = vmatpush1.msra.mxu0 0.0
    %3514 = vmatprep.subr.mxu0 0.0
    %3515 = vmatpush1.msra.mxu0 0.0
    %3516 = vmatprep.subr.mxu0 0.0
    %3517 = vmatpush1.msra.mxu0 0.0
    %3518 = vmatprep.subr.mxu0 0.0
    %3519 = vmatpush1.msra.mxu0 0.0
    %3520 = vmatprep.mubr.f32.mxu0 0.0
    %3521 = vmatmul.mubr.f32.gmra.mrb[0].mxu0 %v3454
    %v3522 = vpop.f32.mrb[0].mxu0
    %v3523 = vadd.f32 0.0, %v3522
    %v3524 = vpop.f32.mrb[0].mxu0
    %3525 = vdwg.mxu0
    %3526 = vrot.lane.b32.xlu0 %v324, 64
    %v3527 = vpop.permute.xlu0 %3526
    %v3530 = vsel %vm405, %v3194, 0
    %3532 = vmatprep.subr.mxu0 0.0
    %3533 = vmatpush1.msra.mxu0 %v3527
    %3534 = vmatprep.subr.mxu0 0.0
    %3535 = vmatpush1.msra.mxu0 0.0
    %3536 = vmatprep.subr.mxu0 0.0
    %3537 = vmatpush1.msra.mxu0 0.0
    %3538 = vmatprep.subr.mxu0 0.0
    %3539 = vmatpush1.msra.mxu0 0.0
    %3540 = vmatprep.subr.mxu0 0.0
    %3541 = vmatpush1.msra.mxu0 0.0
    %3542 = vmatprep.subr.mxu0 0.0
    %3543 = vmatpush1.msra.mxu0 0.0
    %3544 = vmatprep.subr.mxu0 0.0
    %3545 = vmatpush1.msra.mxu0 0.0
    %3546 = vmatprep.subr.mxu0 0.0
    %3547 = vmatpush1.msra.mxu0 0.0
    %3548 = vmatprep.subr.mxu0 0.0
    %3549 = vmatpush1.msra.mxu0 0.0
    %3550 = vmatprep.subr.mxu0 0.0
    %3551 = vmatpush1.msra.mxu0 0.0
    %3552 = vmatprep.subr.mxu0 0.0
    %3553 = vmatpush1.msra.mxu0 0.0
    %3554 = vmatprep.subr.mxu0 0.0
    %3555 = vmatpush1.msra.mxu0 0.0
    %3556 = vmatprep.subr.mxu0 0.0
    %3557 = vmatpush1.msra.mxu0 0.0
    %3558 = vmatprep.subr.mxu0 0.0
    %3559 = vmatpush1.msra.mxu0 0.0
    %3560 = vmatprep.subr.mxu0 0.0
    %3561 = vmatpush1.msra.mxu0 0.0
    %3562 = vmatprep.subr.mxu0 0.0
    %3563 = vmatpush1.msra.mxu0 0.0
    %3564 = vmatprep.subr.mxu0 0.0
    %3565 = vmatpush1.msra.mxu0 0.0
    %3566 = vmatprep.subr.mxu0 0.0
    %3567 = vmatpush1.msra.mxu0 0.0
    %3568 = vmatprep.subr.mxu0 0.0
    %3569 = vmatpush1.msra.mxu0 0.0
    %3570 = vmatprep.subr.mxu0 0.0
    %3571 = vmatpush1.msra.mxu0 0.0
    %3572 = vmatprep.subr.mxu0 0.0
    %3573 = vmatpush1.msra.mxu0 0.0
    %3574 = vmatprep.subr.mxu0 0.0
    %3575 = vmatpush1.msra.mxu0 0.0
    %3576 = vmatprep.subr.mxu0 0.0
    %3577 = vmatpush1.msra.mxu0 0.0
    %3578 = vmatprep.subr.mxu0 0.0
    %3579 = vmatpush1.msra.mxu0 0.0
    %3580 = vmatprep.subr.mxu0 0.0
    %3581 = vmatpush1.msra.mxu0 0.0
    %3582 = vmatprep.subr.mxu0 0.0
    %3583 = vmatpush1.msra.mxu0 0.0
    %3584 = vmatprep.subr.mxu0 0.0
    %3585 = vmatpush1.msra.mxu0 0.0
    %3586 = vmatprep.subr.mxu0 0.0
    %3587 = vmatpush1.msra.mxu0 0.0
    %3588 = vmatprep.subr.mxu0 0.0
    %3589 = vmatpush1.msra.mxu0 0.0
    %3590 = vmatprep.subr.mxu0 0.0
    %3591 = vmatpush1.msra.mxu0 0.0
    %3592 = vmatprep.subr.mxu0 0.0
    %3593 = vmatpush1.msra.mxu0 0.0
    %3594 = vmatprep.subr.mxu0 0.0
    %3595 = vmatpush1.msra.mxu0 0.0
    %3596 = vmatprep.mubr.f32.mxu0 0.0
    %3597 = vmatmul.mubr.f32.gmra.mrb[0].mxu0 %v3530
    %v3598 = vpop.f32.mrb[0].mxu0
    %v3599 = vadd.f32 0.0, %v3598
    %v3600 = vpop.f32.mrb[0].mxu0
    %3601 = vdwg.mxu0
    %3602 = vrot.lane.b32.xlu0 %v329, 64
    %v3603 = vpop.permute.xlu0 %3602
    %v3606 = vsel %vm405, %v3195, 0
    %3608 = vmatprep.subr.mxu0 0.0
    %3609 = vmatpush1.msra.mxu0 %v3603
    %3610 = vmatprep.subr.mxu0 0.0
    %3611 = vmatpush1.msra.mxu0 0.0
    %3612 = vmatprep.subr.mxu0 0.0
    %3613 = vmatpush1.msra.mxu0 0.0
    %3614 = vmatprep.subr.mxu0 0.0
    %3615 = vmatpush1.msra.mxu0 0.0
    %3616 = vmatprep.subr.mxu0 0.0
    %3617 = vmatpush1.msra.mxu0 0.0
    %3618 = vmatprep.subr.mxu0 0.0
    %3619 = vmatpush1.msra.mxu0 0.0
    %3620 = vmatprep.subr.mxu0 0.0
    %3621 = vmatpush1.msra.mxu0 0.0
    %3622 = vmatprep.subr.mxu0 0.0
    %3623 = vmatpush1.msra.mxu0 0.0
    %3624 = vmatprep.subr.mxu0 0.0
    %3625 = vmatpush1.msra.mxu0 0.0
    %3626 = vmatprep.subr.mxu0 0.0
    %3627 = vmatpush1.msra.mxu0 0.0
    %3628 = vmatprep.subr.mxu0 0.0
    %3629 = vmatpush1.msra.mxu0 0.0
    %3630 = vmatprep.subr.mxu0 0.0
    %3631 = vmatpush1.msra.mxu0 0.0
    %3632 = vmatprep.subr.mxu0 0.0
    %3633 = vmatpush1.msra.mxu0 0.0
    %3634 = vmatprep.subr.mxu0 0.0
    %3635 = vmatpush1.msra.mxu0 0.0
    %3636 = vmatprep.subr.mxu0 0.0
    %3637 = vmatpush1.msra.mxu0 0.0
    %3638 = vmatprep.subr.mxu0 0.0
    %3639 = vmatpush1.msra.mxu0 0.0
    %3640 = vmatprep.subr.mxu0 0.0
    %3641 = vmatpush1.msra.mxu0 0.0
    %3642 = vmatprep.subr.mxu0 0.0
    %3643 = vmatpush1.msra.mxu0 0.0
    %3644 = vmatprep.subr.mxu0 0.0
    %3645 = vmatpush1.msra.mxu0 0.0
    %3646 = vmatprep.subr.mxu0 0.0
    %3647 = vmatpush1.msra.mxu0 0.0
    %3648 = vmatprep.subr.mxu0 0.0
    %3649 = vmatpush1.msra.mxu0 0.0
    %3650 = vmatprep.subr.mxu0 0.0
    %3651 = vmatpush1.msra.mxu0 0.0
    %3652 = vmatprep.subr.mxu0 0.0
    %3653 = vmatpush1.msra.mxu0 0.0
    %3654 = vmatprep.subr.mxu0 0.0
    %3655 = vmatpush1.msra.mxu0 0.0
    %3656 = vmatprep.subr.mxu0 0.0
    %3657 = vmatpush1.msra.mxu0 0.0
    %3658 = vmatprep.subr.mxu0 0.0
    %3659 = vmatpush1.msra.mxu0 0.0
    %3660 = vmatprep.subr.mxu0 0.0
    %3661 = vmatpush1.msra.mxu0 0.0
    %3662 = vmatprep.subr.mxu0 0.0
    %3663 = vmatpush1.msra.mxu0 0.0
    %3664 = vmatprep.subr.mxu0 0.0
    %3665 = vmatpush1.msra.mxu0 0.0
    %3666 = vmatprep.subr.mxu0 0.0
    %3667 = vmatpush1.msra.mxu0 0.0
    %3668 = vmatprep.subr.mxu0 0.0
    %3669 = vmatpush1.msra.mxu0 0.0
    %3670 = vmatprep.subr.mxu0 0.0
    %3671 = vmatpush1.msra.mxu0 0.0
    %3672 = vmatprep.mubr.f32.mxu0 0.0
    %3673 = vmatmul.mubr.f32.gmra.mrb[0].mxu0 %v3606
    %v3674 = vpop.f32.mrb[0].mxu0
    %v3675 = vadd.f32 0.0, %v3674
    %v3676 = vpop.f32.mrb[0].mxu0
    %3677 = vdwg.mxu0
    %3678 = vrot.lane.b32.xlu0 %v334, 64
    %v3679 = vpop.permute.xlu0 %3678
    %v3682 = vsel %vm405, %v3196, 0
    %3684 = vmatprep.subr.mxu0 0.0
    %3685 = vmatpush1.msra.mxu0 %v3679
    %3686 = vmatprep.subr.mxu0 0.0
    %3687 = vmatpush1.msra.mxu0 0.0
    %3688 = vmatprep.subr.mxu0 0.0
    %3689 = vmatpush1.msra.mxu0 0.0
    %3690 = vmatprep.subr.mxu0 0.0
    %3691 = vmatpush1.msra.mxu0 0.0
    %3692 = vmatprep.subr.mxu0 0.0
    %3693 = vmatpush1.msra.mxu0 0.0
    %3694 = vmatprep.subr.mxu0 0.0
    %3695 = vmatpush1.msra.mxu0 0.0
    %3696 = vmatprep.subr.mxu0 0.0
    %3697 = vmatpush1.msra.mxu0 0.0
    %3698 = vmatprep.subr.mxu0 0.0
    %3699 = vmatpush1.msra.mxu0 0.0
    %3700 = vmatprep.subr.mxu0 0.0
    %3701 = vmatpush1.msra.mxu0 0.0
    %3702 = vmatprep.subr.mxu0 0.0
    %3703 = vmatpush1.msra.mxu0 0.0
    %3704 = vmatprep.subr.mxu0 0.0
    %3705 = vmatpush1.msra.mxu0 0.0
    %3706 = vmatprep.subr.mxu0 0.0
    %3707 = vmatpush1.msra.mxu0 0.0
    %3708 = vmatprep.subr.mxu0 0.0
    %3709 = vmatpush1.msra.mxu0 0.0
    %3710 = vmatprep.subr.mxu0 0.0
    %3711 = vmatpush1.msra.mxu0 0.0
    %3712 = vmatprep.subr.mxu0 0.0
    %3713 = vmatpush1.msra.mxu0 0.0
    %3714 = vmatprep.subr.mxu0 0.0
    %3715 = vmatpush1.msra.mxu0 0.0
    %3716 = vmatprep.subr.mxu0 0.0
    %3717 = vmatpush1.msra.mxu0 0.0
    %3718 = vmatprep.subr.mxu0 0.0
    %3719 = vmatpush1.msra.mxu0 0.0
    %3720 = vmatprep.subr.mxu0 0.0
    %3721 = vmatpush1.msra.mxu0 0.0
    %3722 = vmatprep.subr.mxu0 0.0
    %3723 = vmatpush1.msra.mxu0 0.0
    %3724 = vmatprep.subr.mxu0 0.0
    %3725 = vmatpush1.msra.mxu0 0.0
    %3726 = vmatprep.subr.mxu0 0.0
    %3727 = vmatpush1.msra.mxu0 0.0
    %3728 = vmatprep.subr.mxu0 0.0
    %3729 = vmatpush1.msra.mxu0 0.0
    %3730 = vmatprep.subr.mxu0 0.0
    %3731 = vmatpush1.msra.mxu0 0.0
    %3732 = vmatprep.subr.mxu0 0.0
    %3733 = vmatpush1.msra.mxu0 0.0
    %3734 = vmatprep.subr.mxu0 0.0
    %3735 = vmatpush1.msra.mxu0 0.0
    %3736 = vmatprep.subr.mxu0 0.0
    %3737 = vmatpush1.msra.mxu0 0.0
    %3738 = vmatprep.subr.mxu0 0.0
    %3739 = vmatpush1.msra.mxu0 0.0
    %3740 = vmatprep.subr.mxu0 0.0
    %3741 = vmatpush1.msra.mxu0 0.0
    %3742 = vmatprep.subr.mxu0 0.0
    %3743 = vmatpush1.msra.mxu0 0.0
    %3744 = vmatprep.subr.mxu0 0.0
    %3745 = vmatpush1.msra.mxu0 0.0
    %3746 = vmatprep.subr.mxu0 0.0
    %3747 = vmatpush1.msra.mxu0 0.0
    %3748 = vmatprep.mubr.f32.mxu0 0.0
    %3749 = vmatmul.mubr.f32.gmra.mrb[0].mxu0 %v3682
    %v3750 = vpop.f32.mrb[0].mxu0
    %v3751 = vadd.f32 0.0, %v3750
    %v3752 = vpop.f32.mrb[0].mxu0
    %3753 = vdwg.mxu0
    %3754 = vrot.lane.b32.xlu0 %v339, 64
    %v3755 = vpop.permute.xlu0 %3754
    %v3758 = vsel %vm405, %v3197, 0
    %3760 = vmatprep.subr.mxu0 0.0
    %3761 = vmatpush1.msra.mxu0 %v3755
    %3762 = vmatprep.subr.mxu0 0.0
    %3763 = vmatpush1.msra.mxu0 0.0
    %3764 = vmatprep.subr.mxu0 0.0
    %3765 = vmatpush1.msra.mxu0 0.0
    %3766 = vmatprep.subr.mxu0 0.0
    %3767 = vmatpush1.msra.mxu0 0.0
    %3768 = vmatprep.subr.mxu0 0.0
    %3769 = vmatpush1.msra.mxu0 0.0
    %3770 = vmatprep.subr.mxu0 0.0
    %3771 = vmatpush1.msra.mxu0 0.0
    %3772 = vmatprep.subr.mxu0 0.0
    %3773 = vmatpush1.msra.mxu0 0.0
    %3774 = vmatprep.subr.mxu0 0.0
    %3775 = vmatpush1.msra.mxu0 0.0
    %3776 = vmatprep.subr.mxu0 0.0
    %3777 = vmatpush1.msra.mxu0 0.0
    %3778 = vmatprep.subr.mxu0 0.0
    %3779 = vmatpush1.msra.mxu0 0.0
    %3780 = vmatprep.subr.mxu0 0.0
    %3781 = vmatpush1.msra.mxu0 0.0
    %3782 = vmatprep.subr.mxu0 0.0
    %3783 = vmatpush1.msra.mxu0 0.0
    %3784 = vmatprep.subr.mxu0 0.0
    %3785 = vmatpush1.msra.mxu0 0.0
    %3786 = vmatprep.subr.mxu0 0.0
    %3787 = vmatpush1.msra.mxu0 0.0
    %3788 = vmatprep.subr.mxu0 0.0
    %3789 = vmatpush1.msra.mxu0 0.0
    %3790 = vmatprep.subr.mxu0 0.0
    %3791 = vmatpush1.msra.mxu0 0.0
    %3792 = vmatprep.subr.mxu0 0.0
    %3793 = vmatpush1.msra.mxu0 0.0
    %3794 = vmatprep.subr.mxu0 0.0
    %3795 = vmatpush1.msra.mxu0 0.0
    %3796 = vmatprep.subr.mxu0 0.0
    %3797 = vmatpush1.msra.mxu0 0.0
    %3798 = vmatprep.subr.mxu0 0.0
    %3799 = vmatpush1.msra.mxu0 0.0
    %3800 = vmatprep.subr.mxu0 0.0
    %3801 = vmatpush1.msra.mxu0 0.0
    %3802 = vmatprep.subr.mxu0 0.0
    %3803 = vmatpush1.msra.mxu0 0.0
    %3804 = vmatprep.subr.mxu0 0.0
    %3805 = vmatpush1.msra.mxu0 0.0
    %3806 = vmatprep.subr.mxu0 0.0
    %3807 = vmatpush1.msra.mxu0 0.0
    %3808 = vmatprep.subr.mxu0 0.0
    %3809 = vmatpush1.msra.mxu0 0.0
    %3810 = vmatprep.subr.mxu0 0.0
    %3811 = vmatpush1.msra.mxu0 0.0
    %3812 = vmatprep.subr.mxu0 0.0
    %3813 = vmatpush1.msra.mxu0 0.0
    %3814 = vmatprep.subr.mxu0 0.0
    %3815 = vmatpush1.msra.mxu0 0.0
    %3816 = vmatprep.subr.mxu0 0.0
    %3817 = vmatpush1.msra.mxu0 0.0
    %3818 = vmatprep.subr.mxu0 0.0
    %3819 = vmatpush1.msra.mxu0 0.0
    %3820 = vmatprep.subr.mxu0 0.0
    %3821 = vmatpush1.msra.mxu0 0.0
    %3822 = vmatprep.subr.mxu0 0.0
    %3823 = vmatpush1.msra.mxu0 0.0
    %3824 = vmatprep.mubr.f32.mxu0 0.0
    %3825 = vmatmul.mubr.f32.gmra.mrb[0].mxu0 %v3758
    %v3826 = vpop.f32.mrb[0].mxu0
    %v3827 = vadd.f32 0.0, %v3826
    %v3828 = vpop.f32.mrb[0].mxu0
    %3829 = vdwg.mxu0
    %3830 = vrot.lane.b32.xlu0 %v356, 64
    %v3831 = vpop.permute.xlu0 %3830
    %v3834 = vsel %vm405, %v3198, 0
    %3836 = vmatprep.subr.mxu0 0.0
    %3837 = vmatpush1.msra.mxu0 %v3831
    %3838 = vmatprep.subr.mxu0 0.0
    %3839 = vmatpush1.msra.mxu0 0.0
    %3840 = vmatprep.subr.mxu0 0.0
    %3841 = vmatpush1.msra.mxu0 0.0
    %3842 = vmatprep.subr.mxu0 0.0
    %3843 = vmatpush1.msra.mxu0 0.0
    %3844 = vmatprep.subr.mxu0 0.0
    %3845 = vmatpush1.msra.mxu0 0.0
    %3846 = vmatprep.subr.mxu0 0.0
    %3847 = vmatpush1.msra.mxu0 0.0
    %3848 = vmatprep.subr.mxu0 0.0
    %3849 = vmatpush1.msra.mxu0 0.0
    %3850 = vmatprep.subr.mxu0 0.0
    %3851 = vmatpush1.msra.mxu0 0.0
    %3852 = vmatprep.subr.mxu0 0.0
    %3853 = vmatpush1.msra.mxu0 0.0
    %3854 = vmatprep.subr.mxu0 0.0
    %3855 = vmatpush1.msra.mxu0 0.0
    %3856 = vmatprep.subr.mxu0 0.0
    %3857 = vmatpush1.msra.mxu0 0.0
    %3858 = vmatprep.subr.mxu0 0.0
    %3859 = vmatpush1.msra.mxu0 0.0
    %3860 = vmatprep.subr.mxu0 0.0
    %3861 = vmatpush1.msra.mxu0 0.0
    %3862 = vmatprep.subr.mxu0 0.0
    %3863 = vmatpush1.msra.mxu0 0.0
    %3864 = vmatprep.subr.mxu0 0.0
    %3865 = vmatpush1.msra.mxu0 0.0
    %3866 = vmatprep.subr.mxu0 0.0
    %3867 = vmatpush1.msra.mxu0 0.0
    %3868 = vmatprep.subr.mxu0 0.0
    %3869 = vmatpush1.msra.mxu0 0.0
    %3870 = vmatprep.subr.mxu0 0.0
    %3871 = vmatpush1.msra.mxu0 0.0
    %3872 = vmatprep.subr.mxu0 0.0
    %3873 = vmatpush1.msra.mxu0 0.0
    %3874 = vmatprep.subr.mxu0 0.0
    %3875 = vmatpush1.msra.mxu0 0.0
    %3876 = vmatprep.subr.mxu0 0.0
    %3877 = vmatpush1.msra.mxu0 0.0
    %3878 = vmatprep.subr.mxu0 0.0
    %3879 = vmatpush1.msra.mxu0 0.0
    %3880 = vmatprep.subr.mxu0 0.0
    %3881 = vmatpush1.msra.mxu0 0.0
    %3882 = vmatprep.subr.mxu0 0.0
    %3883 = vmatpush1.msra.mxu0 0.0
    %3884 = vmatprep.subr.mxu0 0.0
    %3885 = vmatpush1.msra.mxu0 0.0
    %3886 = vmatprep.subr.mxu0 0.0
    %3887 = vmatpush1.msra.mxu0 0.0
    %3888 = vmatprep.subr.mxu0 0.0
    %3889 = vmatpush1.msra.mxu0 0.0
    %3890 = vmatprep.subr.mxu0 0.0
    %3891 = vmatpush1.msra.mxu0 0.0
    %3892 = vmatprep.subr.mxu0 0.0
    %3893 = vmatpush1.msra.mxu0 0.0
    %3894 = vmatprep.subr.mxu0 0.0
    %3895 = vmatpush1.msra.mxu0 0.0
    %3896 = vmatprep.subr.mxu0 0.0
    %3897 = vmatpush1.msra.mxu0 0.0
    %3898 = vmatprep.subr.mxu0 0.0
    %3899 = vmatpush1.msra.mxu0 0.0
    %3900 = vmatprep.mubr.f32.mxu0 0.0
    %3901 = vmatmul.mubr.f32.gmra.mrb[0].mxu0 %v3834
    %v3902 = vpop.f32.mrb[0].mxu0
    %v3903 = vadd.f32 0.0, %v3902
    %v3904 = vpop.f32.mrb[0].mxu0
    %3905 = vdwg.mxu0
    %3906 = vrot.lane.b32.xlu0 %v358, 64
    %v3907 = vpop.permute.xlu0 %3906
    %v3910 = vsel %vm405, %v3199, 0
    %3912 = vmatprep.subr.mxu0 0.0
    %3913 = vmatpush1.msra.mxu0 %v3907
    %3914 = vmatprep.subr.mxu0 0.0
    %3915 = vmatpush1.msra.mxu0 0.0
    %3916 = vmatprep.subr.mxu0 0.0
    %3917 = vmatpush1.msra.mxu0 0.0
    %3918 = vmatprep.subr.mxu0 0.0
    %3919 = vmatpush1.msra.mxu0 0.0
    %3920 = vmatprep.subr.mxu0 0.0
    %3921 = vmatpush1.msra.mxu0 0.0
    %3922 = vmatprep.subr.mxu0 0.0
    %3923 = vmatpush1.msra.mxu0 0.0
    %3924 = vmatprep.subr.mxu0 0.0
    %3925 = vmatpush1.msra.mxu0 0.0
    %3926 = vmatprep.subr.mxu0 0.0
    %3927 = vmatpush1.msra.mxu0 0.0
    %3928 = vmatprep.subr.mxu0 0.0
    %3929 = vmatpush1.msra.mxu0 0.0
    %3930 = vmatprep.subr.mxu0 0.0
    %3931 = vmatpush1.msra.mxu0 0.0
    %3932 = vmatprep.subr.mxu0 0.0
    %3933 = vmatpush1.msra.mxu0 0.0
    %3934 = vmatprep.subr.mxu0 0.0
    %3935 = vmatpush1.msra.mxu0 0.0
    %3936 = vmatprep.subr.mxu0 0.0
    %3937 = vmatpush1.msra.mxu0 0.0
    %3938 = vmatprep.subr.mxu0 0.0
    %3939 = vmatpush1.msra.mxu0 0.0
    %3940 = vmatprep.subr.mxu0 0.0
    %3941 = vmatpush1.msra.mxu0 0.0
    %3942 = vmatprep.subr.mxu0 0.0
    %3943 = vmatpush1.msra.mxu0 0.0
    %3944 = vmatprep.subr.mxu0 0.0
    %3945 = vmatpush1.msra.mxu0 0.0
    %3946 = vmatprep.subr.mxu0 0.0
    %3947 = vmatpush1.msra.mxu0 0.0
    %3948 = vmatprep.subr.mxu0 0.0
    %3949 = vmatpush1.msra.mxu0 0.0
    %3950 = vmatprep.subr.mxu0 0.0
    %3951 = vmatpush1.msra.mxu0 0.0
    %3952 = vmatprep.subr.mxu0 0.0
    %3953 = vmatpush1.msra.mxu0 0.0
    %3954 = vmatprep.subr.mxu0 0.0
    %3955 = vmatpush1.msra.mxu0 0.0
    %3956 = vmatprep.subr.mxu0 0.0
    %3957 = vmatpush1.msra.mxu0 0.0
    %3958 = vmatprep.subr.mxu0 0.0
    %3959 = vmatpush1.msra.mxu0 0.0
    %3960 = vmatprep.subr.mxu0 0.0
    %3961 = vmatpush1.msra.mxu0 0.0
    %3962 = vmatprep.subr.mxu0 0.0
    %3963 = vmatpush1.msra.mxu0 0.0
    %3964 = vmatprep.subr.mxu0 0.0
    %3965 = vmatpush1.msra.mxu0 0.0
    %3966 = vmatprep.subr.mxu0 0.0
    %3967 = vmatpush1.msra.mxu0 0.0
    %3968 = vmatprep.subr.mxu0 0.0
    %3969 = vmatpush1.msra.mxu0 0.0
    %3970 = vmatprep.subr.mxu0 0.0
    %3971 = vmatpush1.msra.mxu0 0.0
    %3972 = vmatprep.subr.mxu0 0.0
    %3973 = vmatpush1.msra.mxu0 0.0
    %3974 = vmatprep.subr.mxu0 0.0
    %3975 = vmatpush1.msra.mxu0 0.0
    %3976 = vmatprep.mubr.f32.mxu0 0.0
    %3977 = vmatmul.mubr.f32.gmra.mrb[0].mxu0 %v3910
    %v3978 = vpop.f32.mrb[0].mxu0
    %v3979 = vadd.f32 0.0, %v3978
    %v3980 = vpop.f32.mrb[0].mxu0
    %3981 = vdwg.mxu0
    %3982 = vrot.lane.b32.xlu0 %v360, 64
    %v3983 = vpop.permute.xlu0 %3982
    %v3986 = vsel %vm405, %v3200, 0
    %3988 = vmatprep.subr.mxu0 0.0
    %3989 = vmatpush1.msra.mxu0 %v3983
    %3990 = vmatprep.subr.mxu0 0.0
    %3991 = vmatpush1.msra.mxu0 0.0
    %3992 = vmatprep.subr.mxu0 0.0
    %3993 = vmatpush1.msra.mxu0 0.0
    %3994 = vmatprep.subr.mxu0 0.0
    %3995 = vmatpush1.msra.mxu0 0.0
    %3996 = vmatprep.subr.mxu0 0.0
    %3997 = vmatpush1.msra.mxu0 0.0
    %3998 = vmatprep.subr.mxu0 0.0
    %3999 = vmatpush1.msra.mxu0 0.0
    %4000 = vmatprep.subr.mxu0 0.0
    %4001 = vmatpush1.msra.mxu0 0.0
    %4002 = vmatprep.subr.mxu0 0.0
    %4003 = vmatpush1.msra.mxu0 0.0
    %4004 = vmatprep.subr.mxu0 0.0
    %4005 = vmatpush1.msra.mxu0 0.0
    %4006 = vmatprep.subr.mxu0 0.0
    %4007 = vmatpush1.msra.mxu0 0.0
    %4008 = vmatprep.subr.mxu0 0.0
    %4009 = vmatpush1.msra.mxu0 0.0
    %4010 = vmatprep.subr.mxu0 0.0
    %4011 = vmatpush1.msra.mxu0 0.0
    %4012 = vmatprep.subr.mxu0 0.0
    %4013 = vmatpush1.msra.mxu0 0.0
    %4014 = vmatprep.subr.mxu0 0.0
    %4015 = vmatpush1.msra.mxu0 0.0
    %4016 = vmatprep.subr.mxu0 0.0
    %4017 = vmatpush1.msra.mxu0 0.0
    %4018 = vmatprep.subr.mxu0 0.0
    %4019 = vmatpush1.msra.mxu0 0.0
    %4020 = vmatprep.subr.mxu0 0.0
    %4021 = vmatpush1.msra.mxu0 0.0
    %4022 = vmatprep.subr.mxu0 0.0
    %4023 = vmatpush1.msra.mxu0 0.0
    %4024 = vmatprep.subr.mxu0 0.0
    %4025 = vmatpush1.msra.mxu0 0.0
    %4026 = vmatprep.subr.mxu0 0.0
    %4027 = vmatpush1.msra.mxu0 0.0
    %4028 = vmatprep.subr.mxu0 0.0
    %4029 = vmatpush1.msra.mxu0 0.0
    %4030 = vmatprep.subr.mxu0 0.0
    %4031 = vmatpush1.msra.mxu0 0.0
    %4032 = vmatprep.subr.mxu0 0.0
    %4033 = vmatpush1.msra.mxu0 0.0
    %4034 = vmatprep.subr.mxu0 0.0
    %4035 = vmatpush1.msra.mxu0 0.0
    %4036 = vmatprep.subr.mxu0 0.0
    %4037 = vmatpush1.msra.mxu0 0.0
    %4038 = vmatprep.subr.mxu0 0.0
    %4039 = vmatpush1.msra.mxu0 0.0
    %4040 = vmatprep.subr.mxu0 0.0
    %4041 = vmatpush1.msra.mxu0 0.0
    %4042 = vmatprep.subr.mxu0 0.0
    %4043 = vmatpush1.msra.mxu0 0.0
    %4044 = vmatprep.subr.mxu0 0.0
    %4045 = vmatpush1.msra.mxu0 0.0
    %4046 = vmatprep.subr.mxu0 0.0
    %4047 = vmatpush1.msra.mxu0 0.0
    %4048 = vmatprep.subr.mxu0 0.0
    %4049 = vmatpush1.msra.mxu0 0.0
    %4050 = vmatprep.subr.mxu0 0.0
    %4051 = vmatpush1.msra.mxu0 0.0
    %4052 = vmatprep.mubr.f32.mxu0 0.0
    %4053 = vmatmul.mubr.f32.gmra.mrb[0].mxu0 %v3986
    %v4054 = vpop.f32.mrb[0].mxu0
    %v4055 = vadd.f32 0.0, %v4054
    %v4056 = vpop.f32.mrb[0].mxu0
    %4057 = vdwg.mxu0
    %4058 = vrot.lane.b32.xlu0 %v362, 64
    %v4059 = vpop.permute.xlu0 %4058
    %v4062 = vsel %vm405, %v3201, 0
    %4064 = vmatprep.subr.mxu0 0.0
    %4065 = vmatpush1.msra.mxu0 %v4059
    %4066 = vmatprep.subr.mxu0 0.0
    %4067 = vmatpush1.msra.mxu0 0.0
    %4068 = vmatprep.subr.mxu0 0.0
    %4069 = vmatpush1.msra.mxu0 0.0
    %4070 = vmatprep.subr.mxu0 0.0
    %4071 = vmatpush1.msra.mxu0 0.0
    %4072 = vmatprep.subr.mxu0 0.0
    %4073 = vmatpush1.msra.mxu0 0.0
    %4074 = vmatprep.subr.mxu0 0.0
    %4075 = vmatpush1.msra.mxu0 0.0
    %4076 = vmatprep.subr.mxu0 0.0
    %4077 = vmatpush1.msra.mxu0 0.0
    %4078 = vmatprep.subr.mxu0 0.0
    %4079 = vmatpush1.msra.mxu0 0.0
    %4080 = vmatprep.subr.mxu0 0.0
    %4081 = vmatpush1.msra.mxu0 0.0
    %4082 = vmatprep.subr.mxu0 0.0
    %4083 = vmatpush1.msra.mxu0 0.0
    %4084 = vmatprep.subr.mxu0 0.0
    %4085 = vmatpush1.msra.mxu0 0.0
    %4086 = vmatprep.subr.mxu0 0.0
    %4087 = vmatpush1.msra.mxu0 0.0
    %4088 = vmatprep.subr.mxu0 0.0
    %4089 = vmatpush1.msra.mxu0 0.0
    %4090 = vmatprep.subr.mxu0 0.0
    %4091 = vmatpush1.msra.mxu0 0.0
    %4092 = vmatprep.subr.mxu0 0.0
    %4093 = vmatpush1.msra.mxu0 0.0
    %4094 = vmatprep.subr.mxu0 0.0
    %4095 = vmatpush1.msra.mxu0 0.0
    %4096 = vmatprep.subr.mxu0 0.0
    %4097 = vmatpush1.msra.mxu0 0.0
    %4098 = vmatprep.subr.mxu0 0.0
    %4099 = vmatpush1.msra.mxu0 0.0
    %4100 = vmatprep.subr.mxu0 0.0
    %4101 = vmatpush1.msra.mxu0 0.0
    %4102 = vmatprep.subr.mxu0 0.0
    %4103 = vmatpush1.msra.mxu0 0.0
    %4104 = vmatprep.subr.mxu0 0.0
    %4105 = vmatpush1.msra.mxu0 0.0
    %4106 = vmatprep.subr.mxu0 0.0
    %4107 = vmatpush1.msra.mxu0 0.0
    %4108 = vmatprep.subr.mxu0 0.0
    %4109 = vmatpush1.msra.mxu0 0.0
    %4110 = vmatprep.subr.mxu0 0.0
    %4111 = vmatpush1.msra.mxu0 0.0
    %4112 = vmatprep.subr.mxu0 0.0
    %4113 = vmatpush1.msra.mxu0 0.0
    %4114 = vmatprep.subr.mxu0 0.0
    %4115 = vmatpush1.msra.mxu0 0.0
    %4116 = vmatprep.subr.mxu0 0.0
    %4117 = vmatpush1.msra.mxu0 0.0
    %4118 = vmatprep.subr.mxu0 0.0
    %4119 = vmatpush1.msra.mxu0 0.0
    %4120 = vmatprep.subr.mxu0 0.0
    %4121 = vmatpush1.msra.mxu0 0.0
    %4122 = vmatprep.subr.mxu0 0.0
    %4123 = vmatpush1.msra.mxu0 0.0
    %4124 = vmatprep.subr.mxu0 0.0
    %4125 = vmatpush1.msra.mxu0 0.0
    %4126 = vmatprep.subr.mxu0 0.0
    %4127 = vmatpush1.msra.mxu0 0.0
    %4128 = vmatprep.mubr.f32.mxu0 0.0
    %4129 = vmatmul.mubr.f32.gmra.mrb[0].mxu0 %v4062
    %v4130 = vpop.f32.mrb[0].mxu0
    %v4131 = vadd.f32 0.0, %v4130
    %v4132 = vpop.f32.mrb[0].mxu0
    %4133 = vdwg.mxu0
    %4134 = vrot.lane.b32.xlu0 %v364, 64
    %v4135 = vpop.permute.xlu0 %4134
    %v4138 = vsel %vm405, %v3202, 0
    %4140 = vmatprep.subr.mxu0 0.0
    %4141 = vmatpush1.msra.mxu0 %v4135
    %4142 = vmatprep.subr.mxu0 0.0
    %4143 = vmatpush1.msra.mxu0 0.0
    %4144 = vmatprep.subr.mxu0 0.0
    %4145 = vmatpush1.msra.mxu0 0.0
    %4146 = vmatprep.subr.mxu0 0.0
    %4147 = vmatpush1.msra.mxu0 0.0
    %4148 = vmatprep.subr.mxu0 0.0
    %4149 = vmatpush1.msra.mxu0 0.0
    %4150 = vmatprep.subr.mxu0 0.0
    %4151 = vmatpush1.msra.mxu0 0.0
    %4152 = vmatprep.subr.mxu0 0.0
    %4153 = vmatpush1.msra.mxu0 0.0
    %4154 = vmatprep.subr.mxu0 0.0
    %4155 = vmatpush1.msra.mxu0 0.0
    %4156 = vmatprep.subr.mxu0 0.0
    %4157 = vmatpush1.msra.mxu0 0.0
    %4158 = vmatprep.subr.mxu0 0.0
    %4159 = vmatpush1.msra.mxu0 0.0
    %4160 = vmatprep.subr.mxu0 0.0
    %4161 = vmatpush1.msra.mxu0 0.0
    %4162 = vmatprep.subr.mxu0 0.0
    %4163 = vmatpush1.msra.mxu0 0.0
    %4164 = vmatprep.subr.mxu0 0.0
    %4165 = vmatpush1.msra.mxu0 0.0
    %4166 = vmatprep.subr.mxu0 0.0
    %4167 = vmatpush1.msra.mxu0 0.0
    %4168 = vmatprep.subr.mxu0 0.0
    %4169 = vmatpush1.msra.mxu0 0.0
    %4170 = vmatprep.subr.mxu0 0.0
    %4171 = vmatpush1.msra.mxu0 0.0
    %4172 = vmatprep.subr.mxu0 0.0
    %4173 = vmatpush1.msra.mxu0 0.0
    %4174 = vmatprep.subr.mxu0 0.0
    %4175 = vmatpush1.msra.mxu0 0.0
    %4176 = vmatprep.subr.mxu0 0.0
    %4177 = vmatpush1.msra.mxu0 0.0
    %4178 = vmatprep.subr.mxu0 0.0
    %4179 = vmatpush1.msra.mxu0 0.0
    %4180 = vmatprep.subr.mxu0 0.0
    %4181 = vmatpush1.msra.mxu0 0.0
    %4182 = vmatprep.subr.mxu0 0.0
    %4183 = vmatpush1.msra.mxu0 0.0
    %4184 = vmatprep.subr.mxu0 0.0
    %4185 = vmatpush1.msra.mxu0 0.0
    %4186 = vmatprep.subr.mxu0 0.0
    %4187 = vmatpush1.msra.mxu0 0.0
    %4188 = vmatprep.subr.mxu0 0.0
    %4189 = vmatpush1.msra.mxu0 0.0
    %4190 = vmatprep.subr.mxu0 0.0
    %4191 = vmatpush1.msra.mxu0 0.0
    %4192 = vmatprep.subr.mxu0 0.0
    %4193 = vmatpush1.msra.mxu0 0.0
    %4194 = vmatprep.subr.mxu0 0.0
    %4195 = vmatpush1.msra.mxu0 0.0
    %4196 = vmatprep.subr.mxu0 0.0
    %4197 = vmatpush1.msra.mxu0 0.0
    %4198 = vmatprep.subr.mxu0 0.0
    %4199 = vmatpush1.msra.mxu0 0.0
    %4200 = vmatprep.subr.mxu0 0.0
    %4201 = vmatpush1.msra.mxu0 0.0
    %4202 = vmatprep.subr.mxu0 0.0
    %4203 = vmatpush1.msra.mxu0 0.0
    %4204 = vmatprep.mubr.f32.mxu0 0.0
    %4205 = vmatmul.mubr.f32.gmra.mrb[0].mxu0 %v4138
    %v4206 = vpop.f32.mrb[0].mxu0
    %v4207 = vadd.f32 0.0, %v4206
    %v4208 = vpop.f32.mrb[0].mxu0
    %4209 = vdwg.mxu0
    %4210 = vrot.lane.b32.xlu0 %v366, 64
    %v4211 = vpop.permute.xlu0 %4210
    %v4214 = vsel %vm405, %v3203, 0
    %4216 = vmatprep.subr.mxu0 0.0
    %4217 = vmatpush1.msra.mxu0 %v4211
    %4218 = vmatprep.subr.mxu0 0.0
    %4219 = vmatpush1.msra.mxu0 0.0
    %4220 = vmatprep.subr.mxu0 0.0
    %4221 = vmatpush1.msra.mxu0 0.0
    %4222 = vmatprep.subr.mxu0 0.0
    %4223 = vmatpush1.msra.mxu0 0.0
    %4224 = vmatprep.subr.mxu0 0.0
    %4225 = vmatpush1.msra.mxu0 0.0
    %4226 = vmatprep.subr.mxu0 0.0
    %4227 = vmatpush1.msra.mxu0 0.0
    %4228 = vmatprep.subr.mxu0 0.0
    %4229 = vmatpush1.msra.mxu0 0.0
    %4230 = vmatprep.subr.mxu0 0.0
    %4231 = vmatpush1.msra.mxu0 0.0
    %4232 = vmatprep.subr.mxu0 0.0
    %4233 = vmatpush1.msra.mxu0 0.0
    %4234 = vmatprep.subr.mxu0 0.0
    %4235 = vmatpush1.msra.mxu0 0.0
    %4236 = vmatprep.subr.mxu0 0.0
    %4237 = vmatpush1.msra.mxu0 0.0
    %4238 = vmatprep.subr.mxu0 0.0
    %4239 = vmatpush1.msra.mxu0 0.0
    %4240 = vmatprep.subr.mxu0 0.0
    %4241 = vmatpush1.msra.mxu0 0.0
    %4242 = vmatprep.subr.mxu0 0.0
    %4243 = vmatpush1.msra.mxu0 0.0
    %4244 = vmatprep.subr.mxu0 0.0
    %4245 = vmatpush1.msra.mxu0 0.0
    %4246 = vmatprep.subr.mxu0 0.0
    %4247 = vmatpush1.msra.mxu0 0.0
    %4248 = vmatprep.subr.mxu0 0.0
    %4249 = vmatpush1.msra.mxu0 0.0
    %4250 = vmatprep.subr.mxu0 0.0
    %4251 = vmatpush1.msra.mxu0 0.0
    %4252 = vmatprep.subr.mxu0 0.0
    %4253 = vmatpush1.msra.mxu0 0.0
    %4254 = vmatprep.subr.mxu0 0.0
    %4255 = vmatpush1.msra.mxu0 0.0
    %4256 = vmatprep.subr.mxu0 0.0
    %4257 = vmatpush1.msra.mxu0 0.0
    %4258 = vmatprep.subr.mxu0 0.0
    %4259 = vmatpush1.msra.mxu0 0.0
    %4260 = vmatprep.subr.mxu0 0.0
    %4261 = vmatpush1.msra.mxu0 0.0
    %4262 = vmatprep.subr.mxu0 0.0
    %4263 = vmatpush1.msra.mxu0 0.0
    %4264 = vmatprep.subr.mxu0 0.0
    %4265 = vmatpush1.msra.mxu0 0.0
    %4266 = vmatprep.subr.mxu0 0.0
    %4267 = vmatpush1.msra.mxu0 0.0
    %4268 = vmatprep.subr.mxu0 0.0
    %4269 = vmatpush1.msra.mxu0 0.0
    %4270 = vmatprep.subr.mxu0 0.0
    %4271 = vmatpush1.msra.mxu0 0.0
    %4272 = vmatprep.subr.mxu0 0.0
    %4273 = vmatpush1.msra.mxu0 0.0
    %4274 = vmatprep.subr.mxu0 0.0
    %4275 = vmatpush1.msra.mxu0 0.0
    %4276 = vmatprep.subr.mxu0 0.0
    %4277 = vmatpush1.msra.mxu0 0.0
    %4278 = vmatprep.subr.mxu0 0.0
    %4279 = vmatpush1.msra.mxu0 0.0
    %4280 = vmatprep.mubr.f32.mxu0 0.0
    %4281 = vmatmul.mubr.f32.gmra.mrb[0].mxu0 %v4214
    %v4282 = vpop.f32.mrb[0].mxu0
    %v4283 = vadd.f32 0.0, %v4282
    %v4284 = vpop.f32.mrb[0].mxu0
    %4285 = vdwg.mxu0
    %4286 = vrot.lane.b32.xlu0 %v368, 64
    %v4287 = vpop.permute.xlu0 %4286
    %v4290 = vsel %vm405, %v3204, 0
    %4292 = vmatprep.subr.mxu0 0.0
    %4293 = vmatpush1.msra.mxu0 %v4287
    %4294 = vmatprep.subr.mxu0 0.0
    %4295 = vmatpush1.msra.mxu0 0.0
    %4296 = vmatprep.subr.mxu0 0.0
    %4297 = vmatpush1.msra.mxu0 0.0
    %4298 = vmatprep.subr.mxu0 0.0
    %4299 = vmatpush1.msra.mxu0 0.0
    %4300 = vmatprep.subr.mxu0 0.0
    %4301 = vmatpush1.msra.mxu0 0.0
    %4302 = vmatprep.subr.mxu0 0.0
    %4303 = vmatpush1.msra.mxu0 0.0
    %4304 = vmatprep.subr.mxu0 0.0
    %4305 = vmatpush1.msra.mxu0 0.0
    %4306 = vmatprep.subr.mxu0 0.0
    %4307 = vmatpush1.msra.mxu0 0.0
    %4308 = vmatprep.subr.mxu0 0.0
    %4309 = vmatpush1.msra.mxu0 0.0
    %4310 = vmatprep.subr.mxu0 0.0
    %4311 = vmatpush1.msra.mxu0 0.0
    %4312 = vmatprep.subr.mxu0 0.0
    %4313 = vmatpush1.msra.mxu0 0.0
    %4314 = vmatprep.subr.mxu0 0.0
    %4315 = vmatpush1.msra.mxu0 0.0
    %4316 = vmatprep.subr.mxu0 0.0
    %4317 = vmatpush1.msra.mxu0 0.0
    %4318 = vmatprep.subr.mxu0 0.0
    %4319 = vmatpush1.msra.mxu0 0.0
    %4320 = vmatprep.subr.mxu0 0.0
    %4321 = vmatpush1.msra.mxu0 0.0
    %4322 = vmatprep.subr.mxu0 0.0
    %4323 = vmatpush1.msra.mxu0 0.0
    %4324 = vmatprep.subr.mxu0 0.0
    %4325 = vmatpush1.msra.mxu0 0.0
    %4326 = vmatprep.subr.mxu0 0.0
    %4327 = vmatpush1.msra.mxu0 0.0
    %4328 = vmatprep.subr.mxu0 0.0
    %4329 = vmatpush1.msra.mxu0 0.0
    %4330 = vmatprep.subr.mxu0 0.0
    %4331 = vmatpush1.msra.mxu0 0.0
    %4332 = vmatprep.subr.mxu0 0.0
    %4333 = vmatpush1.msra.mxu0 0.0
    %4334 = vmatprep.subr.mxu0 0.0
    %4335 = vmatpush1.msra.mxu0 0.0
    %4336 = vmatprep.subr.mxu0 0.0
    %4337 = vmatpush1.msra.mxu0 0.0
    %4338 = vmatprep.subr.mxu0 0.0
    %4339 = vmatpush1.msra.mxu0 0.0
    %4340 = vmatprep.subr.mxu0 0.0
    %4341 = vmatpush1.msra.mxu0 0.0
    %4342 = vmatprep.subr.mxu0 0.0
    %4343 = vmatpush1.msra.mxu0 0.0
    %4344 = vmatprep.subr.mxu0 0.0
    %4345 = vmatpush1.msra.mxu0 0.0
    %4346 = vmatprep.subr.mxu0 0.0
    %4347 = vmatpush1.msra.mxu0 0.0
    %4348 = vmatprep.subr.mxu0 0.0
    %4349 = vmatpush1.msra.mxu0 0.0
    %4350 = vmatprep.subr.mxu0 0.0
    %4351 = vmatpush1.msra.mxu0 0.0
    %4352 = vmatprep.subr.mxu0 0.0
    %4353 = vmatpush1.msra.mxu0 0.0
    %4354 = vmatprep.subr.mxu0 0.0
    %4355 = vmatpush1.msra.mxu0 0.0
    %4356 = vmatprep.mubr.f32.mxu0 0.0
    %4357 = vmatmul.mubr.f32.gmra.mrb[0].mxu0 %v4290
    %v4358 = vpop.f32.mrb[0].mxu0
    %v4359 = vadd.f32 0.0, %v4358
    %v4360 = vpop.f32.mrb[0].mxu0
    %4361 = vdwg.mxu0
    %4362 = vrot.lane.b32.xlu0 %v370, 64
    %v4363 = vpop.permute.xlu0 %4362
    %v4366 = vsel %vm405, %v3205, 0
    %4368 = vmatprep.subr.mxu0 0.0
    %4369 = vmatpush1.msra.mxu0 %v4363
    %4370 = vmatprep.subr.mxu0 0.0
    %4371 = vmatpush1.msra.mxu0 0.0
    %4372 = vmatprep.subr.mxu0 0.0
    %4373 = vmatpush1.msra.mxu0 0.0
    %4374 = vmatprep.subr.mxu0 0.0
    %4375 = vmatpush1.msra.mxu0 0.0
    %4376 = vmatprep.subr.mxu0 0.0
    %4377 = vmatpush1.msra.mxu0 0.0
    %4378 = vmatprep.subr.mxu0 0.0
    %4379 = vmatpush1.msra.mxu0 0.0
    %4380 = vmatprep.subr.mxu0 0.0
    %4381 = vmatpush1.msra.mxu0 0.0
    %4382 = vmatprep.subr.mxu0 0.0
    %4383 = vmatpush1.msra.mxu0 0.0
    %4384 = vmatprep.subr.mxu0 0.0
    %4385 = vmatpush1.msra.mxu0 0.0
    %4386 = vmatprep.subr.mxu0 0.0
    %4387 = vmatpush1.msra.mxu0 0.0
    %4388 = vmatprep.subr.mxu0 0.0
    %4389 = vmatpush1.msra.mxu0 0.0
    %4390 = vmatprep.subr.mxu0 0.0
    %4391 = vmatpush1.msra.mxu0 0.0
    %4392 = vmatprep.subr.mxu0 0.0
    %4393 = vmatpush1.msra.mxu0 0.0
    %4394 = vmatprep.subr.mxu0 0.0
    %4395 = vmatpush1.msra.mxu0 0.0
    %4396 = vmatprep.subr.mxu0 0.0
    %4397 = vmatpush1.msra.mxu0 0.0
    %4398 = vmatprep.subr.mxu0 0.0
    %4399 = vmatpush1.msra.mxu0 0.0
    %4400 = vmatprep.subr.mxu0 0.0
    %4401 = vmatpush1.msra.mxu0 0.0
    %4402 = vmatprep.subr.mxu0 0.0
    %4403 = vmatpush1.msra.mxu0 0.0
    %4404 = vmatprep.subr.mxu0 0.0
    %4405 = vmatpush1.msra.mxu0 0.0
    %4406 = vmatprep.subr.mxu0 0.0
    %4407 = vmatpush1.msra.mxu0 0.0
    %4408 = vmatprep.subr.mxu0 0.0
    %4409 = vmatpush1.msra.mxu0 0.0
    %4410 = vmatprep.subr.mxu0 0.0
    %4411 = vmatpush1.msra.mxu0 0.0
    %4412 = vmatprep.subr.mxu0 0.0
    %4413 = vmatpush1.msra.mxu0 0.0
    %4414 = vmatprep.subr.mxu0 0.0
    %4415 = vmatpush1.msra.mxu0 0.0
    %4416 = vmatprep.subr.mxu0 0.0
    %4417 = vmatpush1.msra.mxu0 0.0
    %4418 = vmatprep.subr.mxu0 0.0
    %4419 = vmatpush1.msra.mxu0 0.0
    %4420 = vmatprep.subr.mxu0 0.0
    %4421 = vmatpush1.msra.mxu0 0.0
    %4422 = vmatprep.subr.mxu0 0.0
    %4423 = vmatpush1.msra.mxu0 0.0
    %4424 = vmatprep.subr.mxu0 0.0
    %4425 = vmatpush1.msra.mxu0 0.0
    %4426 = vmatprep.subr.mxu0 0.0
    %4427 = vmatpush1.msra.mxu0 0.0
    %4428 = vmatprep.subr.mxu0 0.0
    %4429 = vmatpush1.msra.mxu0 0.0
    %4430 = vmatprep.subr.mxu0 0.0
    %4431 = vmatpush1.msra.mxu0 0.0
    %4432 = vmatprep.mubr.f32.mxu0 0.0
    %4433 = vmatmul.mubr.f32.gmra.mrb[0].mxu0 %v4366
    %v4434 = vpop.f32.mrb[0].mxu0
    %v4435 = vadd.f32 0.0, %v4434
    %v4436 = vpop.f32.mrb[0].mxu0
    %4437 = vdwg.mxu0
    %4438 = vrot.lane.b32.xlu0 %v372, 64
    %v4439 = vpop.permute.xlu0 %4438
    %v4442 = vsel %vm405, %v3206, 0
    %4444 = vmatprep.subr.mxu0 0.0
    %4445 = vmatpush1.msra.mxu0 %v4439
    %4446 = vmatprep.subr.mxu0 0.0
    %4447 = vmatpush1.msra.mxu0 0.0
    %4448 = vmatprep.subr.mxu0 0.0
    %4449 = vmatpush1.msra.mxu0 0.0
    %4450 = vmatprep.subr.mxu0 0.0
    %4451 = vmatpush1.msra.mxu0 0.0
    %4452 = vmatprep.subr.mxu0 0.0
    %4453 = vmatpush1.msra.mxu0 0.0
    %4454 = vmatprep.subr.mxu0 0.0
    %4455 = vmatpush1.msra.mxu0 0.0
    %4456 = vmatprep.subr.mxu0 0.0
    %4457 = vmatpush1.msra.mxu0 0.0
    %4458 = vmatprep.subr.mxu0 0.0
    %4459 = vmatpush1.msra.mxu0 0.0
    %4460 = vmatprep.subr.mxu0 0.0
    %4461 = vmatpush1.msra.mxu0 0.0
    %4462 = vmatprep.subr.mxu0 0.0
    %4463 = vmatpush1.msra.mxu0 0.0
    %4464 = vmatprep.subr.mxu0 0.0
    %4465 = vmatpush1.msra.mxu0 0.0
    %4466 = vmatprep.subr.mxu0 0.0
    %4467 = vmatpush1.msra.mxu0 0.0
    %4468 = vmatprep.subr.mxu0 0.0
    %4469 = vmatpush1.msra.mxu0 0.0
    %4470 = vmatprep.subr.mxu0 0.0
    %4471 = vmatpush1.msra.mxu0 0.0
    %4472 = vmatprep.subr.mxu0 0.0
    %4473 = vmatpush1.msra.mxu0 0.0
    %4474 = vmatprep.subr.mxu0 0.0
    %4475 = vmatpush1.msra.mxu0 0.0
    %4476 = vmatprep.subr.mxu0 0.0
    %4477 = vmatpush1.msra.mxu0 0.0
    %4478 = vmatprep.subr.mxu0 0.0
    %4479 = vmatpush1.msra.mxu0 0.0
    %4480 = vmatprep.subr.mxu0 0.0
    %4481 = vmatpush1.msra.mxu0 0.0
    %4482 = vmatprep.subr.mxu0 0.0
    %4483 = vmatpush1.msra.mxu0 0.0
    %4484 = vmatprep.subr.mxu0 0.0
    %4485 = vmatpush1.msra.mxu0 0.0
    %4486 = vmatprep.subr.mxu0 0.0
    %4487 = vmatpush1.msra.mxu0 0.0
    %4488 = vmatprep.subr.mxu0 0.0
    %4489 = vmatpush1.msra.mxu0 0.0
    %4490 = vmatprep.subr.mxu0 0.0
    %4491 = vmatpush1.msra.mxu0 0.0
    %4492 = vmatprep.subr.mxu0 0.0
    %4493 = vmatpush1.msra.mxu0 0.0
    %4494 = vmatprep.subr.mxu0 0.0
    %4495 = vmatpush1.msra.mxu0 0.0
    %4496 = vmatprep.subr.mxu0 0.0
    %4497 = vmatpush1.msra.mxu0 0.0
    %4498 = vmatprep.subr.mxu0 0.0
    %4499 = vmatpush1.msra.mxu0 0.0
    %4500 = vmatprep.subr.mxu0 0.0
    %4501 = vmatpush1.msra.mxu0 0.0
    %4502 = vmatprep.subr.mxu0 0.0
    %4503 = vmatpush1.msra.mxu0 0.0
    %4504 = vmatprep.subr.mxu0 0.0
    %4505 = vmatpush1.msra.mxu0 0.0
    %4506 = vmatprep.subr.mxu0 0.0
    %4507 = vmatpush1.msra.mxu0 0.0
    %4508 = vmatprep.mubr.f32.mxu0 0.0
    %4509 = vmatmul.mubr.f32.gmra.mrb[0].mxu0 %v4442
    %v4510 = vpop.f32.mrb[0].mxu0
    %v4511 = vadd.f32 0.0, %v4510
    %v4512 = vpop.f32.mrb[0].mxu0
    %4513 = vdwg.mxu0
    %4514 = vrot.lane.b32.xlu0 %v374, 64
    %v4515 = vpop.permute.xlu0 %4514
    %v4518 = vsel %vm405, %v3207, 0
    %4520 = vmatprep.subr.mxu0 0.0
    %4521 = vmatpush1.msra.mxu0 %v4515
    %4522 = vmatprep.subr.mxu0 0.0
    %4523 = vmatpush1.msra.mxu0 0.0
    %4524 = vmatprep.subr.mxu0 0.0
    %4525 = vmatpush1.msra.mxu0 0.0
    %4526 = vmatprep.subr.mxu0 0.0
    %4527 = vmatpush1.msra.mxu0 0.0
    %4528 = vmatprep.subr.mxu0 0.0
    %4529 = vmatpush1.msra.mxu0 0.0
    %4530 = vmatprep.subr.mxu0 0.0
    %4531 = vmatpush1.msra.mxu0 0.0
    %4532 = vmatprep.subr.mxu0 0.0
    %4533 = vmatpush1.msra.mxu0 0.0
    %4534 = vmatprep.subr.mxu0 0.0
    %4535 = vmatpush1.msra.mxu0 0.0
    %4536 = vmatprep.subr.mxu0 0.0
    %4537 = vmatpush1.msra.mxu0 0.0
    %4538 = vmatprep.subr.mxu0 0.0
    %4539 = vmatpush1.msra.mxu0 0.0
    %4540 = vmatprep.subr.mxu0 0.0
    %4541 = vmatpush1.msra.mxu0 0.0
    %4542 = vmatprep.subr.mxu0 0.0
    %4543 = vmatpush1.msra.mxu0 0.0
    %4544 = vmatprep.subr.mxu0 0.0
    %4545 = vmatpush1.msra.mxu0 0.0
    %4546 = vmatprep.subr.mxu0 0.0
    %4547 = vmatpush1.msra.mxu0 0.0
    %4548 = vmatprep.subr.mxu0 0.0
    %4549 = vmatpush1.msra.mxu0 0.0
    %4550 = vmatprep.subr.mxu0 0.0
    %4551 = vmatpush1.msra.mxu0 0.0
    %4552 = vmatprep.subr.mxu0 0.0
    %4553 = vmatpush1.msra.mxu0 0.0
    %4554 = vmatprep.subr.mxu0 0.0
    %4555 = vmatpush1.msra.mxu0 0.0
    %4556 = vmatprep.subr.mxu0 0.0
    %4557 = vmatpush1.msra.mxu0 0.0
    %4558 = vmatprep.subr.mxu0 0.0
    %4559 = vmatpush1.msra.mxu0 0.0
    %4560 = vmatprep.subr.mxu0 0.0
    %4561 = vmatpush1.msra.mxu0 0.0
    %4562 = vmatprep.subr.mxu0 0.0
    %4563 = vmatpush1.msra.mxu0 0.0
    %4564 = vmatprep.subr.mxu0 0.0
    %4565 = vmatpush1.msra.mxu0 0.0
    %4566 = vmatprep.subr.mxu0 0.0
    %4567 = vmatpush1.msra.mxu0 0.0
    %4568 = vmatprep.subr.mxu0 0.0
    %4569 = vmatpush1.msra.mxu0 0.0
    %4570 = vmatprep.subr.mxu0 0.0
    %4571 = vmatpush1.msra.mxu0 0.0
    %4572 = vmatprep.subr.mxu0 0.0
    %4573 = vmatpush1.msra.mxu0 0.0
    %4574 = vmatprep.subr.mxu0 0.0
    %4575 = vmatpush1.msra.mxu0 0.0
    %4576 = vmatprep.subr.mxu0 0.0
    %4577 = vmatpush1.msra.mxu0 0.0
    %4578 = vmatprep.subr.mxu0 0.0
    %4579 = vmatpush1.msra.mxu0 0.0
    %4580 = vmatprep.subr.mxu0 0.0
    %4581 = vmatpush1.msra.mxu0 0.0
    %4582 = vmatprep.subr.mxu0 0.0
    %4583 = vmatpush1.msra.mxu0 0.0
    %4584 = vmatprep.mubr.f32.mxu0 0.0
    %4585 = vmatmul.mubr.f32.gmra.mrb[0].mxu0 %v4518
    %v4586 = vpop.f32.mrb[0].mxu0
    %v4587 = vadd.f32 0.0, %v4586
    %v4588 = vpop.f32.mrb[0].mxu0
    %4589 = vdwg.mxu0
    %4590 = vrot.lane.b32.xlu0 %v376, 64
    %v4591 = vpop.permute.xlu0 %4590
    %v4594 = vsel %vm405, %v3208, 0
    %4596 = vmatprep.subr.mxu0 0.0
    %4597 = vmatpush1.msra.mxu0 %v4591
    %4598 = vmatprep.subr.mxu0 0.0
    %4599 = vmatpush1.msra.mxu0 0.0
    %4600 = vmatprep.subr.mxu0 0.0
    %4601 = vmatpush1.msra.mxu0 0.0
    %4602 = vmatprep.subr.mxu0 0.0
    %4603 = vmatpush1.msra.mxu0 0.0
    %4604 = vmatprep.subr.mxu0 0.0
    %4605 = vmatpush1.msra.mxu0 0.0
    %4606 = vmatprep.subr.mxu0 0.0
    %4607 = vmatpush1.msra.mxu0 0.0
    %4608 = vmatprep.subr.mxu0 0.0
    %4609 = vmatpush1.msra.mxu0 0.0
    %4610 = vmatprep.subr.mxu0 0.0
    %4611 = vmatpush1.msra.mxu0 0.0
    %4612 = vmatprep.subr.mxu0 0.0
    %4613 = vmatpush1.msra.mxu0 0.0
    %4614 = vmatprep.subr.mxu0 0.0
    %4615 = vmatpush1.msra.mxu0 0.0
    %4616 = vmatprep.subr.mxu0 0.0
    %4617 = vmatpush1.msra.mxu0 0.0
    %4618 = vmatprep.subr.mxu0 0.0
    %4619 = vmatpush1.msra.mxu0 0.0
    %4620 = vmatprep.subr.mxu0 0.0
    %4621 = vmatpush1.msra.mxu0 0.0
    %4622 = vmatprep.subr.mxu0 0.0
    %4623 = vmatpush1.msra.mxu0 0.0
    %4624 = vmatprep.subr.mxu0 0.0
    %4625 = vmatpush1.msra.mxu0 0.0
    %4626 = vmatprep.subr.mxu0 0.0
    %4627 = vmatpush1.msra.mxu0 0.0
    %4628 = vmatprep.subr.mxu0 0.0
    %4629 = vmatpush1.msra.mxu0 0.0
    %4630 = vmatprep.subr.mxu0 0.0
    %4631 = vmatpush1.msra.mxu0 0.0
    %4632 = vmatprep.subr.mxu0 0.0
    %4633 = vmatpush1.msra.mxu0 0.0
    %4634 = vmatprep.subr.mxu0 0.0
    %4635 = vmatpush1.msra.mxu0 0.0
    %4636 = vmatprep.subr.mxu0 0.0
    %4637 = vmatpush1.msra.mxu0 0.0
    %4638 = vmatprep.subr.mxu0 0.0
    %4639 = vmatpush1.msra.mxu0 0.0
    %4640 = vmatprep.subr.mxu0 0.0
    %4641 = vmatpush1.msra.mxu0 0.0
    %4642 = vmatprep.subr.mxu0 0.0
    %4643 = vmatpush1.msra.mxu0 0.0
    %4644 = vmatprep.subr.mxu0 0.0
    %4645 = vmatpush1.msra.mxu0 0.0
    %4646 = vmatprep.subr.mxu0 0.0
    %4647 = vmatpush1.msra.mxu0 0.0
    %4648 = vmatprep.subr.mxu0 0.0
    %4649 = vmatpush1.msra.mxu0 0.0
    %4650 = vmatprep.subr.mxu0 0.0
    %4651 = vmatpush1.msra.mxu0 0.0
    %4652 = vmatprep.subr.mxu0 0.0
    %4653 = vmatpush1.msra.mxu0 0.0
    %4654 = vmatprep.subr.mxu0 0.0
    %4655 = vmatpush1.msra.mxu0 0.0
    %4656 = vmatprep.subr.mxu0 0.0
    %4657 = vmatpush1.msra.mxu0 0.0
    %4658 = vmatprep.subr.mxu0 0.0
    %4659 = vmatpush1.msra.mxu0 0.0
    %4660 = vmatprep.mubr.f32.mxu0 0.0
    %4661 = vmatmul.mubr.f32.gmra.mrb[0].mxu0 %v4594
    %v4662 = vpop.f32.mrb[0].mxu0
    %v4663 = vadd.f32 0.0, %v4662
    %v4664 = vpop.f32.mrb[0].mxu0
    %4665 = vdwg.mxu0
    %4666 = vrot.lane.b32.xlu0 %v378, 64
    %v4667 = vpop.permute.xlu0 %4666
    %v4670 = vsel %vm405, %v3209, 0
    %4672 = vmatprep.subr.mxu0 0.0
    %4673 = vmatpush1.msra.mxu0 %v4667
    %4674 = vmatprep.subr.mxu0 0.0
    %4675 = vmatpush1.msra.mxu0 0.0
    %4676 = vmatprep.subr.mxu0 0.0
    %4677 = vmatpush1.msra.mxu0 0.0
    %4678 = vmatprep.subr.mxu0 0.0
    %4679 = vmatpush1.msra.mxu0 0.0
    %4680 = vmatprep.subr.mxu0 0.0
    %4681 = vmatpush1.msra.mxu0 0.0
    %4682 = vmatprep.subr.mxu0 0.0
    %4683 = vmatpush1.msra.mxu0 0.0
    %4684 = vmatprep.subr.mxu0 0.0
    %4685 = vmatpush1.msra.mxu0 0.0
    %4686 = vmatprep.subr.mxu0 0.0
    %4687 = vmatpush1.msra.mxu0 0.0
    %4688 = vmatprep.subr.mxu0 0.0
    %4689 = vmatpush1.msra.mxu0 0.0
    %4690 = vmatprep.subr.mxu0 0.0
    %4691 = vmatpush1.msra.mxu0 0.0
    %4692 = vmatprep.subr.mxu0 0.0
    %4693 = vmatpush1.msra.mxu0 0.0
    %4694 = vmatprep.subr.mxu0 0.0
    %4695 = vmatpush1.msra.mxu0 0.0
    %4696 = vmatprep.subr.mxu0 0.0
    %4697 = vmatpush1.msra.mxu0 0.0
    %4698 = vmatprep.subr.mxu0 0.0
    %4699 = vmatpush1.msra.mxu0 0.0
    %4700 = vmatprep.subr.mxu0 0.0
    %4701 = vmatpush1.msra.mxu0 0.0
    %4702 = vmatprep.subr.mxu0 0.0
    %4703 = vmatpush1.msra.mxu0 0.0
    %4704 = vmatprep.subr.mxu0 0.0
    %4705 = vmatpush1.msra.mxu0 0.0
    %4706 = vmatprep.subr.mxu0 0.0
    %4707 = vmatpush1.msra.mxu0 0.0
    %4708 = vmatprep.subr.mxu0 0.0
    %4709 = vmatpush1.msra.mxu0 0.0
    %4710 = vmatprep.subr.mxu0 0.0
    %4711 = vmatpush1.msra.mxu0 0.0
    %4712 = vmatprep.subr.mxu0 0.0
    %4713 = vmatpush1.msra.mxu0 0.0
    %4714 = vmatprep.subr.mxu0 0.0
    %4715 = vmatpush1.msra.mxu0 0.0
    %4716 = vmatprep.subr.mxu0 0.0
    %4717 = vmatpush1.msra.mxu0 0.0
    %4718 = vmatprep.subr.mxu0 0.0
    %4719 = vmatpush1.msra.mxu0 0.0
    %4720 = vmatprep.subr.mxu0 0.0
    %4721 = vmatpush1.msra.mxu0 0.0
    %4722 = vmatprep.subr.mxu0 0.0
    %4723 = vmatpush1.msra.mxu0 0.0
    %4724 = vmatprep.subr.mxu0 0.0
    %4725 = vmatpush1.msra.mxu0 0.0
    %4726 = vmatprep.subr.mxu0 0.0
    %4727 = vmatpush1.msra.mxu0 0.0
    %4728 = vmatprep.subr.mxu0 0.0
    %4729 = vmatpush1.msra.mxu0 0.0
    %4730 = vmatprep.subr.mxu0 0.0
    %4731 = vmatpush1.msra.mxu0 0.0
    %4732 = vmatprep.subr.mxu0 0.0
    %4733 = vmatpush1.msra.mxu0 0.0
    %4734 = vmatprep.subr.mxu0 0.0
    %4735 = vmatpush1.msra.mxu0 0.0
    %4736 = vmatprep.mubr.f32.mxu0 0.0
    %4737 = vmatmul.mubr.f32.gmra.mrb[0].mxu0 %v4670
    %v4738 = vpop.f32.mrb[0].mxu0
    %v4739 = vadd.f32 0.0, %v4738
    %v4740 = vpop.f32.mrb[0].mxu0
    %4741 = vdwg.mxu0
    %4742 = vrot.lane.b32.xlu0 %v380, 64
    %v4743 = vpop.permute.xlu0 %4742
    %v4746 = vsel %vm405, %v3210, 0
    %4748 = vmatprep.subr.mxu0 0.0
    %4749 = vmatpush1.msra.mxu0 %v4743
    %4750 = vmatprep.subr.mxu0 0.0
    %4751 = vmatpush1.msra.mxu0 0.0
    %4752 = vmatprep.subr.mxu0 0.0
    %4753 = vmatpush1.msra.mxu0 0.0
    %4754 = vmatprep.subr.mxu0 0.0
    %4755 = vmatpush1.msra.mxu0 0.0
    %4756 = vmatprep.subr.mxu0 0.0
    %4757 = vmatpush1.msra.mxu0 0.0
    %4758 = vmatprep.subr.mxu0 0.0
    %4759 = vmatpush1.msra.mxu0 0.0
    %4760 = vmatprep.subr.mxu0 0.0
    %4761 = vmatpush1.msra.mxu0 0.0
    %4762 = vmatprep.subr.mxu0 0.0
    %4763 = vmatpush1.msra.mxu0 0.0
    %4764 = vmatprep.subr.mxu0 0.0
    %4765 = vmatpush1.msra.mxu0 0.0
    %4766 = vmatprep.subr.mxu0 0.0
    %4767 = vmatpush1.msra.mxu0 0.0
    %4768 = vmatprep.subr.mxu0 0.0
    %4769 = vmatpush1.msra.mxu0 0.0
    %4770 = vmatprep.subr.mxu0 0.0
    %4771 = vmatpush1.msra.mxu0 0.0
    %4772 = vmatprep.subr.mxu0 0.0
    %4773 = vmatpush1.msra.mxu0 0.0
    %4774 = vmatprep.subr.mxu0 0.0
    %4775 = vmatpush1.msra.mxu0 0.0
    %4776 = vmatprep.subr.mxu0 0.0
    %4777 = vmatpush1.msra.mxu0 0.0
    %4778 = vmatprep.subr.mxu0 0.0
    %4779 = vmatpush1.msra.mxu0 0.0
    %4780 = vmatprep.subr.mxu0 0.0
    %4781 = vmatpush1.msra.mxu0 0.0
    %4782 = vmatprep.subr.mxu0 0.0
    %4783 = vmatpush1.msra.mxu0 0.0
    %4784 = vmatprep.subr.mxu0 0.0
    %4785 = vmatpush1.msra.mxu0 0.0
    %4786 = vmatprep.subr.mxu0 0.0
    %4787 = vmatpush1.msra.mxu0 0.0
    %4788 = vmatprep.subr.mxu0 0.0
    %4789 = vmatpush1.msra.mxu0 0.0
    %4790 = vmatprep.subr.mxu0 0.0
    %4791 = vmatpush1.msra.mxu0 0.0
    %4792 = vmatprep.subr.mxu0 0.0
    %4793 = vmatpush1.msra.mxu0 0.0
    %4794 = vmatprep.subr.mxu0 0.0
    %4795 = vmatpush1.msra.mxu0 0.0
    %4796 = vmatprep.subr.mxu0 0.0
    %4797 = vmatpush1.msra.mxu0 0.0
    %4798 = vmatprep.subr.mxu0 0.0
    %4799 = vmatpush1.msra.mxu0 0.0
    %4800 = vmatprep.subr.mxu0 0.0
    %4801 = vmatpush1.msra.mxu0 0.0
    %4802 = vmatprep.subr.mxu0 0.0
    %4803 = vmatpush1.msra.mxu0 0.0
    %4804 = vmatprep.subr.mxu0 0.0
    %4805 = vmatpush1.msra.mxu0 0.0
    %4806 = vmatprep.subr.mxu0 0.0
    %4807 = vmatpush1.msra.mxu0 0.0
    %4808 = vmatprep.subr.mxu0 0.0
    %4809 = vmatpush1.msra.mxu0 0.0
    %4810 = vmatprep.subr.mxu0 0.0
    %4811 = vmatpush1.msra.mxu0 0.0
    %4812 = vmatprep.mubr.f32.mxu0 0.0
    %4813 = vmatmul.mubr.f32.gmra.mrb[0].mxu0 %v4746
    %v4814 = vpop.f32.mrb[0].mxu0
    %v4815 = vadd.f32 0.0, %v4814
    %v4816 = vpop.f32.mrb[0].mxu0
    %4817 = vdwg.mxu0
    %4818 = vrot.lane.b32.xlu0 %v382, 64
    %v4819 = vpop.permute.xlu0 %4818
    %v4822 = vsel %vm405, %v3211, 0
    %4824 = vmatprep.subr.mxu0 0.0
    %4825 = vmatpush1.msra.mxu0 %v4819
    %4826 = vmatprep.subr.mxu0 0.0
    %4827 = vmatpush1.msra.mxu0 0.0
    %4828 = vmatprep.subr.mxu0 0.0
    %4829 = vmatpush1.msra.mxu0 0.0
    %4830 = vmatprep.subr.mxu0 0.0
    %4831 = vmatpush1.msra.mxu0 0.0
    %4832 = vmatprep.subr.mxu0 0.0
    %4833 = vmatpush1.msra.mxu0 0.0
    %4834 = vmatprep.subr.mxu0 0.0
    %4835 = vmatpush1.msra.mxu0 0.0
    %4836 = vmatprep.subr.mxu0 0.0
    %4837 = vmatpush1.msra.mxu0 0.0
    %4838 = vmatprep.subr.mxu0 0.0
    %4839 = vmatpush1.msra.mxu0 0.0
    %4840 = vmatprep.subr.mxu0 0.0
    %4841 = vmatpush1.msra.mxu0 0.0
    %4842 = vmatprep.subr.mxu0 0.0
    %4843 = vmatpush1.msra.mxu0 0.0
    %4844 = vmatprep.subr.mxu0 0.0
    %4845 = vmatpush1.msra.mxu0 0.0
    %4846 = vmatprep.subr.mxu0 0.0
    %4847 = vmatpush1.msra.mxu0 0.0
    %4848 = vmatprep.subr.mxu0 0.0
    %4849 = vmatpush1.msra.mxu0 0.0
    %4850 = vmatprep.subr.mxu0 0.0
    %4851 = vmatpush1.msra.mxu0 0.0
    %4852 = vmatprep.subr.mxu0 0.0
    %4853 = vmatpush1.msra.mxu0 0.0
    %4854 = vmatprep.subr.mxu0 0.0
    %4855 = vmatpush1.msra.mxu0 0.0
    %4856 = vmatprep.subr.mxu0 0.0
    %4857 = vmatpush1.msra.mxu0 0.0
    %4858 = vmatprep.subr.mxu0 0.0
    %4859 = vmatpush1.msra.mxu0 0.0
    %4860 = vmatprep.subr.mxu0 0.0
    %4861 = vmatpush1.msra.mxu0 0.0
    %4862 = vmatprep.subr.mxu0 0.0
    %4863 = vmatpush1.msra.mxu0 0.0
    %4864 = vmatprep.subr.mxu0 0.0
    %4865 = vmatpush1.msra.mxu0 0.0
    %4866 = vmatprep.subr.mxu0 0.0
    %4867 = vmatpush1.msra.mxu0 0.0
    %4868 = vmatprep.subr.mxu0 0.0
    %4869 = vmatpush1.msra.mxu0 0.0
    %4870 = vmatprep.subr.mxu0 0.0
    %4871 = vmatpush1.msra.mxu0 0.0
    %4872 = vmatprep.subr.mxu0 0.0
    %4873 = vmatpush1.msra.mxu0 0.0
    %4874 = vmatprep.subr.mxu0 0.0
    %4875 = vmatpush1.msra.mxu0 0.0
    %4876 = vmatprep.subr.mxu0 0.0
    %4877 = vmatpush1.msra.mxu0 0.0
    %4878 = vmatprep.subr.mxu0 0.0
    %4879 = vmatpush1.msra.mxu0 0.0
    %4880 = vmatprep.subr.mxu0 0.0
    %4881 = vmatpush1.msra.mxu0 0.0
    %4882 = vmatprep.subr.mxu0 0.0
    %4883 = vmatpush1.msra.mxu0 0.0
    %4884 = vmatprep.subr.mxu0 0.0
    %4885 = vmatpush1.msra.mxu0 0.0
    %4886 = vmatprep.subr.mxu0 0.0
    %4887 = vmatpush1.msra.mxu0 0.0
    %4888 = vmatprep.mubr.f32.mxu0 0.0
    %4889 = vmatmul.mubr.f32.gmra.mrb[0].mxu0 %v4822
    %v4890 = vpop.f32.mrb[0].mxu0
    %v4891 = vadd.f32 0.0, %v4890
    %v4892 = vpop.f32.mrb[0].mxu0
    %4893 = vdwg.mxu0
    %4894 = vrot.lane.b32.xlu0 %v384, 64
    %v4895 = vpop.permute.xlu0 %4894
    %v4898 = vsel %vm405, %v3212, 0
    %4900 = vmatprep.subr.mxu0 0.0
    %4901 = vmatpush1.msra.mxu0 %v4895
    %4902 = vmatprep.subr.mxu0 0.0
    %4903 = vmatpush1.msra.mxu0 0.0
    %4904 = vmatprep.subr.mxu0 0.0
    %4905 = vmatpush1.msra.mxu0 0.0
    %4906 = vmatprep.subr.mxu0 0.0
    %4907 = vmatpush1.msra.mxu0 0.0
    %4908 = vmatprep.subr.mxu0 0.0
    %4909 = vmatpush1.msra.mxu0 0.0
    %4910 = vmatprep.subr.mxu0 0.0
    %4911 = vmatpush1.msra.mxu0 0.0
    %4912 = vmatprep.subr.mxu0 0.0
    %4913 = vmatpush1.msra.mxu0 0.0
    %4914 = vmatprep.subr.mxu0 0.0
    %4915 = vmatpush1.msra.mxu0 0.0
    %4916 = vmatprep.subr.mxu0 0.0
    %4917 = vmatpush1.msra.mxu0 0.0
    %4918 = vmatprep.subr.mxu0 0.0
    %4919 = vmatpush1.msra.mxu0 0.0
    %4920 = vmatprep.subr.mxu0 0.0
    %4921 = vmatpush1.msra.mxu0 0.0
    %4922 = vmatprep.subr.mxu0 0.0
    %4923 = vmatpush1.msra.mxu0 0.0
    %4924 = vmatprep.subr.mxu0 0.0
    %4925 = vmatpush1.msra.mxu0 0.0
    %4926 = vmatprep.subr.mxu0 0.0
    %4927 = vmatpush1.msra.mxu0 0.0
    %4928 = vmatprep.subr.mxu0 0.0
    %4929 = vmatpush1.msra.mxu0 0.0
    %4930 = vmatprep.subr.mxu0 0.0
    %4931 = vmatpush1.msra.mxu0 0.0
    %4932 = vmatprep.subr.mxu0 0.0
    %4933 = vmatpush1.msra.mxu0 0.0
    %4934 = vmatprep.subr.mxu0 0.0
    %4935 = vmatpush1.msra.mxu0 0.0
    %4936 = vmatprep.subr.mxu0 0.0
    %4937 = vmatpush1.msra.mxu0 0.0
    %4938 = vmatprep.subr.mxu0 0.0
    %4939 = vmatpush1.msra.mxu0 0.0
    %4940 = vmatprep.subr.mxu0 0.0
    %4941 = vmatpush1.msra.mxu0 0.0
    %4942 = vmatprep.subr.mxu0 0.0
    %4943 = vmatpush1.msra.mxu0 0.0
    %4944 = vmatprep.subr.mxu0 0.0
    %4945 = vmatpush1.msra.mxu0 0.0
    %4946 = vmatprep.subr.mxu0 0.0
    %4947 = vmatpush1.msra.mxu0 0.0
    %4948 = vmatprep.subr.mxu0 0.0
    %4949 = vmatpush1.msra.mxu0 0.0
    %4950 = vmatprep.subr.mxu0 0.0
    %4951 = vmatpush1.msra.mxu0 0.0
    %4952 = vmatprep.subr.mxu0 0.0
    %4953 = vmatpush1.msra.mxu0 0.0
    %4954 = vmatprep.subr.mxu0 0.0
    %4955 = vmatpush1.msra.mxu0 0.0
    %4956 = vmatprep.subr.mxu0 0.0
    %4957 = vmatpush1.msra.mxu0 0.0
    %4958 = vmatprep.subr.mxu0 0.0
    %4959 = vmatpush1.msra.mxu0 0.0
    %4960 = vmatprep.subr.mxu0 0.0
    %4961 = vmatpush1.msra.mxu0 0.0
    %4962 = vmatprep.subr.mxu0 0.0
    %4963 = vmatpush1.msra.mxu0 0.0
    %4964 = vmatprep.mubr.f32.mxu0 0.0
    %4965 = vmatmul.mubr.f32.gmra.mrb[0].mxu0 %v4898
    %v4966 = vpop.f32.mrb[0].mxu0
    %v4967 = vadd.f32 0.0, %v4966
    %v4968 = vpop.f32.mrb[0].mxu0
    %4969 = vdwg.mxu0
    %4970 = vrot.lane.b32.xlu0 %v386, 64
    %v4971 = vpop.permute.xlu0 %4970
    %v4974 = vsel %vm405, %v3213, 0
    %4976 = vmatprep.subr.mxu0 0.0
    %4977 = vmatpush1.msra.mxu0 %v4971
    %4978 = vmatprep.subr.mxu0 0.0
    %4979 = vmatpush1.msra.mxu0 0.0
    %4980 = vmatprep.subr.mxu0 0.0
    %4981 = vmatpush1.msra.mxu0 0.0
    %4982 = vmatprep.subr.mxu0 0.0
    %4983 = vmatpush1.msra.mxu0 0.0
    %4984 = vmatprep.subr.mxu0 0.0
    %4985 = vmatpush1.msra.mxu0 0.0
    %4986 = vmatprep.subr.mxu0 0.0
    %4987 = vmatpush1.msra.mxu0 0.0
    %4988 = vmatprep.subr.mxu0 0.0
    %4989 = vmatpush1.msra.mxu0 0.0
    %4990 = vmatprep.subr.mxu0 0.0
    %4991 = vmatpush1.msra.mxu0 0.0
    %4992 = vmatprep.subr.mxu0 0.0
    %4993 = vmatpush1.msra.mxu0 0.0
    %4994 = vmatprep.subr.mxu0 0.0
    %4995 = vmatpush1.msra.mxu0 0.0
    %4996 = vmatprep.subr.mxu0 0.0
    %4997 = vmatpush1.msra.mxu0 0.0
    %4998 = vmatprep.subr.mxu0 0.0
    %4999 = vmatpush1.msra.mxu0 0.0
    %5000 = vmatprep.subr.mxu0 0.0
    %5001 = vmatpush1.msra.mxu0 0.0
    %5002 = vmatprep.subr.mxu0 0.0
    %5003 = vmatpush1.msra.mxu0 0.0
    %5004 = vmatprep.subr.mxu0 0.0
    %5005 = vmatpush1.msra.mxu0 0.0
    %5006 = vmatprep.subr.mxu0 0.0
    %5007 = vmatpush1.msra.mxu0 0.0
    %5008 = vmatprep.subr.mxu0 0.0
    %5009 = vmatpush1.msra.mxu0 0.0
    %5010 = vmatprep.subr.mxu0 0.0
    %5011 = vmatpush1.msra.mxu0 0.0
    %5012 = vmatprep.subr.mxu0 0.0
    %5013 = vmatpush1.msra.mxu0 0.0
    %5014 = vmatprep.subr.mxu0 0.0
    %5015 = vmatpush1.msra.mxu0 0.0
    %5016 = vmatprep.subr.mxu0 0.0
    %5017 = vmatpush1.msra.mxu0 0.0
    %5018 = vmatprep.subr.mxu0 0.0
    %5019 = vmatpush1.msra.mxu0 0.0
    %5020 = vmatprep.subr.mxu0 0.0
    %5021 = vmatpush1.msra.mxu0 0.0
    %5022 = vmatprep.subr.mxu0 0.0
    %5023 = vmatpush1.msra.mxu0 0.0
    %5024 = vmatprep.subr.mxu0 0.0
    %5025 = vmatpush1.msra.mxu0 0.0
    %5026 = vmatprep.subr.mxu0 0.0
    %5027 = vmatpush1.msra.mxu0 0.0
    %5028 = vmatprep.subr.mxu0 0.0
    %5029 = vmatpush1.msra.mxu0 0.0
    %5030 = vmatprep.subr.mxu0 0.0
    %5031 = vmatpush1.msra.mxu0 0.0
    %5032 = vmatprep.subr.mxu0 0.0
    %5033 = vmatpush1.msra.mxu0 0.0
    %5034 = vmatprep.subr.mxu0 0.0
    %5035 = vmatpush1.msra.mxu0 0.0
    %5036 = vmatprep.subr.mxu0 0.0
    %5037 = vmatpush1.msra.mxu0 0.0
    %5038 = vmatprep.subr.mxu0 0.0
    %5039 = vmatpush1.msra.mxu0 0.0
    %5040 = vmatprep.mubr.f32.mxu0 0.0
    %5041 = vmatmul.mubr.f32.gmra.mrb[0].mxu0 %v4974
    %v5042 = vpop.f32.mrb[0].mxu0
    %v5043 = vadd.f32 0.0, %v5042
    %v5044 = vpop.f32.mrb[0].mxu0
    %5045 = vdwg.mxu0
    %5046 = vrot.lane.b32.xlu0 %v388, 64
    %v5047 = vpop.permute.xlu0 %5046
    %v5050 = vsel %vm405, %v3214, 0
    %5052 = vmatprep.subr.mxu0 0.0
    %5053 = vmatpush1.msra.mxu0 %v5047
    %5054 = vmatprep.subr.mxu0 0.0
    %5055 = vmatpush1.msra.mxu0 0.0
    %5056 = vmatprep.subr.mxu0 0.0
    %5057 = vmatpush1.msra.mxu0 0.0
    %5058 = vmatprep.subr.mxu0 0.0
    %5059 = vmatpush1.msra.mxu0 0.0
    %5060 = vmatprep.subr.mxu0 0.0
    %5061 = vmatpush1.msra.mxu0 0.0
    %5062 = vmatprep.subr.mxu0 0.0
    %5063 = vmatpush1.msra.mxu0 0.0
    %5064 = vmatprep.subr.mxu0 0.0
    %5065 = vmatpush1.msra.mxu0 0.0
    %5066 = vmatprep.subr.mxu0 0.0
    %5067 = vmatpush1.msra.mxu0 0.0
    %5068 = vmatprep.subr.mxu0 0.0
    %5069 = vmatpush1.msra.mxu0 0.0
    %5070 = vmatprep.subr.mxu0 0.0
    %5071 = vmatpush1.msra.mxu0 0.0
    %5072 = vmatprep.subr.mxu0 0.0
    %5073 = vmatpush1.msra.mxu0 0.0
    %5074 = vmatprep.subr.mxu0 0.0
    %5075 = vmatpush1.msra.mxu0 0.0
    %5076 = vmatprep.subr.mxu0 0.0
    %5077 = vmatpush1.msra.mxu0 0.0
    %5078 = vmatprep.subr.mxu0 0.0
    %5079 = vmatpush1.msra.mxu0 0.0
    %5080 = vmatprep.subr.mxu0 0.0
    %5081 = vmatpush1.msra.mxu0 0.0
    %5082 = vmatprep.subr.mxu0 0.0
    %5083 = vmatpush1.msra.mxu0 0.0
    %5084 = vmatprep.subr.mxu0 0.0
    %5085 = vmatpush1.msra.mxu0 0.0
    %5086 = vmatprep.subr.mxu0 0.0
    %5087 = vmatpush1.msra.mxu0 0.0
    %5088 = vmatprep.subr.mxu0 0.0
    %5089 = vmatpush1.msra.mxu0 0.0
    %5090 = vmatprep.subr.mxu0 0.0
    %5091 = vmatpush1.msra.mxu0 0.0
    %5092 = vmatprep.subr.mxu0 0.0
    %5093 = vmatpush1.msra.mxu0 0.0
    %5094 = vmatprep.subr.mxu0 0.0
    %5095 = vmatpush1.msra.mxu0 0.0
    %5096 = vmatprep.subr.mxu0 0.0
    %5097 = vmatpush1.msra.mxu0 0.0
    %5098 = vmatprep.subr.mxu0 0.0
    %5099 = vmatpush1.msra.mxu0 0.0
    %5100 = vmatprep.subr.mxu0 0.0
    %5101 = vmatpush1.msra.mxu0 0.0
    %5102 = vmatprep.subr.mxu0 0.0
    %5103 = vmatpush1.msra.mxu0 0.0
    %5104 = vmatprep.subr.mxu0 0.0
    %5105 = vmatpush1.msra.mxu0 0.0
    %5106 = vmatprep.subr.mxu0 0.0
    %5107 = vmatpush1.msra.mxu0 0.0
    %5108 = vmatprep.subr.mxu0 0.0
    %5109 = vmatpush1.msra.mxu0 0.0
    %5110 = vmatprep.subr.mxu0 0.0
    %5111 = vmatpush1.msra.mxu0 0.0
    %5112 = vmatprep.subr.mxu0 0.0
    %5113 = vmatpush1.msra.mxu0 0.0
    %5114 = vmatprep.subr.mxu0 0.0
    %5115 = vmatpush1.msra.mxu0 0.0
    %5116 = vmatprep.mubr.f32.mxu0 0.0
    %5117 = vmatmul.mubr.f32.gmra.mrb[0].mxu0 %v5050
    %v5118 = vpop.f32.mrb[0].mxu0
    %v5119 = vadd.f32 0.0, %v5118
    %v5120 = vpop.f32.mrb[0].mxu0
    %5121 = vdwg.mxu0
    %5122 = vrot.lane.b32.xlu0 %v390, 64
    %v5123 = vpop.permute.xlu0 %5122
    %v5126 = vsel %vm405, %v3215, 0
    %5128 = vmatprep.subr.mxu0 0.0
    %5129 = vmatpush1.msra.mxu0 %v5123
    %5130 = vmatprep.subr.mxu0 0.0
    %5131 = vmatpush1.msra.mxu0 0.0
    %5132 = vmatprep.subr.mxu0 0.0
    %5133 = vmatpush1.msra.mxu0 0.0
    %5134 = vmatprep.subr.mxu0 0.0
    %5135 = vmatpush1.msra.mxu0 0.0
    %5136 = vmatprep.subr.mxu0 0.0
    %5137 = vmatpush1.msra.mxu0 0.0
    %5138 = vmatprep.subr.mxu0 0.0
    %5139 = vmatpush1.msra.mxu0 0.0
    %5140 = vmatprep.subr.mxu0 0.0
    %5141 = vmatpush1.msra.mxu0 0.0
    %5142 = vmatprep.subr.mxu0 0.0
    %5143 = vmatpush1.msra.mxu0 0.0
    %5144 = vmatprep.subr.mxu0 0.0
    %5145 = vmatpush1.msra.mxu0 0.0
    %5146 = vmatprep.subr.mxu0 0.0
    %5147 = vmatpush1.msra.mxu0 0.0
    %5148 = vmatprep.subr.mxu0 0.0
    %5149 = vmatpush1.msra.mxu0 0.0
    %5150 = vmatprep.subr.mxu0 0.0
    %5151 = vmatpush1.msra.mxu0 0.0
    %5152 = vmatprep.subr.mxu0 0.0
    %5153 = vmatpush1.msra.mxu0 0.0
    %5154 = vmatprep.subr.mxu0 0.0
    %5155 = vmatpush1.msra.mxu0 0.0
    %5156 = vmatprep.subr.mxu0 0.0
    %5157 = vmatpush1.msra.mxu0 0.0
    %5158 = vmatprep.subr.mxu0 0.0
    %5159 = vmatpush1.msra.mxu0 0.0
    %5160 = vmatprep.subr.mxu0 0.0
    %5161 = vmatpush1.msra.mxu0 0.0
    %5162 = vmatprep.subr.mxu0 0.0
    %5163 = vmatpush1.msra.mxu0 0.0
    %5164 = vmatprep.subr.mxu0 0.0
    %5165 = vmatpush1.msra.mxu0 0.0
    %5166 = vmatprep.subr.mxu0 0.0
    %5167 = vmatpush1.msra.mxu0 0.0
    %5168 = vmatprep.subr.mxu0 0.0
    %5169 = vmatpush1.msra.mxu0 0.0
    %5170 = vmatprep.subr.mxu0 0.0
    %5171 = vmatpush1.msra.mxu0 0.0
    %5172 = vmatprep.subr.mxu0 0.0
    %5173 = vmatpush1.msra.mxu0 0.0
    %5174 = vmatprep.subr.mxu0 0.0
    %5175 = vmatpush1.msra.mxu0 0.0
    %5176 = vmatprep.subr.mxu0 0.0
    %5177 = vmatpush1.msra.mxu0 0.0
    %5178 = vmatprep.subr.mxu0 0.0
    %5179 = vmatpush1.msra.mxu0 0.0
    %5180 = vmatprep.subr.mxu0 0.0
    %5181 = vmatpush1.msra.mxu0 0.0
    %5182 = vmatprep.subr.mxu0 0.0
    %5183 = vmatpush1.msra.mxu0 0.0
    %5184 = vmatprep.subr.mxu0 0.0
    %5185 = vmatpush1.msra.mxu0 0.0
    %5186 = vmatprep.subr.mxu0 0.0
    %5187 = vmatpush1.msra.mxu0 0.0
    %5188 = vmatprep.subr.mxu0 0.0
    %5189 = vmatpush1.msra.mxu0 0.0
    %5190 = vmatprep.subr.mxu0 0.0
    %5191 = vmatpush1.msra.mxu0 0.0
    %5192 = vmatprep.mubr.f32.mxu0 0.0
    %5193 = vmatmul.mubr.f32.gmra.mrb[0].mxu0 %v5126
    %v5194 = vpop.f32.mrb[0].mxu0
    %v5195 = vadd.f32 0.0, %v5194
    %v5196 = vpop.f32.mrb[0].mxu0
    %5197 = vdwg.mxu0
    %5198 = vrot.lane.b32.xlu0 %v392, 64
    %v5199 = vpop.permute.xlu0 %5198
    %v5202 = vsel %vm405, %v3216, 0
    %5204 = vmatprep.subr.mxu0 0.0
    %5205 = vmatpush1.msra.mxu0 %v5199
    %5206 = vmatprep.subr.mxu0 0.0
    %5207 = vmatpush1.msra.mxu0 0.0
    %5208 = vmatprep.subr.mxu0 0.0
    %5209 = vmatpush1.msra.mxu0 0.0
    %5210 = vmatprep.subr.mxu0 0.0
    %5211 = vmatpush1.msra.mxu0 0.0
    %5212 = vmatprep.subr.mxu0 0.0
    %5213 = vmatpush1.msra.mxu0 0.0
    %5214 = vmatprep.subr.mxu0 0.0
    %5215 = vmatpush1.msra.mxu0 0.0
    %5216 = vmatprep.subr.mxu0 0.0
    %5217 = vmatpush1.msra.mxu0 0.0
    %5218 = vmatprep.subr.mxu0 0.0
    %5219 = vmatpush1.msra.mxu0 0.0
    %5220 = vmatprep.subr.mxu0 0.0
    %5221 = vmatpush1.msra.mxu0 0.0
    %5222 = vmatprep.subr.mxu0 0.0
    %5223 = vmatpush1.msra.mxu0 0.0
    %5224 = vmatprep.subr.mxu0 0.0
    %5225 = vmatpush1.msra.mxu0 0.0
    %5226 = vmatprep.subr.mxu0 0.0
    %5227 = vmatpush1.msra.mxu0 0.0
    %5228 = vmatprep.subr.mxu0 0.0
    %5229 = vmatpush1.msra.mxu0 0.0
    %5230 = vmatprep.subr.mxu0 0.0
    %5231 = vmatpush1.msra.mxu0 0.0
    %5232 = vmatprep.subr.mxu0 0.0
    %5233 = vmatpush1.msra.mxu0 0.0
    %5234 = vmatprep.subr.mxu0 0.0
    %5235 = vmatpush1.msra.mxu0 0.0
    %5236 = vmatprep.subr.mxu0 0.0
    %5237 = vmatpush1.msra.mxu0 0.0
    %5238 = vmatprep.subr.mxu0 0.0
    %5239 = vmatpush1.msra.mxu0 0.0
    %5240 = vmatprep.subr.mxu0 0.0
    %5241 = vmatpush1.msra.mxu0 0.0
    %5242 = vmatprep.subr.mxu0 0.0
    %5243 = vmatpush1.msra.mxu0 0.0
    %5244 = vmatprep.subr.mxu0 0.0
    %5245 = vmatpush1.msra.mxu0 0.0
    %5246 = vmatprep.subr.mxu0 0.0
    %5247 = vmatpush1.msra.mxu0 0.0
    %5248 = vmatprep.subr.mxu0 0.0
    %5249 = vmatpush1.msra.mxu0 0.0
    %5250 = vmatprep.subr.mxu0 0.0
    %5251 = vmatpush1.msra.mxu0 0.0
    %5252 = vmatprep.subr.mxu0 0.0
    %5253 = vmatpush1.msra.mxu0 0.0
    %5254 = vmatprep.subr.mxu0 0.0
    %5255 = vmatpush1.msra.mxu0 0.0
    %5256 = vmatprep.subr.mxu0 0.0
    %5257 = vmatpush1.msra.mxu0 0.0
    %5258 = vmatprep.subr.mxu0 0.0
    %5259 = vmatpush1.msra.mxu0 0.0
    %5260 = vmatprep.subr.mxu0 0.0
    %5261 = vmatpush1.msra.mxu0 0.0
    %5262 = vmatprep.subr.mxu0 0.0
    %5263 = vmatpush1.msra.mxu0 0.0
    %5264 = vmatprep.subr.mxu0 0.0
    %5265 = vmatpush1.msra.mxu0 0.0
    %5266 = vmatprep.subr.mxu0 0.0
    %5267 = vmatpush1.msra.mxu0 0.0
    %5268 = vmatprep.mubr.f32.mxu0 0.0
    %5269 = vmatmul.mubr.f32.gmra.mrb[0].mxu0 %v5202
    %v5270 = vpop.f32.mrb[0].mxu0
    %v5271 = vadd.f32 0.0, %v5270
    %v5272 = vpop.f32.mrb[0].mxu0
    %5273 = vdwg.mxu0
    %5274 = vrot.lane.b32.xlu0 %v394, 64
    %v5275 = vpop.permute.xlu0 %5274
    %v5278 = vsel %vm405, %v3217, 0
    %5280 = vmatprep.subr.mxu0 0.0
    %5281 = vmatpush1.msra.mxu0 %v5275
    %5282 = vmatprep.subr.mxu0 0.0
    %5283 = vmatpush1.msra.mxu0 0.0
    %5284 = vmatprep.subr.mxu0 0.0
    %5285 = vmatpush1.msra.mxu0 0.0
    %5286 = vmatprep.subr.mxu0 0.0
    %5287 = vmatpush1.msra.mxu0 0.0
    %5288 = vmatprep.subr.mxu0 0.0
    %5289 = vmatpush1.msra.mxu0 0.0
    %5290 = vmatprep.subr.mxu0 0.0
    %5291 = vmatpush1.msra.mxu0 0.0
    %5292 = vmatprep.subr.mxu0 0.0
    %5293 = vmatpush1.msra.mxu0 0.0
    %5294 = vmatprep.subr.mxu0 0.0
    %5295 = vmatpush1.msra.mxu0 0.0
    %5296 = vmatprep.subr.mxu0 0.0
    %5297 = vmatpush1.msra.mxu0 0.0
    %5298 = vmatprep.subr.mxu0 0.0
    %5299 = vmatpush1.msra.mxu0 0.0
    %5300 = vmatprep.subr.mxu0 0.0
    %5301 = vmatpush1.msra.mxu0 0.0
    %5302 = vmatprep.subr.mxu0 0.0
    %5303 = vmatpush1.msra.mxu0 0.0
    %5304 = vmatprep.subr.mxu0 0.0
    %5305 = vmatpush1.msra.mxu0 0.0
    %5306 = vmatprep.subr.mxu0 0.0
    %5307 = vmatpush1.msra.mxu0 0.0
    %5308 = vmatprep.subr.mxu0 0.0
    %5309 = vmatpush1.msra.mxu0 0.0
    %5310 = vmatprep.subr.mxu0 0.0
    %5311 = vmatpush1.msra.mxu0 0.0
    %5312 = vmatprep.subr.mxu0 0.0
    %5313 = vmatpush1.msra.mxu0 0.0
    %5314 = vmatprep.subr.mxu0 0.0
    %5315 = vmatpush1.msra.mxu0 0.0
    %5316 = vmatprep.subr.mxu0 0.0
    %5317 = vmatpush1.msra.mxu0 0.0
    %5318 = vmatprep.subr.mxu0 0.0
    %5319 = vmatpush1.msra.mxu0 0.0
    %5320 = vmatprep.subr.mxu0 0.0
    %5321 = vmatpush1.msra.mxu0 0.0
    %5322 = vmatprep.subr.mxu0 0.0
    %5323 = vmatpush1.msra.mxu0 0.0
    %5324 = vmatprep.subr.mxu0 0.0
    %5325 = vmatpush1.msra.mxu0 0.0
    %5326 = vmatprep.subr.mxu0 0.0
    %5327 = vmatpush1.msra.mxu0 0.0
    %5328 = vmatprep.subr.mxu0 0.0
    %5329 = vmatpush1.msra.mxu0 0.0
    %5330 = vmatprep.subr.mxu0 0.0
    %5331 = vmatpush1.msra.mxu0 0.0
    %5332 = vmatprep.subr.mxu0 0.0
    %5333 = vmatpush1.msra.mxu0 0.0
    %5334 = vmatprep.subr.mxu0 0.0
    %5335 = vmatpush1.msra.mxu0 0.0
    %5336 = vmatprep.subr.mxu0 0.0
    %5337 = vmatpush1.msra.mxu0 0.0
    %5338 = vmatprep.subr.mxu0 0.0
    %5339 = vmatpush1.msra.mxu0 0.0
    %5340 = vmatprep.subr.mxu0 0.0
    %5341 = vmatpush1.msra.mxu0 0.0
    %5342 = vmatprep.subr.mxu0 0.0
    %5343 = vmatpush1.msra.mxu0 0.0
    %5344 = vmatprep.mubr.f32.mxu0 0.0
    %5345 = vmatmul.mubr.f32.gmra.mrb[0].mxu0 %v5278
    %v5346 = vpop.f32.mrb[0].mxu0
    %v5347 = vadd.f32 0.0, %v5346
    %v5348 = vpop.f32.mrb[0].mxu0
    %5349 = vdwg.mxu0
    %5350 = vrot.lane.b32.xlu0 %v396, 64
    %v5351 = vpop.permute.xlu0 %5350
    %v5354 = vsel %vm405, %v3218, 0
    %5356 = vmatprep.subr.mxu0 0.0
    %5357 = vmatpush1.msra.mxu0 %v5351
    %5358 = vmatprep.subr.mxu0 0.0
    %5359 = vmatpush1.msra.mxu0 0.0
    %5360 = vmatprep.subr.mxu0 0.0
    %5361 = vmatpush1.msra.mxu0 0.0
    %5362 = vmatprep.subr.mxu0 0.0
    %5363 = vmatpush1.msra.mxu0 0.0
    %5364 = vmatprep.subr.mxu0 0.0
    %5365 = vmatpush1.msra.mxu0 0.0
    %5366 = vmatprep.subr.mxu0 0.0
    %5367 = vmatpush1.msra.mxu0 0.0
    %5368 = vmatprep.subr.mxu0 0.0
    %5369 = vmatpush1.msra.mxu0 0.0
    %5370 = vmatprep.subr.mxu0 0.0
    %5371 = vmatpush1.msra.mxu0 0.0
    %5372 = vmatprep.subr.mxu0 0.0
    %5373 = vmatpush1.msra.mxu0 0.0
    %5374 = vmatprep.subr.mxu0 0.0
    %5375 = vmatpush1.msra.mxu0 0.0
    %5376 = vmatprep.subr.mxu0 0.0
    %5377 = vmatpush1.msra.mxu0 0.0
    %5378 = vmatprep.subr.mxu0 0.0
    %5379 = vmatpush1.msra.mxu0 0.0
    %5380 = vmatprep.subr.mxu0 0.0
    %5381 = vmatpush1.msra.mxu0 0.0
    %5382 = vmatprep.subr.mxu0 0.0
    %5383 = vmatpush1.msra.mxu0 0.0
    %5384 = vmatprep.subr.mxu0 0.0
    %5385 = vmatpush1.msra.mxu0 0.0
    %5386 = vmatprep.subr.mxu0 0.0
    %5387 = vmatpush1.msra.mxu0 0.0
    %5388 = vmatprep.subr.mxu0 0.0
    %5389 = vmatpush1.msra.mxu0 0.0
    %5390 = vmatprep.subr.mxu0 0.0
    %5391 = vmatpush1.msra.mxu0 0.0
    %5392 = vmatprep.subr.mxu0 0.0
    %5393 = vmatpush1.msra.mxu0 0.0
    %5394 = vmatprep.subr.mxu0 0.0
    %5395 = vmatpush1.msra.mxu0 0.0
    %5396 = vmatprep.subr.mxu0 0.0
    %5397 = vmatpush1.msra.mxu0 0.0
    %5398 = vmatprep.subr.mxu0 0.0
    %5399 = vmatpush1.msra.mxu0 0.0
    %5400 = vmatprep.subr.mxu0 0.0
    %5401 = vmatpush1.msra.mxu0 0.0
    %5402 = vmatprep.subr.mxu0 0.0
    %5403 = vmatpush1.msra.mxu0 0.0
    %5404 = vmatprep.subr.mxu0 0.0
    %5405 = vmatpush1.msra.mxu0 0.0
    %5406 = vmatprep.subr.mxu0 0.0
    %5407 = vmatpush1.msra.mxu0 0.0
    %5408 = vmatprep.subr.mxu0 0.0
    %5409 = vmatpush1.msra.mxu0 0.0
    %5410 = vmatprep.subr.mxu0 0.0
    %5411 = vmatpush1.msra.mxu0 0.0
    %5412 = vmatprep.subr.mxu0 0.0
    %5413 = vmatpush1.msra.mxu0 0.0
    %5414 = vmatprep.subr.mxu0 0.0
    %5415 = vmatpush1.msra.mxu0 0.0
    %5416 = vmatprep.subr.mxu0 0.0
    %5417 = vmatpush1.msra.mxu0 0.0
    %5418 = vmatprep.subr.mxu0 0.0
    %5419 = vmatpush1.msra.mxu0 0.0
    %5420 = vmatprep.mubr.f32.mxu0 0.0
    %5421 = vmatmul.mubr.f32.gmra.mrb[0].mxu0 %v5354
    %v5422 = vpop.f32.mrb[0].mxu0
    %v5423 = vadd.f32 0.0, %v5422
    %v5424 = vpop.f32.mrb[0].mxu0
    %5425 = vdwg.mxu0
    %5426 = vrot.lane.b32.xlu0 %v398, 64
    %v5427 = vpop.permute.xlu0 %5426
    %v5430 = vsel %vm405, %v3219, 0
    %5432 = vmatprep.subr.mxu0 0.0
    %5433 = vmatpush1.msra.mxu0 %v5427
    %5434 = vmatprep.subr.mxu0 0.0
    %5435 = vmatpush1.msra.mxu0 0.0
    %5436 = vmatprep.subr.mxu0 0.0
    %5437 = vmatpush1.msra.mxu0 0.0
    %5438 = vmatprep.subr.mxu0 0.0
    %5439 = vmatpush1.msra.mxu0 0.0
    %5440 = vmatprep.subr.mxu0 0.0
    %5441 = vmatpush1.msra.mxu0 0.0
    %5442 = vmatprep.subr.mxu0 0.0
    %5443 = vmatpush1.msra.mxu0 0.0
    %5444 = vmatprep.subr.mxu0 0.0
    %5445 = vmatpush1.msra.mxu0 0.0
    %5446 = vmatprep.subr.mxu0 0.0
    %5447 = vmatpush1.msra.mxu0 0.0
    %5448 = vmatprep.subr.mxu0 0.0
    %5449 = vmatpush1.msra.mxu0 0.0
    %5450 = vmatprep.subr.mxu0 0.0
    %5451 = vmatpush1.msra.mxu0 0.0
    %5452 = vmatprep.subr.mxu0 0.0
    %5453 = vmatpush1.msra.mxu0 0.0
    %5454 = vmatprep.subr.mxu0 0.0
    %5455 = vmatpush1.msra.mxu0 0.0
    %5456 = vmatprep.subr.mxu0 0.0
    %5457 = vmatpush1.msra.mxu0 0.0
    %5458 = vmatprep.subr.mxu0 0.0
    %5459 = vmatpush1.msra.mxu0 0.0
    %5460 = vmatprep.subr.mxu0 0.0
    %5461 = vmatpush1.msra.mxu0 0.0
    %5462 = vmatprep.subr.mxu0 0.0
    %5463 = vmatpush1.msra.mxu0 0.0
    %5464 = vmatprep.subr.mxu0 0.0
    %5465 = vmatpush1.msra.mxu0 0.0
    %5466 = vmatprep.subr.mxu0 0.0
    %5467 = vmatpush1.msra.mxu0 0.0
    %5468 = vmatprep.subr.mxu0 0.0
    %5469 = vmatpush1.msra.mxu0 0.0
    %5470 = vmatprep.subr.mxu0 0.0
    %5471 = vmatpush1.msra.mxu0 0.0
    %5472 = vmatprep.subr.mxu0 0.0
    %5473 = vmatpush1.msra.mxu0 0.0
    %5474 = vmatprep.subr.mxu0 0.0
    %5475 = vmatpush1.msra.mxu0 0.0
    %5476 = vmatprep.subr.mxu0 0.0
    %5477 = vmatpush1.msra.mxu0 0.0
    %5478 = vmatprep.subr.mxu0 0.0
    %5479 = vmatpush1.msra.mxu0 0.0
    %5480 = vmatprep.subr.mxu0 0.0
    %5481 = vmatpush1.msra.mxu0 0.0
    %5482 = vmatprep.subr.mxu0 0.0
    %5483 = vmatpush1.msra.mxu0 0.0
    %5484 = vmatprep.subr.mxu0 0.0
    %5485 = vmatpush1.msra.mxu0 0.0
    %5486 = vmatprep.subr.mxu0 0.0
    %5487 = vmatpush1.msra.mxu0 0.0
    %5488 = vmatprep.subr.mxu0 0.0
    %5489 = vmatpush1.msra.mxu0 0.0
    %5490 = vmatprep.subr.mxu0 0.0
    %5491 = vmatpush1.msra.mxu0 0.0
    %5492 = vmatprep.subr.mxu0 0.0
    %5493 = vmatpush1.msra.mxu0 0.0
    %5494 = vmatprep.subr.mxu0 0.0
    %5495 = vmatpush1.msra.mxu0 0.0
    %5496 = vmatprep.mubr.f32.mxu0 0.0
    %5497 = vmatmul.mubr.f32.gmra.mrb[0].mxu0 %v5430
    %v5498 = vpop.f32.mrb[0].mxu0
    %v5499 = vadd.f32 0.0, %v5498
    %v5500 = vpop.f32.mrb[0].mxu0
    %5501 = vdwg.mxu0
    %5502 = vrot.lane.b32.xlu0 %v400, 64
    %v5503 = vpop.permute.xlu0 %5502
    %v5506 = vsel %vm405, %v3220, 0
    %5508 = vmatprep.subr.mxu0 0.0
    %5509 = vmatpush1.msra.mxu0 %v5503
    %5510 = vmatprep.subr.mxu0 0.0
    %5511 = vmatpush1.msra.mxu0 0.0
    %5512 = vmatprep.subr.mxu0 0.0
    %5513 = vmatpush1.msra.mxu0 0.0
    %5514 = vmatprep.subr.mxu0 0.0
    %5515 = vmatpush1.msra.mxu0 0.0
    %5516 = vmatprep.subr.mxu0 0.0
    %5517 = vmatpush1.msra.mxu0 0.0
    %5518 = vmatprep.subr.mxu0 0.0
    %5519 = vmatpush1.msra.mxu0 0.0
    %5520 = vmatprep.subr.mxu0 0.0
    %5521 = vmatpush1.msra.mxu0 0.0
    %5522 = vmatprep.subr.mxu0 0.0
    %5523 = vmatpush1.msra.mxu0 0.0
    %5524 = vmatprep.subr.mxu0 0.0
    %5525 = vmatpush1.msra.mxu0 0.0
    %5526 = vmatprep.subr.mxu0 0.0
    %5527 = vmatpush1.msra.mxu0 0.0
    %5528 = vmatprep.subr.mxu0 0.0
    %5529 = vmatpush1.msra.mxu0 0.0
    %5530 = vmatprep.subr.mxu0 0.0
    %5531 = vmatpush1.msra.mxu0 0.0
    %5532 = vmatprep.subr.mxu0 0.0
    %5533 = vmatpush1.msra.mxu0 0.0
    %5534 = vmatprep.subr.mxu0 0.0
    %5535 = vmatpush1.msra.mxu0 0.0
    %5536 = vmatprep.subr.mxu0 0.0
    %5537 = vmatpush1.msra.mxu0 0.0
    %5538 = vmatprep.subr.mxu0 0.0
    %5539 = vmatpush1.msra.mxu0 0.0
    %5540 = vmatprep.subr.mxu0 0.0
    %5541 = vmatpush1.msra.mxu0 0.0
    %5542 = vmatprep.subr.mxu0 0.0
    %5543 = vmatpush1.msra.mxu0 0.0
    %5544 = vmatprep.subr.mxu0 0.0
    %5545 = vmatpush1.msra.mxu0 0.0
    %5546 = vmatprep.subr.mxu0 0.0
    %5547 = vmatpush1.msra.mxu0 0.0
    %5548 = vmatprep.subr.mxu0 0.0
    %5549 = vmatpush1.msra.mxu0 0.0
    %5550 = vmatprep.subr.mxu0 0.0
    %5551 = vmatpush1.msra.mxu0 0.0
    %5552 = vmatprep.subr.mxu0 0.0
    %5553 = vmatpush1.msra.mxu0 0.0
    %5554 = vmatprep.subr.mxu0 0.0
    %5555 = vmatpush1.msra.mxu0 0.0
    %5556 = vmatprep.subr.mxu0 0.0
    %5557 = vmatpush1.msra.mxu0 0.0
    %5558 = vmatprep.subr.mxu0 0.0
    %5559 = vmatpush1.msra.mxu0 0.0
    %5560 = vmatprep.subr.mxu0 0.0
    %5561 = vmatpush1.msra.mxu0 0.0
    %5562 = vmatprep.subr.mxu0 0.0
    %5563 = vmatpush1.msra.mxu0 0.0
    %5564 = vmatprep.subr.mxu0 0.0
    %5565 = vmatpush1.msra.mxu0 0.0
    %5566 = vmatprep.subr.mxu0 0.0
    %5567 = vmatpush1.msra.mxu0 0.0
    %5568 = vmatprep.subr.mxu0 0.0
    %5569 = vmatpush1.msra.mxu0 0.0
    %5570 = vmatprep.subr.mxu0 0.0
    %5571 = vmatpush1.msra.mxu0 0.0
    %5572 = vmatprep.mubr.f32.mxu0 0.0
    %5573 = vmatmul.mubr.f32.gmra.mrb[0].mxu0 %v5506
    %v5574 = vpop.f32.mrb[0].mxu0
    %v5575 = vadd.f32 0.0, %v5574
    %v5576 = vpop.f32.mrb[0].mxu0
    %5577 = vdwg.mxu0
    %5578 = vrot.lane.b32.xlu0 %v402, 64
    %v5579 = vpop.permute.xlu0 %5578
    %v5582 = vsel %vm405, %v3221, 0
    %5584 = vmatprep.subr.mxu0 0.0
    %5585 = vmatpush1.msra.mxu0 %v5579
    %5586 = vmatprep.subr.mxu0 0.0
    %5587 = vmatpush1.msra.mxu0 0.0
    %5588 = vmatprep.subr.mxu0 0.0
    %5589 = vmatpush1.msra.mxu0 0.0
    %5590 = vmatprep.subr.mxu0 0.0
    %5591 = vmatpush1.msra.mxu0 0.0
    %5592 = vmatprep.subr.mxu0 0.0
    %5593 = vmatpush1.msra.mxu0 0.0
    %5594 = vmatprep.subr.mxu0 0.0
    %5595 = vmatpush1.msra.mxu0 0.0
    %5596 = vmatprep.subr.mxu0 0.0
    %5597 = vmatpush1.msra.mxu0 0.0
    %5598 = vmatprep.subr.mxu0 0.0
    %5599 = vmatpush1.msra.mxu0 0.0
    %5600 = vmatprep.subr.mxu0 0.0
    %5601 = vmatpush1.msra.mxu0 0.0
    %5602 = vmatprep.subr.mxu0 0.0
    %5603 = vmatpush1.msra.mxu0 0.0
    %5604 = vmatprep.subr.mxu0 0.0
    %5605 = vmatpush1.msra.mxu0 0.0
    %5606 = vmatprep.subr.mxu0 0.0
    %5607 = vmatpush1.msra.mxu0 0.0
    %5608 = vmatprep.subr.mxu0 0.0
    %5609 = vmatpush1.msra.mxu0 0.0
    %5610 = vmatprep.subr.mxu0 0.0
    %5611 = vmatpush1.msra.mxu0 0.0
    %5612 = vmatprep.subr.mxu0 0.0
    %5613 = vmatpush1.msra.mxu0 0.0
    %5614 = vmatprep.subr.mxu0 0.0
    %5615 = vmatpush1.msra.mxu0 0.0
    %5616 = vmatprep.subr.mxu0 0.0
    %5617 = vmatpush1.msra.mxu0 0.0
    %5618 = vmatprep.subr.mxu0 0.0
    %5619 = vmatpush1.msra.mxu0 0.0
    %5620 = vmatprep.subr.mxu0 0.0
    %5621 = vmatpush1.msra.mxu0 0.0
    %5622 = vmatprep.subr.mxu0 0.0
    %5623 = vmatpush1.msra.mxu0 0.0
    %5624 = vmatprep.subr.mxu0 0.0
    %5625 = vmatpush1.msra.mxu0 0.0
    %5626 = vmatprep.subr.mxu0 0.0
    %5627 = vmatpush1.msra.mxu0 0.0
    %5628 = vmatprep.subr.mxu0 0.0
    %5629 = vmatpush1.msra.mxu0 0.0
    %5630 = vmatprep.subr.mxu0 0.0
    %5631 = vmatpush1.msra.mxu0 0.0
    %5632 = vmatprep.subr.mxu0 0.0
    %5633 = vmatpush1.msra.mxu0 0.0
    %5634 = vmatprep.subr.mxu0 0.0
    %5635 = vmatpush1.msra.mxu0 0.0
    %5636 = vmatprep.subr.mxu0 0.0
    %5637 = vmatpush1.msra.mxu0 0.0
    %5638 = vmatprep.subr.mxu0 0.0
    %5639 = vmatpush1.msra.mxu0 0.0
    %5640 = vmatprep.subr.mxu0 0.0
    %5641 = vmatpush1.msra.mxu0 0.0
    %5642 = vmatprep.subr.mxu0 0.0
    %5643 = vmatpush1.msra.mxu0 0.0
    %5644 = vmatprep.subr.mxu0 0.0
    %5645 = vmatpush1.msra.mxu0 0.0
    %5646 = vmatprep.subr.mxu0 0.0
    %5647 = vmatpush1.msra.mxu0 0.0
    %5648 = vmatprep.mubr.f32.mxu0 0.0
    %5649 = vmatmul.mubr.f32.gmra.mrb[0].mxu0 %v5582
    %v5650 = vpop.f32.mrb[0].mxu0
    %v5651 = vadd.f32 0.0, %v5650
    %v5652 = vpop.f32.mrb[0].mxu0
    %5653 = vdwg.mxu0
    %5662 = vrot.lane.b32.xlu0 %v3903, 8
    %v5663 = vpop.permute.xlu0 %5662
    %5664 = vrot.lane.b32.xlu0 %v3979, 8
    %v5665 = vpop.permute.xlu0 %5664
    %5666 = vrot.lane.b32.xlu0 %v4055, 8
    %v5667 = vpop.permute.xlu0 %5666
    %5668 = vrot.lane.b32.xlu0 %v4131, 8
    %v5669 = vpop.permute.xlu0 %5668
    %5670 = vrot.lane.b32.xlu0 %v4207, 8
    %v5671 = vpop.permute.xlu0 %5670
    %5672 = vrot.lane.b32.xlu0 %v4283, 8
    %v5673 = vpop.permute.xlu0 %5672
    %5674 = vrot.lane.b32.xlu0 %v4359, 8
    %v5675 = vpop.permute.xlu0 %5674
    %5676 = vrot.lane.b32.xlu0 %v4435, 8
    %v5677 = vpop.permute.xlu0 %5676
    %5694 = vrot.lane.b32.xlu0 %v4511, 16
    %v5695 = vpop.permute.xlu0 %5694
    %5696 = vrot.lane.b32.xlu0 %v4587, 16
    %v5697 = vpop.permute.xlu0 %5696
    %5698 = vrot.lane.b32.xlu0 %v4663, 16
    %v5699 = vpop.permute.xlu0 %5698
    %5700 = vrot.lane.b32.xlu0 %v4739, 16
    %v5701 = vpop.permute.xlu0 %5700
    %5702 = vrot.lane.b32.xlu0 %v4815, 16
    %v5703 = vpop.permute.xlu0 %5702
    %5704 = vrot.lane.b32.xlu0 %v4891, 16
    %v5705 = vpop.permute.xlu0 %5704
    %5706 = vrot.lane.b32.xlu0 %v4967, 16
    %v5707 = vpop.permute.xlu0 %5706
    %5708 = vrot.lane.b32.xlu0 %v5043, 16
    %v5709 = vpop.permute.xlu0 %5708
    %5726 = vrot.lane.b32.xlu0 %v5119, 24
    %v5727 = vpop.permute.xlu0 %5726
    %5728 = vrot.lane.b32.xlu0 %v5195, 24
    %v5729 = vpop.permute.xlu0 %5728
    %5730 = vrot.lane.b32.xlu0 %v5271, 24
    %v5731 = vpop.permute.xlu0 %5730
    %5732 = vrot.lane.b32.xlu0 %v5347, 24
    %v5733 = vpop.permute.xlu0 %5732
    %5734 = vrot.lane.b32.xlu0 %v5423, 24
    %v5735 = vpop.permute.xlu0 %5734
    %5736 = vrot.lane.b32.xlu0 %v5499, 24
    %v5737 = vpop.permute.xlu0 %5736
    %5738 = vrot.lane.b32.xlu0 %v5575, 24
    %v5739 = vpop.permute.xlu0 %5738
    %5740 = vrot.lane.b32.xlu0 %v5651, 24
    %v5741 = vpop.permute.xlu0 %5740
    %v5750 = vsel %vm405, %v3295, %v5663
    %v5751 = vsel %vm405, %v3371, %v5665
    %v5752 = vsel %vm405, %v3447, %v5667
    %v5753 = vsel %vm405, %v3523, %v5669
    %v5754 = vsel %vm405, %v3599, %v5671
    %v5755 = vsel %vm405, %v3675, %v5673
    %v5756 = vsel %vm405, %v3751, %v5675
    %v5757 = vsel %vm405, %v3827, %v5677
    %vm5758 = vcmask 130048
    %v5759 = vsel %vm5758, %v5750, %v5695
    %v5760 = vsel %vm5758, %v5751, %v5697
    %v5761 = vsel %vm5758, %v5752, %v5699
    %v5762 = vsel %vm5758, %v5753, %v5701
    %v5763 = vsel %vm5758, %v5754, %v5703
    %v5764 = vsel %vm5758, %v5755, %v5705
    %v5765 = vsel %vm5758, %v5756, %v5707
    %v5766 = vsel %vm5758, %v5757, %v5709
    %vm5767 = vcmask 195584
    %v5768 = vsel %vm5767, %v5759, %v5727
    %v5769 = vsel %vm5767, %v5760, %v5729
    %v5770 = vsel %vm5767, %v5761, %v5731
    %v5771 = vsel %vm5767, %v5762, %v5733
    %v5772 = vsel %vm5767, %v5763, %v5735
    %v5773 = vsel %vm5767, %v5764, %v5737
    %v5774 = vsel %vm5767, %v5765, %v5739
    %v5775 = vsel %vm5767, %v5766, %v5741
    %v5776 = vld [vmem:[#allocation5] sm:$0xff]
    %v5777 = vld [vmem:[#allocation5 + $0x10] sm:$0xff]
    %v5778 = vld [vmem:[#allocation5 + $0x20] sm:$0xff]
    %v5779 = vld [vmem:[#allocation5 + $0x30] sm:$0xff]
    %v5780 = vlaneseq
    %v5781 = vshrl.u32 %v5780, 7
    %v5782 = vsub.s32 0, %v5781
    %v5783 = vrot.slane %v80, %v5782
    %5788 = vrot.lane.b32.xlu0 %v5776, 32
    %v5789 = vpop.permute.xlu0 %5788
    %5790 = vrot.lane.b32.xlu0 %v5777, 32
    %v5791 = vpop.permute.xlu0 %5790
    %5792 = vrot.lane.b32.xlu0 %v5778, 32
    %v5793 = vpop.permute.xlu0 %5792
    %5794 = vrot.lane.b32.xlu0 %v5779, 32
    %v5795 = vpop.permute.xlu0 %5794
    %v5801 = vsel %vm83, %v5768, 0
    %v5804 = vsel %vm83, %v5769, 0
    %v5807 = vsel %vm83, %v5770, 0
    %v5810 = vsel %vm83, %v5771, 0
    %v5813 = vsel %vm83, %v5772, 0
    %v5816 = vsel %vm83, %v5773, 0
    %v5819 = vsel %vm83, %v5774, 0
    %v5822 = vsel %vm83, %v5775, 0
    %5824 = vmatprep.subr.mxu0 0.0
    %5825 = vmatpush1.msra.mxu0 %v5789
    %5826 = vmatprep.subr.mxu0 0.0
    %5827 = vmatpush1.msra.mxu0 %v5791
    %5828 = vmatprep.subr.mxu0 0.0
    %5829 = vmatpush1.msra.mxu0 %v5793
    %5830 = vmatprep.subr.mxu0 0.0
    %5831 = vmatpush1.msra.mxu0 %v5795
    %5832 = vmatprep.subr.mxu0 0.0
    %5833 = vmatpush1.msra.mxu0 0.0
    %5834 = vmatprep.subr.mxu0 0.0
    %5835 = vmatpush1.msra.mxu0 0.0
    %5836 = vmatprep.subr.mxu0 0.0
    %5837 = vmatpush1.msra.mxu0 0.0
    %5838 = vmatprep.subr.mxu0 0.0
    %5839 = vmatpush1.msra.mxu0 0.0
    %5840 = vmatprep.subr.mxu0 0.0
    %5841 = vmatpush1.msra.mxu0 0.0
    %5842 = vmatprep.subr.mxu0 0.0
    %5843 = vmatpush1.msra.mxu0 0.0
    %5844 = vmatprep.subr.mxu0 0.0
    %5845 = vmatpush1.msra.mxu0 0.0
    %5846 = vmatprep.subr.mxu0 0.0
    %5847 = vmatpush1.msra.mxu0 0.0
    %5848 = vmatprep.subr.mxu0 0.0
    %5849 = vmatpush1.msra.mxu0 0.0
    %5850 = vmatprep.subr.mxu0 0.0
    %5851 = vmatpush1.msra.mxu0 0.0
    %5852 = vmatprep.subr.mxu0 0.0
    %5853 = vmatpush1.msra.mxu0 0.0
    %5854 = vmatprep.subr.mxu0 0.0
    %5855 = vmatpush1.msra.mxu0 0.0
    %5856 = vmatprep.subr.mxu0 0.0
    %5857 = vmatpush1.msra.mxu0 0.0
    %5858 = vmatprep.subr.mxu0 0.0
    %5859 = vmatpush1.msra.mxu0 0.0
    %5860 = vmatprep.subr.mxu0 0.0
    %5861 = vmatpush1.msra.mxu0 0.0
    %5862 = vmatprep.subr.mxu0 0.0
    %5863 = vmatpush1.msra.mxu0 0.0
    %5864 = vmatprep.subr.mxu0 0.0
    %5865 = vmatpush1.msra.mxu0 0.0
    %5866 = vmatprep.subr.mxu0 0.0
    %5867 = vmatpush1.msra.mxu0 0.0
    %5868 = vmatprep.subr.mxu0 0.0
    %5869 = vmatpush1.msra.mxu0 0.0
    %5870 = vmatprep.subr.mxu0 0.0
    %5871 = vmatpush1.msra.mxu0 0.0
    %5872 = vmatprep.subr.mxu0 0.0
    %5873 = vmatpush1.msra.mxu0 0.0
    %5874 = vmatprep.subr.mxu0 0.0
    %5875 = vmatpush1.msra.mxu0 0.0
    %5876 = vmatprep.subr.mxu0 0.0
    %5877 = vmatpush1.msra.mxu0 0.0
    %5878 = vmatprep.subr.mxu0 0.0
    %5879 = vmatpush1.msra.mxu0 0.0
    %5880 = vmatprep.subr.mxu0 0.0
    %5881 = vmatpush1.msra.mxu0 0.0
    %5882 = vmatprep.subr.mxu0 0.0
    %5883 = vmatpush1.msra.mxu0 0.0
    %5884 = vmatprep.subr.mxu0 0.0
    %5885 = vmatpush1.msra.mxu0 0.0
    %5886 = vmatprep.subr.mxu0 0.0
    %5887 = vmatpush1.msra.mxu0 0.0
    %5888 = vmatprep.mubr.f32.mxu0 0.0
    %5889 = vmatmul.mubr.f32.gmra.mrb[0].mxu0 %v5801
    %v5890 = vpop.f32.mrb[0].mxu0
    %v5891 = vadd.f32 %v5783, %v5890
    %v5892 = vpop.f32.mrb[0].mxu0
    %5893 = vmatprep.mubr.f32.mxu0 0.0
    %5894 = vmatmul.mubr.f32.gmra.mrb[0].mxu0 %v5804
    %v5895 = vpop.f32.mrb[0].mxu0
    %v5896 = vadd.f32 %v5783, %v5895
    %v5897 = vpop.f32.mrb[0].mxu0
    %5898 = vmatprep.mubr.f32.mxu0 0.0
    %5899 = vmatmul.mubr.f32.gmra.mrb[0].mxu0 %v5807
    %v5900 = vpop.f32.mrb[0].mxu0
    %v5901 = vadd.f32 %v5783, %v5900
    %v5902 = vpop.f32.mrb[0].mxu0
    %5903 = vmatprep.mubr.f32.mxu0 0.0
    %5904 = vmatmul.mubr.f32.gmra.mrb[0].mxu0 %v5810
    %v5905 = vpop.f32.mrb[0].mxu0
    %v5906 = vadd.f32 %v5783, %v5905
    %v5907 = vpop.f32.mrb[0].mxu0
    %5908 = vmatprep.mubr.f32.mxu0 0.0
    %5909 = vmatmul.mubr.f32.gmra.mrb[0].mxu0 %v5813
    %v5910 = vpop.f32.mrb[0].mxu0
    %v5911 = vadd.f32 %v5783, %v5910
    %v5912 = vpop.f32.mrb[0].mxu0
    %5913 = vmatprep.mubr.f32.mxu0 0.0
    %5914 = vmatmul.mubr.f32.gmra.mrb[0].mxu0 %v5816
    %v5915 = vpop.f32.mrb[0].mxu0
    %v5916 = vadd.f32 %v5783, %v5915
    %v5917 = vpop.f32.mrb[0].mxu0
    %5918 = vmatprep.mubr.f32.mxu0 0.0
    %5919 = vmatmul.mubr.f32.gmra.mrb[0].mxu0 %v5819
    %v5920 = vpop.f32.mrb[0].mxu0
    %v5921 = vadd.f32 %v5783, %v5920
    %v5922 = vpop.f32.mrb[0].mxu0
    %5923 = vmatprep.mubr.f32.mxu0 0.0
    %5924 = vmatmul.mubr.f32.gmra.mrb[0].mxu0 %v5822
    %v5925 = vpop.f32.mrb[0].mxu0
    %v5926 = vadd.f32 %v5783, %v5925
    %v5927 = vpop.f32.mrb[0].mxu0
    %5928 = vdwg.mxu0
    %v5929 = vadd.f32 %v71, %v5891
    %v5930 = vadd.f32 %v72, %v5896
    %v5931 = vadd.f32 %v73, %v5901
    %v5932 = vadd.f32 %v74, %v5906
    %v5933 = vadd.f32 %v75, %v5911
    %v5934 = vadd.f32 %v76, %v5916
    %v5935 = vadd.f32 %v77, %v5921
    %v5936 = vadd.f32 %v78, %v5926
    %v5937 = vsel %vm83, %v5929, 0.0
    %5938 = vadd.xlane.f32.xlu0 %v5937
    %v5939 = vpop.xlane.xlu0 %5938
    %v5940 = vsel %vm83, %v5930, 0.0
    %5941 = vadd.xlane.f32.xlu0 %v5940
    %v5942 = vpop.xlane.xlu0 %5941
    %v5943 = vsel %vm83, %v5931, 0.0
    %5944 = vadd.xlane.f32.xlu0 %v5943
    %v5945 = vpop.xlane.xlu0 %5944
    %v5946 = vsel %vm83, %v5932, 0.0
    %5947 = vadd.xlane.f32.xlu0 %v5946
    %v5948 = vpop.xlane.xlu0 %5947
    %v5949 = vsel %vm83, %v5933, 0.0
    %5950 = vadd.xlane.f32.xlu0 %v5949
    %v5951 = vpop.xlane.xlu0 %5950
    %v5952 = vsel %vm83, %v5934, 0.0
    %5953 = vadd.xlane.f32.xlu0 %v5952
    %v5954 = vpop.xlane.xlu0 %5953
    %v5955 = vsel %vm83, %v5935, 0.0
    %5956 = vadd.xlane.f32.xlu0 %v5955
    %v5957 = vpop.xlane.xlu0 %5956
    %v5958 = vsel %vm83, %v5936, 0.0
    %5959 = vadd.xlane.f32.xlu0 %v5958
    %v5960 = vpop.xlane.xlu0 %5959
    %v5961 = vmul.f32 %v5939, %v108
    %v5962 = vmul.f32 %v5942, %v108
    %v5963 = vmul.f32 %v5945, %v108
    %v5964 = vmul.f32 %v5948, %v108
    %v5965 = vmul.f32 %v5951, %v108
    %v5966 = vmul.f32 %v5954, %v108
    %v5967 = vmul.f32 %v5957, %v108
    %v5968 = vmul.f32 %v5960, %v108
    %v5969 = vmul.f32 %v5929, %v5929
    %v5970 = vmul.f32 %v5930, %v5930
    %v5971 = vmul.f32 %v5931, %v5931
    %v5972 = vmul.f32 %v5932, %v5932
    %v5973 = vmul.f32 %v5933, %v5933
    %v5974 = vmul.f32 %v5934, %v5934
    %v5975 = vmul.f32 %v5935, %v5935
    %v5976 = vmul.f32 %v5936, %v5936
    %v5977 = vsel %vm83, %v5969, 0.0
    %5978 = vadd.xlane.f32.xlu0 %v5977
    %v5979 = vpop.xlane.xlu0 %5978
    %v5980 = vsel %vm83, %v5970, 0.0
    %5981 = vadd.xlane.f32.xlu0 %v5980
    %v5982 = vpop.xlane.xlu0 %5981
    %v5983 = vsel %vm83, %v5971, 0.0
    %5984 = vadd.xlane.f32.xlu0 %v5983
    %v5985 = vpop.xlane.xlu0 %5984
    %v5986 = vsel %vm83, %v5972, 0.0
    %5987 = vadd.xlane.f32.xlu0 %v5986
    %v5988 = vpop.xlane.xlu0 %5987
    %v5989 = vsel %vm83, %v5973, 0.0
    %5990 = vadd.xlane.f32.xlu0 %v5989
    %v5991 = vpop.xlane.xlu0 %5990
    %v5992 = vsel %vm83, %v5974, 0.0
    %5993 = vadd.xlane.f32.xlu0 %v5992
    %v5994 = vpop.xlane.xlu0 %5993
    %v5995 = vsel %vm83, %v5975, 0.0
    %5996 = vadd.xlane.f32.xlu0 %v5995
    %v5997 = vpop.xlane.xlu0 %5996
    %v5998 = vsel %vm83, %v5976, 0.0
    %5999 = vadd.xlane.f32.xlu0 %v5998
    %v6000 = vpop.xlane.xlu0 %5999
    %v6001 = vmul.f32 %v5979, %v108
    %v6002 = vmul.f32 %v5982, %v108
    %v6003 = vmul.f32 %v5985, %v108
    %v6004 = vmul.f32 %v5988, %v108
    %v6005 = vmul.f32 %v5991, %v108
    %v6006 = vmul.f32 %v5994, %v108
    %v6007 = vmul.f32 %v5997, %v108
    %v6008 = vmul.f32 %v6000, %v108
    %v6009 = vmul.f32 %v5961, %v5961
    %v6010 = vmul.f32 %v5962, %v5962
    %v6011 = vmul.f32 %v5963, %v5963
    %v6012 = vmul.f32 %v5964, %v5964
    %v6013 = vmul.f32 %v5965, %v5965
    %v6014 = vmul.f32 %v5966, %v5966
    %v6015 = vmul.f32 %v5967, %v5967
    %v6016 = vmul.f32 %v5968, %v5968
    %v6017 = vsub.f32 %v6001, %v6009
    %v6018 = vsub.f32 %v6002, %v6010
    %v6019 = vsub.f32 %v6003, %v6011
    %v6020 = vsub.f32 %v6004, %v6012
    %v6021 = vsub.f32 %v6005, %v6013
    %v6022 = vsub.f32 %v6006, %v6014
    %v6023 = vsub.f32 %v6007, %v6015
    %v6024 = vsub.f32 %v6008, %v6016
    %v6025 = vsub.f32 %v5929, %v5961
    %v6026 = vsub.f32 %v5930, %v5962
    %v6027 = vsub.f32 %v5931, %v5963
    %v6028 = vsub.f32 %v5932, %v5964
    %v6029 = vsub.f32 %v5933, %v5965
    %v6030 = vsub.f32 %v5934, %v5966
    %v6031 = vsub.f32 %v5935, %v5967
    %v6032 = vsub.f32 %v5936, %v5968
    %v6033 = vadd.f32 %v6017, 1e-05
    %v6034 = vadd.f32 %v6018, 1e-05
    %v6035 = vadd.f32 %v6019, 1e-05
    %v6036 = vadd.f32 %v6020, 1e-05
    %v6037 = vadd.f32 %v6021, 1e-05
    %v6038 = vadd.f32 %v6022, 1e-05
    %v6039 = vadd.f32 %v6023, 1e-05
    %v6040 = vadd.f32 %v6024, 1e-05
    %v6041 = vrsqrt.pop %v6033
    %v6042 = vrsqrt.pop %v6034
    %v6043 = vrsqrt.pop %v6035
    %v6044 = vrsqrt.pop %v6036
    %v6045 = vrsqrt.pop %v6037
    %v6046 = vrsqrt.pop %v6038
    %v6047 = vrsqrt.pop %v6039
    %v6048 = vrsqrt.pop %v6040
    %v6049 = vmul.f32 %v6025, %v6041
    %v6050 = vmul.f32 %v6026, %v6042
    %v6051 = vmul.f32 %v6027, %v6043
    %v6052 = vmul.f32 %v6028, %v6044
    %v6053 = vmul.f32 %v6029, %v6045
    %v6054 = vmul.f32 %v6030, %v6046
    %v6055 = vmul.f32 %v6031, %v6047
    %v6056 = vmul.f32 %v6032, %v6048
    %v6057 = vld [vmem:[#allocation5 + $0x8] sm:$0xff]
    %v6058 = vld [vmem:[#allocation5 + $0x18] sm:$0xff]
    %v6059 = vld [vmem:[#allocation5 + $0x28] sm:$0xff]
    %v6060 = vld [vmem:[#allocation5 + $0x38] sm:$0xff]
    %v6061 = vlaneseq
    %v6062 = vshrl.u32 %v6061, 7
    %v6063 = vsub.s32 0, %v6062
    %v6064 = vrot.slane %v81, %v6063
    %v6066 = vsel %vm83, %v6049, 0
    %v6069 = vsel %vm83, %v6050, 0
    %v6072 = vsel %vm83, %v6051, 0
    %v6075 = vsel %vm83, %v6052, 0
    %v6078 = vsel %vm83, %v6053, 0
    %v6081 = vsel %vm83, %v6054, 0
    %v6084 = vsel %vm83, %v6055, 0
    %v6087 = vsel %vm83, %v6056, 0
    %6089 = vmatprep.subr.mxu0 0.0
    %6090 = vmatpush1.msra.mxu0 %v6057
    %6091 = vmatprep.subr.mxu0 0.0
    %6092 = vmatpush1.msra.mxu0 %v6058
    %6093 = vmatprep.subr.mxu0 0.0
    %6094 = vmatpush1.msra.mxu0 %v6059
    %6095 = vmatprep.subr.mxu0 0.0
    %6096 = vmatpush1.msra.mxu0 %v6060
    %6097 = vmatprep.subr.mxu0 0.0
    %6098 = vmatpush1.msra.mxu0 0.0
    %6099 = vmatprep.subr.mxu0 0.0
    %6100 = vmatpush1.msra.mxu0 0.0
    %6101 = vmatprep.subr.mxu0 0.0
    %6102 = vmatpush1.msra.mxu0 0.0
    %6103 = vmatprep.subr.mxu0 0.0
    %6104 = vmatpush1.msra.mxu0 0.0
    %6105 = vmatprep.subr.mxu0 0.0
    %6106 = vmatpush1.msra.mxu0 0.0
    %6107 = vmatprep.subr.mxu0 0.0
    %6108 = vmatpush1.msra.mxu0 0.0
    %6109 = vmatprep.subr.mxu0 0.0
    %6110 = vmatpush1.msra.mxu0 0.0
    %6111 = vmatprep.subr.mxu0 0.0
    %6112 = vmatpush1.msra.mxu0 0.0
    %6113 = vmatprep.subr.mxu0 0.0
    %6114 = vmatpush1.msra.mxu0 0.0
    %6115 = vmatprep.subr.mxu0 0.0
    %6116 = vmatpush1.msra.mxu0 0.0
    %6117 = vmatprep.subr.mxu0 0.0
    %6118 = vmatpush1.msra.mxu0 0.0
    %6119 = vmatprep.subr.mxu0 0.0
    %6120 = vmatpush1.msra.mxu0 0.0
    %6121 = vmatprep.subr.mxu0 0.0
    %6122 = vmatpush1.msra.mxu0 0.0
    %6123 = vmatprep.subr.mxu0 0.0
    %6124 = vmatpush1.msra.mxu0 0.0
    %6125 = vmatprep.subr.mxu0 0.0
    %6126 = vmatpush1.msra.mxu0 0.0
    %6127 = vmatprep.subr.mxu0 0.0
    %6128 = vmatpush1.msra.mxu0 0.0
    %6129 = vmatprep.subr.mxu0 0.0
    %6130 = vmatpush1.msra.mxu0 0.0
    %6131 = vmatprep.subr.mxu0 0.0
    %6132 = vmatpush1.msra.mxu0 0.0
    %6133 = vmatprep.subr.mxu0 0.0
    %6134 = vmatpush1.msra.mxu0 0.0
    %6135 = vmatprep.subr.mxu0 0.0
    %6136 = vmatpush1.msra.mxu0 0.0
    %6137 = vmatprep.subr.mxu0 0.0
    %6138 = vmatpush1.msra.mxu0 0.0
    %6139 = vmatprep.subr.mxu0 0.0
    %6140 = vmatpush1.msra.mxu0 0.0
    %6141 = vmatprep.subr.mxu0 0.0
    %6142 = vmatpush1.msra.mxu0 0.0
    %6143 = vmatprep.subr.mxu0 0.0
    %6144 = vmatpush1.msra.mxu0 0.0
    %6145 = vmatprep.subr.mxu0 0.0
    %6146 = vmatpush1.msra.mxu0 0.0
    %6147 = vmatprep.subr.mxu0 0.0
    %6148 = vmatpush1.msra.mxu0 0.0
    %6149 = vmatprep.subr.mxu0 0.0
    %6150 = vmatpush1.msra.mxu0 0.0
    %6151 = vmatprep.subr.mxu0 0.0
    %6152 = vmatpush1.msra.mxu0 0.0
    %6153 = vmatprep.mubr.f32.mxu0 0.0
    %6154 = vmatmul.mubr.f32.gmra.mrb[0].mxu0 %v6066
    %v6155 = vpop.f32.mrb[0].mxu0
    %v6156 = vadd.f32 %v6064, %v6155
    %v6157 = vpop.f32.mrb[0].mxu0
    %6158 = vmatprep.mubr.f32.mxu0 0.0
    %6159 = vmatmul.mubr.f32.gmra.mrb[0].mxu0 %v6069
    %v6160 = vpop.f32.mrb[0].mxu0
    %v6161 = vadd.f32 %v6064, %v6160
    %v6162 = vpop.f32.mrb[0].mxu0
    %6163 = vmatprep.mubr.f32.mxu0 0.0
    %6164 = vmatmul.mubr.f32.gmra.mrb[0].mxu0 %v6072
    %v6165 = vpop.f32.mrb[0].mxu0
    %v6166 = vadd.f32 %v6064, %v6165
    %v6167 = vpop.f32.mrb[0].mxu0
    %6168 = vmatprep.mubr.f32.mxu0 0.0
    %6169 = vmatmul.mubr.f32.gmra.mrb[0].mxu0 %v6075
    %v6170 = vpop.f32.mrb[0].mxu0
    %v6171 = vadd.f32 %v6064, %v6170
    %v6172 = vpop.f32.mrb[0].mxu0
    %6173 = vmatprep.mubr.f32.mxu0 0.0
    %6174 = vmatmul.mubr.f32.gmra.mrb[0].mxu0 %v6078
    %v6175 = vpop.f32.mrb[0].mxu0
    %v6176 = vadd.f32 %v6064, %v6175
    %v6177 = vpop.f32.mrb[0].mxu0
    %6178 = vmatprep.mubr.f32.mxu0 0.0
    %6179 = vmatmul.mubr.f32.gmra.mrb[0].mxu0 %v6081
    %v6180 = vpop.f32.mrb[0].mxu0
    %v6181 = vadd.f32 %v6064, %v6180
    %v6182 = vpop.f32.mrb[0].mxu0
    %6183 = vmatprep.mubr.f32.mxu0 0.0
    %6184 = vmatmul.mubr.f32.gmra.mrb[0].mxu0 %v6084
    %v6185 = vpop.f32.mrb[0].mxu0
    %v6186 = vadd.f32 %v6064, %v6185
    %v6187 = vpop.f32.mrb[0].mxu0
    %6188 = vmatprep.mubr.f32.mxu0 0.0
    %6189 = vmatmul.mubr.f32.gmra.mrb[0].mxu0 %v6087
    %v6190 = vpop.f32.mrb[0].mxu0
    %v6191 = vadd.f32 %v6064, %v6190
    %v6192 = vpop.f32.mrb[0].mxu0
    %6193 = vdwg.mxu0
    %v6194 = vmax.f32 %v6156, 0.0
    %v6195 = vmax.f32 %v6161, 0.0
    %v6196 = vmax.f32 %v6166, 0.0
    %v6197 = vmax.f32 %v6171, 0.0
    %v6198 = vmax.f32 %v6176, 0.0
    %v6199 = vmax.f32 %v6181, 0.0
    %v6200 = vmax.f32 %v6186, 0.0
    %v6201 = vmax.f32 %v6191, 0.0
    %v6202 = vld [vmem:[#allocation7] sm:$0xff]
    %v6203 = vld [vmem:[#allocation7 + $0x8] sm:$0xff]
    %v6204 = vld [vmem:[#allocation7 + $0x10] sm:$0xff]
    %v6205 = vld [vmem:[#allocation7 + $0x18] sm:$0xff]
    %v6206 = vld [vmem:[#allocation7 + $0x20] sm:$0xff]
    %v6207 = vld [vmem:[#allocation7 + $0x28] sm:$0xff]
    %v6208 = vld [vmem:[#allocation7 + $0x30] sm:$0xff]
    %v6209 = vld [vmem:[#allocation7 + $0x38] sm:$0xff]
    %v6210 = vld [vmem:[#allocation7 + $0x40] sm:$0xff]
    %v6211 = vld [vmem:[#allocation7 + $0x48] sm:$0xff]
    %v6212 = vld [vmem:[#allocation7 + $0x50] sm:$0xff]
    %v6213 = vld [vmem:[#allocation7 + $0x58] sm:$0xff]
    %v6214 = vld [vmem:[#allocation7 + $0x60] sm:$0xff]
    %v6215 = vld [vmem:[#allocation7 + $0x68] sm:$0xff]
    %v6216 = vld [vmem:[#allocation7 + $0x70] sm:$0xff]
    %v6217 = vld [vmem:[#allocation7 + $0x78] sm:$0xff]
    %v6218 = vlaneseq
    %v6219 = vshrl.u32 %v6218, 7
    %v6220 = vsub.s32 0, %v6219
    %v6221 = vrot.slane %v82, %v6220
    %6222 = vmatprep.subr.mxu0 0.0
    %6223 = vmatpush1.msra.mxu0 %v6202
    %6224 = vmatprep.subr.mxu0 0.0
    %6225 = vmatpush1.msra.mxu0 %v6203
    %6226 = vmatprep.subr.mxu0 0.0
    %6227 = vmatpush1.msra.mxu0 %v6204
    %6228 = vmatprep.subr.mxu0 0.0
    %6229 = vmatpush1.msra.mxu0 %v6205
    %6230 = vmatprep.subr.mxu0 0.0
    %6231 = vmatpush1.msra.mxu0 %v6206
    %6232 = vmatprep.subr.mxu0 0.0
    %6233 = vmatpush1.msra.mxu0 %v6207
    %6234 = vmatprep.subr.mxu0 0.0
    %6235 = vmatpush1.msra.mxu0 %v6208
    %6236 = vmatprep.subr.mxu0 0.0
    %6237 = vmatpush1.msra.mxu0 %v6209
    %6238 = vmatprep.subr.mxu0 0.0
    %6239 = vmatpush1.msra.mxu0 %v6210
    %6240 = vmatprep.subr.mxu0 0.0
    %6241 = vmatpush1.msra.mxu0 %v6211
    %6242 = vmatprep.subr.mxu0 0.0
    %6243 = vmatpush1.msra.mxu0 %v6212
    %6244 = vmatprep.subr.mxu0 0.0
    %6245 = vmatpush1.msra.mxu0 %v6213
    %6246 = vmatprep.subr.mxu0 0.0
    %6247 = vmatpush1.msra.mxu0 %v6214
    %6248 = vmatprep.subr.mxu0 0.0
    %6249 = vmatpush1.msra.mxu0 %v6215
    %6250 = vmatprep.subr.mxu0 0.0
    %6251 = vmatpush1.msra.mxu0 %v6216
    %6252 = vmatprep.subr.mxu0 0.0
    %6253 = vmatpush1.msra.mxu0 %v6217
    %6254 = vmatprep.subr.mxu0 0.0
    %6255 = vmatpush1.msra.mxu0 0.0
    %6256 = vmatprep.subr.mxu0 0.0
    %6257 = vmatpush1.msra.mxu0 0.0
    %6258 = vmatprep.subr.mxu0 0.0
    %6259 = vmatpush1.msra.mxu0 0.0
    %6260 = vmatprep.subr.mxu0 0.0
    %6261 = vmatpush1.msra.mxu0 0.0
    %6262 = vmatprep.subr.mxu0 0.0
    %6263 = vmatpush1.msra.mxu0 0.0
    %6264 = vmatprep.subr.mxu0 0.0
    %6265 = vmatpush1.msra.mxu0 0.0
    %6266 = vmatprep.subr.mxu0 0.0
    %6267 = vmatpush1.msra.mxu0 0.0
    %6268 = vmatprep.subr.mxu0 0.0
    %6269 = vmatpush1.msra.mxu0 0.0
    %6270 = vmatprep.subr.mxu0 0.0
    %6271 = vmatpush1.msra.mxu0 0.0
    %6272 = vmatprep.subr.mxu0 0.0
    %6273 = vmatpush1.msra.mxu0 0.0
    %6274 = vmatprep.subr.mxu0 0.0
    %6275 = vmatpush1.msra.mxu0 0.0
    %6276 = vmatprep.subr.mxu0 0.0
    %6277 = vmatpush1.msra.mxu0 0.0
    %6278 = vmatprep.subr.mxu0 0.0
    %6279 = vmatpush1.msra.mxu0 0.0
    %6280 = vmatprep.subr.mxu0 0.0
    %6281 = vmatpush1.msra.mxu0 0.0
    %6282 = vmatprep.subr.mxu0 0.0
    %6283 = vmatpush1.msra.mxu0 0.0
    %6284 = vmatprep.subr.mxu0 0.0
    %6285 = vmatpush1.msra.mxu0 0.0
    %6286 = vmatprep.mubr.f32.mxu0 0.0
    %6287 = vmatmul.mubr.f32.gmra.mrb[0].mxu0 %v6194
    %v6288 = vpop.f32.mrb[0].mxu0
    %v6289 = vadd.f32 %v6221, %v6288
    %v6290 = vpop.f32.mrb[0].mxu0
    %6291 = vmatprep.mubr.f32.mxu0 0.0
    %6292 = vmatmul.mubr.f32.gmra.mrb[0].mxu0 %v6195
    %v6293 = vpop.f32.mrb[0].mxu0
    %v6294 = vadd.f32 %v6221, %v6293
    %v6295 = vpop.f32.mrb[0].mxu0
    %6296 = vmatprep.mubr.f32.mxu0 0.0
    %6297 = vmatmul.mubr.f32.gmra.mrb[0].mxu0 %v6196
    %v6298 = vpop.f32.mrb[0].mxu0
    %v6299 = vadd.f32 %v6221, %v6298
    %v6300 = vpop.f32.mrb[0].mxu0
    %6301 = vmatprep.mubr.f32.mxu0 0.0
    %6302 = vmatmul.mubr.f32.gmra.mrb[0].mxu0 %v6197
    %v6303 = vpop.f32.mrb[0].mxu0
    %v6304 = vadd.f32 %v6221, %v6303
    %v6305 = vpop.f32.mrb[0].mxu0
    %6306 = vmatprep.mubr.f32.mxu0 0.0
    %6307 = vmatmul.mubr.f32.gmra.mrb[0].mxu0 %v6198
    %v6308 = vpop.f32.mrb[0].mxu0
    %v6309 = vadd.f32 %v6221, %v6308
    %v6310 = vpop.f32.mrb[0].mxu0
    %6311 = vmatprep.mubr.f32.mxu0 0.0
    %6312 = vmatmul.mubr.f32.gmra.mrb[0].mxu0 %v6199
    %v6313 = vpop.f32.mrb[0].mxu0
    %v6314 = vadd.f32 %v6221, %v6313
    %v6315 = vpop.f32.mrb[0].mxu0
    %6316 = vmatprep.mubr.f32.mxu0 0.0
    %6317 = vmatmul.mubr.f32.gmra.mrb[0].mxu0 %v6200
    %v6318 = vpop.f32.mrb[0].mxu0
    %v6319 = vadd.f32 %v6221, %v6318
    %v6320 = vpop.f32.mrb[0].mxu0
    %6321 = vmatprep.mubr.f32.mxu0 0.0
    %6322 = vmatmul.mubr.f32.gmra.mrb[0].mxu0 %v6201
    %v6323 = vpop.f32.mrb[0].mxu0
    %v6324 = vadd.f32 %v6221, %v6323
    %v6325 = vpop.f32.mrb[0].mxu0
    %6326 = vdwg.mxu0
    %v6327 = vadd.f32 %v5929, %v6289
    %v6328 = vadd.f32 %v5930, %v6294
    %v6329 = vadd.f32 %v5931, %v6299
    %v6330 = vadd.f32 %v5932, %v6304
    %v6331 = vadd.f32 %v5933, %v6309
    %v6332 = vadd.f32 %v5934, %v6314
    %v6333 = vadd.f32 %v5935, %v6319
    %v6334 = vadd.f32 %v5936, %v6324
    %6335 = vst.msk [vmem:[#allocation10] sm:$0xff] %vm83, %v6327
    %6336 = vst.msk [vmem:[#allocation10 + $0x8] sm:$0xff] %vm83, %v6328
    %6337 = vst.msk [vmem:[#allocation10 + $0x10] sm:$0xff] %vm83, %v6329
    %6338 = vst.msk [vmem:[#allocation10 + $0x18] sm:$0xff] %vm83, %v6330
    %6339 = vst.msk [vmem:[#allocation10 + $0x20] sm:$0xff] %vm83, %v6331
    %6340 = vst.msk [vmem:[#allocation10 + $0x28] sm:$0xff] %vm83, %v6332
    %6341 = vst.msk [vmem:[#allocation10 + $0x30] sm:$0xff] %vm83, %v6333
    %6342 = vst.msk [vmem:[#allocation10 + $0x38] sm:$0xff] %vm83, %v6334
    // Predicated region
    $region34: #{_run.1} parent=1 // pred_check
      _
    $region35: #{_run.1} parent=1 // pred_check_branch
      %6344 = sbr.rel (0) target = $region37
    $region36: #{_run.1} parent=1 // pred_region
      %s6346 = ssub.s32 1024, 1024
      %6347 = vsyncadd [#allocation4], %s6346
      %s6348 = sshll.u32 [#allocation10], 4
      %s6349 = int_to_ptr.vmem [resolvable:$true] %s6348
      %6354 = dma.vmem_to_hbm [thread:$0]  %s6349, 1024, %s4, [#allocation4], 128, 128, 8
    $region37: #{_run.1} parent=1 // pred_fallthru
      _
    // Predicated region
    $region38: #{_run.1} parent=1 // pred_check
      _
    $region39: #{_run.1} parent=1 // pred_check_branch
      %6356 = sbr.rel (0) target = $region41
    $region40: #{_run.1} parent=1 // pred_region
      %6357 = dma.done [#allocation4], 1024
    $region41: #{_run.1} parent=1 // pred_fallthru
      _
    %6358 = vsyncpa [#allocation3], 1
    %6359 = vsyncpa [#allocation6], 1
    %6360 = vsyncpa [#allocation9], 1
    %6361 = vsyncpa [#allocation4], 1

</llo_original>
